<compile_context>
chip_gen: v7x
topology: tpu7x:2x2x1
jax: 0.10.0
libtpu: 0.0.40
codegen_flags: <defaults>
</compile_context>

<pallas_src>
import jax
import jax.numpy as jnp
from jax.experimental import pallas as pl
from jax.experimental.pallas import tpu as pltpu

_EPS = 1e-5  # PyTorch BatchNorm2d default eps
_TAPS = tuple((dy, dx) for dy in range(3) for dx in range(3))


def _fold_bn(bnp):
    # Inference-mode folded BatchNorm (running stats).
    scale = bnp["gamma"] / jnp.sqrt(bnp["var"] + _EPS)
    bias = bnp["beta"] - bnp["mean"] * scale
    return scale, bias


def _make_kernel(*, BH, Wo, Hq, Cin, C, stride, nb, projection, cdtype):
    """Statically specialized kernel: identity vs. projection shortcut."""
    s = stride
    Mh = (BH + 2) * Wo          # conv1 rows per band incl. 1-row halo each side
    M2 = BH * Wo
    f32 = jnp.float32

    def body(x_ref, w1_ref, w2_ref, sb_ref, out_ref, mid_s, wsc_ref=None):
        b = pl.program_id(1)
        sb = sb_ref[...]                       # (k, C) f32: s1,b1,s2,b2[,ssc,bsc]

        # ---- conv1 (3x3 / stride / pad=1) over band + halo: 9 per-tap matmuls ----
        # Input is padded + parity-planed in the wrapper, so every tap is a
        # contiguous slice of the resident input block (no strided reads).
        acc1 = None
        for t, (dy, dx) in enumerate(_TAPS):
            qy, ry = divmod(dy, s)
            qx, rx = divmod(dx, s)
            row0 = (ry * s + rx) * Hq + qy + b * BH
            tap = x_ref[0, pl.ds(row0, BH + 2), pl.ds(qx, Wo), :]
            p = jnp.dot(tap.reshape(Mh, Cin), w1_ref[t],
                        preferred_element_type=f32)
            acc1 = p if acc1 is None else acc1 + p
        out1 = jnp.maximum(acc1 * sb[0:1] + sb[1:2], 0.0)       # BN1 + ReLU (f32)

        # ---- stage conv1 band (+halo) with conv2's zero padding in VMEM ----
        mid_s[:, 1:Wo + 1, :] = out1.reshape(BH + 2, Wo, C).astype(cdtype)
        zcol = jnp.zeros((BH + 2, 1, C), cdtype)
        mid_s[:, 0:1, :] = zcol
        mid_s[:, Wo + 1:Wo + 2, :] = zcol

        @pl.when(b == 0)                       # top halo row is image padding
        def _():
            mid_s[0:1, :, :] = jnp.zeros((1, Wo + 2, C), cdtype)

        @pl.when(b == nb - 1)                  # bottom halo row is image padding
        def _():
            mid_s[BH + 1:BH + 2, :, :] = jnp.zeros((1, Wo + 2, C), cdtype)

        # ---- conv2 (3x3 / stride=1 / pad=1): 9 per-tap matmuls, f32 acc ----
        acc2 = None
        for t, (dy, dx) in enumerate(_TAPS):
            tap = mid_s[dy:dy + BH, dx:dx + Wo, :]
            p = jnp.dot(tap.reshape(M2, C), w2_ref[t],
                        preferred_element_type=f32)
            acc2 = p if acc2 is None else acc2 + p
        out2 = acc2 * sb[2:3] + sb[3:4]                          # BN2 (f32)

        # ---- shortcut from the already-resident input block ----
        sc_plane = (1 % s) * s + (1 % s)
        sc_i0 = sc_plane * Hq + 1 + (1 // s) + b * BH
        sc_j0 = 1 // s
        xs = x_ref[0, pl.ds(sc_i0, BH), pl.ds(sc_j0, Wo), :]
        if projection:
            sc = jnp.dot(xs.reshape(M2, Cin), wsc_ref[...],
                         preferred_element_type=f32)
            sc = sc * sb[4:5] + sb[5:6]
        else:
            sc = xs.reshape(M2, C).astype(f32)   # identity: plain residual add

        out_ref[0] = jnp.maximum(out2 + sc, 0.0).reshape(BH, Wo, C).astype(out_ref.dtype)

    if projection:
        def kernel(x_ref, w1_ref, w2_ref, wsc_ref, sb_ref, out_ref, mid_s):
            body(x_ref, w1_ref, w2_ref, sb_ref, out_ref, mid_s, wsc_ref)
    else:
        def kernel(x_ref, w1_ref, w2_ref, sb_ref, out_ref, mid_s):
            body(x_ref, w1_ref, w2_ref, sb_ref, out_ref, mid_s)
    return kernel


def basic_block_pallas(x_nchw, params, stride=1, compute_dtype=jnp.bfloat16,
                       out_dtype=None, band_rows=None):
    s = int(stride)
    out_dtype = compute_dtype if out_dtype is None else out_dtype
    x = jnp.transpose(x_nchw, (0, 2, 3, 1)).astype(compute_dtype)       # NHWC
    N, H, W, Cin = x.shape
    C = params["w1"].shape[0]
    Ho = (H - 1) // s + 1
    Wo = (W - 1) // s + 1
    projection = (s != 1) or (Cin != C)

    # ---- generous zero padding so the band-halo conv1 never reads OOB ----
    pt = s + 1
    pb = max(1, Ho * s + 2 - H)
    pleft = 1
    pr = max(1, (Wo - 1) * s + 3 - (1 + W))
    Hp, Wp = pt + H + pb, pleft + W + pr
    pb += (-Hp) % s; Hp += (-Hp) % s          # make divisible by stride
    pr += (-Wp) % s; Wp += (-Wp) % s
    Hq, Wq = Hp // s, Wp // s
    xpad = jnp.pad(x, ((0, 0), (pt, pb), (pleft, pr), (0, 0)))
    # parity planes: xq[n, (ry*s+rx)*Hq + i, j, c] == xpad[n, i*s+ry, j*s+rx, c]
    xq = xpad.reshape(N, Hq, s, Wq, s, Cin).transpose(0, 2, 4, 1, 3, 5)
    xq = xq.reshape(N, s * s * Hq, Wq, Cin)
    PHq = s * s * Hq

    # ---- band size: largest divisor of Ho within a per-band VMEM budget ----
    it = jnp.dtype(compute_dtype).itemsize
    oit = jnp.dtype(out_dtype).itemsize

    def band_bytes(d):
        return ((d + 2) * (Wo + 2) * C * it        # mid scratch
                + 2 * (d + 2) * Wo * C * 4         # f32 accumulators (estimate)
                + 2 * d * Wo * C * oit)            # double-buffered output block

    divisors = [d for d in range(1, Ho + 1) if Ho % d == 0]
    if band_rows is None:
        BH = divisors[0]
        for d in divisors:
            if band_bytes(d) <= (6 << 20):
                BH = d
    else:
        BH = max(d for d in divisors if d <= max(1, int(band_rows)))
    nb = Ho // BH

    # ---- weights in per-tap layout; BN scale/bias packed into one array ----
    w1 = jnp.transpose(params["w1"], (2, 3, 1, 0)).reshape(9, Cin, C).astype(compute_dtype)
    w2 = jnp.transpose(params["w2"], (2, 3, 1, 0)).reshape(9, C, C).astype(compute_dtype)
    s1, b1 = _fold_bn(params["bn1"])
    s2, b2 = _fold_bn(params["bn2"])
    sb_rows = [s1, b1, s2, b2]
    inputs = [xq, w1, w2]
    if projection:
        wsc = params["wsc"][:, :, 0, 0].T.astype(compute_dtype)          # (Cin, C)
        ssc, bsc = _fold_bn(params["bn_sc"])
        sb_rows += [ssc, bsc]
        inputs.append(wsc)
    sb = jnp.stack(sb_rows).astype(jnp.float32)                          # (k, C)
    inputs.append(sb)
    k_sb = len(sb_rows)

    kernel = _make_kernel(BH=BH, Wo=Wo, Hq=Hq, Cin=Cin, C=C, stride=s,
                          nb=nb, projection=projection, cdtype=compute_dtype)

    flops = N * nb * ((BH + 2) * Wo * 18 * Cin * C + BH * Wo * 18 * C * C
                      + (BH * Wo * 2 * Cin * C if projection else 0))
    w_bytes = (9 * Cin * C + 9 * C * C + (Cin * C if projection else 0)) * it + k_sb * C * 4
    bytes_acc = N * PHq * Wq * Cin * it + w_bytes + N * Ho * Wo * C * oit
    cost = pl.CostEstimate(flops=int(flops), transcendentals=0,
                           bytes_accessed=int(bytes_acc))

    # ---- per-generation VMEM limit (capped by the detected chip capacity) ----
    need = 2 * PHq * Wq * Cin * it + 2 * BH * Wo * C * oit + 2 * w_bytes + band_bytes(BH)
    try:
        cap = int(pltpu.get_tpu_info().vmem_capacity_bytes * 0.85)
    except Exception:
        cap = 96 << 20
    vmem_limit = int(min(max(int(need * 1.5), 24 << 20), cap))

    def run(single_buffer_weights):
        wmode = ({"pipeline_mode": pl.Buffered(1)} if single_buffer_weights else {})
        in_specs = [
            pl.BlockSpec((1, PHq, Wq, Cin), lambda n, b: (n, 0, 0, 0)),
            pl.BlockSpec((9, Cin, C), lambda n, b: (0, 0, 0), **wmode),
            pl.BlockSpec((9, C, C), lambda n, b: (0, 0, 0), **wmode),
        ]
        if projection:
            in_specs.append(pl.BlockSpec((Cin, C), lambda n, b: (0, 0), **wmode))
        in_specs.append(pl.BlockSpec((k_sb, C), lambda n, b: (0, 0), **wmode))
        return pl.pallas_call(
            kernel,
            out_shape=jax.ShapeDtypeStruct((N, Ho, Wo, C), out_dtype),
            grid_spec=pltpu.PrefetchScalarGridSpec(
                num_scalar_prefetch=0,
                grid=(N, nb),
                in_specs=in_specs,
                out_specs=pl.BlockSpec((1, BH, Wo, C), lambda n, b: (n, b, 0, 0)),
                scratch_shapes=[pltpu.VMEM((BH + 2, Wo + 2, C), compute_dtype)],
            ),
            compiler_params=pltpu.CompilerParams(
                dimension_semantics=("parallel", "parallel"),
                vmem_limit_bytes=vmem_limit),
            cost_estimate=cost,
        )(*inputs)

    try:
        out = run(True)          # single-buffer the grid-invariant weights
    except Exception:
        out = run(False)         # fallback if Buffered(1) is rejected

    return jnp.transpose(out, (0, 3, 1, 2))                              # NCHW


# ----------------------- pure-JAX reference (NCHW) -------------------------
def basic_block_ref(x, params, stride=1, compute_dtype=jnp.float32):
    """Reference. `compute_dtype` applies the same input/weight quantization the
    kernel's MXU path uses (math stays f32), so the check isolates kernel bugs
    from the deliberate bf16-input tradeoff."""
    q = lambda a: a.astype(compute_dtype).astype(jnp.float32)

    def conv(x, w, s, pad):
        return jax.lax.conv_general_dilated(
            q(x), q(w), (s, s), [(pad, pad), (pad, pad)],
            dimension_numbers=("NCHW", "OIHW", "NCHW"),
            precision=jax.lax.Precision.HIGHEST)

    def bn(x, bnp):
        scale, bias = _fold_bn(bnp)
        return x * scale[None, :, None, None] + bias[None, :, None, None]

    out = jax.nn.relu(bn(conv(x, params["w1"], stride, 1), params["bn1"]))
    out = bn(conv(out, params["w2"], 1, 1), params["bn2"])
    if "wsc" in params:
        sc = bn(conv(x, params["wsc"], stride, 0), params["bn_sc"])
    else:
        sc = q(x)
    return jax.nn.relu(out + sc)


def _init_params(key, in_planes, planes, stride):
    ks = jax.random.split(key, 6)

    def bn_params(k):
        k1, k2, k3, k4 = jax.random.split(k, 4)
        return {
            "gamma": jax.random.uniform(k1, (planes,), jnp.float32, 0.5, 1.5),
            "beta": 0.1 * jax.random.normal(k2, (planes,), jnp.float32),
            "mean": 0.1 * jax.random.normal(k3, (planes,), jnp.float32),
            "var": jax.random.uniform(k4, (planes,), jnp.float32, 0.5, 1.5),
        }

    p = {
        "w1": jax.random.normal(ks[0], (planes, in_planes, 3, 3), jnp.float32)
        * (2.0 / (9 * in_planes)) ** 0.5,
        "w2": jax.random.normal(ks[1], (planes, planes, 3, 3), jnp.float32)
        * (2.0 / (9 * planes)) ** 0.5,
        "bn1": bn_params(ks[2]),
        "bn2": bn_params(ks[3]),
    }
    if stride != 1 or in_planes != planes:
        p["wsc"] = jax.random.normal(ks[4], (planes, in_planes, 1, 1), jnp.float32) \
            * (2.0 / in_planes) ** 0.5
        p["bn_sc"] = bn_params(ks[5])
    return p


if __name__ == "__main__":
    key = jax.random.PRNGKey(0)
    kx1, kx2, kx3, kp1, kp2, kp3 = jax.random.split(key, 6)
    cdt = jnp.bfloat16          # MXU-native input dtype; accumulation stays f32

    def check(x, params, stride, band_rows=None):
        out = jax.block_until_ready(
            basic_block_pallas(x, params, stride, cdt, band_rows=band_rows))
        ref = jax.block_until_ready(basic_block_ref(x, params, stride, cdt))
        assert out.shape == ref.shape, (out.shape, ref.shape)
        o = out.astype(jnp.float32)
        err = float(jnp.max(jnp.abs(o - ref)))
        assert jnp.allclose(o, ref, atol=2e-2, rtol=2e-2), f"max abs err {err}"

    N, H, W = 2, 16, 16

    # 1) identity shortcut: 8 -> 8, stride 1, 4 row-bands (exercises halo logic)
    x1 = jax.random.normal(kx1, (N, 8, H, W), jnp.float32)    # NCHW, like PyTorch
    check(x1, _init_params(kp1, 8, 8, 1), 1, band_rows=4)

    # 2) projection shortcut: channel change 4 -> 8 (1x1 conv + BN), auto band size
    x2 = jax.random.normal(kx2, (N, 4, H, W), jnp.float32)
    check(x2, _init_params(kp2, 4, 8, 1), 1)

    # 3) downsampling projection block: 8 -> 16, stride 2 (parity-plane path), 2 bands
    x3 = jax.random.normal(kx3, (N, 8, H, W), jnp.float32)
    check(x3, _init_params(kp3, 8, 16, 2), 2, band_rows=4)

    print("KERNEL_OK")
</pallas_src>

<mosaic_0001>
module attributes {stable_mosaic.version = 11 : i64} {
  func.func @kernel(%arg0: i32, %arg1: i32, %arg2: memref<1x20x18x8xbf16, #tpu.memory_space<vmem>>, %arg3: memref<9x8x8xbf16, #tpu.memory_space<vmem>>, %arg4: memref<9x8x8xbf16, #tpu.memory_space<vmem>>, %arg5: memref<4x8xf32, #tpu.memory_space<vmem>>, %arg6: memref<1x4x16x8xbf16, #tpu.memory_space<vmem>>, %arg7: memref<6x18x8xbf16, #tpu.memory_space<vmem>>) attributes {dimension_semantics = [#tpu.dimension_semantics<parallel>, #tpu.dimension_semantics<parallel>], iteration_bounds = array<i64: 2, 4>, scalar_prefetch = 0 : i64, scratch_operands = 1 : i64, tpu.core_type = #tpu.core_type<tc>, window_params = [{transform_indices = @transform_0, window_bounds = array<i64: 1, 20, 18, 8>}, {pipeline_mode = #tpu.pipeline_mode<synchronous>, transform_indices = @transform_1, window_bounds = array<i64: 9, 8, 8>}, {pipeline_mode = #tpu.pipeline_mode<synchronous>, transform_indices = @transform_2, window_bounds = array<i64: 9, 8, 8>}, {pipeline_mode = #tpu.pipeline_mode<synchronous>, transform_indices = @transform_3, window_bounds = array<i64: 4, 8>}, {transform_indices = @transform_4, window_bounds = array<i64: 1, 4, 16, 8>}]} {
    %c0 = arith.constant 0 : index
    %c0_0 = arith.constant 0 : index
    %0 = vector.load %arg5[%c0, %c0_0] : memref<4x8xf32, #tpu.memory_space<vmem>>, vector<4x8xf32>
    %c4_i32 = arith.constant 4 : i32
    %1 = arith.muli %arg1, %c4_i32 : i32
    %c0_i32 = arith.constant 0 : i32
    %2 = arith.addi %c0_i32, %1 : i32
    %c0_1 = arith.constant 0 : index
    %3 = arith.index_cast %2 : i32 to index
    %c0_2 = arith.constant 0 : index
    %c0_3 = arith.constant 0 : index
    %4 = vector.load %arg2[%c0_1, %3, %c0_2, %c0_3] : memref<1x20x18x8xbf16, #tpu.memory_space<vmem>>, vector<1x6x16x8xbf16>
    %5 = vector.shape_cast %4 : vector<1x6x16x8xbf16> to vector<6x16x8xbf16>
    %6 = vector.shape_cast %5 : vector<6x16x8xbf16> to vector<96x8xbf16>
    %c0_4 = arith.constant 0 : index
    %c0_5 = arith.constant 0 : index
    %c0_6 = arith.constant 0 : index
    %7 = vector.load %arg3[%c0_4, %c0_5, %c0_6] : memref<9x8x8xbf16, #tpu.memory_space<vmem>>, vector<1x8x8xbf16>
    %8 = vector.shape_cast %7 : vector<1x8x8xbf16> to vector<8x8xbf16>
    %cst = arith.constant dense<0.000000e+00> : vector<96x8xf32>
    %9 = tpu.matmul %6, %8, %cst {dimension_numbers = #tpu.dot_dimension_numbers<[1], [0], [0], [1], [0, 0, 1, 1], [], []>} : vector<96x8xbf16>, vector<8x8xbf16>, vector<96x8xf32> -> vector<96x8xf32>
    %c4_i32_7 = arith.constant 4 : i32
    %10 = arith.muli %arg1, %c4_i32_7 : i32
    %c0_i32_8 = arith.constant 0 : i32
    %11 = arith.addi %c0_i32_8, %10 : i32
    %c0_9 = arith.constant 0 : index
    %12 = arith.index_cast %11 : i32 to index
    %c1 = arith.constant 1 : index
    %c0_10 = arith.constant 0 : index
    %13 = vector.load %arg2[%c0_9, %12, %c1, %c0_10] : memref<1x20x18x8xbf16, #tpu.memory_space<vmem>>, vector<1x6x16x8xbf16>
    %14 = vector.shape_cast %13 : vector<1x6x16x8xbf16> to vector<6x16x8xbf16>
    %15 = vector.shape_cast %14 : vector<6x16x8xbf16> to vector<96x8xbf16>
    %c1_11 = arith.constant 1 : index
    %c0_12 = arith.constant 0 : index
    %c0_13 = arith.constant 0 : index
    %16 = vector.load %arg3[%c1_11, %c0_12, %c0_13] : memref<9x8x8xbf16, #tpu.memory_space<vmem>>, vector<1x8x8xbf16>
    %17 = vector.shape_cast %16 : vector<1x8x8xbf16> to vector<8x8xbf16>
    %cst_14 = arith.constant dense<0.000000e+00> : vector<96x8xf32>
    %18 = tpu.matmul %15, %17, %cst_14 {dimension_numbers = #tpu.dot_dimension_numbers<[1], [0], [0], [1], [0, 0, 1, 1], [], []>} : vector<96x8xbf16>, vector<8x8xbf16>, vector<96x8xf32> -> vector<96x8xf32>
    %19 = arith.addf %9, %18 : vector<96x8xf32>
    %c4_i32_15 = arith.constant 4 : i32
    %20 = arith.muli %arg1, %c4_i32_15 : i32
    %c0_i32_16 = arith.constant 0 : i32
    %21 = arith.addi %c0_i32_16, %20 : i32
    %c0_17 = arith.constant 0 : index
    %22 = arith.index_cast %21 : i32 to index
    %c2 = arith.constant 2 : index
    %c0_18 = arith.constant 0 : index
    %23 = vector.load %arg2[%c0_17, %22, %c2, %c0_18] : memref<1x20x18x8xbf16, #tpu.memory_space<vmem>>, vector<1x6x16x8xbf16>
    %24 = vector.shape_cast %23 : vector<1x6x16x8xbf16> to vector<6x16x8xbf16>
    %25 = vector.shape_cast %24 : vector<6x16x8xbf16> to vector<96x8xbf16>
    %c2_19 = arith.constant 2 : index
    %c0_20 = arith.constant 0 : index
    %c0_21 = arith.constant 0 : index
    %26 = vector.load %arg3[%c2_19, %c0_20, %c0_21] : memref<9x8x8xbf16, #tpu.memory_space<vmem>>, vector<1x8x8xbf16>
    %27 = vector.shape_cast %26 : vector<1x8x8xbf16> to vector<8x8xbf16>
    %cst_22 = arith.constant dense<0.000000e+00> : vector<96x8xf32>
    %28 = tpu.matmul %25, %27, %cst_22 {dimension_numbers = #tpu.dot_dimension_numbers<[1], [0], [0], [1], [0, 0, 1, 1], [], []>} : vector<96x8xbf16>, vector<8x8xbf16>, vector<96x8xf32> -> vector<96x8xf32>
    %29 = arith.addf %19, %28 : vector<96x8xf32>
    %c4_i32_23 = arith.constant 4 : i32
    %30 = arith.muli %arg1, %c4_i32_23 : i32
    %c1_i32 = arith.constant 1 : i32
    %31 = arith.addi %c1_i32, %30 : i32
    %c0_24 = arith.constant 0 : index
    %32 = arith.index_cast %31 : i32 to index
    %c0_25 = arith.constant 0 : index
    %c0_26 = arith.constant 0 : index
    %33 = vector.load %arg2[%c0_24, %32, %c0_25, %c0_26] : memref<1x20x18x8xbf16, #tpu.memory_space<vmem>>, vector<1x6x16x8xbf16>
    %34 = vector.shape_cast %33 : vector<1x6x16x8xbf16> to vector<6x16x8xbf16>
    %35 = vector.shape_cast %34 : vector<6x16x8xbf16> to vector<96x8xbf16>
    %c3 = arith.constant 3 : index
    %c0_27 = arith.constant 0 : index
    %c0_28 = arith.constant 0 : index
    %36 = vector.load %arg3[%c3, %c0_27, %c0_28] : memref<9x8x8xbf16, #tpu.memory_space<vmem>>, vector<1x8x8xbf16>
    %37 = vector.shape_cast %36 : vector<1x8x8xbf16> to vector<8x8xbf16>
    %cst_29 = arith.constant dense<0.000000e+00> : vector<96x8xf32>
    %38 = tpu.matmul %35, %37, %cst_29 {dimension_numbers = #tpu.dot_dimension_numbers<[1], [0], [0], [1], [0, 0, 1, 1], [], []>} : vector<96x8xbf16>, vector<8x8xbf16>, vector<96x8xf32> -> vector<96x8xf32>
    %39 = arith.addf %29, %38 : vector<96x8xf32>
    %c4_i32_30 = arith.constant 4 : i32
    %40 = arith.muli %arg1, %c4_i32_30 : i32
    %c1_i32_31 = arith.constant 1 : i32
    %41 = arith.addi %c1_i32_31, %40 : i32
    %c0_32 = arith.constant 0 : index
    %42 = arith.index_cast %41 : i32 to index
    %c1_33 = arith.constant 1 : index
    %c0_34 = arith.constant 0 : index
    %43 = vector.load %arg2[%c0_32, %42, %c1_33, %c0_34] : memref<1x20x18x8xbf16, #tpu.memory_space<vmem>>, vector<1x6x16x8xbf16>
    %44 = vector.shape_cast %43 : vector<1x6x16x8xbf16> to vector<6x16x8xbf16>
    %45 = vector.shape_cast %44 : vector<6x16x8xbf16> to vector<96x8xbf16>
    %c4 = arith.constant 4 : index
    %c0_35 = arith.constant 0 : index
    %c0_36 = arith.constant 0 : index
    %46 = vector.load %arg3[%c4, %c0_35, %c0_36] : memref<9x8x8xbf16, #tpu.memory_space<vmem>>, vector<1x8x8xbf16>
    %47 = vector.shape_cast %46 : vector<1x8x8xbf16> to vector<8x8xbf16>
    %cst_37 = arith.constant dense<0.000000e+00> : vector<96x8xf32>
    %48 = tpu.matmul %45, %47, %cst_37 {dimension_numbers = #tpu.dot_dimension_numbers<[1], [0], [0], [1], [0, 0, 1, 1], [], []>} : vector<96x8xbf16>, vector<8x8xbf16>, vector<96x8xf32> -> vector<96x8xf32>
    %49 = arith.addf %39, %48 : vector<96x8xf32>
    %c4_i32_38 = arith.constant 4 : i32
    %50 = arith.muli %arg1, %c4_i32_38 : i32
    %c1_i32_39 = arith.constant 1 : i32
    %51 = arith.addi %c1_i32_39, %50 : i32
    %c0_40 = arith.constant 0 : index
    %52 = arith.index_cast %51 : i32 to index
    %c2_41 = arith.constant 2 : index
    %c0_42 = arith.constant 0 : index
    %53 = vector.load %arg2[%c0_40, %52, %c2_41, %c0_42] : memref<1x20x18x8xbf16, #tpu.memory_space<vmem>>, vector<1x6x16x8xbf16>
    %54 = vector.shape_cast %53 : vector<1x6x16x8xbf16> to vector<6x16x8xbf16>
    %55 = vector.shape_cast %54 : vector<6x16x8xbf16> to vector<96x8xbf16>
    %c5 = arith.constant 5 : index
    %c0_43 = arith.constant 0 : index
    %c0_44 = arith.constant 0 : index
    %56 = vector.load %arg3[%c5, %c0_43, %c0_44] : memref<9x8x8xbf16, #tpu.memory_space<vmem>>, vector<1x8x8xbf16>
    %57 = vector.shape_cast %56 : vector<1x8x8xbf16> to vector<8x8xbf16>
    %cst_45 = arith.constant dense<0.000000e+00> : vector<96x8xf32>
    %58 = tpu.matmul %55, %57, %cst_45 {dimension_numbers = #tpu.dot_dimension_numbers<[1], [0], [0], [1], [0, 0, 1, 1], [], []>} : vector<96x8xbf16>, vector<8x8xbf16>, vector<96x8xf32> -> vector<96x8xf32>
    %59 = arith.addf %49, %58 : vector<96x8xf32>
    %c4_i32_46 = arith.constant 4 : i32
    %60 = arith.muli %arg1, %c4_i32_46 : i32
    %c2_i32 = arith.constant 2 : i32
    %61 = arith.addi %c2_i32, %60 : i32
    %c0_47 = arith.constant 0 : index
    %62 = arith.index_cast %61 : i32 to index
    %c0_48 = arith.constant 0 : index
    %c0_49 = arith.constant 0 : index
    %63 = vector.load %arg2[%c0_47, %62, %c0_48, %c0_49] : memref<1x20x18x8xbf16, #tpu.memory_space<vmem>>, vector<1x6x16x8xbf16>
    %64 = vector.shape_cast %63 : vector<1x6x16x8xbf16> to vector<6x16x8xbf16>
    %65 = vector.shape_cast %64 : vector<6x16x8xbf16> to vector<96x8xbf16>
    %c6 = arith.constant 6 : index
    %c0_50 = arith.constant 0 : index
    %c0_51 = arith.constant 0 : index
    %66 = vector.load %arg3[%c6, %c0_50, %c0_51] : memref<9x8x8xbf16, #tpu.memory_space<vmem>>, vector<1x8x8xbf16>
    %67 = vector.shape_cast %66 : vector<1x8x8xbf16> to vector<8x8xbf16>
    %cst_52 = arith.constant dense<0.000000e+00> : vector<96x8xf32>
    %68 = tpu.matmul %65, %67, %cst_52 {dimension_numbers = #tpu.dot_dimension_numbers<[1], [0], [0], [1], [0, 0, 1, 1], [], []>} : vector<96x8xbf16>, vector<8x8xbf16>, vector<96x8xf32> -> vector<96x8xf32>
    %69 = arith.addf %59, %68 : vector<96x8xf32>
    %c4_i32_53 = arith.constant 4 : i32
    %70 = arith.muli %arg1, %c4_i32_53 : i32
    %c2_i32_54 = arith.constant 2 : i32
    %71 = arith.addi %c2_i32_54, %70 : i32
    %c0_55 = arith.constant 0 : index
    %72 = arith.index_cast %71 : i32 to index
    %c1_56 = arith.constant 1 : index
    %c0_57 = arith.constant 0 : index
    %73 = vector.load %arg2[%c0_55, %72, %c1_56, %c0_57] : memref<1x20x18x8xbf16, #tpu.memory_space<vmem>>, vector<1x6x16x8xbf16>
    %74 = vector.shape_cast %73 : vector<1x6x16x8xbf16> to vector<6x16x8xbf16>
    %75 = vector.shape_cast %74 : vector<6x16x8xbf16> to vector<96x8xbf16>
    %c7 = arith.constant 7 : index
    %c0_58 = arith.constant 0 : index
    %c0_59 = arith.constant 0 : index
    %76 = vector.load %arg3[%c7, %c0_58, %c0_59] : memref<9x8x8xbf16, #tpu.memory_space<vmem>>, vector<1x8x8xbf16>
    %77 = vector.shape_cast %76 : vector<1x8x8xbf16> to vector<8x8xbf16>
    %cst_60 = arith.constant dense<0.000000e+00> : vector<96x8xf32>
    %78 = tpu.matmul %75, %77, %cst_60 {dimension_numbers = #tpu.dot_dimension_numbers<[1], [0], [0], [1], [0, 0, 1, 1], [], []>} : vector<96x8xbf16>, vector<8x8xbf16>, vector<96x8xf32> -> vector<96x8xf32>
    %79 = arith.addf %69, %78 : vector<96x8xf32>
    %c4_i32_61 = arith.constant 4 : i32
    %80 = arith.muli %arg1, %c4_i32_61 : i32
    %c2_i32_62 = arith.constant 2 : i32
    %81 = arith.addi %c2_i32_62, %80 : i32
    %c0_63 = arith.constant 0 : index
    %82 = arith.index_cast %81 : i32 to index
    %c2_64 = arith.constant 2 : index
    %c0_65 = arith.constant 0 : index
    %83 = vector.load %arg2[%c0_63, %82, %c2_64, %c0_65] : memref<1x20x18x8xbf16, #tpu.memory_space<vmem>>, vector<1x6x16x8xbf16>
    %84 = vector.shape_cast %83 : vector<1x6x16x8xbf16> to vector<6x16x8xbf16>
    %85 = vector.shape_cast %84 : vector<6x16x8xbf16> to vector<96x8xbf16>
    %c8 = arith.constant 8 : index
    %c0_66 = arith.constant 0 : index
    %c0_67 = arith.constant 0 : index
    %86 = vector.load %arg3[%c8, %c0_66, %c0_67] : memref<9x8x8xbf16, #tpu.memory_space<vmem>>, vector<1x8x8xbf16>
    %87 = vector.shape_cast %86 : vector<1x8x8xbf16> to vector<8x8xbf16>
    %cst_68 = arith.constant dense<0.000000e+00> : vector<96x8xf32>
    %88 = tpu.matmul %85, %87, %cst_68 {dimension_numbers = #tpu.dot_dimension_numbers<[1], [0], [0], [1], [0, 0, 1, 1], [], []>} : vector<96x8xbf16>, vector<8x8xbf16>, vector<96x8xf32> -> vector<96x8xf32>
    %89 = arith.addf %79, %88 : vector<96x8xf32>
    %90 = vector.extract_strided_slice %0 {offsets = [0, 0], sizes = [1, 8], strides = [1, 1]} : vector<4x8xf32> to vector<1x8xf32>
    %91 = vector.broadcast %90 : vector<1x8xf32> to vector<96x8xf32>
    %92 = arith.mulf %89, %91 : vector<96x8xf32>
    %93 = vector.extract_strided_slice %0 {offsets = [1, 0], sizes = [1, 8], strides = [1, 1]} : vector<4x8xf32> to vector<1x8xf32>
    %94 = vector.broadcast %93 : vector<1x8xf32> to vector<96x8xf32>
    %95 = arith.addf %92, %94 : vector<96x8xf32>
    %cst_69 = arith.constant 0.000000e+00 : f32
    %96 = vector.broadcast %cst_69 : f32 to vector<96x8xf32>
    %97 = arith.maximumf %95, %96 : vector<96x8xf32>
    %98 = vector.shape_cast %97 : vector<96x8xf32> to vector<6x16x8xf32>
    %99 = arith.truncf %98 : vector<6x16x8xf32> to vector<6x16x8xbf16>
    %c0_70 = arith.constant 0 : index
    %c1_71 = arith.constant 1 : index
    %c0_72 = arith.constant 0 : index
    %100 = vector.load %arg7[%c0_70, %c1_71, %c0_72] : memref<6x18x8xbf16, #tpu.memory_space<vmem>>, vector<6x16x8xbf16>
    tpu.vector_store %arg7[%c0_70, %c1_71, %c0_72], %99 {strides = array<i32>} : memref<6x18x8xbf16, #tpu.memory_space<vmem>>, vector<6x16x8xbf16>,
    %cst_73 = arith.constant 0.000000e+00 : bf16
    %101 = vector.broadcast %cst_73 : bf16 to vector<6x1x8xbf16>
    %c0_74 = arith.constant 0 : index
    %c0_75 = arith.constant 0 : index
    %c0_76 = arith.constant 0 : index
    %102 = vector.load %arg7[%c0_74, %c0_75, %c0_76] : memref<6x18x8xbf16, #tpu.memory_space<vmem>>, vector<6x1x8xbf16>
    tpu.vector_store %arg7[%c0_74, %c0_75, %c0_76], %101 {strides = array<i32>} : memref<6x18x8xbf16, #tpu.memory_space<vmem>>, vector<6x1x8xbf16>,
    %c0_77 = arith.constant 0 : index
    %c17 = arith.constant 17 : index
    %c0_78 = arith.constant 0 : index
    %103 = vector.load %arg7[%c0_77, %c17, %c0_78] : memref<6x18x8xbf16, #tpu.memory_space<vmem>>, vector<6x1x8xbf16>
    tpu.vector_store %arg7[%c0_77, %c17, %c0_78], %101 {strides = array<i32>} : memref<6x18x8xbf16, #tpu.memory_space<vmem>>, vector<6x1x8xbf16>,
    %c0_i32_79 = arith.constant 0 : i32
    %104 = arith.cmpi eq, %arg1, %c0_i32_79 : i32
    %105 = arith.extui %104 : i1 to i32
    %c0_i32_80 = arith.constant 0 : i32
    %106 = arith.cmpi ne, %105, %c0_i32_80 : i32
    scf.if %106 {
      %cst_155 = arith.constant 0.000000e+00 : bf16
      %184 = vector.broadcast %cst_155 : bf16 to vector<1x18x8xbf16>
      %c0_156 = arith.constant 0 : index
      %c0_157 = arith.constant 0 : index
      %c0_158 = arith.constant 0 : index
      %185 = vector.load %arg7[%c0_156, %c0_157, %c0_158] : memref<6x18x8xbf16, #tpu.memory_space<vmem>>, vector<1x18x8xbf16>
      tpu.vector_store %arg7[%c0_156, %c0_157, %c0_158], %184 {strides = array<i32>} : memref<6x18x8xbf16, #tpu.memory_space<vmem>>, vector<1x18x8xbf16>,
    } else {
    }
    %c3_i32 = arith.constant 3 : i32
    %107 = arith.cmpi eq, %arg1, %c3_i32 : i32
    %108 = arith.extui %107 : i1 to i32
    %c0_i32_81 = arith.constant 0 : i32
    %109 = arith.cmpi ne, %108, %c0_i32_81 : i32
    scf.if %109 {
      %cst_155 = arith.constant 0.000000e+00 : bf16
      %184 = vector.broadcast %cst_155 : bf16 to vector<1x18x8xbf16>
      %c5_156 = arith.constant 5 : index
      %c0_157 = arith.constant 0 : index
      %c0_158 = arith.constant 0 : index
      %185 = vector.load %arg7[%c5_156, %c0_157, %c0_158] : memref<6x18x8xbf16, #tpu.memory_space<vmem>>, vector<1x18x8xbf16>
      tpu.vector_store %arg7[%c5_156, %c0_157, %c0_158], %184 {strides = array<i32>} : memref<6x18x8xbf16, #tpu.memory_space<vmem>>, vector<1x18x8xbf16>,
    } else {
    }
    %c0_82 = arith.constant 0 : index
    %c0_83 = arith.constant 0 : index
    %c0_84 = arith.constant 0 : index
    %110 = vector.load %arg7[%c0_82, %c0_83, %c0_84] : memref<6x18x8xbf16, #tpu.memory_space<vmem>>, vector<4x16x8xbf16>
    %111 = vector.shape_cast %110 : vector<4x16x8xbf16> to vector<64x8xbf16>
    %c0_85 = arith.constant 0 : index
    %c0_86 = arith.constant 0 : index
    %c0_87 = arith.constant 0 : index
    %112 = vector.load %arg4[%c0_85, %c0_86, %c0_87] : memref<9x8x8xbf16, #tpu.memory_space<vmem>>, vector<1x8x8xbf16>
    %113 = vector.shape_cast %112 : vector<1x8x8xbf16> to vector<8x8xbf16>
    %cst_88 = arith.constant dense<0.000000e+00> : vector<64x8xf32>
    %114 = tpu.matmul %111, %113, %cst_88 {dimension_numbers = #tpu.dot_dimension_numbers<[1], [0], [0], [1], [0, 0, 1, 1], [], []>} : vector<64x8xbf16>, vector<8x8xbf16>, vector<64x8xf32> -> vector<64x8xf32>
    %c0_89 = arith.constant 0 : index
    %c1_90 = arith.constant 1 : index
    %c0_91 = arith.constant 0 : index
    %115 = vector.load %arg7[%c0_89, %c1_90, %c0_91] : memref<6x18x8xbf16, #tpu.memory_space<vmem>>, vector<4x16x8xbf16>
    %116 = vector.shape_cast %115 : vector<4x16x8xbf16> to vector<64x8xbf16>
    %c1_92 = arith.constant 1 : index
    %c0_93 = arith.constant 0 : index
    %c0_94 = arith.constant 0 : index
    %117 = vector.load %arg4[%c1_92, %c0_93, %c0_94] : memref<9x8x8xbf16, #tpu.memory_space<vmem>>, vector<1x8x8xbf16>
    %118 = vector.shape_cast %117 : vector<1x8x8xbf16> to vector<8x8xbf16>
    %cst_95 = arith.constant dense<0.000000e+00> : vector<64x8xf32>
    %119 = tpu.matmul %116, %118, %cst_95 {dimension_numbers = #tpu.dot_dimension_numbers<[1], [0], [0], [1], [0, 0, 1, 1], [], []>} : vector<64x8xbf16>, vector<8x8xbf16>, vector<64x8xf32> -> vector<64x8xf32>
    %120 = arith.addf %114, %119 : vector<64x8xf32>
    %c0_96 = arith.constant 0 : index
    %c2_97 = arith.constant 2 : index
    %c0_98 = arith.constant 0 : index
    %121 = vector.load %arg7[%c0_96, %c2_97, %c0_98] : memref<6x18x8xbf16, #tpu.memory_space<vmem>>, vector<4x16x8xbf16>
    %122 = vector.shape_cast %121 : vector<4x16x8xbf16> to vector<64x8xbf16>
    %c2_99 = arith.constant 2 : index
    %c0_100 = arith.constant 0 : index
    %c0_101 = arith.constant 0 : index
    %123 = vector.load %arg4[%c2_99, %c0_100, %c0_101] : memref<9x8x8xbf16, #tpu.memory_space<vmem>>, vector<1x8x8xbf16>
    %124 = vector.shape_cast %123 : vector<1x8x8xbf16> to vector<8x8xbf16>
    %cst_102 = arith.constant dense<0.000000e+00> : vector<64x8xf32>
    %125 = tpu.matmul %122, %124, %cst_102 {dimension_numbers = #tpu.dot_dimension_numbers<[1], [0], [0], [1], [0, 0, 1, 1], [], []>} : vector<64x8xbf16>, vector<8x8xbf16>, vector<64x8xf32> -> vector<64x8xf32>
    %126 = arith.addf %120, %125 : vector<64x8xf32>
    %c1_103 = arith.constant 1 : index
    %c0_104 = arith.constant 0 : index
    %c0_105 = arith.constant 0 : index
    %127 = vector.load %arg7[%c1_103, %c0_104, %c0_105] : memref<6x18x8xbf16, #tpu.memory_space<vmem>>, vector<4x16x8xbf16>
    %128 = vector.shape_cast %127 : vector<4x16x8xbf16> to vector<64x8xbf16>
    %c3_106 = arith.constant 3 : index
    %c0_107 = arith.constant 0 : index
    %c0_108 = arith.constant 0 : index
    %129 = vector.load %arg4[%c3_106, %c0_107, %c0_108] : memref<9x8x8xbf16, #tpu.memory_space<vmem>>, vector<1x8x8xbf16>
    %130 = vector.shape_cast %129 : vector<1x8x8xbf16> to vector<8x8xbf16>
    %cst_109 = arith.constant dense<0.000000e+00> : vector<64x8xf32>
    %131 = tpu.matmul %128, %130, %cst_109 {dimension_numbers = #tpu.dot_dimension_numbers<[1], [0], [0], [1], [0, 0, 1, 1], [], []>} : vector<64x8xbf16>, vector<8x8xbf16>, vector<64x8xf32> -> vector<64x8xf32>
    %132 = arith.addf %126, %131 : vector<64x8xf32>
    %c1_110 = arith.constant 1 : index
    %c1_111 = arith.constant 1 : index
    %c0_112 = arith.constant 0 : index
    %133 = vector.load %arg7[%c1_110, %c1_111, %c0_112] : memref<6x18x8xbf16, #tpu.memory_space<vmem>>, vector<4x16x8xbf16>
    %134 = vector.shape_cast %133 : vector<4x16x8xbf16> to vector<64x8xbf16>
    %c4_113 = arith.constant 4 : index
    %c0_114 = arith.constant 0 : index
    %c0_115 = arith.constant 0 : index
    %135 = vector.load %arg4[%c4_113, %c0_114, %c0_115] : memref<9x8x8xbf16, #tpu.memory_space<vmem>>, vector<1x8x8xbf16>
    %136 = vector.shape_cast %135 : vector<1x8x8xbf16> to vector<8x8xbf16>
    %cst_116 = arith.constant dense<0.000000e+00> : vector<64x8xf32>
    %137 = tpu.matmul %134, %136, %cst_116 {dimension_numbers = #tpu.dot_dimension_numbers<[1], [0], [0], [1], [0, 0, 1, 1], [], []>} : vector<64x8xbf16>, vector<8x8xbf16>, vector<64x8xf32> -> vector<64x8xf32>
    %138 = arith.addf %132, %137 : vector<64x8xf32>
    %c1_117 = arith.constant 1 : index
    %c2_118 = arith.constant 2 : index
    %c0_119 = arith.constant 0 : index
    %139 = vector.load %arg7[%c1_117, %c2_118, %c0_119] : memref<6x18x8xbf16, #tpu.memory_space<vmem>>, vector<4x16x8xbf16>
    %140 = vector.shape_cast %139 : vector<4x16x8xbf16> to vector<64x8xbf16>
    %c5_120 = arith.constant 5 : index
    %c0_121 = arith.constant 0 : index
    %c0_122 = arith.constant 0 : index
    %141 = vector.load %arg4[%c5_120, %c0_121, %c0_122] : memref<9x8x8xbf16, #tpu.memory_space<vmem>>, vector<1x8x8xbf16>
    %142 = vector.shape_cast %141 : vector<1x8x8xbf16> to vector<8x8xbf16>
    %cst_123 = arith.constant dense<0.000000e+00> : vector<64x8xf32>
    %143 = tpu.matmul %140, %142, %cst_123 {dimension_numbers = #tpu.dot_dimension_numbers<[1], [0], [0], [1], [0, 0, 1, 1], [], []>} : vector<64x8xbf16>, vector<8x8xbf16>, vector<64x8xf32> -> vector<64x8xf32>
    %144 = arith.addf %138, %143 : vector<64x8xf32>
    %c2_124 = arith.constant 2 : index
    %c0_125 = arith.constant 0 : index
    %c0_126 = arith.constant 0 : index
    %145 = vector.load %arg7[%c2_124, %c0_125, %c0_126] : memref<6x18x8xbf16, #tpu.memory_space<vmem>>, vector<4x16x8xbf16>
    %146 = vector.shape_cast %145 : vector<4x16x8xbf16> to vector<64x8xbf16>
    %c6_127 = arith.constant 6 : index
    %c0_128 = arith.constant 0 : index
    %c0_129 = arith.constant 0 : index
    %147 = vector.load %arg4[%c6_127, %c0_128, %c0_129] : memref<9x8x8xbf16, #tpu.memory_space<vmem>>, vector<1x8x8xbf16>
    %148 = vector.shape_cast %147 : vector<1x8x8xbf16> to vector<8x8xbf16>
    %cst_130 = arith.constant dense<0.000000e+00> : vector<64x8xf32>
    %149 = tpu.matmul %146, %148, %cst_130 {dimension_numbers = #tpu.dot_dimension_numbers<[1], [0], [0], [1], [0, 0, 1, 1], [], []>} : vector<64x8xbf16>, vector<8x8xbf16>, vector<64x8xf32> -> vector<64x8xf32>
    %150 = arith.addf %144, %149 : vector<64x8xf32>
    %c2_131 = arith.constant 2 : index
    %c1_132 = arith.constant 1 : index
    %c0_133 = arith.constant 0 : index
    %151 = vector.load %arg7[%c2_131, %c1_132, %c0_133] : memref<6x18x8xbf16, #tpu.memory_space<vmem>>, vector<4x16x8xbf16>
    %152 = vector.shape_cast %151 : vector<4x16x8xbf16> to vector<64x8xbf16>
    %c7_134 = arith.constant 7 : index
    %c0_135 = arith.constant 0 : index
    %c0_136 = arith.constant 0 : index
    %153 = vector.load %arg4[%c7_134, %c0_135, %c0_136] : memref<9x8x8xbf16, #tpu.memory_space<vmem>>, vector<1x8x8xbf16>
    %154 = vector.shape_cast %153 : vector<1x8x8xbf16> to vector<8x8xbf16>
    %cst_137 = arith.constant dense<0.000000e+00> : vector<64x8xf32>
    %155 = tpu.matmul %152, %154, %cst_137 {dimension_numbers = #tpu.dot_dimension_numbers<[1], [0], [0], [1], [0, 0, 1, 1], [], []>} : vector<64x8xbf16>, vector<8x8xbf16>, vector<64x8xf32> -> vector<64x8xf32>
    %156 = arith.addf %150, %155 : vector<64x8xf32>
    %c2_138 = arith.constant 2 : index
    %c2_139 = arith.constant 2 : index
    %c0_140 = arith.constant 0 : index
    %157 = vector.load %arg7[%c2_138, %c2_139, %c0_140] : memref<6x18x8xbf16, #tpu.memory_space<vmem>>, vector<4x16x8xbf16>
    %158 = vector.shape_cast %157 : vector<4x16x8xbf16> to vector<64x8xbf16>
    %c8_141 = arith.constant 8 : index
    %c0_142 = arith.constant 0 : index
    %c0_143 = arith.constant 0 : index
    %159 = vector.load %arg4[%c8_141, %c0_142, %c0_143] : memref<9x8x8xbf16, #tpu.memory_space<vmem>>, vector<1x8x8xbf16>
    %160 = vector.shape_cast %159 : vector<1x8x8xbf16> to vector<8x8xbf16>
    %cst_144 = arith.constant dense<0.000000e+00> : vector<64x8xf32>
    %161 = tpu.matmul %158, %160, %cst_144 {dimension_numbers = #tpu.dot_dimension_numbers<[1], [0], [0], [1], [0, 0, 1, 1], [], []>} : vector<64x8xbf16>, vector<8x8xbf16>, vector<64x8xf32> -> vector<64x8xf32>
    %162 = arith.addf %156, %161 : vector<64x8xf32>
    %163 = vector.extract_strided_slice %0 {offsets = [2, 0], sizes = [1, 8], strides = [1, 1]} : vector<4x8xf32> to vector<1x8xf32>
    %164 = vector.broadcast %163 : vector<1x8xf32> to vector<64x8xf32>
    %165 = arith.mulf %162, %164 : vector<64x8xf32>
    %166 = vector.extract_strided_slice %0 {offsets = [3, 0], sizes = [1, 8], strides = [1, 1]} : vector<4x8xf32> to vector<1x8xf32>
    %167 = vector.broadcast %166 : vector<1x8xf32> to vector<64x8xf32>
    %168 = arith.addf %165, %167 : vector<64x8xf32>
    %c4_i32_145 = arith.constant 4 : i32
    %169 = arith.muli %arg1, %c4_i32_145 : i32
    %c2_i32_146 = arith.constant 2 : i32
    %170 = arith.addi %c2_i32_146, %169 : i32
    %c0_147 = arith.constant 0 : index
    %171 = arith.index_cast %170 : i32 to index
    %c1_148 = arith.constant 1 : index
    %c0_149 = arith.constant 0 : index
    %172 = vector.load %arg2[%c0_147, %171, %c1_148, %c0_149] : memref<1x20x18x8xbf16, #tpu.memory_space<vmem>>, vector<1x4x16x8xbf16>
    %173 = vector.shape_cast %172 : vector<1x4x16x8xbf16> to vector<4x16x8xbf16>
    %174 = vector.shape_cast %173 : vector<4x16x8xbf16> to vector<64x8xbf16>
    %175 = arith.extf %174 : vector<64x8xbf16> to vector<64x8xf32>
    %176 = arith.addf %168, %175 : vector<64x8xf32>
    %cst_150 = arith.constant 0.000000e+00 : f32
    %177 = vector.broadcast %cst_150 : f32 to vector<64x8xf32>
    %178 = arith.maximumf %176, %177 : vector<64x8xf32>
    %179 = vector.shape_cast %178 : vector<64x8xf32> to vector<4x16x8xf32>
    %180 = arith.truncf %179 : vector<4x16x8xf32> to vector<4x16x8xbf16>
    %c0_151 = arith.constant 0 : index
    %c0_152 = arith.constant 0 : index
    %c0_153 = arith.constant 0 : index
    %c0_154 = arith.constant 0 : index
    %181 = vector.load %arg6[%c0_151, %c0_152, %c0_153, %c0_154] : memref<1x4x16x8xbf16, #tpu.memory_space<vmem>>, vector<1x4x16x8xbf16>
    %182 = vector.shape_cast %181 : vector<1x4x16x8xbf16> to vector<4x16x8xbf16>
    %183 = vector.shape_cast %180 : vector<4x16x8xbf16> to vector<1x4x16x8xbf16>
    tpu.vector_store %arg6[%c0_151, %c0_152, %c0_153, %c0_154], %183 {strides = array<i32>} : memref<1x4x16x8xbf16, #tpu.memory_space<vmem>>, vector<1x4x16x8xbf16>,
    return
  }
  func.func @transform_0(%arg0: i32, %arg1: i32) -> (i32, i32, i32, i32) {
    %c0_i32 = arith.constant 0 : i32
    %c0_i32_0 = arith.constant 0 : i32
    %c0_i32_1 = arith.constant 0 : i32
    %c0_i32_2 = arith.constant 0 : i32
    return %arg0, %c0_i32, %c0_i32_0, %c0_i32_1 : i32, i32, i32, i32
  }
  func.func @transform_1(%arg0: i32, %arg1: i32) -> (i32, i32, i32) {
    %c0_i32 = arith.constant 0 : i32
    %c0_i32_0 = arith.constant 0 : i32
    %c0_i32_1 = arith.constant 0 : i32
    %c0_i32_2 = arith.constant 0 : i32
    return %c0_i32, %c0_i32_0, %c0_i32_1 : i32, i32, i32
  }
  func.func @transform_2(%arg0: i32, %arg1: i32) -> (i32, i32, i32) {
    %c0_i32 = arith.constant 0 : i32
    %c0_i32_0 = arith.constant 0 : i32
    %c0_i32_1 = arith.constant 0 : i32
    %c0_i32_2 = arith.constant 0 : i32
    return %c0_i32, %c0_i32_0, %c0_i32_1 : i32, i32, i32
  }
  func.func @transform_3(%arg0: i32, %arg1: i32) -> (i32, i32) {
    %c0_i32 = arith.constant 0 : i32
    %c0_i32_0 = arith.constant 0 : i32
    %c0_i32_1 = arith.constant 0 : i32
    return %c0_i32, %c0_i32_0 : i32, i32
  }
  func.func @transform_4(%arg0: i32, %arg1: i32) -> (i32, i32, i32, i32) {
    %c0_i32 = arith.constant 0 : i32
    %c0_i32_0 = arith.constant 0 : i32
    %c0_i32_1 = arith.constant 0 : i32
    return %arg0, %arg1, %c0_i32, %c0_i32_0 : i32, i32, i32, i32
  }
}

module attributes {stable_mosaic.version = 11 : i64} {
  func.func @kernel(%arg0: i32, %arg1: i32, %arg2: memref<1x20x18x8xbf16, #tpu.memory_space<vmem>>, %arg3: memref<9x8x8xbf16, #tpu.memory_space<vmem>>, %arg4: memref<9x8x8xbf16, #tpu.memory_space<vmem>>, %arg5: memref<4x8xf32, #tpu.memory_space<vmem>>, %arg6: memref<1x4x16x8xbf16, #tpu.memory_space<vmem>>, %arg7: memref<6x18x8xbf16, #tpu.memory_space<vmem>>) attributes {dimension_semantics = [#tpu.dimension_semantics<parallel>, #tpu.dimension_semantics<parallel>], iteration_bounds = array<i64: 2, 4>, scalar_prefetch = 0 : i64, scratch_operands = 1 : i64, tpu.core_type = #tpu.core_type<tc>, window_params = [{transform_indices = @transform_0, window_bounds = array<i64: 1, 20, 18, 8>}, {pipeline_mode = #tpu.pipeline_mode<synchronous>, transform_indices = @transform_1, window_bounds = array<i64: 9, 8, 8>}, {pipeline_mode = #tpu.pipeline_mode<synchronous>, transform_indices = @transform_2, window_bounds = array<i64: 9, 8, 8>}, {pipeline_mode = #tpu.pipeline_mode<synchronous>, transform_indices = @transform_3, window_bounds = array<i64: 4, 8>}, {transform_indices = @transform_4, window_bounds = array<i64: 1, 4, 16, 8>}]} {
    %c0 = arith.constant 0 : index
    %c0_0 = arith.constant 0 : index
    %0 = vector.load %arg5[%c0, %c0_0] : memref<4x8xf32, #tpu.memory_space<vmem>>, vector<4x8xf32>
    %c4_i32 = arith.constant 4 : i32
    %1 = arith.muli %arg1, %c4_i32 : i32
    %c0_i32 = arith.constant 0 : i32
    %2 = arith.addi %c0_i32, %1 : i32
    %c0_1 = arith.constant 0 : index
    %3 = arith.index_cast %2 : i32 to index
    %c0_2 = arith.constant 0 : index
    %c0_3 = arith.constant 0 : index
    %4 = vector.load %arg2[%c0_1, %3, %c0_2, %c0_3] : memref<1x20x18x8xbf16, #tpu.memory_space<vmem>>, vector<1x6x16x8xbf16>
    %5 = vector.shape_cast %4 : vector<1x6x16x8xbf16> to vector<6x16x8xbf16>
    %6 = vector.shape_cast %5 : vector<6x16x8xbf16> to vector<96x8xbf16>
    %c0_4 = arith.constant 0 : index
    %c0_5 = arith.constant 0 : index
    %c0_6 = arith.constant 0 : index
    %7 = vector.load %arg3[%c0_4, %c0_5, %c0_6] : memref<9x8x8xbf16, #tpu.memory_space<vmem>>, vector<1x8x8xbf16>
    %8 = vector.shape_cast %7 : vector<1x8x8xbf16> to vector<8x8xbf16>
    %cst = arith.constant dense<0.000000e+00> : vector<96x8xf32>
    %9 = tpu.matmul %6, %8, %cst {dimension_numbers = #tpu.dot_dimension_numbers<[1], [0], [0], [1], [0, 0, 1, 1], [], []>} : vector<96x8xbf16>, vector<8x8xbf16>, vector<96x8xf32> -> vector<96x8xf32>
    %c4_i32_7 = arith.constant 4 : i32
    %10 = arith.muli %arg1, %c4_i32_7 : i32
    %c0_i32_8 = arith.constant 0 : i32
    %11 = arith.addi %c0_i32_8, %10 : i32
    %c0_9 = arith.constant 0 : index
    %12 = arith.index_cast %11 : i32 to index
    %c1 = arith.constant 1 : index
    %c0_10 = arith.constant 0 : index
    %13 = vector.load %arg2[%c0_9, %12, %c1, %c0_10] : memref<1x20x18x8xbf16, #tpu.memory_space<vmem>>, vector<1x6x16x8xbf16>
    %14 = vector.shape_cast %13 : vector<1x6x16x8xbf16> to vector<6x16x8xbf16>
    %15 = vector.shape_cast %14 : vector<6x16x8xbf16> to vector<96x8xbf16>
    %c1_11 = arith.constant 1 : index
    %c0_12 = arith.constant 0 : index
    %c0_13 = arith.constant 0 : index
    %16 = vector.load %arg3[%c1_11, %c0_12, %c0_13] : memref<9x8x8xbf16, #tpu.memory_space<vmem>>, vector<1x8x8xbf16>
    %17 = vector.shape_cast %16 : vector<1x8x8xbf16> to vector<8x8xbf16>
    %cst_14 = arith.constant dense<0.000000e+00> : vector<96x8xf32>
    %18 = tpu.matmul %15, %17, %cst_14 {dimension_numbers = #tpu.dot_dimension_numbers<[1], [0], [0], [1], [0, 0, 1, 1], [], []>} : vector<96x8xbf16>, vector<8x8xbf16>, vector<96x8xf32> -> vector<96x8xf32>
    %19 = arith.addf %9, %18 : vector<96x8xf32>
    %c4_i32_15 = arith.constant 4 : i32
    %20 = arith.muli %arg1, %c4_i32_15 : i32
    %c0_i32_16 = arith.constant 0 : i32
    %21 = arith.addi %c0_i32_16, %20 : i32
    %c0_17 = arith.constant 0 : index
    %22 = arith.index_cast %21 : i32 to index
    %c2 = arith.constant 2 : index
    %c0_18 = arith.constant 0 : index
    %23 = vector.load %arg2[%c0_17, %22, %c2, %c0_18] : memref<1x20x18x8xbf16, #tpu.memory_space<vmem>>, vector<1x6x16x8xbf16>
    %24 = vector.shape_cast %23 : vector<1x6x16x8xbf16> to vector<6x16x8xbf16>
    %25 = vector.shape_cast %24 : vector<6x16x8xbf16> to vector<96x8xbf16>
    %c2_19 = arith.constant 2 : index
    %c0_20 = arith.constant 0 : index
    %c0_21 = arith.constant 0 : index
    %26 = vector.load %arg3[%c2_19, %c0_20, %c0_21] : memref<9x8x8xbf16, #tpu.memory_space<vmem>>, vector<1x8x8xbf16>
    %27 = vector.shape_cast %26 : vector<1x8x8xbf16> to vector<8x8xbf16>
    %cst_22 = arith.constant dense<0.000000e+00> : vector<96x8xf32>
    %28 = tpu.matmul %25, %27, %cst_22 {dimension_numbers = #tpu.dot_dimension_numbers<[1], [0], [0], [1], [0, 0, 1, 1], [], []>} : vector<96x8xbf16>, vector<8x8xbf16>, vector<96x8xf32> -> vector<96x8xf32>
    %29 = arith.addf %19, %28 : vector<96x8xf32>
    %c4_i32_23 = arith.constant 4 : i32
    %30 = arith.muli %arg1, %c4_i32_23 : i32
    %c1_i32 = arith.constant 1 : i32
    %31 = arith.addi %c1_i32, %30 : i32
    %c0_24 = arith.constant 0 : index
    %32 = arith.index_cast %31 : i32 to index
    %c0_25 = arith.constant 0 : index
    %c0_26 = arith.constant 0 : index
    %33 = vector.load %arg2[%c0_24, %32, %c0_25, %c0_26] : memref<1x20x18x8xbf16, #tpu.memory_space<vmem>>, vector<1x6x16x8xbf16>
    %34 = vector.shape_cast %33 : vector<1x6x16x8xbf16> to vector<6x16x8xbf16>
    %35 = vector.shape_cast %34 : vector<6x16x8xbf16> to vector<96x8xbf16>
    %c3 = arith.constant 3 : index
    %c0_27 = arith.constant 0 : index
    %c0_28 = arith.constant 0 : index
    %36 = vector.load %arg3[%c3, %c0_27, %c0_28] : memref<9x8x8xbf16, #tpu.memory_space<vmem>>, vector<1x8x8xbf16>
    %37 = vector.shape_cast %36 : vector<1x8x8xbf16> to vector<8x8xbf16>
    %cst_29 = arith.constant dense<0.000000e+00> : vector<96x8xf32>
    %38 = tpu.matmul %35, %37, %cst_29 {dimension_numbers = #tpu.dot_dimension_numbers<[1], [0], [0], [1], [0, 0, 1, 1], [], []>} : vector<96x8xbf16>, vector<8x8xbf16>, vector<96x8xf32> -> vector<96x8xf32>
    %39 = arith.addf %29, %38 : vector<96x8xf32>
    %c4_i32_30 = arith.constant 4 : i32
    %40 = arith.muli %arg1, %c4_i32_30 : i32
    %c1_i32_31 = arith.constant 1 : i32
    %41 = arith.addi %c1_i32_31, %40 : i32
    %c0_32 = arith.constant 0 : index
    %42 = arith.index_cast %41 : i32 to index
    %c1_33 = arith.constant 1 : index
    %c0_34 = arith.constant 0 : index
    %43 = vector.load %arg2[%c0_32, %42, %c1_33, %c0_34] : memref<1x20x18x8xbf16, #tpu.memory_space<vmem>>, vector<1x6x16x8xbf16>
    %44 = vector.shape_cast %43 : vector<1x6x16x8xbf16> to vector<6x16x8xbf16>
    %45 = vector.shape_cast %44 : vector<6x16x8xbf16> to vector<96x8xbf16>
    %c4 = arith.constant 4 : index
    %c0_35 = arith.constant 0 : index
    %c0_36 = arith.constant 0 : index
    %46 = vector.load %arg3[%c4, %c0_35, %c0_36] : memref<9x8x8xbf16, #tpu.memory_space<vmem>>, vector<1x8x8xbf16>
    %47 = vector.shape_cast %46 : vector<1x8x8xbf16> to vector<8x8xbf16>
    %cst_37 = arith.constant dense<0.000000e+00> : vector<96x8xf32>
    %48 = tpu.matmul %45, %47, %cst_37 {dimension_numbers = #tpu.dot_dimension_numbers<[1], [0], [0], [1], [0, 0, 1, 1], [], []>} : vector<96x8xbf16>, vector<8x8xbf16>, vector<96x8xf32> -> vector<96x8xf32>
    %49 = arith.addf %39, %48 : vector<96x8xf32>
    %c4_i32_38 = arith.constant 4 : i32
    %50 = arith.muli %arg1, %c4_i32_38 : i32
    %c1_i32_39 = arith.constant 1 : i32
    %51 = arith.addi %c1_i32_39, %50 : i32
    %c0_40 = arith.constant 0 : index
    %52 = arith.index_cast %51 : i32 to index
    %c2_41 = arith.constant 2 : index
    %c0_42 = arith.constant 0 : index
    %53 = vector.load %arg2[%c0_40, %52, %c2_41, %c0_42] : memref<1x20x18x8xbf16, #tpu.memory_space<vmem>>, vector<1x6x16x8xbf16>
    %54 = vector.shape_cast %53 : vector<1x6x16x8xbf16> to vector<6x16x8xbf16>
    %55 = vector.shape_cast %54 : vector<6x16x8xbf16> to vector<96x8xbf16>
    %c5 = arith.constant 5 : index
    %c0_43 = arith.constant 0 : index
    %c0_44 = arith.constant 0 : index
    %56 = vector.load %arg3[%c5, %c0_43, %c0_44] : memref<9x8x8xbf16, #tpu.memory_space<vmem>>, vector<1x8x8xbf16>
    %57 = vector.shape_cast %56 : vector<1x8x8xbf16> to vector<8x8xbf16>
    %cst_45 = arith.constant dense<0.000000e+00> : vector<96x8xf32>
    %58 = tpu.matmul %55, %57, %cst_45 {dimension_numbers = #tpu.dot_dimension_numbers<[1], [0], [0], [1], [0, 0, 1, 1], [], []>} : vector<96x8xbf16>, vector<8x8xbf16>, vector<96x8xf32> -> vector<96x8xf32>
    %59 = arith.addf %49, %58 : vector<96x8xf32>
    %c4_i32_46 = arith.constant 4 : i32
    %60 = arith.muli %arg1, %c4_i32_46 : i32
    %c2_i32 = arith.constant 2 : i32
    %61 = arith.addi %c2_i32, %60 : i32
    %c0_47 = arith.constant 0 : index
    %62 = arith.index_cast %61 : i32 to index
    %c0_48 = arith.constant 0 : index
    %c0_49 = arith.constant 0 : index
    %63 = vector.load %arg2[%c0_47, %62, %c0_48, %c0_49] : memref<1x20x18x8xbf16, #tpu.memory_space<vmem>>, vector<1x6x16x8xbf16>
    %64 = vector.shape_cast %63 : vector<1x6x16x8xbf16> to vector<6x16x8xbf16>
    %65 = vector.shape_cast %64 : vector<6x16x8xbf16> to vector<96x8xbf16>
    %c6 = arith.constant 6 : index
    %c0_50 = arith.constant 0 : index
    %c0_51 = arith.constant 0 : index
    %66 = vector.load %arg3[%c6, %c0_50, %c0_51] : memref<9x8x8xbf16, #tpu.memory_space<vmem>>, vector<1x8x8xbf16>
    %67 = vector.shape_cast %66 : vector<1x8x8xbf16> to vector<8x8xbf16>
    %cst_52 = arith.constant dense<0.000000e+00> : vector<96x8xf32>
    %68 = tpu.matmul %65, %67, %cst_52 {dimension_numbers = #tpu.dot_dimension_numbers<[1], [0], [0], [1], [0, 0, 1, 1], [], []>} : vector<96x8xbf16>, vector<8x8xbf16>, vector<96x8xf32> -> vector<96x8xf32>
    %69 = arith.addf %59, %68 : vector<96x8xf32>
    %c4_i32_53 = arith.constant 4 : i32
    %70 = arith.muli %arg1, %c4_i32_53 : i32
    %c2_i32_54 = arith.constant 2 : i32
    %71 = arith.addi %c2_i32_54, %70 : i32
    %c0_55 = arith.constant 0 : index
    %72 = arith.index_cast %71 : i32 to index
    %c1_56 = arith.constant 1 : index
    %c0_57 = arith.constant 0 : index
    %73 = vector.load %arg2[%c0_55, %72, %c1_56, %c0_57] : memref<1x20x18x8xbf16, #tpu.memory_space<vmem>>, vector<1x6x16x8xbf16>
    %74 = vector.shape_cast %73 : vector<1x6x16x8xbf16> to vector<6x16x8xbf16>
    %75 = vector.shape_cast %74 : vector<6x16x8xbf16> to vector<96x8xbf16>
    %c7 = arith.constant 7 : index
    %c0_58 = arith.constant 0 : index
    %c0_59 = arith.constant 0 : index
    %76 = vector.load %arg3[%c7, %c0_58, %c0_59] : memref<9x8x8xbf16, #tpu.memory_space<vmem>>, vector<1x8x8xbf16>
    %77 = vector.shape_cast %76 : vector<1x8x8xbf16> to vector<8x8xbf16>
    %cst_60 = arith.constant dense<0.000000e+00> : vector<96x8xf32>
    %78 = tpu.matmul %75, %77, %cst_60 {dimension_numbers = #tpu.dot_dimension_numbers<[1], [0], [0], [1], [0, 0, 1, 1], [], []>} : vector<96x8xbf16>, vector<8x8xbf16>, vector<96x8xf32> -> vector<96x8xf32>
    %79 = arith.addf %69, %78 : vector<96x8xf32>
    %c4_i32_61 = arith.constant 4 : i32
    %80 = arith.muli %arg1, %c4_i32_61 : i32
    %c2_i32_62 = arith.constant 2 : i32
    %81 = arith.addi %c2_i32_62, %80 : i32
    %c0_63 = arith.constant 0 : index
    %82 = arith.index_cast %81 : i32 to index
    %c2_64 = arith.constant 2 : index
    %c0_65 = arith.constant 0 : index
    %83 = vector.load %arg2[%c0_63, %82, %c2_64, %c0_65] : memref<1x20x18x8xbf16, #tpu.memory_space<vmem>>, vector<1x6x16x8xbf16>
    %84 = vector.shape_cast %83 : vector<1x6x16x8xbf16> to vector<6x16x8xbf16>
    %85 = vector.shape_cast %84 : vector<6x16x8xbf16> to vector<96x8xbf16>
    %c8 = arith.constant 8 : index
    %c0_66 = arith.constant 0 : index
    %c0_67 = arith.constant 0 : index
    %86 = vector.load %arg3[%c8, %c0_66, %c0_67] : memref<9x8x8xbf16, #tpu.memory_space<vmem>>, vector<1x8x8xbf16>
    %87 = vector.shape_cast %86 : vector<1x8x8xbf16> to vector<8x8xbf16>
    %cst_68 = arith.constant dense<0.000000e+00> : vector<96x8xf32>
    %88 = tpu.matmul %85, %87, %cst_68 {dimension_numbers = #tpu.dot_dimension_numbers<[1], [0], [0], [1], [0, 0, 1, 1], [], []>} : vector<96x8xbf16>, vector<8x8xbf16>, vector<96x8xf32> -> vector<96x8xf32>
    %89 = arith.addf %79, %88 : vector<96x8xf32>
    %90 = vector.extract_strided_slice %0 {offsets = [0, 0], sizes = [1, 8], strides = [1, 1]} : vector<4x8xf32> to vector<1x8xf32>
    %91 = vector.broadcast %90 : vector<1x8xf32> to vector<96x8xf32>
    %92 = arith.mulf %89, %91 : vector<96x8xf32>
    %93 = vector.extract_strided_slice %0 {offsets = [1, 0], sizes = [1, 8], strides = [1, 1]} : vector<4x8xf32> to vector<1x8xf32>
    %94 = vector.broadcast %93 : vector<1x8xf32> to vector<96x8xf32>
    %95 = arith.addf %92, %94 : vector<96x8xf32>
    %cst_69 = arith.constant 0.000000e+00 : f32
    %96 = vector.broadcast %cst_69 : f32 to vector<96x8xf32>
    %97 = arith.maximumf %95, %96 : vector<96x8xf32>
    %98 = vector.shape_cast %97 : vector<96x8xf32> to vector<6x16x8xf32>
    %99 = arith.truncf %98 : vector<6x16x8xf32> to vector<6x16x8xbf16>
    %c0_70 = arith.constant 0 : index
    %c1_71 = arith.constant 1 : index
    %c0_72 = arith.constant 0 : index
    %100 = vector.load %arg7[%c0_70, %c1_71, %c0_72] : memref<6x18x8xbf16, #tpu.memory_space<vmem>>, vector<6x16x8xbf16>
    tpu.vector_store %arg7[%c0_70, %c1_71, %c0_72], %99 {strides = array<i32>} : memref<6x18x8xbf16, #tpu.memory_space<vmem>>, vector<6x16x8xbf16>,
    %cst_73 = arith.constant 0.000000e+00 : bf16
    %101 = vector.broadcast %cst_73 : bf16 to vector<6x1x8xbf16>
    %c0_74 = arith.constant 0 : index
    %c0_75 = arith.constant 0 : index
    %c0_76 = arith.constant 0 : index
    %102 = vector.load %arg7[%c0_74, %c0_75, %c0_76] : memref<6x18x8xbf16, #tpu.memory_space<vmem>>, vector<6x1x8xbf16>
    tpu.vector_store %arg7[%c0_74, %c0_75, %c0_76], %101 {strides = array<i32>} : memref<6x18x8xbf16, #tpu.memory_space<vmem>>, vector<6x1x8xbf16>,
    %c0_77 = arith.constant 0 : index
    %c17 = arith.constant 17 : index
    %c0_78 = arith.constant 0 : index
    %103 = vector.load %arg7[%c0_77, %c17, %c0_78] : memref<6x18x8xbf16, #tpu.memory_space<vmem>>, vector<6x1x8xbf16>
    tpu.vector_store %arg7[%c0_77, %c17, %c0_78], %101 {strides = array<i32>} : memref<6x18x8xbf16, #tpu.memory_space<vmem>>, vector<6x1x8xbf16>,
    %c0_i32_79 = arith.constant 0 : i32
    %104 = arith.cmpi eq, %arg1, %c0_i32_79 : i32
    %105 = arith.extui %104 : i1 to i32
    %c0_i32_80 = arith.constant 0 : i32
    %106 = arith.cmpi ne, %105, %c0_i32_80 : i32
    scf.if %106 {
      %cst_155 = arith.constant 0.000000e+00 : bf16
      %184 = vector.broadcast %cst_155 : bf16 to vector<1x18x8xbf16>
      %c0_156 = arith.constant 0 : index
      %c0_157 = arith.constant 0 : index
      %c0_158 = arith.constant 0 : index
      %185 = vector.load %arg7[%c0_156, %c0_157, %c0_158] : memref<6x18x8xbf16, #tpu.memory_space<vmem>>, vector<1x18x8xbf16>
      tpu.vector_store %arg7[%c0_156, %c0_157, %c0_158], %184 {strides = array<i32>} : memref<6x18x8xbf16, #tpu.memory_space<vmem>>, vector<1x18x8xbf16>,
    } else {
    }
    %c3_i32 = arith.constant 3 : i32
    %107 = arith.cmpi eq, %arg1, %c3_i32 : i32
    %108 = arith.extui %107 : i1 to i32
    %c0_i32_81 = arith.constant 0 : i32
    %109 = arith.cmpi ne, %108, %c0_i32_81 : i32
    scf.if %109 {
      %cst_155 = arith.constant 0.000000e+00 : bf16
      %184 = vector.broadcast %cst_155 : bf16 to vector<1x18x8xbf16>
      %c5_156 = arith.constant 5 : index
      %c0_157 = arith.constant 0 : index
      %c0_158 = arith.constant 0 : index
      %185 = vector.load %arg7[%c5_156, %c0_157, %c0_158] : memref<6x18x8xbf16, #tpu.memory_space<vmem>>, vector<1x18x8xbf16>
      tpu.vector_store %arg7[%c5_156, %c0_157, %c0_158], %184 {strides = array<i32>} : memref<6x18x8xbf16, #tpu.memory_space<vmem>>, vector<1x18x8xbf16>,
    } else {
    }
    %c0_82 = arith.constant 0 : index
    %c0_83 = arith.constant 0 : index
    %c0_84 = arith.constant 0 : index
    %110 = vector.load %arg7[%c0_82, %c0_83, %c0_84] : memref<6x18x8xbf16, #tpu.memory_space<vmem>>, vector<4x16x8xbf16>
    %111 = vector.shape_cast %110 : vector<4x16x8xbf16> to vector<64x8xbf16>
    %c0_85 = arith.constant 0 : index
    %c0_86 = arith.constant 0 : index
    %c0_87 = arith.constant 0 : index
    %112 = vector.load %arg4[%c0_85, %c0_86, %c0_87] : memref<9x8x8xbf16, #tpu.memory_space<vmem>>, vector<1x8x8xbf16>
    %113 = vector.shape_cast %112 : vector<1x8x8xbf16> to vector<8x8xbf16>
    %cst_88 = arith.constant dense<0.000000e+00> : vector<64x8xf32>
    %114 = tpu.matmul %111, %113, %cst_88 {dimension_numbers = #tpu.dot_dimension_numbers<[1], [0], [0], [1], [0, 0, 1, 1], [], []>} : vector<64x8xbf16>, vector<8x8xbf16>, vector<64x8xf32> -> vector<64x8xf32>
    %c0_89 = arith.constant 0 : index
    %c1_90 = arith.constant 1 : index
    %c0_91 = arith.constant 0 : index
    %115 = vector.load %arg7[%c0_89, %c1_90, %c0_91] : memref<6x18x8xbf16, #tpu.memory_space<vmem>>, vector<4x16x8xbf16>
    %116 = vector.shape_cast %115 : vector<4x16x8xbf16> to vector<64x8xbf16>
    %c1_92 = arith.constant 1 : index
    %c0_93 = arith.constant 0 : index
    %c0_94 = arith.constant 0 : index
    %117 = vector.load %arg4[%c1_92, %c0_93, %c0_94] : memref<9x8x8xbf16, #tpu.memory_space<vmem>>, vector<1x8x8xbf16>
    %118 = vector.shape_cast %117 : vector<1x8x8xbf16> to vector<8x8xbf16>
    %cst_95 = arith.constant dense<0.000000e+00> : vector<64x8xf32>
    %119 = tpu.matmul %116, %118, %cst_95 {dimension_numbers = #tpu.dot_dimension_numbers<[1], [0], [0], [1], [0, 0, 1, 1], [], []>} : vector<64x8xbf16>, vector<8x8xbf16>, vector<64x8xf32> -> vector<64x8xf32>
    %120 = arith.addf %114, %119 : vector<64x8xf32>
    %c0_96 = arith.constant 0 : index
    %c2_97 = arith.constant 2 : index
    %c0_98 = arith.constant 0 : index
    %121 = vector.load %arg7[%c0_96, %c2_97, %c0_98] : memref<6x18x8xbf16, #tpu.memory_space<vmem>>, vector<4x16x8xbf16>
    %122 = vector.shape_cast %121 : vector<4x16x8xbf16> to vector<64x8xbf16>
    %c2_99 = arith.constant 2 : index
    %c0_100 = arith.constant 0 : index
    %c0_101 = arith.constant 0 : index
    %123 = vector.load %arg4[%c2_99, %c0_100, %c0_101] : memref<9x8x8xbf16, #tpu.memory_space<vmem>>, vector<1x8x8xbf16>
    %124 = vector.shape_cast %123 : vector<1x8x8xbf16> to vector<8x8xbf16>
    %cst_102 = arith.constant dense<0.000000e+00> : vector<64x8xf32>
    %125 = tpu.matmul %122, %124, %cst_102 {dimension_numbers = #tpu.dot_dimension_numbers<[1], [0], [0], [1], [0, 0, 1, 1], [], []>} : vector<64x8xbf16>, vector<8x8xbf16>, vector<64x8xf32> -> vector<64x8xf32>
    %126 = arith.addf %120, %125 : vector<64x8xf32>
    %c1_103 = arith.constant 1 : index
    %c0_104 = arith.constant 0 : index
    %c0_105 = arith.constant 0 : index
    %127 = vector.load %arg7[%c1_103, %c0_104, %c0_105] : memref<6x18x8xbf16, #tpu.memory_space<vmem>>, vector<4x16x8xbf16>
    %128 = vector.shape_cast %127 : vector<4x16x8xbf16> to vector<64x8xbf16>
    %c3_106 = arith.constant 3 : index
    %c0_107 = arith.constant 0 : index
    %c0_108 = arith.constant 0 : index
    %129 = vector.load %arg4[%c3_106, %c0_107, %c0_108] : memref<9x8x8xbf16, #tpu.memory_space<vmem>>, vector<1x8x8xbf16>
    %130 = vector.shape_cast %129 : vector<1x8x8xbf16> to vector<8x8xbf16>
    %cst_109 = arith.constant dense<0.000000e+00> : vector<64x8xf32>
    %131 = tpu.matmul %128, %130, %cst_109 {dimension_numbers = #tpu.dot_dimension_numbers<[1], [0], [0], [1], [0, 0, 1, 1], [], []>} : vector<64x8xbf16>, vector<8x8xbf16>, vector<64x8xf32> -> vector<64x8xf32>
    %132 = arith.addf %126, %131 : vector<64x8xf32>
    %c1_110 = arith.constant 1 : index
    %c1_111 = arith.constant 1 : index
    %c0_112 = arith.constant 0 : index
    %133 = vector.load %arg7[%c1_110, %c1_111, %c0_112] : memref<6x18x8xbf16, #tpu.memory_space<vmem>>, vector<4x16x8xbf16>
    %134 = vector.shape_cast %133 : vector<4x16x8xbf16> to vector<64x8xbf16>
    %c4_113 = arith.constant 4 : index
    %c0_114 = arith.constant 0 : index
    %c0_115 = arith.constant 0 : index
    %135 = vector.load %arg4[%c4_113, %c0_114, %c0_115] : memref<9x8x8xbf16, #tpu.memory_space<vmem>>, vector<1x8x8xbf16>
    %136 = vector.shape_cast %135 : vector<1x8x8xbf16> to vector<8x8xbf16>
    %cst_116 = arith.constant dense<0.000000e+00> : vector<64x8xf32>
    %137 = tpu.matmul %134, %136, %cst_116 {dimension_numbers = #tpu.dot_dimension_numbers<[1], [0], [0], [1], [0, 0, 1, 1], [], []>} : vector<64x8xbf16>, vector<8x8xbf16>, vector<64x8xf32> -> vector<64x8xf32>
    %138 = arith.addf %132, %137 : vector<64x8xf32>
    %c1_117 = arith.constant 1 : index
    %c2_118 = arith.constant 2 : index
    %c0_119 = arith.constant 0 : index
    %139 = vector.load %arg7[%c1_117, %c2_118, %c0_119] : memref<6x18x8xbf16, #tpu.memory_space<vmem>>, vector<4x16x8xbf16>
    %140 = vector.shape_cast %139 : vector<4x16x8xbf16> to vector<64x8xbf16>
    %c5_120 = arith.constant 5 : index
    %c0_121 = arith.constant 0 : index
    %c0_122 = arith.constant 0 : index
    %141 = vector.load %arg4[%c5_120, %c0_121, %c0_122] : memref<9x8x8xbf16, #tpu.memory_space<vmem>>, vector<1x8x8xbf16>
    %142 = vector.shape_cast %141 : vector<1x8x8xbf16> to vector<8x8xbf16>
    %cst_123 = arith.constant dense<0.000000e+00> : vector<64x8xf32>
    %143 = tpu.matmul %140, %142, %cst_123 {dimension_numbers = #tpu.dot_dimension_numbers<[1], [0], [0], [1], [0, 0, 1, 1], [], []>} : vector<64x8xbf16>, vector<8x8xbf16>, vector<64x8xf32> -> vector<64x8xf32>
    %144 = arith.addf %138, %143 : vector<64x8xf32>
    %c2_124 = arith.constant 2 : index
    %c0_125 = arith.constant 0 : index
    %c0_126 = arith.constant 0 : index
    %145 = vector.load %arg7[%c2_124, %c0_125, %c0_126] : memref<6x18x8xbf16, #tpu.memory_space<vmem>>, vector<4x16x8xbf16>
    %146 = vector.shape_cast %145 : vector<4x16x8xbf16> to vector<64x8xbf16>
    %c6_127 = arith.constant 6 : index
    %c0_128 = arith.constant 0 : index
    %c0_129 = arith.constant 0 : index
    %147 = vector.load %arg4[%c6_127, %c0_128, %c0_129] : memref<9x8x8xbf16, #tpu.memory_space<vmem>>, vector<1x8x8xbf16>
    %148 = vector.shape_cast %147 : vector<1x8x8xbf16> to vector<8x8xbf16>
    %cst_130 = arith.constant dense<0.000000e+00> : vector<64x8xf32>
    %149 = tpu.matmul %146, %148, %cst_130 {dimension_numbers = #tpu.dot_dimension_numbers<[1], [0], [0], [1], [0, 0, 1, 1], [], []>} : vector<64x8xbf16>, vector<8x8xbf16>, vector<64x8xf32> -> vector<64x8xf32>
    %150 = arith.addf %144, %149 : vector<64x8xf32>
    %c2_131 = arith.constant 2 : index
    %c1_132 = arith.constant 1 : index
    %c0_133 = arith.constant 0 : index
    %151 = vector.load %arg7[%c2_131, %c1_132, %c0_133] : memref<6x18x8xbf16, #tpu.memory_space<vmem>>, vector<4x16x8xbf16>
    %152 = vector.shape_cast %151 : vector<4x16x8xbf16> to vector<64x8xbf16>
    %c7_134 = arith.constant 7 : index
    %c0_135 = arith.constant 0 : index
    %c0_136 = arith.constant 0 : index
    %153 = vector.load %arg4[%c7_134, %c0_135, %c0_136] : memref<9x8x8xbf16, #tpu.memory_space<vmem>>, vector<1x8x8xbf16>
    %154 = vector.shape_cast %153 : vector<1x8x8xbf16> to vector<8x8xbf16>
    %cst_137 = arith.constant dense<0.000000e+00> : vector<64x8xf32>
    %155 = tpu.matmul %152, %154, %cst_137 {dimension_numbers = #tpu.dot_dimension_numbers<[1], [0], [0], [1], [0, 0, 1, 1], [], []>} : vector<64x8xbf16>, vector<8x8xbf16>, vector<64x8xf32> -> vector<64x8xf32>
    %156 = arith.addf %150, %155 : vector<64x8xf32>
    %c2_138 = arith.constant 2 : index
    %c2_139 = arith.constant 2 : index
    %c0_140 = arith.constant 0 : index
    %157 = vector.load %arg7[%c2_138, %c2_139, %c0_140] : memref<6x18x8xbf16, #tpu.memory_space<vmem>>, vector<4x16x8xbf16>
    %158 = vector.shape_cast %157 : vector<4x16x8xbf16> to vector<64x8xbf16>
    %c8_141 = arith.constant 8 : index
    %c0_142 = arith.constant 0 : index
    %c0_143 = arith.constant 0 : index
    %159 = vector.load %arg4[%c8_141, %c0_142, %c0_143] : memref<9x8x8xbf16, #tpu.memory_space<vmem>>, vector<1x8x8xbf16>
    %160 = vector.shape_cast %159 : vector<1x8x8xbf16> to vector<8x8xbf16>
    %cst_144 = arith.constant dense<0.000000e+00> : vector<64x8xf32>
    %161 = tpu.matmul %158, %160, %cst_144 {dimension_numbers = #tpu.dot_dimension_numbers<[1], [0], [0], [1], [0, 0, 1, 1], [], []>} : vector<64x8xbf16>, vector<8x8xbf16>, vector<64x8xf32> -> vector<64x8xf32>
    %162 = arith.addf %156, %161 : vector<64x8xf32>
    %163 = vector.extract_strided_slice %0 {offsets = [2, 0], sizes = [1, 8], strides = [1, 1]} : vector<4x8xf32> to vector<1x8xf32>
    %164 = vector.broadcast %163 : vector<1x8xf32> to vector<64x8xf32>
    %165 = arith.mulf %162, %164 : vector<64x8xf32>
    %166 = vector.extract_strided_slice %0 {offsets = [3, 0], sizes = [1, 8], strides = [1, 1]} : vector<4x8xf32> to vector<1x8xf32>
    %167 = vector.broadcast %166 : vector<1x8xf32> to vector<64x8xf32>
    %168 = arith.addf %165, %167 : vector<64x8xf32>
    %c4_i32_145 = arith.constant 4 : i32
    %169 = arith.muli %arg1, %c4_i32_145 : i32
    %c2_i32_146 = arith.constant 2 : i32
    %170 = arith.addi %c2_i32_146, %169 : i32
    %c0_147 = arith.constant 0 : index
    %171 = arith.index_cast %170 : i32 to index
    %c1_148 = arith.constant 1 : index
    %c0_149 = arith.constant 0 : index
    %172 = vector.load %arg2[%c0_147, %171, %c1_148, %c0_149] : memref<1x20x18x8xbf16, #tpu.memory_space<vmem>>, vector<1x4x16x8xbf16>
    %173 = vector.shape_cast %172 : vector<1x4x16x8xbf16> to vector<4x16x8xbf16>
    %174 = vector.shape_cast %173 : vector<4x16x8xbf16> to vector<64x8xbf16>
    %175 = arith.extf %174 : vector<64x8xbf16> to vector<64x8xf32>
    %176 = arith.addf %168, %175 : vector<64x8xf32>
    %cst_150 = arith.constant 0.000000e+00 : f32
    %177 = vector.broadcast %cst_150 : f32 to vector<64x8xf32>
    %178 = arith.maximumf %176, %177 : vector<64x8xf32>
    %179 = vector.shape_cast %178 : vector<64x8xf32> to vector<4x16x8xf32>
    %180 = arith.truncf %179 : vector<4x16x8xf32> to vector<4x16x8xbf16>
    %c0_151 = arith.constant 0 : index
    %c0_152 = arith.constant 0 : index
    %c0_153 = arith.constant 0 : index
    %c0_154 = arith.constant 0 : index
    %181 = vector.load %arg6[%c0_151, %c0_152, %c0_153, %c0_154] : memref<1x4x16x8xbf16, #tpu.memory_space<vmem>>, vector<1x4x16x8xbf16>
    %182 = vector.shape_cast %181 : vector<1x4x16x8xbf16> to vector<4x16x8xbf16>
    %183 = vector.shape_cast %180 : vector<4x16x8xbf16> to vector<1x4x16x8xbf16>
    tpu.vector_store %arg6[%c0_151, %c0_152, %c0_153, %c0_154], %183 {strides = array<i32>} : memref<1x4x16x8xbf16, #tpu.memory_space<vmem>>, vector<1x4x16x8xbf16>,
    return
  }
  func.func @transform_0(%arg0: i32, %arg1: i32) -> (i32, i32, i32, i32) {
    %c0_i32 = arith.constant 0 : i32
    %c0_i32_0 = arith.constant 0 : i32
    %c0_i32_1 = arith.constant 0 : i32
    %c0_i32_2 = arith.constant 0 : i32
    return %arg0, %c0_i32, %c0_i32_0, %c0_i32_1 : i32, i32, i32, i32
  }
  func.func @transform_1(%arg0: i32, %arg1: i32) -> (i32, i32, i32) {
    %c0_i32 = arith.constant 0 : i32
    %c0_i32_0 = arith.constant 0 : i32
    %c0_i32_1 = arith.constant 0 : i32
    %c0_i32_2 = arith.constant 0 : i32
    return %c0_i32, %c0_i32_0, %c0_i32_1 : i32, i32, i32
  }
  func.func @transform_2(%arg0: i32, %arg1: i32) -> (i32, i32, i32) {
    %c0_i32 = arith.constant 0 : i32
    %c0_i32_0 = arith.constant 0 : i32
    %c0_i32_1 = arith.constant 0 : i32
    %c0_i32_2 = arith.constant 0 : i32
    return %c0_i32, %c0_i32_0, %c0_i32_1 : i32, i32, i32
  }
  func.func @transform_3(%arg0: i32, %arg1: i32) -> (i32, i32) {
    %c0_i32 = arith.constant 0 : i32
    %c0_i32_0 = arith.constant 0 : i32
    %c0_i32_1 = arith.constant 0 : i32
    return %c0_i32, %c0_i32_0 : i32, i32
  }
  func.func @transform_4(%arg0: i32, %arg1: i32) -> (i32, i32, i32, i32) {
    %c0_i32 = arith.constant 0 : i32
    %c0_i32_0 = arith.constant 0 : i32
    %c0_i32_1 = arith.constant 0 : i32
    return %arg0, %arg1, %c0_i32, %c0_i32_0 : i32, i32, i32, i32
  }
}

</mosaic_0001>

<llo_original>
// kernel: tpu_custom_call.1
$region0: #{tpu_custom_call.1}
  #allocation0 [shape = 'u32[]', space=smem, size = 0x4, offset = 0x4, fixed_abs, tag = 'smem constant byte address 0x4 - core index']
  #allocation1 [shape = 'u32[144,128]{1,0:T(1,128)}', space=vmem, size = 0x12000, scoped, tag = 'internal scratch']
  #allocation2 [shape = 'bf16[6,18,8]{2,1,0:T(8,128)(2,1)}', space=vmem, size = 0x9000, scoped, tag = 'scratch operand']
  %s0 = inlined_call_operand.vmem [shape: bf16[2,20,18,8], index: 0, kind: input, shape index: {}]
  %s1 = inlined_call_operand.vmem [shape: bf16[9,8,8], index: 1, kind: input, shape index: {}]
  %s2 = inlined_call_operand.vmem [shape: bf16[9,8,8], index: 2, kind: input, shape index: {}]
  %s3 = inlined_call_operand.vmem [shape: f32[4,8], index: 3, kind: input, shape index: {}]
  %s4 = inlined_call_operand.vmem [shape: bf16[2,16,16,8], index: 4, kind: output, shape index: {}]
  %s5 = sld [smem:[#allocation0]]
  $region57: #{tpu_custom_call.1} parent=0
    _
  %s7 = ssub.s32 1, %s5
  %s8 = scalar_select 0, %s7, %s5
  loop: start=0, step=1, limit=10
  $region2: #{tpu_custom_call.1} parent=0 // loop_pre_header
    _
  $region3: #{tpu_custom_call.1} parent=0 // loop_header
    %s10 = sphi 0, %s14
    %p11 = scmp.ge.s32.totalorder %s10, 10
    %s17 = sphi 0, %s29
    %s18 = sphi 0, %s25
    %s19 = sphi 0, %s17
    %s20 = sphi 0, %s18
    %s21 = sphi 0, %s19
    %s22 = sphi 0, %s20
    %s32 = sphi 0, %s34
    %s35 = sphi 0, %s32
    %s36 = sphi 0, %s35
    %s52 = sphi 0, %s36
    %s56 = sphi 0, %s56
    %s58 = sphi 0, %s56
    %s59 = sphi 0, %s58
    %s73 = sphi 0, %s59
    %s77 = sphi 0, %s77
    %s79 = sphi 0, %s77
    %s80 = sphi 0, %s79
    %s94 = sphi 0, %s80
    %s98 = sphi 0, %s98
    %s100 = sphi 0, %s98
    %s101 = sphi 0, %s100
    %s115 = sphi 0, %s101
    %s123 = sphi 0, %s125
    %s126 = sphi 0, %s123
    %s127 = sphi 0, %s126
    %s143 = sphi 0, %s127
  $region4: #{tpu_custom_call.1} parent=0 // loop_header_branch
    %13 = sbr.rel (%p11) target = $region8
  $region5: #{tpu_custom_call.1} parent=0 // loop_body
    %s15 = ssub.s32 %s10, 1
    %s16 = ssub.s32 %s10, 2
    %s23 = sadd.s32 1, %s18
    %p24 = scmp.ge.s32.totalorder %s23, 4
    %s25 = scalar_select %p24, 0, %s23
    %s26 = sadd.s32 1, %s17
    %s27 = scalar_select %p24, %s26, %s17
    %p28 = scmp.ge.s32.totalorder %s27, 2
    %s29 = scalar_select %p28, 0, %s27
    %s30 = ssub.s32 %s17, %s29
    %p31 = scmp.eq.s32.totalorder %s30, 0
    %s33 = sadd.s32 %s32, 1
    %s34 = scalar_select %p31, %s32, %s33
    %p37 = pneg %p31
    %p38 = scmp.eq.s32.totalorder %s10, 7
    %p39 = por %p37, %p38
    %p40 = scmp.ne.s32.totalorder %s32, %s35
    %p41 = scmp.eq.s32.totalorder %s10, 0
    %p42 = por %p40, %p41
    %p43 = scmp.ne.s32.totalorder %s32, %s35
    %p44 = scmp.eq.s32.totalorder %s15, 7
    %p45 = por %p43, %p44
    %p46 = scmp.ne.s32.totalorder %s35, %s36
    %p47 = scmp.eq.s32.totalorder %s15, 0
    %p48 = por %p46, %p47
    %p49 = scmp.ne.s32.totalorder %s35, %s36
    %p50 = scmp.eq.s32.totalorder %s16, 7
    %p51 = por %p49, %p50
    %p53 = scmp.ne.s32.totalorder %s36, %s52
    %p54 = scmp.eq.s32.totalorder %s16, 0
    %p55 = por %p53, %p54
    %s57 = sadd.s32 %s56, 1
    %p60 = scmp.eq.s32.totalorder %s10, 7
    %p61 = scmp.ne.s32.totalorder %s56, %s58
    %p62 = scmp.eq.s32.totalorder %s10, 0
    %p63 = por %p61, %p62
    %p64 = scmp.ne.s32.totalorder %s56, %s58
    %p65 = scmp.eq.s32.totalorder %s15, 7
    %p66 = por %p64, %p65
    %p67 = scmp.ne.s32.totalorder %s58, %s59
    %p68 = scmp.eq.s32.totalorder %s15, 0
    %p69 = por %p67, %p68
    %p70 = scmp.ne.s32.totalorder %s58, %s59
    %p71 = scmp.eq.s32.totalorder %s16, 7
    %p72 = por %p70, %p71
    %p74 = scmp.ne.s32.totalorder %s59, %s73
    %p75 = scmp.eq.s32.totalorder %s16, 0
    %p76 = por %p74, %p75
    %s78 = sadd.s32 %s77, 1
    %p81 = scmp.eq.s32.totalorder %s10, 7
    %p82 = scmp.ne.s32.totalorder %s77, %s79
    %p83 = scmp.eq.s32.totalorder %s10, 0
    %p84 = por %p82, %p83
    %p85 = scmp.ne.s32.totalorder %s77, %s79
    %p86 = scmp.eq.s32.totalorder %s15, 7
    %p87 = por %p85, %p86
    %p88 = scmp.ne.s32.totalorder %s79, %s80
    %p89 = scmp.eq.s32.totalorder %s15, 0
    %p90 = por %p88, %p89
    %p91 = scmp.ne.s32.totalorder %s79, %s80
    %p92 = scmp.eq.s32.totalorder %s16, 7
    %p93 = por %p91, %p92
    %p95 = scmp.ne.s32.totalorder %s80, %s94
    %p96 = scmp.eq.s32.totalorder %s16, 0
    %p97 = por %p95, %p96
    %s99 = sadd.s32 %s98, 1
    %p102 = scmp.eq.s32.totalorder %s10, 7
    %p103 = scmp.ne.s32.totalorder %s98, %s100
    %p104 = scmp.eq.s32.totalorder %s10, 0
    %p105 = por %p103, %p104
    %p106 = scmp.ne.s32.totalorder %s98, %s100
    %p107 = scmp.eq.s32.totalorder %s15, 7
    %p108 = por %p106, %p107
    %p109 = scmp.ne.s32.totalorder %s100, %s101
    %p110 = scmp.eq.s32.totalorder %s15, 0
    %p111 = por %p109, %p110
    %p112 = scmp.ne.s32.totalorder %s100, %s101
    %p113 = scmp.eq.s32.totalorder %s16, 7
    %p114 = por %p112, %p113
    %p116 = scmp.ne.s32.totalorder %s101, %s115
    %p117 = scmp.eq.s32.totalorder %s16, 0
    %p118 = por %p116, %p117
    %s119 = ssub.s32 %s17, %s29
    %s120 = ssub.s32 %s18, %s25
    %s121 = sor.u32 %s119, %s120
    %p122 = scmp.eq.s32.totalorder %s121, 0
    %s124 = sadd.s32 %s123, 1
    %s125 = scalar_select %p122, %s123, %s124
    %p128 = pneg %p122
    %p129 = scmp.eq.s32.totalorder %s10, 7
    %p130 = por %p128, %p129
    %p131 = scmp.ne.s32.totalorder %s123, %s126
    %p132 = scmp.eq.s32.totalorder %s10, 0
    %p133 = por %p131, %p132
    %p134 = scmp.ne.s32.totalorder %s123, %s126
    %p135 = scmp.eq.s32.totalorder %s15, 7
    %p136 = por %p134, %p135
    %p137 = scmp.ne.s32.totalorder %s126, %s127
    %p138 = scmp.eq.s32.totalorder %s15, 0
    %p139 = por %p137, %p138
    %p140 = scmp.ne.s32.totalorder %s126, %s127
    %p141 = scmp.eq.s32.totalorder %s16, 7
    %p142 = por %p140, %p141
    %p144 = scmp.ne.s32.totalorder %s127, %s143
    %p145 = scmp.eq.s32.totalorder %s16, 0
    %p146 = por %p144, %p145
    %p147 = scmp.le.s32.totalorder 1, %s10
    %p148 = scmp.lt.s32.totalorder %s10, 9
    %p149 = pnand %p147, %p148
    %p150 = pneg %p149
    // Predicated region
    $region9: #{tpu_custom_call.1} parent=5 // pred_check
      _
    $region10: #{tpu_custom_call.1} parent=5 // pred_check_branch
      %152 = sbr.rel (%p149) target = $region12
    $region11: #{tpu_custom_call.1} parent=5 // pred_region
      %s153 = ssub.s32 %s10, 1
      // Predicated region
      $region13: #{tpu_custom_call.1} parent=11 // pred_check
        %p154 = pneg %p69
      $region14: #{tpu_custom_call.1} parent=11 // pred_check_branch
        %156 = sbr.rel (%p154) target = $region16
      $region15: #{tpu_custom_call.1} parent=11 // pred_region
        _
      $region16: #{tpu_custom_call.1} parent=11 // pred_fallthru
        _
      // Predicated region
      $region17: #{tpu_custom_call.1} parent=11 // pred_check
        %p157 = pneg %p90
      $region18: #{tpu_custom_call.1} parent=11 // pred_check_branch
        %159 = sbr.rel (%p157) target = $region20
      $region19: #{tpu_custom_call.1} parent=11 // pred_region
        _
      $region20: #{tpu_custom_call.1} parent=11 // pred_fallthru
        _
      // Predicated region
      $region21: #{tpu_custom_call.1} parent=11 // pred_check
        %p160 = pneg %p111
      $region22: #{tpu_custom_call.1} parent=11 // pred_check_branch
        %162 = sbr.rel (%p160) target = $region24
      $region23: #{tpu_custom_call.1} parent=11 // pred_region
        _
      $region24: #{tpu_custom_call.1} parent=11 // pred_fallthru
        _
    $region12: #{tpu_custom_call.1} parent=5 // pred_fallthru
      _
    %p163 = scmp.lt.s32.totalorder %s10, 8
    // Predicated region
    $region25: #{tpu_custom_call.1} parent=5 // pred_check
      %p164 = pneg %p163
    $region26: #{tpu_custom_call.1} parent=5 // pred_check_branch
      %166 = sbr.rel (%p164) target = $region28
    $region27: #{tpu_custom_call.1} parent=5 // pred_region
      // Predicated region
      $region29: #{tpu_custom_call.1} parent=27 // pred_check
        %p167 = pneg %p42
      $region30: #{tpu_custom_call.1} parent=27 // pred_check_branch
        %169 = sbr.rel (%p167) target = $region32
      $region31: #{tpu_custom_call.1} parent=27 // pred_region
        %p170 = scmp.lt.s32.totalorder %s17, 1
        %s171 = scalar_select %p170, %s17, 1
        %s172 = smul.addr %s171, 60
        %s173 = smul.addr %s172, 4
        %s174 = scalar_lea.vmem %s0, %s173
      $region32: #{tpu_custom_call.1} parent=27 // pred_fallthru
        _
    $region28: #{tpu_custom_call.1} parent=5 // pred_fallthru
      _
    %p175 = scmp.le.s32.totalorder 1, %s10
    %p176 = scmp.lt.s32.totalorder %s10, 9
    %p177 = pnand %p175, %p176
    %p178 = pneg %p177
    // Predicated region
    $region33: #{tpu_custom_call.1} parent=5 // pred_check
      _
    $region34: #{tpu_custom_call.1} parent=5 // pred_check_branch
      %180 = sbr.rel (%p177) target = $region36
    $region35: #{tpu_custom_call.1} parent=5 // pred_region
      %s181 = ssub.s32 %s10, 1
      %p182 = scmp.lt.s32.totalorder %s19, 1
      %s183 = scalar_select %p182, %s19, 1
      %s184 = smul.addr %s183, 60
      %s185 = smul.addr %s184, 4
      %s186 = scalar_lea.vmem %s0, %s185
      %p187 = pneg %p48
      %p188 = pneg %p45
      %p189 = pneg %p69
      %p190 = pneg %p66
      %p191 = pneg %p90
      %p192 = pneg %p87
      %p193 = pneg %p111
      %p194 = pneg %p108
      %p195 = pneg %p139
      %p196 = pneg %p136
      %s197 = smul.u32 4, %s20
      %p198 = scmp.lt.s32.totalorder %s19, 1
      %s199 = scalar_select %p198, %s19, 1
      %p200 = scmp.lt.s32.totalorder %s197, 15
      %s201 = scalar_select %p200, %s197, 15
      %s202 = smul.addr %s201, 2
      %s203 = smul.addr %s199, 32
      %s204 = sadd.s32 %s202, %s203
      %s205 = smul.addr %s204, 4
      %s206 = scalar_lea.vmem %s4, %s205
      %p207 = scmp.lt.s32.totalorder %s19, 1
      %s208 = scalar_select %p207, %s19, 1
      %s209 = smul.addr %s208, 60
      %s210 = smul.addr %s209, 4
      %s211 = scalar_lea.vmem %s0, %s210
      %s212 = smul.u32 4, %s20
      %p213 = scmp.lt.s32.totalorder %s19, 1
      %s214 = scalar_select %p213, %s19, 1
      %p215 = scmp.lt.s32.totalorder %s212, 15
      %s216 = scalar_select %p215, %s212, 15
      %s217 = smul.addr %s216, 2
      %s218 = smul.addr %s214, 32
      %s219 = sadd.s32 %s217, %s218
      %s220 = smul.addr %s219, 4
      %s221 = scalar_lea.vmem %s4, %s220
      %s222 = smul.u32 4, %s20
      %v224 = vld [vmem:[%s3] sm:$0xf]
      %s225 = smul.u32 %s20, 4
      %s226 = smul.u32 %s225, 3
      %s227 = smul.addr %s226, 4
      %s228 = scalar_lea.vmem %s211, %s227
      %v229 = vld [vmem:[%s228] sm:$0xf]
      %v230 = vld [vmem:[%s228 + $0x4] sm:$0xf]
      %v231 = vld [vmem:[%s228 + $0xc] sm:$0xf]
      %v232 = vld [vmem:[%s228 + $0x10] sm:$0xf]
      %v233 = vld [vmem:[%s228 + $0x18] sm:$0xf]
      %v234 = vld [vmem:[%s228 + $0x1c] sm:$0xf]
      %v235 = vld [vmem:[%s228 + $0x24] sm:$0xf]
      %v236 = vld [vmem:[%s228 + $0x28] sm:$0xf]
      %v237 = vld [vmem:[%s228 + $0x30] sm:$0xf]
      %v238 = vld [vmem:[%s228 + $0x34] sm:$0xf]
      %v239 = vld [vmem:[%s228 + $0x3c] sm:$0xf]
      %v240 = vld [vmem:[%s228 + $0x40] sm:$0xf]
      %v241 = vld [vmem:[%s1] sm:$0xf]
      %v242 = vld [vmem:[%s228 + $0x8] sm:$0x1]
      %v243 = vld [vmem:[%s228 + $0x14] sm:$0x1]
      %v244 = vld [vmem:[%s228 + $0x20] sm:$0x1]
      %v245 = vld [vmem:[%s228 + $0x2c] sm:$0x1]
      %v246 = vld [vmem:[%s228 + $0x38] sm:$0x1]
      %v247 = vld [vmem:[%s228 + $0x44] sm:$0x1]
      %vm248 = vsmask.f32 3328
      %vm249 = vsmask.f32 7440
      %vm250 = vmor %vm248, %vm249
      %v252 = vshrl.u32 %v229, 16
      %v254 = vrot.slane %v252, 4
      %v255 = vshll.u32 %v229, 16
      %v257 = vrot.slane %v255, 5
      %v258 = vor.u32 %v254, %v257
      %v259 = vrot.slane %v258, 4
      %v261 = vshll.u32 %v230, 16
      %v263 = vrot.slane %v261, 5
      %v264 = vsel %vm250, %v259, %v263
      %v265 = vshrl.u32 %v230, 16
      %v267 = vrot.slane %v265, 4
      %v268 = vor.u32 %v267, %v263
      %v269 = vrot.slane %v268, 4
      %v271 = vshll.u32 %v242, 16
      %v273 = vrot.slane %v271, 5
      %v274 = vsel %vm250, %v269, %v273
      %v276 = vshrl.u32 %v231, 16
      %v278 = vrot.slane %v276, 4
      %v279 = vshll.u32 %v231, 16
      %v281 = vrot.slane %v279, 5
      %v282 = vor.u32 %v278, %v281
      %v283 = vrot.slane %v282, 4
      %v285 = vshll.u32 %v232, 16
      %v287 = vrot.slane %v285, 5
      %v288 = vsel %vm250, %v283, %v287
      %v289 = vshrl.u32 %v232, 16
      %v291 = vrot.slane %v289, 4
      %v292 = vor.u32 %v291, %v287
      %v293 = vrot.slane %v292, 4
      %v295 = vshll.u32 %v243, 16
      %v297 = vrot.slane %v295, 5
      %v298 = vsel %vm250, %v293, %v297
      %v300 = vshrl.u32 %v233, 16
      %v302 = vrot.slane %v300, 4
      %v303 = vshll.u32 %v233, 16
      %v305 = vrot.slane %v303, 5
      %v306 = vor.u32 %v302, %v305
      %v307 = vrot.slane %v306, 4
      %v309 = vshll.u32 %v234, 16
      %v311 = vrot.slane %v309, 5
      %v312 = vsel %vm250, %v307, %v311
      %v313 = vshrl.u32 %v234, 16
      %v315 = vrot.slane %v313, 4
      %v316 = vor.u32 %v315, %v311
      %v317 = vrot.slane %v316, 4
      %v319 = vshll.u32 %v244, 16
      %v321 = vrot.slane %v319, 5
      %v322 = vsel %vm250, %v317, %v321
      %v324 = vshrl.u32 %v235, 16
      %v326 = vrot.slane %v324, 4
      %v327 = vshll.u32 %v235, 16
      %v329 = vrot.slane %v327, 5
      %v330 = vor.u32 %v326, %v329
      %v331 = vrot.slane %v330, 4
      %v333 = vshll.u32 %v236, 16
      %v335 = vrot.slane %v333, 5
      %v336 = vsel %vm250, %v331, %v335
      %v337 = vshrl.u32 %v236, 16
      %v339 = vrot.slane %v337, 4
      %v340 = vor.u32 %v339, %v335
      %v341 = vrot.slane %v340, 4
      %v343 = vshll.u32 %v245, 16
      %v345 = vrot.slane %v343, 5
      %v346 = vsel %vm250, %v341, %v345
      %v348 = vshrl.u32 %v237, 16
      %v350 = vrot.slane %v348, 4
      %v351 = vshll.u32 %v237, 16
      %v353 = vrot.slane %v351, 5
      %v354 = vor.u32 %v350, %v353
      %v355 = vrot.slane %v354, 4
      %v357 = vshll.u32 %v238, 16
      %v359 = vrot.slane %v357, 5
      %v360 = vsel %vm250, %v355, %v359
      %v361 = vshrl.u32 %v238, 16
      %v363 = vrot.slane %v361, 4
      %v364 = vor.u32 %v363, %v359
      %v365 = vrot.slane %v364, 4
      %v367 = vshll.u32 %v246, 16
      %v369 = vrot.slane %v367, 5
      %v370 = vsel %vm250, %v365, %v369
      %v372 = vshrl.u32 %v239, 16
      %v374 = vrot.slane %v372, 4
      %v375 = vshll.u32 %v239, 16
      %v377 = vrot.slane %v375, 5
      %v378 = vor.u32 %v374, %v377
      %v379 = vrot.slane %v378, 4
      %v381 = vshll.u32 %v240, 16
      %v383 = vrot.slane %v381, 5
      %v384 = vsel %vm250, %v379, %v383
      %v385 = vshrl.u32 %v240, 16
      %v387 = vrot.slane %v385, 4
      %v388 = vor.u32 %v387, %v383
      %v389 = vrot.slane %v388, 4
      %v391 = vshll.u32 %v247, 16
      %v393 = vrot.slane %v391, 5
      %v394 = vsel %vm250, %v389, %v393
      %s395 = scalar_lea.vmem %s1, 4
      %v396 = vld [vmem:[%s395] sm:$0xf]
      %v397 = vunpack.c.l.b16 %v264
      %v398 = vunpack.c.l.b16 %v274
      %v399 = vunpack.c.l.b16 %v288
      %v400 = vunpack.c.l.b16 %v298
      %v401 = vunpack.c.l.b16 %v312
      %v402 = vunpack.c.l.b16 %v322
      %v403 = vunpack.c.l.b16 %v336
      %v404 = vunpack.c.l.b16 %v346
      %v405 = vunpack.c.l.b16 %v360
      %v406 = vunpack.c.l.b16 %v370
      %v407 = vunpack.c.l.b16 %v384
      %v408 = vunpack.c.l.b16 %v394
      %v409 = vpack.c.b16 %v398, %v397
      %v410 = vpack.c.b16 %v400, %v399
      %v411 = vpack.c.b16 %v402, %v401
      %v412 = vpack.c.b16 %v404, %v403
      %v413 = vpack.c.b16 %v406, %v405
      %v414 = vpack.c.b16 %v408, %v407
      %vm415 = vcmask 64512
      %v417 = vsel %vm415, %v409, 0
      %v420 = vsel %vm415, %v410, 0
      %v423 = vsel %vm415, %v411, 0
      %v426 = vsel %vm415, %v412, 0
      %v429 = vsel %vm415, %v413, 0
      %v432 = vsel %vm415, %v414, 0
      %vm434 = vcmask 1043456
      %v436 = vsel %vm434, %v396, 0
      %438 = vmatprep.subr.bf16.mxu0 0
      %439 = vmatpush1.bf16.msra.mxu0 %v436
      %440 = vmatprep.subr.bf16.mxu0 0
      %441 = vmatpush1.bf16.msra.mxu0 0
      %442 = vmatprep.subr.bf16.mxu0 0
      %443 = vmatpush1.bf16.msra.mxu0 0
      %444 = vmatprep.subr.bf16.mxu0 0
      %445 = vmatpush1.bf16.msra.mxu0 0
      %446 = vmatprep.subr.bf16.mxu0 0
      %447 = vmatpush1.bf16.msra.mxu0 0
      %448 = vmatprep.subr.bf16.mxu0 0
      %449 = vmatpush1.bf16.msra.mxu0 0
      %450 = vmatprep.subr.bf16.mxu0 0
      %451 = vmatpush1.bf16.msra.mxu0 0
      %452 = vmatprep.subr.bf16.mxu0 0
      %453 = vmatpush1.bf16.msra.mxu0 0
      %454 = vmatprep.subr.bf16.mxu0 0
      %455 = vmatpush1.bf16.msra.mxu0 0
      %456 = vmatprep.subr.bf16.mxu0 0
      %457 = vmatpush1.bf16.msra.mxu0 0
      %458 = vmatprep.subr.bf16.mxu0 0
      %459 = vmatpush1.bf16.msra.mxu0 0
      %460 = vmatprep.subr.bf16.mxu0 0
      %461 = vmatpush1.bf16.msra.mxu0 0
      %462 = vmatprep.subr.bf16.mxu0 0
      %463 = vmatpush1.bf16.msra.mxu0 0
      %464 = vmatprep.subr.bf16.mxu0 0
      %465 = vmatpush1.bf16.msra.mxu0 0
      %466 = vmatprep.subr.bf16.mxu0 0
      %467 = vmatpush1.bf16.msra.mxu0 0
      %468 = vmatprep.subr.bf16.mxu0 0
      %469 = vmatpush1.bf16.msra.mxu0 0
      %470 = vmatprep.mubr.bf16.mxu0 0
      %471 = vmatmul.mubr.bf16.gmra.mrb[0].mxu0 %v417
      %v472 = vpop.f32.mrb[0].mxu0
      %v473 = vadd.f32 0.0, %v472
      %v474 = vpop.f32.mrb[0].mxu0
      %v475 = vpop.f32.mrb[0].mxu0
      %v476 = vadd.f32 0.0, %v475
      %v477 = vpop.f32.mrb[0].mxu0
      %478 = vmatprep.mubr.bf16.mxu0 0
      %479 = vmatmul.mubr.bf16.gmra.mrb[0].mxu0 %v420
      %v480 = vpop.f32.mrb[0].mxu0
      %v481 = vadd.f32 0.0, %v480
      %v482 = vpop.f32.mrb[0].mxu0
      %v483 = vpop.f32.mrb[0].mxu0
      %v484 = vadd.f32 0.0, %v483
      %v485 = vpop.f32.mrb[0].mxu0
      %486 = vmatprep.mubr.bf16.mxu0 0
      %487 = vmatmul.mubr.bf16.gmra.mrb[0].mxu0 %v423
      %v488 = vpop.f32.mrb[0].mxu0
      %v489 = vadd.f32 0.0, %v488
      %v490 = vpop.f32.mrb[0].mxu0
      %v491 = vpop.f32.mrb[0].mxu0
      %v492 = vadd.f32 0.0, %v491
      %v493 = vpop.f32.mrb[0].mxu0
      %494 = vmatprep.mubr.bf16.mxu0 0
      %495 = vmatmul.mubr.bf16.gmra.mrb[0].mxu0 %v426
      %v496 = vpop.f32.mrb[0].mxu0
      %v497 = vadd.f32 0.0, %v496
      %v498 = vpop.f32.mrb[0].mxu0
      %v499 = vpop.f32.mrb[0].mxu0
      %v500 = vadd.f32 0.0, %v499
      %v501 = vpop.f32.mrb[0].mxu0
      %502 = vmatprep.mubr.bf16.mxu0 0
      %503 = vmatmul.mubr.bf16.gmra.mrb[0].mxu0 %v429
      %v504 = vpop.f32.mrb[0].mxu0
      %v505 = vadd.f32 0.0, %v504
      %v506 = vpop.f32.mrb[0].mxu0
      %v507 = vpop.f32.mrb[0].mxu0
      %v508 = vadd.f32 0.0, %v507
      %v509 = vpop.f32.mrb[0].mxu0
      %510 = vmatprep.mubr.bf16.mxu0 0
      %511 = vmatmul.mubr.bf16.gmra.mrb[0].mxu0 %v432
      %v512 = vpop.f32.mrb[0].mxu0
      %v513 = vadd.f32 0.0, %v512
      %v514 = vpop.f32.mrb[0].mxu0
      %v515 = vpop.f32.mrb[0].mxu0
      %v516 = vadd.f32 0.0, %v515
      %v517 = vpop.f32.mrb[0].mxu0
      %518 = vdwg.mxu0
      %v531 = vunpack.c.l.b16 %v229
      %v532 = vunpack.c.l.b16 %v230
      %v533 = vunpack.c.l.b16 %v231
      %v534 = vunpack.c.l.b16 %v232
      %v535 = vunpack.c.l.b16 %v233
      %v536 = vunpack.c.l.b16 %v234
      %v537 = vunpack.c.l.b16 %v235
      %v538 = vunpack.c.l.b16 %v236
      %v539 = vunpack.c.l.b16 %v237
      %v540 = vunpack.c.l.b16 %v238
      %v541 = vunpack.c.l.b16 %v239
      %v542 = vunpack.c.l.b16 %v240
      %v543 = vpack.c.b16 %v532, %v531
      %v544 = vpack.c.b16 %v534, %v533
      %v545 = vpack.c.b16 %v536, %v535
      %v546 = vpack.c.b16 %v538, %v537
      %v547 = vpack.c.b16 %v540, %v539
      %v548 = vpack.c.b16 %v542, %v541
      %v550 = vsel %vm415, %v543, 0
      %v553 = vsel %vm415, %v544, 0
      %v556 = vsel %vm415, %v545, 0
      %v559 = vsel %vm415, %v546, 0
      %v562 = vsel %vm415, %v547, 0
      %v565 = vsel %vm415, %v548, 0
      %v568 = vsel %vm434, %v241, 0
      %570 = vmatprep.subr.bf16.mxu0 0
      %571 = vmatpush1.bf16.msra.mxu0 %v568
      %572 = vmatprep.subr.bf16.mxu0 0
      %573 = vmatpush1.bf16.msra.mxu0 0
      %574 = vmatprep.subr.bf16.mxu0 0
      %575 = vmatpush1.bf16.msra.mxu0 0
      %576 = vmatprep.subr.bf16.mxu0 0
      %577 = vmatpush1.bf16.msra.mxu0 0
      %578 = vmatprep.subr.bf16.mxu0 0
      %579 = vmatpush1.bf16.msra.mxu0 0
      %580 = vmatprep.subr.bf16.mxu0 0
      %581 = vmatpush1.bf16.msra.mxu0 0
      %582 = vmatprep.subr.bf16.mxu0 0
      %583 = vmatpush1.bf16.msra.mxu0 0
      %584 = vmatprep.subr.bf16.mxu0 0
      %585 = vmatpush1.bf16.msra.mxu0 0
      %586 = vmatprep.subr.bf16.mxu0 0
      %587 = vmatpush1.bf16.msra.mxu0 0
      %588 = vmatprep.subr.bf16.mxu0 0
      %589 = vmatpush1.bf16.msra.mxu0 0
      %590 = vmatprep.subr.bf16.mxu0 0
      %591 = vmatpush1.bf16.msra.mxu0 0
      %592 = vmatprep.subr.bf16.mxu0 0
      %593 = vmatpush1.bf16.msra.mxu0 0
      %594 = vmatprep.subr.bf16.mxu0 0
      %595 = vmatpush1.bf16.msra.mxu0 0
      %596 = vmatprep.subr.bf16.mxu0 0
      %597 = vmatpush1.bf16.msra.mxu0 0
      %598 = vmatprep.subr.bf16.mxu0 0
      %599 = vmatpush1.bf16.msra.mxu0 0
      %600 = vmatprep.subr.bf16.mxu0 0
      %601 = vmatpush1.bf16.msra.mxu0 0
      %602 = vmatprep.mubr.bf16.mxu0 0
      %603 = vmatmul.mubr.bf16.gmra.mrb[0].mxu0 %v550
      %v604 = vpop.f32.mrb[0].mxu0
      %v605 = vadd.f32 %v473, %v604
      %v606 = vpop.f32.mrb[0].mxu0
      %v607 = vpop.f32.mrb[0].mxu0
      %v608 = vadd.f32 %v476, %v607
      %v609 = vpop.f32.mrb[0].mxu0
      %610 = vmatprep.mubr.bf16.mxu0 0
      %611 = vmatmul.mubr.bf16.gmra.mrb[0].mxu0 %v553
      %v612 = vpop.f32.mrb[0].mxu0
      %v613 = vadd.f32 %v481, %v612
      %v614 = vpop.f32.mrb[0].mxu0
      %v615 = vpop.f32.mrb[0].mxu0
      %v616 = vadd.f32 %v484, %v615
      %v617 = vpop.f32.mrb[0].mxu0
      %618 = vmatprep.mubr.bf16.mxu0 0
      %619 = vmatmul.mubr.bf16.gmra.mrb[0].mxu0 %v556
      %v620 = vpop.f32.mrb[0].mxu0
      %v621 = vadd.f32 %v489, %v620
      %v622 = vpop.f32.mrb[0].mxu0
      %v623 = vpop.f32.mrb[0].mxu0
      %v624 = vadd.f32 %v492, %v623
      %v625 = vpop.f32.mrb[0].mxu0
      %626 = vmatprep.mubr.bf16.mxu0 0
      %627 = vmatmul.mubr.bf16.gmra.mrb[0].mxu0 %v559
      %v628 = vpop.f32.mrb[0].mxu0
      %v629 = vadd.f32 %v497, %v628
      %v630 = vpop.f32.mrb[0].mxu0
      %v631 = vpop.f32.mrb[0].mxu0
      %v632 = vadd.f32 %v500, %v631
      %v633 = vpop.f32.mrb[0].mxu0
      %634 = vmatprep.mubr.bf16.mxu0 0
      %635 = vmatmul.mubr.bf16.gmra.mrb[0].mxu0 %v562
      %v636 = vpop.f32.mrb[0].mxu0
      %v637 = vadd.f32 %v505, %v636
      %v638 = vpop.f32.mrb[0].mxu0
      %v639 = vpop.f32.mrb[0].mxu0
      %v640 = vadd.f32 %v508, %v639
      %v641 = vpop.f32.mrb[0].mxu0
      %642 = vmatprep.mubr.bf16.mxu0 0
      %643 = vmatmul.mubr.bf16.gmra.mrb[0].mxu0 %v565
      %v644 = vpop.f32.mrb[0].mxu0
      %v645 = vadd.f32 %v513, %v644
      %v646 = vpop.f32.mrb[0].mxu0
      %v647 = vpop.f32.mrb[0].mxu0
      %v648 = vadd.f32 %v516, %v647
      %v649 = vpop.f32.mrb[0].mxu0
      %650 = vdwg.mxu0
      %v651 = vld [vmem:[%s228] sm:$0xe]
      %v652 = vld [vmem:[%s228 + $0xc] sm:$0xe]
      %v653 = vld [vmem:[%s228 + $0x18] sm:$0xe]
      %v654 = vld [vmem:[%s228 + $0x24] sm:$0xe]
      %v655 = vld [vmem:[%s228 + $0x30] sm:$0xe]
      %v656 = vld [vmem:[%s228 + $0x3c] sm:$0xe]
      %vm669 = vcmask 1042432
      %vm670 = vcmask 1046532
      %vm671 = vmor %vm669, %vm670
      %v672 = vrot.slane %v651, 5
      %v673 = vrot.slane %v672, 4
      %v674 = vrot.slane %v230, 5
      %v675 = vsel %vm671, %v673, %v674
      %v676 = vrot.slane %v674, 4
      %v677 = vrot.slane %v242, 5
      %v678 = vsel %vm671, %v676, %v677
      %v679 = vrot.slane %v652, 5
      %v680 = vrot.slane %v679, 4
      %v681 = vrot.slane %v232, 5
      %v682 = vsel %vm671, %v680, %v681
      %v683 = vrot.slane %v681, 4
      %v684 = vrot.slane %v243, 5
      %v685 = vsel %vm671, %v683, %v684
      %v686 = vrot.slane %v653, 5
      %v687 = vrot.slane %v686, 4
      %v688 = vrot.slane %v234, 5
      %v689 = vsel %vm671, %v687, %v688
      %v690 = vrot.slane %v688, 4
      %v691 = vrot.slane %v244, 5
      %v692 = vsel %vm671, %v690, %v691
      %v693 = vrot.slane %v654, 5
      %v694 = vrot.slane %v693, 4
      %v695 = vrot.slane %v236, 5
      %v696 = vsel %vm671, %v694, %v695
      %v697 = vrot.slane %v695, 4
      %v698 = vrot.slane %v245, 5
      %v699 = vsel %vm671, %v697, %v698
      %v700 = vrot.slane %v655, 5
      %v701 = vrot.slane %v700, 4
      %v702 = vrot.slane %v238, 5
      %v703 = vsel %vm671, %v701, %v702
      %v704 = vrot.slane %v702, 4
      %v705 = vrot.slane %v246, 5
      %v706 = vsel %vm671, %v704, %v705
      %v707 = vrot.slane %v656, 5
      %v708 = vrot.slane %v707, 4
      %v709 = vrot.slane %v240, 5
      %v710 = vsel %vm671, %v708, %v709
      %v711 = vrot.slane %v709, 4
      %v712 = vrot.slane %v247, 5
      %v713 = vsel %vm671, %v711, %v712
      %s714 = scalar_lea.vmem %s1, 8
      %v715 = vld [vmem:[%s714] sm:$0xf]
      %v716 = vunpack.c.l.b16 %v675
      %v717 = vunpack.c.l.b16 %v678
      %v718 = vunpack.c.l.b16 %v682
      %v719 = vunpack.c.l.b16 %v685
      %v720 = vunpack.c.l.b16 %v689
      %v721 = vunpack.c.l.b16 %v692
      %v722 = vunpack.c.l.b16 %v696
      %v723 = vunpack.c.l.b16 %v699
      %v724 = vunpack.c.l.b16 %v703
      %v725 = vunpack.c.l.b16 %v706
      %v726 = vunpack.c.l.b16 %v710
      %v727 = vunpack.c.l.b16 %v713
      %v728 = vpack.c.b16 %v717, %v716
      %v729 = vpack.c.b16 %v719, %v718
      %v730 = vpack.c.b16 %v721, %v720
      %v731 = vpack.c.b16 %v723, %v722
      %v732 = vpack.c.b16 %v725, %v724
      %v733 = vpack.c.b16 %v727, %v726
      %v735 = vsel %vm415, %v728, 0
      %v738 = vsel %vm415, %v729, 0
      %v741 = vsel %vm415, %v730, 0
      %v744 = vsel %vm415, %v731, 0
      %v747 = vsel %vm415, %v732, 0
      %v750 = vsel %vm415, %v733, 0
      %v753 = vsel %vm434, %v715, 0
      %755 = vmatprep.subr.bf16.mxu0 0
      %756 = vmatpush1.bf16.msra.mxu0 %v753
      %757 = vmatprep.subr.bf16.mxu0 0
      %758 = vmatpush1.bf16.msra.mxu0 0
      %759 = vmatprep.subr.bf16.mxu0 0
      %760 = vmatpush1.bf16.msra.mxu0 0
      %761 = vmatprep.subr.bf16.mxu0 0
      %762 = vmatpush1.bf16.msra.mxu0 0
      %763 = vmatprep.subr.bf16.mxu0 0
      %764 = vmatpush1.bf16.msra.mxu0 0
      %765 = vmatprep.subr.bf16.mxu0 0
      %766 = vmatpush1.bf16.msra.mxu0 0
      %767 = vmatprep.subr.bf16.mxu0 0
      %768 = vmatpush1.bf16.msra.mxu0 0
      %769 = vmatprep.subr.bf16.mxu0 0
      %770 = vmatpush1.bf16.msra.mxu0 0
      %771 = vmatprep.subr.bf16.mxu0 0
      %772 = vmatpush1.bf16.msra.mxu0 0
      %773 = vmatprep.subr.bf16.mxu0 0
      %774 = vmatpush1.bf16.msra.mxu0 0
      %775 = vmatprep.subr.bf16.mxu0 0
      %776 = vmatpush1.bf16.msra.mxu0 0
      %777 = vmatprep.subr.bf16.mxu0 0
      %778 = vmatpush1.bf16.msra.mxu0 0
      %779 = vmatprep.subr.bf16.mxu0 0
      %780 = vmatpush1.bf16.msra.mxu0 0
      %781 = vmatprep.subr.bf16.mxu0 0
      %782 = vmatpush1.bf16.msra.mxu0 0
      %783 = vmatprep.subr.bf16.mxu0 0
      %784 = vmatpush1.bf16.msra.mxu0 0
      %785 = vmatprep.subr.bf16.mxu0 0
      %786 = vmatpush1.bf16.msra.mxu0 0
      %787 = vmatprep.mubr.bf16.mxu0 0
      %788 = vmatmul.mubr.bf16.gmra.mrb[0].mxu0 %v735
      %v789 = vpop.f32.mrb[0].mxu0
      %v790 = vadd.f32 0.0, %v789
      %v791 = vpop.f32.mrb[0].mxu0
      %v792 = vpop.f32.mrb[0].mxu0
      %v793 = vadd.f32 0.0, %v792
      %v794 = vpop.f32.mrb[0].mxu0
      %795 = vmatprep.mubr.bf16.mxu0 0
      %796 = vmatmul.mubr.bf16.gmra.mrb[0].mxu0 %v738
      %v797 = vpop.f32.mrb[0].mxu0
      %v798 = vadd.f32 0.0, %v797
      %v799 = vpop.f32.mrb[0].mxu0
      %v800 = vpop.f32.mrb[0].mxu0
      %v801 = vadd.f32 0.0, %v800
      %v802 = vpop.f32.mrb[0].mxu0
      %803 = vmatprep.mubr.bf16.mxu0 0
      %804 = vmatmul.mubr.bf16.gmra.mrb[0].mxu0 %v741
      %v805 = vpop.f32.mrb[0].mxu0
      %v806 = vadd.f32 0.0, %v805
      %v807 = vpop.f32.mrb[0].mxu0
      %v808 = vpop.f32.mrb[0].mxu0
      %v809 = vadd.f32 0.0, %v808
      %v810 = vpop.f32.mrb[0].mxu0
      %811 = vmatprep.mubr.bf16.mxu0 0
      %812 = vmatmul.mubr.bf16.gmra.mrb[0].mxu0 %v744
      %v813 = vpop.f32.mrb[0].mxu0
      %v814 = vadd.f32 0.0, %v813
      %v815 = vpop.f32.mrb[0].mxu0
      %v816 = vpop.f32.mrb[0].mxu0
      %v817 = vadd.f32 0.0, %v816
      %v818 = vpop.f32.mrb[0].mxu0
      %819 = vmatprep.mubr.bf16.mxu0 0
      %820 = vmatmul.mubr.bf16.gmra.mrb[0].mxu0 %v747
      %v821 = vpop.f32.mrb[0].mxu0
      %v822 = vadd.f32 0.0, %v821
      %v823 = vpop.f32.mrb[0].mxu0
      %v824 = vpop.f32.mrb[0].mxu0
      %v825 = vadd.f32 0.0, %v824
      %v826 = vpop.f32.mrb[0].mxu0
      %827 = vmatprep.mubr.bf16.mxu0 0
      %828 = vmatmul.mubr.bf16.gmra.mrb[0].mxu0 %v750
      %v829 = vpop.f32.mrb[0].mxu0
      %v830 = vadd.f32 0.0, %v829
      %v831 = vpop.f32.mrb[0].mxu0
      %v832 = vpop.f32.mrb[0].mxu0
      %v833 = vadd.f32 0.0, %v832
      %v834 = vpop.f32.mrb[0].mxu0
      %835 = vdwg.mxu0
      %v836 = vadd.f32 %v605, %v790
      %v837 = vadd.f32 %v608, %v793
      %v838 = vadd.f32 %v613, %v798
      %v839 = vadd.f32 %v616, %v801
      %v840 = vadd.f32 %v621, %v806
      %v841 = vadd.f32 %v624, %v809
      %v842 = vadd.f32 %v629, %v814
      %v843 = vadd.f32 %v632, %v817
      %v844 = vadd.f32 %v637, %v822
      %v845 = vadd.f32 %v640, %v825
      %v846 = vadd.f32 %v645, %v830
      %v847 = vadd.f32 %v648, %v833
      %s848 = sadd.s32 %s225, 1
      %s849 = smul.u32 %s848, 3
      %s850 = smul.addr %s849, 4
      %s851 = scalar_lea.vmem %s211, %s850
      %v852 = vld [vmem:[%s851] sm:$0xf]
      %v853 = vld [vmem:[%s851 + $0x4] sm:$0xf]
      %v854 = vld [vmem:[%s851 + $0xc] sm:$0xf]
      %v855 = vld [vmem:[%s851 + $0x10] sm:$0xf]
      %v856 = vld [vmem:[%s851 + $0x18] sm:$0xf]
      %v857 = vld [vmem:[%s851 + $0x1c] sm:$0xf]
      %v858 = vld [vmem:[%s851 + $0x24] sm:$0xf]
      %v859 = vld [vmem:[%s851 + $0x28] sm:$0xf]
      %v860 = vld [vmem:[%s851 + $0x30] sm:$0xf]
      %v861 = vld [vmem:[%s851 + $0x34] sm:$0xf]
      %v862 = vld [vmem:[%s851 + $0x3c] sm:$0xf]
      %v863 = vld [vmem:[%s851 + $0x40] sm:$0xf]
      %s864 = scalar_lea.vmem %s1, 12
      %v865 = vld [vmem:[%s864] sm:$0xf]
      %v878 = vunpack.c.l.b16 %v852
      %v879 = vunpack.c.l.b16 %v853
      %v880 = vunpack.c.l.b16 %v854
      %v881 = vunpack.c.l.b16 %v855
      %v882 = vunpack.c.l.b16 %v856
      %v883 = vunpack.c.l.b16 %v857
      %v884 = vunpack.c.l.b16 %v858
      %v885 = vunpack.c.l.b16 %v859
      %v886 = vunpack.c.l.b16 %v860
      %v887 = vunpack.c.l.b16 %v861
      %v888 = vunpack.c.l.b16 %v862
      %v889 = vunpack.c.l.b16 %v863
      %v890 = vpack.c.b16 %v879, %v878
      %v891 = vpack.c.b16 %v881, %v880
      %v892 = vpack.c.b16 %v883, %v882
      %v893 = vpack.c.b16 %v885, %v884
      %v894 = vpack.c.b16 %v887, %v886
      %v895 = vpack.c.b16 %v889, %v888
      %v897 = vsel %vm415, %v890, 0
      %v900 = vsel %vm415, %v891, 0
      %v903 = vsel %vm415, %v892, 0
      %v906 = vsel %vm415, %v893, 0
      %v909 = vsel %vm415, %v894, 0
      %v912 = vsel %vm415, %v895, 0
      %v915 = vsel %vm434, %v865, 0
      %917 = vmatprep.subr.bf16.mxu0 0
      %918 = vmatpush1.bf16.msra.mxu0 %v915
      %919 = vmatprep.subr.bf16.mxu0 0
      %920 = vmatpush1.bf16.msra.mxu0 0
      %921 = vmatprep.subr.bf16.mxu0 0
      %922 = vmatpush1.bf16.msra.mxu0 0
      %923 = vmatprep.subr.bf16.mxu0 0
      %924 = vmatpush1.bf16.msra.mxu0 0
      %925 = vmatprep.subr.bf16.mxu0 0
      %926 = vmatpush1.bf16.msra.mxu0 0
      %927 = vmatprep.subr.bf16.mxu0 0
      %928 = vmatpush1.bf16.msra.mxu0 0
      %929 = vmatprep.subr.bf16.mxu0 0
      %930 = vmatpush1.bf16.msra.mxu0 0
      %931 = vmatprep.subr.bf16.mxu0 0
      %932 = vmatpush1.bf16.msra.mxu0 0
      %933 = vmatprep.subr.bf16.mxu0 0
      %934 = vmatpush1.bf16.msra.mxu0 0
      %935 = vmatprep.subr.bf16.mxu0 0
      %936 = vmatpush1.bf16.msra.mxu0 0
      %937 = vmatprep.subr.bf16.mxu0 0
      %938 = vmatpush1.bf16.msra.mxu0 0
      %939 = vmatprep.subr.bf16.mxu0 0
      %940 = vmatpush1.bf16.msra.mxu0 0
      %941 = vmatprep.subr.bf16.mxu0 0
      %942 = vmatpush1.bf16.msra.mxu0 0
      %943 = vmatprep.subr.bf16.mxu0 0
      %944 = vmatpush1.bf16.msra.mxu0 0
      %945 = vmatprep.subr.bf16.mxu0 0
      %946 = vmatpush1.bf16.msra.mxu0 0
      %947 = vmatprep.subr.bf16.mxu0 0
      %948 = vmatpush1.bf16.msra.mxu0 0
      %949 = vmatprep.mubr.bf16.mxu0 0
      %950 = vmatmul.mubr.bf16.gmra.mrb[0].mxu0 %v897
      %v951 = vpop.f32.mrb[0].mxu0
      %v952 = vadd.f32 0.0, %v951
      %v953 = vpop.f32.mrb[0].mxu0
      %v954 = vpop.f32.mrb[0].mxu0
      %v955 = vadd.f32 0.0, %v954
      %v956 = vpop.f32.mrb[0].mxu0
      %957 = vmatprep.mubr.bf16.mxu0 0
      %958 = vmatmul.mubr.bf16.gmra.mrb[0].mxu0 %v900
      %v959 = vpop.f32.mrb[0].mxu0
      %v960 = vadd.f32 0.0, %v959
      %v961 = vpop.f32.mrb[0].mxu0
      %v962 = vpop.f32.mrb[0].mxu0
      %v963 = vadd.f32 0.0, %v962
      %v964 = vpop.f32.mrb[0].mxu0
      %965 = vmatprep.mubr.bf16.mxu0 0
      %966 = vmatmul.mubr.bf16.gmra.mrb[0].mxu0 %v903
      %v967 = vpop.f32.mrb[0].mxu0
      %v968 = vadd.f32 0.0, %v967
      %v969 = vpop.f32.mrb[0].mxu0
      %v970 = vpop.f32.mrb[0].mxu0
      %v971 = vadd.f32 0.0, %v970
      %v972 = vpop.f32.mrb[0].mxu0
      %973 = vmatprep.mubr.bf16.mxu0 0
      %974 = vmatmul.mubr.bf16.gmra.mrb[0].mxu0 %v906
      %v975 = vpop.f32.mrb[0].mxu0
      %v976 = vadd.f32 0.0, %v975
      %v977 = vpop.f32.mrb[0].mxu0
      %v978 = vpop.f32.mrb[0].mxu0
      %v979 = vadd.f32 0.0, %v978
      %v980 = vpop.f32.mrb[0].mxu0
      %981 = vmatprep.mubr.bf16.mxu0 0
      %982 = vmatmul.mubr.bf16.gmra.mrb[0].mxu0 %v909
      %v983 = vpop.f32.mrb[0].mxu0
      %v984 = vadd.f32 0.0, %v983
      %v985 = vpop.f32.mrb[0].mxu0
      %v986 = vpop.f32.mrb[0].mxu0
      %v987 = vadd.f32 0.0, %v986
      %v988 = vpop.f32.mrb[0].mxu0
      %989 = vmatprep.mubr.bf16.mxu0 0
      %990 = vmatmul.mubr.bf16.gmra.mrb[0].mxu0 %v912
      %v991 = vpop.f32.mrb[0].mxu0
      %v992 = vadd.f32 0.0, %v991
      %v993 = vpop.f32.mrb[0].mxu0
      %v994 = vpop.f32.mrb[0].mxu0
      %v995 = vadd.f32 0.0, %v994
      %v996 = vpop.f32.mrb[0].mxu0
      %997 = vdwg.mxu0
      %v998 = vadd.f32 %v836, %v952
      %v999 = vadd.f32 %v837, %v955
      %v1000 = vadd.f32 %v838, %v960
      %v1001 = vadd.f32 %v839, %v963
      %v1002 = vadd.f32 %v840, %v968
      %v1003 = vadd.f32 %v841, %v971
      %v1004 = vadd.f32 %v842, %v976
      %v1005 = vadd.f32 %v843, %v979
      %v1006 = vadd.f32 %v844, %v984
      %v1007 = vadd.f32 %v845, %v987
      %v1008 = vadd.f32 %v846, %v992
      %v1009 = vadd.f32 %v847, %v995
      %v1010 = vld [vmem:[%s851] sm:$0xf]
      %v1011 = vld [vmem:[%s851 + $0x4] sm:$0xf]
      %v1012 = vld [vmem:[%s851 + $0x8] sm:$0x1]
      %v1013 = vld [vmem:[%s851 + $0xc] sm:$0xf]
      %v1014 = vld [vmem:[%s851 + $0x10] sm:$0xf]
      %v1015 = vld [vmem:[%s851 + $0x14] sm:$0x1]
      %v1016 = vld [vmem:[%s851 + $0x18] sm:$0xf]
      %v1017 = vld [vmem:[%s851 + $0x1c] sm:$0xf]
      %v1018 = vld [vmem:[%s851 + $0x20] sm:$0x1]
      %v1019 = vld [vmem:[%s851 + $0x24] sm:$0xf]
      %v1020 = vld [vmem:[%s851 + $0x28] sm:$0xf]
      %v1021 = vld [vmem:[%s851 + $0x2c] sm:$0x1]
      %v1022 = vld [vmem:[%s851 + $0x30] sm:$0xf]
      %v1023 = vld [vmem:[%s851 + $0x34] sm:$0xf]
      %v1024 = vld [vmem:[%s851 + $0x38] sm:$0x1]
      %v1025 = vld [vmem:[%s851 + $0x3c] sm:$0xf]
      %v1026 = vld [vmem:[%s851 + $0x40] sm:$0xf]
      %v1027 = vld [vmem:[%s851 + $0x44] sm:$0x1]
      %v1029 = vshrl.u32 %v1010, 16
      %v1031 = vrot.slane %v1029, 4
      %v1032 = vshll.u32 %v1010, 16
      %v1034 = vrot.slane %v1032, 5
      %v1035 = vor.u32 %v1031, %v1034
      %v1036 = vrot.slane %v1035, 4
      %v1038 = vshll.u32 %v1011, 16
      %v1040 = vrot.slane %v1038, 5
      %v1041 = vsel %vm250, %v1036, %v1040
      %v1042 = vshrl.u32 %v1011, 16
      %v1044 = vrot.slane %v1042, 4
      %v1045 = vor.u32 %v1044, %v1040
      %v1046 = vrot.slane %v1045, 4
      %v1048 = vshll.u32 %v1012, 16
      %v1050 = vrot.slane %v1048, 5
      %v1051 = vsel %vm250, %v1046, %v1050
      %v1053 = vshrl.u32 %v1013, 16
      %v1055 = vrot.slane %v1053, 4
      %v1056 = vshll.u32 %v1013, 16
      %v1058 = vrot.slane %v1056, 5
      %v1059 = vor.u32 %v1055, %v1058
      %v1060 = vrot.slane %v1059, 4
      %v1062 = vshll.u32 %v1014, 16
      %v1064 = vrot.slane %v1062, 5
      %v1065 = vsel %vm250, %v1060, %v1064
      %v1066 = vshrl.u32 %v1014, 16
      %v1068 = vrot.slane %v1066, 4
      %v1069 = vor.u32 %v1068, %v1064
      %v1070 = vrot.slane %v1069, 4
      %v1072 = vshll.u32 %v1015, 16
      %v1074 = vrot.slane %v1072, 5
      %v1075 = vsel %vm250, %v1070, %v1074
      %v1077 = vshrl.u32 %v1016, 16
      %v1079 = vrot.slane %v1077, 4
      %v1080 = vshll.u32 %v1016, 16
      %v1082 = vrot.slane %v1080, 5
      %v1083 = vor.u32 %v1079, %v1082
      %v1084 = vrot.slane %v1083, 4
      %v1086 = vshll.u32 %v1017, 16
      %v1088 = vrot.slane %v1086, 5
      %v1089 = vsel %vm250, %v1084, %v1088
      %v1090 = vshrl.u32 %v1017, 16
      %v1092 = vrot.slane %v1090, 4
      %v1093 = vor.u32 %v1092, %v1088
      %v1094 = vrot.slane %v1093, 4
      %v1096 = vshll.u32 %v1018, 16
      %v1098 = vrot.slane %v1096, 5
      %v1099 = vsel %vm250, %v1094, %v1098
      %v1101 = vshrl.u32 %v1019, 16
      %v1103 = vrot.slane %v1101, 4
      %v1104 = vshll.u32 %v1019, 16
      %v1106 = vrot.slane %v1104, 5
      %v1107 = vor.u32 %v1103, %v1106
      %v1108 = vrot.slane %v1107, 4
      %v1110 = vshll.u32 %v1020, 16
      %v1112 = vrot.slane %v1110, 5
      %v1113 = vsel %vm250, %v1108, %v1112
      %v1114 = vshrl.u32 %v1020, 16
      %v1116 = vrot.slane %v1114, 4
      %v1117 = vor.u32 %v1116, %v1112
      %v1118 = vrot.slane %v1117, 4
      %v1120 = vshll.u32 %v1021, 16
      %v1122 = vrot.slane %v1120, 5
      %v1123 = vsel %vm250, %v1118, %v1122
      %v1125 = vshrl.u32 %v1022, 16
      %v1127 = vrot.slane %v1125, 4
      %v1128 = vshll.u32 %v1022, 16
      %v1130 = vrot.slane %v1128, 5
      %v1131 = vor.u32 %v1127, %v1130
      %v1132 = vrot.slane %v1131, 4
      %v1134 = vshll.u32 %v1023, 16
      %v1136 = vrot.slane %v1134, 5
      %v1137 = vsel %vm250, %v1132, %v1136
      %v1138 = vshrl.u32 %v1023, 16
      %v1140 = vrot.slane %v1138, 4
      %v1141 = vor.u32 %v1140, %v1136
      %v1142 = vrot.slane %v1141, 4
      %v1144 = vshll.u32 %v1024, 16
      %v1146 = vrot.slane %v1144, 5
      %v1147 = vsel %vm250, %v1142, %v1146
      %v1149 = vshrl.u32 %v1025, 16
      %v1151 = vrot.slane %v1149, 4
      %v1152 = vshll.u32 %v1025, 16
      %v1154 = vrot.slane %v1152, 5
      %v1155 = vor.u32 %v1151, %v1154
      %v1156 = vrot.slane %v1155, 4
      %v1158 = vshll.u32 %v1026, 16
      %v1160 = vrot.slane %v1158, 5
      %v1161 = vsel %vm250, %v1156, %v1160
      %v1162 = vshrl.u32 %v1026, 16
      %v1164 = vrot.slane %v1162, 4
      %v1165 = vor.u32 %v1164, %v1160
      %v1166 = vrot.slane %v1165, 4
      %v1168 = vshll.u32 %v1027, 16
      %v1170 = vrot.slane %v1168, 5
      %v1171 = vsel %vm250, %v1166, %v1170
      %s1172 = scalar_lea.vmem %s1, 16
      %v1173 = vld [vmem:[%s1172] sm:$0xf]
      %v1174 = vunpack.c.l.b16 %v1041
      %v1175 = vunpack.c.l.b16 %v1051
      %v1176 = vunpack.c.l.b16 %v1065
      %v1177 = vunpack.c.l.b16 %v1075
      %v1178 = vunpack.c.l.b16 %v1089
      %v1179 = vunpack.c.l.b16 %v1099
      %v1180 = vunpack.c.l.b16 %v1113
      %v1181 = vunpack.c.l.b16 %v1123
      %v1182 = vunpack.c.l.b16 %v1137
      %v1183 = vunpack.c.l.b16 %v1147
      %v1184 = vunpack.c.l.b16 %v1161
      %v1185 = vunpack.c.l.b16 %v1171
      %v1186 = vpack.c.b16 %v1175, %v1174
      %v1187 = vpack.c.b16 %v1177, %v1176
      %v1188 = vpack.c.b16 %v1179, %v1178
      %v1189 = vpack.c.b16 %v1181, %v1180
      %v1190 = vpack.c.b16 %v1183, %v1182
      %v1191 = vpack.c.b16 %v1185, %v1184
      %v1193 = vsel %vm415, %v1186, 0
      %v1196 = vsel %vm415, %v1187, 0
      %v1199 = vsel %vm415, %v1188, 0
      %v1202 = vsel %vm415, %v1189, 0
      %v1205 = vsel %vm415, %v1190, 0
      %v1208 = vsel %vm415, %v1191, 0
      %v1211 = vsel %vm434, %v1173, 0
      %1213 = vmatprep.subr.bf16.mxu0 0
      %1214 = vmatpush1.bf16.msra.mxu0 %v1211
      %1215 = vmatprep.subr.bf16.mxu0 0
      %1216 = vmatpush1.bf16.msra.mxu0 0
      %1217 = vmatprep.subr.bf16.mxu0 0
      %1218 = vmatpush1.bf16.msra.mxu0 0
      %1219 = vmatprep.subr.bf16.mxu0 0
      %1220 = vmatpush1.bf16.msra.mxu0 0
      %1221 = vmatprep.subr.bf16.mxu0 0
      %1222 = vmatpush1.bf16.msra.mxu0 0
      %1223 = vmatprep.subr.bf16.mxu0 0
      %1224 = vmatpush1.bf16.msra.mxu0 0
      %1225 = vmatprep.subr.bf16.mxu0 0
      %1226 = vmatpush1.bf16.msra.mxu0 0
      %1227 = vmatprep.subr.bf16.mxu0 0
      %1228 = vmatpush1.bf16.msra.mxu0 0
      %1229 = vmatprep.subr.bf16.mxu0 0
      %1230 = vmatpush1.bf16.msra.mxu0 0
      %1231 = vmatprep.subr.bf16.mxu0 0
      %1232 = vmatpush1.bf16.msra.mxu0 0
      %1233 = vmatprep.subr.bf16.mxu0 0
      %1234 = vmatpush1.bf16.msra.mxu0 0
      %1235 = vmatprep.subr.bf16.mxu0 0
      %1236 = vmatpush1.bf16.msra.mxu0 0
      %1237 = vmatprep.subr.bf16.mxu0 0
      %1238 = vmatpush1.bf16.msra.mxu0 0
      %1239 = vmatprep.subr.bf16.mxu0 0
      %1240 = vmatpush1.bf16.msra.mxu0 0
      %1241 = vmatprep.subr.bf16.mxu0 0
      %1242 = vmatpush1.bf16.msra.mxu0 0
      %1243 = vmatprep.subr.bf16.mxu0 0
      %1244 = vmatpush1.bf16.msra.mxu0 0
      %1245 = vmatprep.mubr.bf16.mxu0 0
      %1246 = vmatmul.mubr.bf16.gmra.mrb[0].mxu0 %v1193
      %v1247 = vpop.f32.mrb[0].mxu0
      %v1248 = vadd.f32 0.0, %v1247
      %v1249 = vpop.f32.mrb[0].mxu0
      %v1250 = vpop.f32.mrb[0].mxu0
      %v1251 = vadd.f32 0.0, %v1250
      %v1252 = vpop.f32.mrb[0].mxu0
      %1253 = vmatprep.mubr.bf16.mxu0 0
      %1254 = vmatmul.mubr.bf16.gmra.mrb[0].mxu0 %v1196
      %v1255 = vpop.f32.mrb[0].mxu0
      %v1256 = vadd.f32 0.0, %v1255
      %v1257 = vpop.f32.mrb[0].mxu0
      %v1258 = vpop.f32.mrb[0].mxu0
      %v1259 = vadd.f32 0.0, %v1258
      %v1260 = vpop.f32.mrb[0].mxu0
      %1261 = vmatprep.mubr.bf16.mxu0 0
      %1262 = vmatmul.mubr.bf16.gmra.mrb[0].mxu0 %v1199
      %v1263 = vpop.f32.mrb[0].mxu0
      %v1264 = vadd.f32 0.0, %v1263
      %v1265 = vpop.f32.mrb[0].mxu0
      %v1266 = vpop.f32.mrb[0].mxu0
      %v1267 = vadd.f32 0.0, %v1266
      %v1268 = vpop.f32.mrb[0].mxu0
      %1269 = vmatprep.mubr.bf16.mxu0 0
      %1270 = vmatmul.mubr.bf16.gmra.mrb[0].mxu0 %v1202
      %v1271 = vpop.f32.mrb[0].mxu0
      %v1272 = vadd.f32 0.0, %v1271
      %v1273 = vpop.f32.mrb[0].mxu0
      %v1274 = vpop.f32.mrb[0].mxu0
      %v1275 = vadd.f32 0.0, %v1274
      %v1276 = vpop.f32.mrb[0].mxu0
      %1277 = vmatprep.mubr.bf16.mxu0 0
      %1278 = vmatmul.mubr.bf16.gmra.mrb[0].mxu0 %v1205
      %v1279 = vpop.f32.mrb[0].mxu0
      %v1280 = vadd.f32 0.0, %v1279
      %v1281 = vpop.f32.mrb[0].mxu0
      %v1282 = vpop.f32.mrb[0].mxu0
      %v1283 = vadd.f32 0.0, %v1282
      %v1284 = vpop.f32.mrb[0].mxu0
      %1285 = vmatprep.mubr.bf16.mxu0 0
      %1286 = vmatmul.mubr.bf16.gmra.mrb[0].mxu0 %v1208
      %v1287 = vpop.f32.mrb[0].mxu0
      %v1288 = vadd.f32 0.0, %v1287
      %v1289 = vpop.f32.mrb[0].mxu0
      %v1290 = vpop.f32.mrb[0].mxu0
      %v1291 = vadd.f32 0.0, %v1290
      %v1292 = vpop.f32.mrb[0].mxu0
      %1293 = vdwg.mxu0
      %v1294 = vadd.f32 %v998, %v1248
      %v1295 = vadd.f32 %v999, %v1251
      %v1296 = vadd.f32 %v1000, %v1256
      %v1297 = vadd.f32 %v1001, %v1259
      %v1298 = vadd.f32 %v1002, %v1264
      %v1299 = vadd.f32 %v1003, %v1267
      %v1300 = vadd.f32 %v1004, %v1272
      %v1301 = vadd.f32 %v1005, %v1275
      %v1302 = vadd.f32 %v1006, %v1280
      %v1303 = vadd.f32 %v1007, %v1283
      %v1304 = vadd.f32 %v1008, %v1288
      %v1305 = vadd.f32 %v1009, %v1291
      %v1306 = vld [vmem:[%s851] sm:$0xe]
      %v1307 = vld [vmem:[%s851 + $0xc] sm:$0xe]
      %v1308 = vld [vmem:[%s851 + $0x18] sm:$0xe]
      %v1309 = vld [vmem:[%s851 + $0x24] sm:$0xe]
      %v1310 = vld [vmem:[%s851 + $0x30] sm:$0xe]
      %v1311 = vld [vmem:[%s851 + $0x3c] sm:$0xe]
      %v1330 = vrot.slane %v1306, 5
      %v1331 = vrot.slane %v1330, 4
      %v1332 = vrot.slane %v1011, 5
      %v1333 = vsel %vm671, %v1331, %v1332
      %v1334 = vrot.slane %v1332, 4
      %v1335 = vrot.slane %v1012, 5
      %v1336 = vsel %vm671, %v1334, %v1335
      %v1337 = vrot.slane %v1307, 5
      %v1338 = vrot.slane %v1337, 4
      %v1339 = vrot.slane %v1014, 5
      %v1340 = vsel %vm671, %v1338, %v1339
      %v1341 = vrot.slane %v1339, 4
      %v1342 = vrot.slane %v1015, 5
      %v1343 = vsel %vm671, %v1341, %v1342
      %v1344 = vrot.slane %v1308, 5
      %v1345 = vrot.slane %v1344, 4
      %v1346 = vrot.slane %v1017, 5
      %v1347 = vsel %vm671, %v1345, %v1346
      %v1348 = vrot.slane %v1346, 4
      %v1349 = vrot.slane %v1018, 5
      %v1350 = vsel %vm671, %v1348, %v1349
      %v1351 = vrot.slane %v1309, 5
      %v1352 = vrot.slane %v1351, 4
      %v1353 = vrot.slane %v1020, 5
      %v1354 = vsel %vm671, %v1352, %v1353
      %v1355 = vrot.slane %v1353, 4
      %v1356 = vrot.slane %v1021, 5
      %v1357 = vsel %vm671, %v1355, %v1356
      %v1358 = vrot.slane %v1310, 5
      %v1359 = vrot.slane %v1358, 4
      %v1360 = vrot.slane %v1023, 5
      %v1361 = vsel %vm671, %v1359, %v1360
      %v1362 = vrot.slane %v1360, 4
      %v1363 = vrot.slane %v1024, 5
      %v1364 = vsel %vm671, %v1362, %v1363
      %v1365 = vrot.slane %v1311, 5
      %v1366 = vrot.slane %v1365, 4
      %v1367 = vrot.slane %v1026, 5
      %v1368 = vsel %vm671, %v1366, %v1367
      %v1369 = vrot.slane %v1367, 4
      %v1370 = vrot.slane %v1027, 5
      %v1371 = vsel %vm671, %v1369, %v1370
      %s1372 = scalar_lea.vmem %s1, 20
      %v1373 = vld [vmem:[%s1372] sm:$0xf]
      %v1374 = vunpack.c.l.b16 %v1333
      %v1375 = vunpack.c.l.b16 %v1336
      %v1376 = vunpack.c.l.b16 %v1340
      %v1377 = vunpack.c.l.b16 %v1343
      %v1378 = vunpack.c.l.b16 %v1347
      %v1379 = vunpack.c.l.b16 %v1350
      %v1380 = vunpack.c.l.b16 %v1354
      %v1381 = vunpack.c.l.b16 %v1357
      %v1382 = vunpack.c.l.b16 %v1361
      %v1383 = vunpack.c.l.b16 %v1364
      %v1384 = vunpack.c.l.b16 %v1368
      %v1385 = vunpack.c.l.b16 %v1371
      %v1386 = vpack.c.b16 %v1375, %v1374
      %v1387 = vpack.c.b16 %v1377, %v1376
      %v1388 = vpack.c.b16 %v1379, %v1378
      %v1389 = vpack.c.b16 %v1381, %v1380
      %v1390 = vpack.c.b16 %v1383, %v1382
      %v1391 = vpack.c.b16 %v1385, %v1384
      %v1393 = vsel %vm415, %v1386, 0
      %v1396 = vsel %vm415, %v1387, 0
      %v1399 = vsel %vm415, %v1388, 0
      %v1402 = vsel %vm415, %v1389, 0
      %v1405 = vsel %vm415, %v1390, 0
      %v1408 = vsel %vm415, %v1391, 0
      %v1411 = vsel %vm434, %v1373, 0
      %1413 = vmatprep.subr.bf16.mxu0 0
      %1414 = vmatpush1.bf16.msra.mxu0 %v1411
      %1415 = vmatprep.subr.bf16.mxu0 0
      %1416 = vmatpush1.bf16.msra.mxu0 0
      %1417 = vmatprep.subr.bf16.mxu0 0
      %1418 = vmatpush1.bf16.msra.mxu0 0
      %1419 = vmatprep.subr.bf16.mxu0 0
      %1420 = vmatpush1.bf16.msra.mxu0 0
      %1421 = vmatprep.subr.bf16.mxu0 0
      %1422 = vmatpush1.bf16.msra.mxu0 0
      %1423 = vmatprep.subr.bf16.mxu0 0
      %1424 = vmatpush1.bf16.msra.mxu0 0
      %1425 = vmatprep.subr.bf16.mxu0 0
      %1426 = vmatpush1.bf16.msra.mxu0 0
      %1427 = vmatprep.subr.bf16.mxu0 0
      %1428 = vmatpush1.bf16.msra.mxu0 0
      %1429 = vmatprep.subr.bf16.mxu0 0
      %1430 = vmatpush1.bf16.msra.mxu0 0
      %1431 = vmatprep.subr.bf16.mxu0 0
      %1432 = vmatpush1.bf16.msra.mxu0 0
      %1433 = vmatprep.subr.bf16.mxu0 0
      %1434 = vmatpush1.bf16.msra.mxu0 0
      %1435 = vmatprep.subr.bf16.mxu0 0
      %1436 = vmatpush1.bf16.msra.mxu0 0
      %1437 = vmatprep.subr.bf16.mxu0 0
      %1438 = vmatpush1.bf16.msra.mxu0 0
      %1439 = vmatprep.subr.bf16.mxu0 0
      %1440 = vmatpush1.bf16.msra.mxu0 0
      %1441 = vmatprep.subr.bf16.mxu0 0
      %1442 = vmatpush1.bf16.msra.mxu0 0
      %1443 = vmatprep.subr.bf16.mxu0 0
      %1444 = vmatpush1.bf16.msra.mxu0 0
      %1445 = vmatprep.mubr.bf16.mxu0 0
      %1446 = vmatmul.mubr.bf16.gmra.mrb[0].mxu0 %v1393
      %v1447 = vpop.f32.mrb[0].mxu0
      %v1448 = vadd.f32 0.0, %v1447
      %v1449 = vpop.f32.mrb[0].mxu0
      %v1450 = vpop.f32.mrb[0].mxu0
      %v1451 = vadd.f32 0.0, %v1450
      %v1452 = vpop.f32.mrb[0].mxu0
      %1453 = vmatprep.mubr.bf16.mxu0 0
      %1454 = vmatmul.mubr.bf16.gmra.mrb[0].mxu0 %v1396
      %v1455 = vpop.f32.mrb[0].mxu0
      %v1456 = vadd.f32 0.0, %v1455
      %v1457 = vpop.f32.mrb[0].mxu0
      %v1458 = vpop.f32.mrb[0].mxu0
      %v1459 = vadd.f32 0.0, %v1458
      %v1460 = vpop.f32.mrb[0].mxu0
      %1461 = vmatprep.mubr.bf16.mxu0 0
      %1462 = vmatmul.mubr.bf16.gmra.mrb[0].mxu0 %v1399
      %v1463 = vpop.f32.mrb[0].mxu0
      %v1464 = vadd.f32 0.0, %v1463
      %v1465 = vpop.f32.mrb[0].mxu0
      %v1466 = vpop.f32.mrb[0].mxu0
      %v1467 = vadd.f32 0.0, %v1466
      %v1468 = vpop.f32.mrb[0].mxu0
      %1469 = vmatprep.mubr.bf16.mxu0 0
      %1470 = vmatmul.mubr.bf16.gmra.mrb[0].mxu0 %v1402
      %v1471 = vpop.f32.mrb[0].mxu0
      %v1472 = vadd.f32 0.0, %v1471
      %v1473 = vpop.f32.mrb[0].mxu0
      %v1474 = vpop.f32.mrb[0].mxu0
      %v1475 = vadd.f32 0.0, %v1474
      %v1476 = vpop.f32.mrb[0].mxu0
      %1477 = vmatprep.mubr.bf16.mxu0 0
      %1478 = vmatmul.mubr.bf16.gmra.mrb[0].mxu0 %v1405
      %v1479 = vpop.f32.mrb[0].mxu0
      %v1480 = vadd.f32 0.0, %v1479
      %v1481 = vpop.f32.mrb[0].mxu0
      %v1482 = vpop.f32.mrb[0].mxu0
      %v1483 = vadd.f32 0.0, %v1482
      %v1484 = vpop.f32.mrb[0].mxu0
      %1485 = vmatprep.mubr.bf16.mxu0 0
      %1486 = vmatmul.mubr.bf16.gmra.mrb[0].mxu0 %v1408
      %v1487 = vpop.f32.mrb[0].mxu0
      %v1488 = vadd.f32 0.0, %v1487
      %v1489 = vpop.f32.mrb[0].mxu0
      %v1490 = vpop.f32.mrb[0].mxu0
      %v1491 = vadd.f32 0.0, %v1490
      %v1492 = vpop.f32.mrb[0].mxu0
      %1493 = vdwg.mxu0
      %v1494 = vadd.f32 %v1294, %v1448
      %v1495 = vadd.f32 %v1295, %v1451
      %v1496 = vadd.f32 %v1296, %v1456
      %v1497 = vadd.f32 %v1297, %v1459
      %v1498 = vadd.f32 %v1298, %v1464
      %v1499 = vadd.f32 %v1299, %v1467
      %v1500 = vadd.f32 %v1300, %v1472
      %v1501 = vadd.f32 %v1301, %v1475
      %v1502 = vadd.f32 %v1302, %v1480
      %v1503 = vadd.f32 %v1303, %v1483
      %v1504 = vadd.f32 %v1304, %v1488
      %v1505 = vadd.f32 %v1305, %v1491
      %s1506 = sadd.s32 %s225, 2
      %s1507 = smul.u32 %s1506, 3
      %s1508 = smul.addr %s1507, 4
      %s1509 = scalar_lea.vmem %s211, %s1508
      %v1510 = vld [vmem:[%s1509] sm:$0xf]
      %v1511 = vld [vmem:[%s1509 + $0x4] sm:$0xf]
      %v1512 = vld [vmem:[%s1509 + $0xc] sm:$0xf]
      %v1513 = vld [vmem:[%s1509 + $0x10] sm:$0xf]
      %v1514 = vld [vmem:[%s1509 + $0x18] sm:$0xf]
      %v1515 = vld [vmem:[%s1509 + $0x1c] sm:$0xf]
      %v1516 = vld [vmem:[%s1509 + $0x24] sm:$0xf]
      %v1517 = vld [vmem:[%s1509 + $0x28] sm:$0xf]
      %v1518 = vld [vmem:[%s1509 + $0x30] sm:$0xf]
      %v1519 = vld [vmem:[%s1509 + $0x34] sm:$0xf]
      %v1520 = vld [vmem:[%s1509 + $0x3c] sm:$0xf]
      %v1521 = vld [vmem:[%s1509 + $0x40] sm:$0xf]
      %s1522 = scalar_lea.vmem %s1, 24
      %v1523 = vld [vmem:[%s1522] sm:$0xf]
      %v1536 = vunpack.c.l.b16 %v1510
      %v1537 = vunpack.c.l.b16 %v1511
      %v1538 = vunpack.c.l.b16 %v1512
      %v1539 = vunpack.c.l.b16 %v1513
      %v1540 = vunpack.c.l.b16 %v1514
      %v1541 = vunpack.c.l.b16 %v1515
      %v1542 = vunpack.c.l.b16 %v1516
      %v1543 = vunpack.c.l.b16 %v1517
      %v1544 = vunpack.c.l.b16 %v1518
      %v1545 = vunpack.c.l.b16 %v1519
      %v1546 = vunpack.c.l.b16 %v1520
      %v1547 = vunpack.c.l.b16 %v1521
      %v1548 = vpack.c.b16 %v1537, %v1536
      %v1549 = vpack.c.b16 %v1539, %v1538
      %v1550 = vpack.c.b16 %v1541, %v1540
      %v1551 = vpack.c.b16 %v1543, %v1542
      %v1552 = vpack.c.b16 %v1545, %v1544
      %v1553 = vpack.c.b16 %v1547, %v1546
      %v1555 = vsel %vm415, %v1548, 0
      %v1558 = vsel %vm415, %v1549, 0
      %v1561 = vsel %vm415, %v1550, 0
      %v1564 = vsel %vm415, %v1551, 0
      %v1567 = vsel %vm415, %v1552, 0
      %v1570 = vsel %vm415, %v1553, 0
      %v1573 = vsel %vm434, %v1523, 0
      %1575 = vmatprep.subr.bf16.mxu0 0
      %1576 = vmatpush1.bf16.msra.mxu0 %v1573
      %1577 = vmatprep.subr.bf16.mxu0 0
      %1578 = vmatpush1.bf16.msra.mxu0 0
      %1579 = vmatprep.subr.bf16.mxu0 0
      %1580 = vmatpush1.bf16.msra.mxu0 0
      %1581 = vmatprep.subr.bf16.mxu0 0
      %1582 = vmatpush1.bf16.msra.mxu0 0
      %1583 = vmatprep.subr.bf16.mxu0 0
      %1584 = vmatpush1.bf16.msra.mxu0 0
      %1585 = vmatprep.subr.bf16.mxu0 0
      %1586 = vmatpush1.bf16.msra.mxu0 0
      %1587 = vmatprep.subr.bf16.mxu0 0
      %1588 = vmatpush1.bf16.msra.mxu0 0
      %1589 = vmatprep.subr.bf16.mxu0 0
      %1590 = vmatpush1.bf16.msra.mxu0 0
      %1591 = vmatprep.subr.bf16.mxu0 0
      %1592 = vmatpush1.bf16.msra.mxu0 0
      %1593 = vmatprep.subr.bf16.mxu0 0
      %1594 = vmatpush1.bf16.msra.mxu0 0
      %1595 = vmatprep.subr.bf16.mxu0 0
      %1596 = vmatpush1.bf16.msra.mxu0 0
      %1597 = vmatprep.subr.bf16.mxu0 0
      %1598 = vmatpush1.bf16.msra.mxu0 0
      %1599 = vmatprep.subr.bf16.mxu0 0
      %1600 = vmatpush1.bf16.msra.mxu0 0
      %1601 = vmatprep.subr.bf16.mxu0 0
      %1602 = vmatpush1.bf16.msra.mxu0 0
      %1603 = vmatprep.subr.bf16.mxu0 0
      %1604 = vmatpush1.bf16.msra.mxu0 0
      %1605 = vmatprep.subr.bf16.mxu0 0
      %1606 = vmatpush1.bf16.msra.mxu0 0
      %1607 = vmatprep.mubr.bf16.mxu0 0
      %1608 = vmatmul.mubr.bf16.gmra.mrb[0].mxu0 %v1555
      %v1609 = vpop.f32.mrb[0].mxu0
      %v1610 = vadd.f32 0.0, %v1609
      %v1611 = vpop.f32.mrb[0].mxu0
      %v1612 = vpop.f32.mrb[0].mxu0
      %v1613 = vadd.f32 0.0, %v1612
      %v1614 = vpop.f32.mrb[0].mxu0
      %1615 = vmatprep.mubr.bf16.mxu0 0
      %1616 = vmatmul.mubr.bf16.gmra.mrb[0].mxu0 %v1558
      %v1617 = vpop.f32.mrb[0].mxu0
      %v1618 = vadd.f32 0.0, %v1617
      %v1619 = vpop.f32.mrb[0].mxu0
      %v1620 = vpop.f32.mrb[0].mxu0
      %v1621 = vadd.f32 0.0, %v1620
      %v1622 = vpop.f32.mrb[0].mxu0
      %1623 = vmatprep.mubr.bf16.mxu0 0
      %1624 = vmatmul.mubr.bf16.gmra.mrb[0].mxu0 %v1561
      %v1625 = vpop.f32.mrb[0].mxu0
      %v1626 = vadd.f32 0.0, %v1625
      %v1627 = vpop.f32.mrb[0].mxu0
      %v1628 = vpop.f32.mrb[0].mxu0
      %v1629 = vadd.f32 0.0, %v1628
      %v1630 = vpop.f32.mrb[0].mxu0
      %1631 = vmatprep.mubr.bf16.mxu0 0
      %1632 = vmatmul.mubr.bf16.gmra.mrb[0].mxu0 %v1564
      %v1633 = vpop.f32.mrb[0].mxu0
      %v1634 = vadd.f32 0.0, %v1633
      %v1635 = vpop.f32.mrb[0].mxu0
      %v1636 = vpop.f32.mrb[0].mxu0
      %v1637 = vadd.f32 0.0, %v1636
      %v1638 = vpop.f32.mrb[0].mxu0
      %1639 = vmatprep.mubr.bf16.mxu0 0
      %1640 = vmatmul.mubr.bf16.gmra.mrb[0].mxu0 %v1567
      %v1641 = vpop.f32.mrb[0].mxu0
      %v1642 = vadd.f32 0.0, %v1641
      %v1643 = vpop.f32.mrb[0].mxu0
      %v1644 = vpop.f32.mrb[0].mxu0
      %v1645 = vadd.f32 0.0, %v1644
      %v1646 = vpop.f32.mrb[0].mxu0
      %1647 = vmatprep.mubr.bf16.mxu0 0
      %1648 = vmatmul.mubr.bf16.gmra.mrb[0].mxu0 %v1570
      %v1649 = vpop.f32.mrb[0].mxu0
      %v1650 = vadd.f32 0.0, %v1649
      %v1651 = vpop.f32.mrb[0].mxu0
      %v1652 = vpop.f32.mrb[0].mxu0
      %v1653 = vadd.f32 0.0, %v1652
      %v1654 = vpop.f32.mrb[0].mxu0
      %1655 = vdwg.mxu0
      %v1656 = vadd.f32 %v1494, %v1610
      %v1657 = vadd.f32 %v1495, %v1613
      %v1658 = vadd.f32 %v1496, %v1618
      %v1659 = vadd.f32 %v1497, %v1621
      %v1660 = vadd.f32 %v1498, %v1626
      %v1661 = vadd.f32 %v1499, %v1629
      %v1662 = vadd.f32 %v1500, %v1634
      %v1663 = vadd.f32 %v1501, %v1637
      %v1664 = vadd.f32 %v1502, %v1642
      %v1665 = vadd.f32 %v1503, %v1645
      %v1666 = vadd.f32 %v1504, %v1650
      %v1667 = vadd.f32 %v1505, %v1653
      %v1668 = vld [vmem:[%s1509] sm:$0xf]
      %v1669 = vld [vmem:[%s1509 + $0x4] sm:$0xf]
      %v1670 = vld [vmem:[%s1509 + $0x8] sm:$0x1]
      %v1671 = vld [vmem:[%s1509 + $0xc] sm:$0xf]
      %v1672 = vld [vmem:[%s1509 + $0x10] sm:$0xf]
      %v1673 = vld [vmem:[%s1509 + $0x14] sm:$0x1]
      %v1674 = vld [vmem:[%s1509 + $0x18] sm:$0xf]
      %v1675 = vld [vmem:[%s1509 + $0x1c] sm:$0xf]
      %v1676 = vld [vmem:[%s1509 + $0x20] sm:$0x1]
      %v1677 = vld [vmem:[%s1509 + $0x24] sm:$0xf]
      %v1678 = vld [vmem:[%s1509 + $0x28] sm:$0xf]
      %v1679 = vld [vmem:[%s1509 + $0x2c] sm:$0x1]
      %v1680 = vld [vmem:[%s1509 + $0x30] sm:$0xf]
      %v1681 = vld [vmem:[%s1509 + $0x34] sm:$0xf]
      %v1682 = vld [vmem:[%s1509 + $0x38] sm:$0x1]
      %v1683 = vld [vmem:[%s1509 + $0x3c] sm:$0xf]
      %v1684 = vld [vmem:[%s1509 + $0x40] sm:$0xf]
      %v1685 = vld [vmem:[%s1509 + $0x44] sm:$0x1]
      %v1687 = vshrl.u32 %v1668, 16
      %v1689 = vrot.slane %v1687, 4
      %v1690 = vshll.u32 %v1668, 16
      %v1692 = vrot.slane %v1690, 5
      %v1693 = vor.u32 %v1689, %v1692
      %v1694 = vrot.slane %v1693, 4
      %v1696 = vshll.u32 %v1669, 16
      %v1698 = vrot.slane %v1696, 5
      %v1699 = vsel %vm250, %v1694, %v1698
      %v1700 = vshrl.u32 %v1669, 16
      %v1702 = vrot.slane %v1700, 4
      %v1703 = vor.u32 %v1702, %v1698
      %v1704 = vrot.slane %v1703, 4
      %v1706 = vshll.u32 %v1670, 16
      %v1708 = vrot.slane %v1706, 5
      %v1709 = vsel %vm250, %v1704, %v1708
      %v1711 = vshrl.u32 %v1671, 16
      %v1713 = vrot.slane %v1711, 4
      %v1714 = vshll.u32 %v1671, 16
      %v1716 = vrot.slane %v1714, 5
      %v1717 = vor.u32 %v1713, %v1716
      %v1718 = vrot.slane %v1717, 4
      %v1720 = vshll.u32 %v1672, 16
      %v1722 = vrot.slane %v1720, 5
      %v1723 = vsel %vm250, %v1718, %v1722
      %v1724 = vshrl.u32 %v1672, 16
      %v1726 = vrot.slane %v1724, 4
      %v1727 = vor.u32 %v1726, %v1722
      %v1728 = vrot.slane %v1727, 4
      %v1730 = vshll.u32 %v1673, 16
      %v1732 = vrot.slane %v1730, 5
      %v1733 = vsel %vm250, %v1728, %v1732
      %v1735 = vshrl.u32 %v1674, 16
      %v1737 = vrot.slane %v1735, 4
      %v1738 = vshll.u32 %v1674, 16
      %v1740 = vrot.slane %v1738, 5
      %v1741 = vor.u32 %v1737, %v1740
      %v1742 = vrot.slane %v1741, 4
      %v1744 = vshll.u32 %v1675, 16
      %v1746 = vrot.slane %v1744, 5
      %v1747 = vsel %vm250, %v1742, %v1746
      %v1748 = vshrl.u32 %v1675, 16
      %v1750 = vrot.slane %v1748, 4
      %v1751 = vor.u32 %v1750, %v1746
      %v1752 = vrot.slane %v1751, 4
      %v1754 = vshll.u32 %v1676, 16
      %v1756 = vrot.slane %v1754, 5
      %v1757 = vsel %vm250, %v1752, %v1756
      %v1759 = vshrl.u32 %v1677, 16
      %v1761 = vrot.slane %v1759, 4
      %v1762 = vshll.u32 %v1677, 16
      %v1764 = vrot.slane %v1762, 5
      %v1765 = vor.u32 %v1761, %v1764
      %v1766 = vrot.slane %v1765, 4
      %v1768 = vshll.u32 %v1678, 16
      %v1770 = vrot.slane %v1768, 5
      %v1771 = vsel %vm250, %v1766, %v1770
      %v1772 = vshrl.u32 %v1678, 16
      %v1774 = vrot.slane %v1772, 4
      %v1775 = vor.u32 %v1774, %v1770
      %v1776 = vrot.slane %v1775, 4
      %v1778 = vshll.u32 %v1679, 16
      %v1780 = vrot.slane %v1778, 5
      %v1781 = vsel %vm250, %v1776, %v1780
      %v1783 = vshrl.u32 %v1680, 16
      %v1785 = vrot.slane %v1783, 4
      %v1786 = vshll.u32 %v1680, 16
      %v1788 = vrot.slane %v1786, 5
      %v1789 = vor.u32 %v1785, %v1788
      %v1790 = vrot.slane %v1789, 4
      %v1792 = vshll.u32 %v1681, 16
      %v1794 = vrot.slane %v1792, 5
      %v1795 = vsel %vm250, %v1790, %v1794
      %v1796 = vshrl.u32 %v1681, 16
      %v1798 = vrot.slane %v1796, 4
      %v1799 = vor.u32 %v1798, %v1794
      %v1800 = vrot.slane %v1799, 4
      %v1802 = vshll.u32 %v1682, 16
      %v1804 = vrot.slane %v1802, 5
      %v1805 = vsel %vm250, %v1800, %v1804
      %v1807 = vshrl.u32 %v1683, 16
      %v1809 = vrot.slane %v1807, 4
      %v1810 = vshll.u32 %v1683, 16
      %v1812 = vrot.slane %v1810, 5
      %v1813 = vor.u32 %v1809, %v1812
      %v1814 = vrot.slane %v1813, 4
      %v1816 = vshll.u32 %v1684, 16
      %v1818 = vrot.slane %v1816, 5
      %v1819 = vsel %vm250, %v1814, %v1818
      %v1820 = vshrl.u32 %v1684, 16
      %v1822 = vrot.slane %v1820, 4
      %v1823 = vor.u32 %v1822, %v1818
      %v1824 = vrot.slane %v1823, 4
      %v1826 = vshll.u32 %v1685, 16
      %v1828 = vrot.slane %v1826, 5
      %v1829 = vsel %vm250, %v1824, %v1828
      %s1830 = scalar_lea.vmem %s1, 28
      %v1831 = vld [vmem:[%s1830] sm:$0xf]
      %v1832 = vunpack.c.l.b16 %v1699
      %v1833 = vunpack.c.l.b16 %v1709
      %v1834 = vunpack.c.l.b16 %v1723
      %v1835 = vunpack.c.l.b16 %v1733
      %v1836 = vunpack.c.l.b16 %v1747
      %v1837 = vunpack.c.l.b16 %v1757
      %v1838 = vunpack.c.l.b16 %v1771
      %v1839 = vunpack.c.l.b16 %v1781
      %v1840 = vunpack.c.l.b16 %v1795
      %v1841 = vunpack.c.l.b16 %v1805
      %v1842 = vunpack.c.l.b16 %v1819
      %v1843 = vunpack.c.l.b16 %v1829
      %v1844 = vpack.c.b16 %v1833, %v1832
      %v1845 = vpack.c.b16 %v1835, %v1834
      %v1846 = vpack.c.b16 %v1837, %v1836
      %v1847 = vpack.c.b16 %v1839, %v1838
      %v1848 = vpack.c.b16 %v1841, %v1840
      %v1849 = vpack.c.b16 %v1843, %v1842
      %v1851 = vsel %vm415, %v1844, 0
      %v1854 = vsel %vm415, %v1845, 0
      %v1857 = vsel %vm415, %v1846, 0
      %v1860 = vsel %vm415, %v1847, 0
      %v1863 = vsel %vm415, %v1848, 0
      %v1866 = vsel %vm415, %v1849, 0
      %v1869 = vsel %vm434, %v1831, 0
      %1871 = vmatprep.subr.bf16.mxu0 0
      %1872 = vmatpush1.bf16.msra.mxu0 %v1869
      %1873 = vmatprep.subr.bf16.mxu0 0
      %1874 = vmatpush1.bf16.msra.mxu0 0
      %1875 = vmatprep.subr.bf16.mxu0 0
      %1876 = vmatpush1.bf16.msra.mxu0 0
      %1877 = vmatprep.subr.bf16.mxu0 0
      %1878 = vmatpush1.bf16.msra.mxu0 0
      %1879 = vmatprep.subr.bf16.mxu0 0
      %1880 = vmatpush1.bf16.msra.mxu0 0
      %1881 = vmatprep.subr.bf16.mxu0 0
      %1882 = vmatpush1.bf16.msra.mxu0 0
      %1883 = vmatprep.subr.bf16.mxu0 0
      %1884 = vmatpush1.bf16.msra.mxu0 0
      %1885 = vmatprep.subr.bf16.mxu0 0
      %1886 = vmatpush1.bf16.msra.mxu0 0
      %1887 = vmatprep.subr.bf16.mxu0 0
      %1888 = vmatpush1.bf16.msra.mxu0 0
      %1889 = vmatprep.subr.bf16.mxu0 0
      %1890 = vmatpush1.bf16.msra.mxu0 0
      %1891 = vmatprep.subr.bf16.mxu0 0
      %1892 = vmatpush1.bf16.msra.mxu0 0
      %1893 = vmatprep.subr.bf16.mxu0 0
      %1894 = vmatpush1.bf16.msra.mxu0 0
      %1895 = vmatprep.subr.bf16.mxu0 0
      %1896 = vmatpush1.bf16.msra.mxu0 0
      %1897 = vmatprep.subr.bf16.mxu0 0
      %1898 = vmatpush1.bf16.msra.mxu0 0
      %1899 = vmatprep.subr.bf16.mxu0 0
      %1900 = vmatpush1.bf16.msra.mxu0 0
      %1901 = vmatprep.subr.bf16.mxu0 0
      %1902 = vmatpush1.bf16.msra.mxu0 0
      %1903 = vmatprep.mubr.bf16.mxu0 0
      %1904 = vmatmul.mubr.bf16.gmra.mrb[0].mxu0 %v1851
      %v1905 = vpop.f32.mrb[0].mxu0
      %v1906 = vadd.f32 0.0, %v1905
      %v1907 = vpop.f32.mrb[0].mxu0
      %v1908 = vpop.f32.mrb[0].mxu0
      %v1909 = vadd.f32 0.0, %v1908
      %v1910 = vpop.f32.mrb[0].mxu0
      %1911 = vmatprep.mubr.bf16.mxu0 0
      %1912 = vmatmul.mubr.bf16.gmra.mrb[0].mxu0 %v1854
      %v1913 = vpop.f32.mrb[0].mxu0
      %v1914 = vadd.f32 0.0, %v1913
      %v1915 = vpop.f32.mrb[0].mxu0
      %v1916 = vpop.f32.mrb[0].mxu0
      %v1917 = vadd.f32 0.0, %v1916
      %v1918 = vpop.f32.mrb[0].mxu0
      %1919 = vmatprep.mubr.bf16.mxu0 0
      %1920 = vmatmul.mubr.bf16.gmra.mrb[0].mxu0 %v1857
      %v1921 = vpop.f32.mrb[0].mxu0
      %v1922 = vadd.f32 0.0, %v1921
      %v1923 = vpop.f32.mrb[0].mxu0
      %v1924 = vpop.f32.mrb[0].mxu0
      %v1925 = vadd.f32 0.0, %v1924
      %v1926 = vpop.f32.mrb[0].mxu0
      %1927 = vmatprep.mubr.bf16.mxu0 0
      %1928 = vmatmul.mubr.bf16.gmra.mrb[0].mxu0 %v1860
      %v1929 = vpop.f32.mrb[0].mxu0
      %v1930 = vadd.f32 0.0, %v1929
      %v1931 = vpop.f32.mrb[0].mxu0
      %v1932 = vpop.f32.mrb[0].mxu0
      %v1933 = vadd.f32 0.0, %v1932
      %v1934 = vpop.f32.mrb[0].mxu0
      %1935 = vmatprep.mubr.bf16.mxu0 0
      %1936 = vmatmul.mubr.bf16.gmra.mrb[0].mxu0 %v1863
      %v1937 = vpop.f32.mrb[0].mxu0
      %v1938 = vadd.f32 0.0, %v1937
      %v1939 = vpop.f32.mrb[0].mxu0
      %v1940 = vpop.f32.mrb[0].mxu0
      %v1941 = vadd.f32 0.0, %v1940
      %v1942 = vpop.f32.mrb[0].mxu0
      %1943 = vmatprep.mubr.bf16.mxu0 0
      %1944 = vmatmul.mubr.bf16.gmra.mrb[0].mxu0 %v1866
      %v1945 = vpop.f32.mrb[0].mxu0
      %v1946 = vadd.f32 0.0, %v1945
      %v1947 = vpop.f32.mrb[0].mxu0
      %v1948 = vpop.f32.mrb[0].mxu0
      %v1949 = vadd.f32 0.0, %v1948
      %v1950 = vpop.f32.mrb[0].mxu0
      %1951 = vdwg.mxu0
      %v1952 = vadd.f32 %v1656, %v1906
      %v1953 = vadd.f32 %v1657, %v1909
      %v1954 = vadd.f32 %v1658, %v1914
      %v1955 = vadd.f32 %v1659, %v1917
      %v1956 = vadd.f32 %v1660, %v1922
      %v1957 = vadd.f32 %v1661, %v1925
      %v1958 = vadd.f32 %v1662, %v1930
      %v1959 = vadd.f32 %v1663, %v1933
      %v1960 = vadd.f32 %v1664, %v1938
      %v1961 = vadd.f32 %v1665, %v1941
      %v1962 = vadd.f32 %v1666, %v1946
      %v1963 = vadd.f32 %v1667, %v1949
      %v1964 = vld [vmem:[%s1509] sm:$0xe]
      %v1965 = vld [vmem:[%s1509 + $0xc] sm:$0xe]
      %v1966 = vld [vmem:[%s1509 + $0x18] sm:$0xe]
      %v1967 = vld [vmem:[%s1509 + $0x24] sm:$0xe]
      %v1968 = vld [vmem:[%s1509 + $0x30] sm:$0xe]
      %v1969 = vld [vmem:[%s1509 + $0x3c] sm:$0xe]
      %v1988 = vrot.slane %v1964, 5
      %v1989 = vrot.slane %v1988, 4
      %v1990 = vrot.slane %v1669, 5
      %v1991 = vsel %vm671, %v1989, %v1990
      %v1992 = vrot.slane %v1990, 4
      %v1993 = vrot.slane %v1670, 5
      %v1994 = vsel %vm671, %v1992, %v1993
      %v1995 = vrot.slane %v1965, 5
      %v1996 = vrot.slane %v1995, 4
      %v1997 = vrot.slane %v1672, 5
      %v1998 = vsel %vm671, %v1996, %v1997
      %v1999 = vrot.slane %v1997, 4
      %v2000 = vrot.slane %v1673, 5
      %v2001 = vsel %vm671, %v1999, %v2000
      %v2002 = vrot.slane %v1966, 5
      %v2003 = vrot.slane %v2002, 4
      %v2004 = vrot.slane %v1675, 5
      %v2005 = vsel %vm671, %v2003, %v2004
      %v2006 = vrot.slane %v2004, 4
      %v2007 = vrot.slane %v1676, 5
      %v2008 = vsel %vm671, %v2006, %v2007
      %v2009 = vrot.slane %v1967, 5
      %v2010 = vrot.slane %v2009, 4
      %v2011 = vrot.slane %v1678, 5
      %v2012 = vsel %vm671, %v2010, %v2011
      %v2013 = vrot.slane %v2011, 4
      %v2014 = vrot.slane %v1679, 5
      %v2015 = vsel %vm671, %v2013, %v2014
      %v2016 = vrot.slane %v1968, 5
      %v2017 = vrot.slane %v2016, 4
      %v2018 = vrot.slane %v1681, 5
      %v2019 = vsel %vm671, %v2017, %v2018
      %v2020 = vrot.slane %v2018, 4
      %v2021 = vrot.slane %v1682, 5
      %v2022 = vsel %vm671, %v2020, %v2021
      %v2023 = vrot.slane %v1969, 5
      %v2024 = vrot.slane %v2023, 4
      %v2025 = vrot.slane %v1684, 5
      %v2026 = vsel %vm671, %v2024, %v2025
      %v2027 = vrot.slane %v2025, 4
      %v2028 = vrot.slane %v1685, 5
      %v2029 = vsel %vm671, %v2027, %v2028
      %s2030 = scalar_lea.vmem %s1, 32
      %v2031 = vld [vmem:[%s2030] sm:$0xf]
      %v2032 = vunpack.c.l.b16 %v1991
      %v2033 = vunpack.c.l.b16 %v1994
      %v2034 = vunpack.c.l.b16 %v1998
      %v2035 = vunpack.c.l.b16 %v2001
      %v2036 = vunpack.c.l.b16 %v2005
      %v2037 = vunpack.c.l.b16 %v2008
      %v2038 = vunpack.c.l.b16 %v2012
      %v2039 = vunpack.c.l.b16 %v2015
      %v2040 = vunpack.c.l.b16 %v2019
      %v2041 = vunpack.c.l.b16 %v2022
      %v2042 = vunpack.c.l.b16 %v2026
      %v2043 = vunpack.c.l.b16 %v2029
      %v2044 = vpack.c.b16 %v2033, %v2032
      %v2045 = vpack.c.b16 %v2035, %v2034
      %v2046 = vpack.c.b16 %v2037, %v2036
      %v2047 = vpack.c.b16 %v2039, %v2038
      %v2048 = vpack.c.b16 %v2041, %v2040
      %v2049 = vpack.c.b16 %v2043, %v2042
      %v2051 = vsel %vm415, %v2044, 0
      %v2054 = vsel %vm415, %v2045, 0
      %v2057 = vsel %vm415, %v2046, 0
      %v2060 = vsel %vm415, %v2047, 0
      %v2063 = vsel %vm415, %v2048, 0
      %v2066 = vsel %vm415, %v2049, 0
      %v2069 = vsel %vm434, %v2031, 0
      %2071 = vmatprep.subr.bf16.mxu0 0
      %2072 = vmatpush1.bf16.msra.mxu0 %v2069
      %2073 = vmatprep.subr.bf16.mxu0 0
      %2074 = vmatpush1.bf16.msra.mxu0 0
      %2075 = vmatprep.subr.bf16.mxu0 0
      %2076 = vmatpush1.bf16.msra.mxu0 0
      %2077 = vmatprep.subr.bf16.mxu0 0
      %2078 = vmatpush1.bf16.msra.mxu0 0
      %2079 = vmatprep.subr.bf16.mxu0 0
      %2080 = vmatpush1.bf16.msra.mxu0 0
      %2081 = vmatprep.subr.bf16.mxu0 0
      %2082 = vmatpush1.bf16.msra.mxu0 0
      %2083 = vmatprep.subr.bf16.mxu0 0
      %2084 = vmatpush1.bf16.msra.mxu0 0
      %2085 = vmatprep.subr.bf16.mxu0 0
      %2086 = vmatpush1.bf16.msra.mxu0 0
      %2087 = vmatprep.subr.bf16.mxu0 0
      %2088 = vmatpush1.bf16.msra.mxu0 0
      %2089 = vmatprep.subr.bf16.mxu0 0
      %2090 = vmatpush1.bf16.msra.mxu0 0
      %2091 = vmatprep.subr.bf16.mxu0 0
      %2092 = vmatpush1.bf16.msra.mxu0 0
      %2093 = vmatprep.subr.bf16.mxu0 0
      %2094 = vmatpush1.bf16.msra.mxu0 0
      %2095 = vmatprep.subr.bf16.mxu0 0
      %2096 = vmatpush1.bf16.msra.mxu0 0
      %2097 = vmatprep.subr.bf16.mxu0 0
      %2098 = vmatpush1.bf16.msra.mxu0 0
      %2099 = vmatprep.subr.bf16.mxu0 0
      %2100 = vmatpush1.bf16.msra.mxu0 0
      %2101 = vmatprep.subr.bf16.mxu0 0
      %2102 = vmatpush1.bf16.msra.mxu0 0
      %2103 = vmatprep.mubr.bf16.mxu0 0
      %2104 = vmatmul.mubr.bf16.gmra.mrb[0].mxu0 %v2051
      %v2105 = vpop.f32.mrb[0].mxu0
      %v2106 = vadd.f32 0.0, %v2105
      %v2107 = vpop.f32.mrb[0].mxu0
      %v2108 = vpop.f32.mrb[0].mxu0
      %v2109 = vadd.f32 0.0, %v2108
      %v2110 = vpop.f32.mrb[0].mxu0
      %2111 = vmatprep.mubr.bf16.mxu0 0
      %2112 = vmatmul.mubr.bf16.gmra.mrb[0].mxu0 %v2054
      %v2113 = vpop.f32.mrb[0].mxu0
      %v2114 = vadd.f32 0.0, %v2113
      %v2115 = vpop.f32.mrb[0].mxu0
      %v2116 = vpop.f32.mrb[0].mxu0
      %v2117 = vadd.f32 0.0, %v2116
      %v2118 = vpop.f32.mrb[0].mxu0
      %2119 = vmatprep.mubr.bf16.mxu0 0
      %2120 = vmatmul.mubr.bf16.gmra.mrb[0].mxu0 %v2057
      %v2121 = vpop.f32.mrb[0].mxu0
      %v2122 = vadd.f32 0.0, %v2121
      %v2123 = vpop.f32.mrb[0].mxu0
      %v2124 = vpop.f32.mrb[0].mxu0
      %v2125 = vadd.f32 0.0, %v2124
      %v2126 = vpop.f32.mrb[0].mxu0
      %2127 = vmatprep.mubr.bf16.mxu0 0
      %2128 = vmatmul.mubr.bf16.gmra.mrb[0].mxu0 %v2060
      %v2129 = vpop.f32.mrb[0].mxu0
      %v2130 = vadd.f32 0.0, %v2129
      %v2131 = vpop.f32.mrb[0].mxu0
      %v2132 = vpop.f32.mrb[0].mxu0
      %v2133 = vadd.f32 0.0, %v2132
      %v2134 = vpop.f32.mrb[0].mxu0
      %2135 = vmatprep.mubr.bf16.mxu0 0
      %2136 = vmatmul.mubr.bf16.gmra.mrb[0].mxu0 %v2063
      %v2137 = vpop.f32.mrb[0].mxu0
      %v2138 = vadd.f32 0.0, %v2137
      %v2139 = vpop.f32.mrb[0].mxu0
      %v2140 = vpop.f32.mrb[0].mxu0
      %v2141 = vadd.f32 0.0, %v2140
      %v2142 = vpop.f32.mrb[0].mxu0
      %2143 = vmatprep.mubr.bf16.mxu0 0
      %2144 = vmatmul.mubr.bf16.gmra.mrb[0].mxu0 %v2066
      %v2145 = vpop.f32.mrb[0].mxu0
      %v2146 = vadd.f32 0.0, %v2145
      %v2147 = vpop.f32.mrb[0].mxu0
      %v2148 = vpop.f32.mrb[0].mxu0
      %v2149 = vadd.f32 0.0, %v2148
      %v2150 = vpop.f32.mrb[0].mxu0
      %2151 = vdwg.mxu0
      %v2152 = vadd.f32 %v1952, %v2106
      %v2153 = vadd.f32 %v1953, %v2109
      %v2154 = vadd.f32 %v1954, %v2114
      %v2155 = vadd.f32 %v1955, %v2117
      %v2156 = vadd.f32 %v1956, %v2122
      %v2157 = vadd.f32 %v1957, %v2125
      %v2158 = vadd.f32 %v1958, %v2130
      %v2159 = vadd.f32 %v1959, %v2133
      %v2160 = vadd.f32 %v1960, %v2138
      %v2161 = vadd.f32 %v1961, %v2141
      %v2162 = vadd.f32 %v1962, %v2146
      %v2163 = vadd.f32 %v1963, %v2149
      %v2164 = vlaneseq
      %v2165 = vshrl.u32 %v2164, 7
      %v2166 = vsub.s32 0, %v2165
      %v2167 = vrot.slane %v224, %v2166
      %v2168 = vmul.f32 %v2152, %v2167
      %v2169 = vmul.f32 %v2153, %v2167
      %v2170 = vmul.f32 %v2154, %v2167
      %v2171 = vmul.f32 %v2155, %v2167
      %v2172 = vmul.f32 %v2156, %v2167
      %v2173 = vmul.f32 %v2157, %v2167
      %v2174 = vmul.f32 %v2158, %v2167
      %v2175 = vmul.f32 %v2159, %v2167
      %v2176 = vmul.f32 %v2160, %v2167
      %v2177 = vmul.f32 %v2161, %v2167
      %v2178 = vmul.f32 %v2162, %v2167
      %v2179 = vmul.f32 %v2163, %v2167
      %v2180 = vlaneseq
      %v2181 = vshrl.u32 %v2180, 7
      %v2182 = vsub.s32 1, %v2181
      %v2183 = vrot.slane %v224, %v2182
      %v2184 = vadd.f32 %v2168, %v2183
      %v2185 = vadd.f32 %v2169, %v2183
      %v2186 = vadd.f32 %v2170, %v2183
      %v2187 = vadd.f32 %v2171, %v2183
      %v2188 = vadd.f32 %v2172, %v2183
      %v2189 = vadd.f32 %v2173, %v2183
      %v2190 = vadd.f32 %v2174, %v2183
      %v2191 = vadd.f32 %v2175, %v2183
      %v2192 = vadd.f32 %v2176, %v2183
      %v2193 = vadd.f32 %v2177, %v2183
      %v2194 = vadd.f32 %v2178, %v2183
      %v2195 = vadd.f32 %v2179, %v2183
      %v2196 = vmax.f32 %v2184, 0.0
      %v2197 = vmax.f32 %v2185, 0.0
      %v2198 = vmax.f32 %v2186, 0.0
      %v2199 = vmax.f32 %v2187, 0.0
      %v2200 = vmax.f32 %v2188, 0.0
      %v2201 = vmax.f32 %v2189, 0.0
      %v2202 = vmax.f32 %v2190, 0.0
      %v2203 = vmax.f32 %v2191, 0.0
      %v2204 = vmax.f32 %v2192, 0.0
      %v2205 = vmax.f32 %v2193, 0.0
      %v2206 = vmax.f32 %v2194, 0.0
      %v2207 = vmax.f32 %v2195, 0.0
      %v2208 = vpack.c.bf16 %v2197, %v2196
      %v2209 = vpack.c.bf16 %v2199, %v2198
      %v2210 = vpack.c.bf16 %v2201, %v2200
      %v2211 = vpack.c.bf16 %v2203, %v2202
      %v2212 = vpack.c.bf16 %v2205, %v2204
      %v2213 = vpack.c.bf16 %v2207, %v2206
      %v2220 = vunpack.c.l.b16 %v2208
      %v2221 = vunpack.c.h.b16 %v2208
      %v2222 = vunpack.c.l.b16 %v2209
      %v2223 = vunpack.c.h.b16 %v2209
      %v2224 = vunpack.c.l.b16 %v2210
      %v2225 = vunpack.c.h.b16 %v2210
      %v2226 = vunpack.c.l.b16 %v2211
      %v2227 = vunpack.c.h.b16 %v2211
      %v2228 = vunpack.c.l.b16 %v2212
      %v2229 = vunpack.c.h.b16 %v2212
      %v2230 = vunpack.c.l.b16 %v2213
      %v2231 = vunpack.c.h.b16 %v2213
      %v2232 = vpack.c.b16 %v2220, %v2220
      %v2233 = vpack.c.b16 %v2221, %v2221
      %v2234 = vpack.c.b16 %v2222, %v2222
      %v2235 = vpack.c.b16 %v2223, %v2223
      %v2236 = vpack.c.b16 %v2224, %v2224
      %v2237 = vpack.c.b16 %v2225, %v2225
      %v2238 = vpack.c.b16 %v2226, %v2226
      %v2239 = vpack.c.b16 %v2227, %v2227
      %v2240 = vpack.c.b16 %v2228, %v2228
      %v2241 = vpack.c.b16 %v2229, %v2229
      %v2242 = vpack.c.b16 %v2230, %v2230
      %v2243 = vpack.c.b16 %v2231, %v2231
      %vm2244 = vsmask.f32 256
      %vm2245 = vsmask.f32 4368
      %vm2246 = vmor %vm2244, %vm2245
      %v2248 = vshrl.u32 %v2232, 16
      %v2250 = vrot.slane %v2248, 7
      %v2251 = vshll.u32 %v2232, 16
      %v2253 = vor.u32 %v2250, %v2251
      %v2254 = vrot.slane %v2250, 4
      %v2256 = vshrl.u32 %v2233, 16
      %v2258 = vrot.slane %v2256, 7
      %v2259 = vshll.u32 %v2233, 16
      %v2261 = vor.u32 %v2258, %v2259
      %v2262 = vsel %vm2246, %v2254, %v2261
      %v2263 = vrot.slane %v2258, 4
      %v2265 = vshrl.u32 %v2234, 16
      %v2267 = vrot.slane %v2265, 7
      %v2268 = vshll.u32 %v2234, 16
      %v2270 = vor.u32 %v2267, %v2268
      %v2271 = vrot.slane %v2267, 4
      %v2273 = vshrl.u32 %v2235, 16
      %v2275 = vrot.slane %v2273, 7
      %v2276 = vshll.u32 %v2235, 16
      %v2278 = vor.u32 %v2275, %v2276
      %v2279 = vsel %vm2246, %v2271, %v2278
      %v2280 = vrot.slane %v2275, 4
      %v2282 = vshrl.u32 %v2236, 16
      %v2284 = vrot.slane %v2282, 7
      %v2285 = vshll.u32 %v2236, 16
      %v2287 = vor.u32 %v2284, %v2285
      %v2288 = vrot.slane %v2284, 4
      %v2290 = vshrl.u32 %v2237, 16
      %v2292 = vrot.slane %v2290, 7
      %v2293 = vshll.u32 %v2237, 16
      %v2295 = vor.u32 %v2292, %v2293
      %v2296 = vsel %vm2246, %v2288, %v2295
      %v2297 = vrot.slane %v2292, 4
      %v2299 = vshrl.u32 %v2238, 16
      %v2301 = vrot.slane %v2299, 7
      %v2302 = vshll.u32 %v2238, 16
      %v2304 = vor.u32 %v2301, %v2302
      %v2305 = vrot.slane %v2301, 4
      %v2307 = vshrl.u32 %v2239, 16
      %v2309 = vrot.slane %v2307, 7
      %v2310 = vshll.u32 %v2239, 16
      %v2312 = vor.u32 %v2309, %v2310
      %v2313 = vsel %vm2246, %v2305, %v2312
      %v2314 = vrot.slane %v2309, 4
      %v2316 = vshrl.u32 %v2240, 16
      %v2318 = vrot.slane %v2316, 7
      %v2319 = vshll.u32 %v2240, 16
      %v2321 = vor.u32 %v2318, %v2319
      %v2322 = vrot.slane %v2318, 4
      %v2324 = vshrl.u32 %v2241, 16
      %v2326 = vrot.slane %v2324, 7
      %v2327 = vshll.u32 %v2241, 16
      %v2329 = vor.u32 %v2326, %v2327
      %v2330 = vsel %vm2246, %v2322, %v2329
      %v2331 = vrot.slane %v2326, 4
      %v2333 = vshrl.u32 %v2242, 16
      %v2335 = vrot.slane %v2333, 7
      %v2336 = vshll.u32 %v2242, 16
      %v2338 = vor.u32 %v2335, %v2336
      %v2339 = vrot.slane %v2335, 4
      %v2341 = vshrl.u32 %v2243, 16
      %v2343 = vrot.slane %v2341, 7
      %v2344 = vshll.u32 %v2243, 16
      %v2346 = vor.u32 %v2343, %v2344
      %v2347 = vsel %vm2246, %v2339, %v2346
      %v2348 = vrot.slane %v2343, 4
      %vm2367 = vcmask 60416
      %vm2368 = vsmask.f32 7938
      %vm2369 = vmand %vm2367, %vm2368
      %v2370 = vld [vmem:[#allocation2] sm:$0xf]
      %v2371 = vsel %vm2369, %v2253, %v2370
      %2372 = vst [vmem:[#allocation2] sm:$0xf] %v2371
      %vm2373 = vcmask 60416
      %2374 = vst.msk [vmem:[#allocation2 + $0x4] sm:$0xf] %vm2373, %v2262
      %vm2375 = vcmask 57344
      %vm2376 = vmand %vm2375, %vm2244
      %v2377 = vld [vmem:[#allocation2 + $0x8] sm:$0x1]
      %v2378 = vsel %vm2376, %v2263, %v2377
      %2379 = vst [vmem:[#allocation2 + $0x8] sm:$0x1] %v2378
      %v2380 = vld [vmem:[#allocation2 + $0xc] sm:$0xf]
      %v2381 = vsel %vm2369, %v2270, %v2380
      %2382 = vst [vmem:[#allocation2 + $0xc] sm:$0xf] %v2381
      %2383 = vst.msk [vmem:[#allocation2 + $0x10] sm:$0xf] %vm2373, %v2279
      %v2384 = vld [vmem:[#allocation2 + $0x14] sm:$0x1]
      %v2385 = vsel %vm2376, %v2280, %v2384
      %2386 = vst [vmem:[#allocation2 + $0x14] sm:$0x1] %v2385
      %v2387 = vld [vmem:[#allocation2 + $0x18] sm:$0xf]
      %v2388 = vsel %vm2369, %v2287, %v2387
      %2389 = vst [vmem:[#allocation2 + $0x18] sm:$0xf] %v2388
      %2390 = vst.msk [vmem:[#allocation2 + $0x1c] sm:$0xf] %vm2373, %v2296
      %v2391 = vld [vmem:[#allocation2 + $0x20] sm:$0x1]
      %v2392 = vsel %vm2376, %v2297, %v2391
      %2393 = vst [vmem:[#allocation2 + $0x20] sm:$0x1] %v2392
      %v2394 = vld [vmem:[#allocation2 + $0x24] sm:$0xf]
      %v2395 = vsel %vm2369, %v2304, %v2394
      %2396 = vst [vmem:[#allocation2 + $0x24] sm:$0xf] %v2395
      %2397 = vst.msk [vmem:[#allocation2 + $0x28] sm:$0xf] %vm2373, %v2313
      %v2398 = vld [vmem:[#allocation2 + $0x2c] sm:$0x1]
      %v2399 = vsel %vm2376, %v2314, %v2398
      %2400 = vst [vmem:[#allocation2 + $0x2c] sm:$0x1] %v2399
      %v2401 = vld [vmem:[#allocation2 + $0x30] sm:$0xf]
      %v2402 = vsel %vm2369, %v2321, %v2401
      %2403 = vst [vmem:[#allocation2 + $0x30] sm:$0xf] %v2402
      %2404 = vst.msk [vmem:[#allocation2 + $0x34] sm:$0xf] %vm2373, %v2330
      %v2405 = vld [vmem:[#allocation2 + $0x38] sm:$0x1]
      %v2406 = vsel %vm2376, %v2331, %v2405
      %2407 = vst [vmem:[#allocation2 + $0x38] sm:$0x1] %v2406
      %v2408 = vld [vmem:[#allocation2 + $0x3c] sm:$0xf]
      %v2409 = vsel %vm2369, %v2338, %v2408
      %2410 = vst [vmem:[#allocation2 + $0x3c] sm:$0xf] %v2409
      %2411 = vst.msk [vmem:[#allocation2 + $0x40] sm:$0xf] %vm2373, %v2347
      %v2412 = vld [vmem:[#allocation2 + $0x44] sm:$0x1]
      %v2413 = vsel %vm2376, %v2348, %v2412
      %2414 = vst [vmem:[#allocation2 + $0x44] sm:$0x1] %v2413
      %v2415 = vld [vmem:[#allocation2] sm:$0x1]
      %v2416 = vsel %vm2376, 0, %v2415
      %2417 = vst [vmem:[#allocation2] sm:$0x1] %v2416
      %v2418 = vld [vmem:[#allocation2 + $0xc] sm:$0x1]
      %v2419 = vsel %vm2376, 0, %v2418
      %2420 = vst [vmem:[#allocation2 + $0xc] sm:$0x1] %v2419
      %v2421 = vld [vmem:[#allocation2 + $0x18] sm:$0x1]
      %v2422 = vsel %vm2376, 0, %v2421
      %2423 = vst [vmem:[#allocation2 + $0x18] sm:$0x1] %v2422
      %v2424 = vld [vmem:[#allocation2 + $0x24] sm:$0x1]
      %v2425 = vsel %vm2376, 0, %v2424
      %2426 = vst [vmem:[#allocation2 + $0x24] sm:$0x1] %v2425
      %v2427 = vld [vmem:[#allocation2 + $0x30] sm:$0x1]
      %v2428 = vsel %vm2376, 0, %v2427
      %2429 = vst [vmem:[#allocation2 + $0x30] sm:$0x1] %v2428
      %v2430 = vld [vmem:[#allocation2 + $0x3c] sm:$0x1]
      %v2431 = vsel %vm2376, 0, %v2430
      %2432 = vst [vmem:[#allocation2 + $0x3c] sm:$0x1] %v2431
      %vm2433 = vmand %vm2375, %vm2368
      %v2434 = vld [vmem:[#allocation2 + $0x8] sm:$0x1]
      %v2435 = vsel %vm2433, 0, %v2434
      %2436 = vst [vmem:[#allocation2 + $0x8] sm:$0x1] %v2435
      %v2437 = vld [vmem:[#allocation2 + $0x14] sm:$0x1]
      %v2438 = vsel %vm2433, 0, %v2437
      %2439 = vst [vmem:[#allocation2 + $0x14] sm:$0x1] %v2438
      %v2440 = vld [vmem:[#allocation2 + $0x20] sm:$0x1]
      %v2441 = vsel %vm2433, 0, %v2440
      %2442 = vst [vmem:[#allocation2 + $0x20] sm:$0x1] %v2441
      %v2443 = vld [vmem:[#allocation2 + $0x2c] sm:$0x1]
      %v2444 = vsel %vm2433, 0, %v2443
      %2445 = vst [vmem:[#allocation2 + $0x2c] sm:$0x1] %v2444
      %v2446 = vld [vmem:[#allocation2 + $0x38] sm:$0x1]
      %v2447 = vsel %vm2433, 0, %v2446
      %2448 = vst [vmem:[#allocation2 + $0x38] sm:$0x1] %v2447
      %v2449 = vld [vmem:[#allocation2 + $0x44] sm:$0x1]
      %v2450 = vsel %vm2433, 0, %v2449
      %2451 = vst [vmem:[#allocation2 + $0x44] sm:$0x1] %v2450
      %p2452 = scmp.eq.s32.totalorder %s20, 0
      // Predicated region
      $region37: #{tpu_custom_call.1} parent=35 // pred_check
        %p2453 = pneg %p2452
      $region38: #{tpu_custom_call.1} parent=35 // pred_check_branch
        %2455 = sbr.rel (%p2453) target = $region40
      $region39: #{tpu_custom_call.1} parent=35 // pred_region
        %2456 = vst.msk [vmem:[#allocation2] sm:$0xf] %vm2373, 0
        %2457 = vst.msk [vmem:[#allocation2 + $0x4] sm:$0xf] %vm2373, 0
        %vm2458 = vcmask 57344
        %2459 = vst.msk [vmem:[#allocation2 + $0x8] sm:$0x1] %vm2458, 0
      $region40: #{tpu_custom_call.1} parent=35 // pred_fallthru
        _
      %p2460 = scmp.eq.s32.totalorder %s20, 3
      // Predicated region
      $region41: #{tpu_custom_call.1} parent=35 // pred_check
        %p2461 = pneg %p2460
      $region42: #{tpu_custom_call.1} parent=35 // pred_check_branch
        %2463 = sbr.rel (%p2461) target = $region44
      $region43: #{tpu_custom_call.1} parent=35 // pred_region
        %s2464 = scalar_lea.vmem [#allocation2], 60
        %2465 = vst.msk [vmem:[%s2464] sm:$0xf] %vm2373, 0
        %2466 = vst.msk [vmem:[%s2464 + $0x4] sm:$0xf] %vm2373, 0
        %vm2467 = vcmask 57344
        %2468 = vst.msk [vmem:[%s2464 + $0x8] sm:$0x1] %vm2467, 0
      $region44: #{tpu_custom_call.1} parent=35 // pred_fallthru
        _
      %v2469 = vld [vmem:[#allocation2] sm:$0xf]
      %v2470 = vld [vmem:[#allocation2 + $0x4] sm:$0xf]
      %v2471 = vld [vmem:[#allocation2 + $0xc] sm:$0xf]
      %v2472 = vld [vmem:[#allocation2 + $0x10] sm:$0xf]
      %v2473 = vld [vmem:[#allocation2 + $0x18] sm:$0xf]
      %v2474 = vld [vmem:[#allocation2 + $0x1c] sm:$0xf]
      %v2475 = vld [vmem:[#allocation2 + $0x24] sm:$0xf]
      %v2476 = vld [vmem:[#allocation2 + $0x28] sm:$0xf]
      %v2477 = vld [vmem:[%s2] sm:$0xf]
      %v2478 = vld [vmem:[#allocation2 + $0x8] sm:$0x1]
      %v2479 = vld [vmem:[#allocation2 + $0x14] sm:$0x1]
      %v2480 = vld [vmem:[#allocation2 + $0x20] sm:$0x1]
      %v2481 = vld [vmem:[#allocation2 + $0x2c] sm:$0x1]
      %v2483 = vshrl.u32 %v2469, 16
      %v2485 = vrot.slane %v2483, 4
      %v2486 = vshll.u32 %v2469, 16
      %v2488 = vrot.slane %v2486, 5
      %v2489 = vor.u32 %v2485, %v2488
      %v2490 = vrot.slane %v2489, 4
      %v2492 = vshll.u32 %v2470, 16
      %v2494 = vrot.slane %v2492, 5
      %v2495 = vsel %vm250, %v2490, %v2494
      %v2496 = vshrl.u32 %v2470, 16
      %v2498 = vrot.slane %v2496, 4
      %v2499 = vor.u32 %v2498, %v2494
      %v2500 = vrot.slane %v2499, 4
      %v2502 = vshll.u32 %v2478, 16
      %v2504 = vrot.slane %v2502, 5
      %v2505 = vsel %vm250, %v2500, %v2504
      %v2507 = vshrl.u32 %v2471, 16
      %v2509 = vrot.slane %v2507, 4
      %v2510 = vshll.u32 %v2471, 16
      %v2512 = vrot.slane %v2510, 5
      %v2513 = vor.u32 %v2509, %v2512
      %v2514 = vrot.slane %v2513, 4
      %v2516 = vshll.u32 %v2472, 16
      %v2518 = vrot.slane %v2516, 5
      %v2519 = vsel %vm250, %v2514, %v2518
      %v2520 = vshrl.u32 %v2472, 16
      %v2522 = vrot.slane %v2520, 4
      %v2523 = vor.u32 %v2522, %v2518
      %v2524 = vrot.slane %v2523, 4
      %v2526 = vshll.u32 %v2479, 16
      %v2528 = vrot.slane %v2526, 5
      %v2529 = vsel %vm250, %v2524, %v2528
      %v2531 = vshrl.u32 %v2473, 16
      %v2533 = vrot.slane %v2531, 4
      %v2534 = vshll.u32 %v2473, 16
      %v2536 = vrot.slane %v2534, 5
      %v2537 = vor.u32 %v2533, %v2536
      %v2538 = vrot.slane %v2537, 4
      %v2540 = vshll.u32 %v2474, 16
      %v2542 = vrot.slane %v2540, 5
      %v2543 = vsel %vm250, %v2538, %v2542
      %v2544 = vshrl.u32 %v2474, 16
      %v2546 = vrot.slane %v2544, 4
      %v2547 = vor.u32 %v2546, %v2542
      %v2548 = vrot.slane %v2547, 4
      %v2550 = vshll.u32 %v2480, 16
      %v2552 = vrot.slane %v2550, 5
      %v2553 = vsel %vm250, %v2548, %v2552
      %v2555 = vshrl.u32 %v2475, 16
      %v2557 = vrot.slane %v2555, 4
      %v2558 = vshll.u32 %v2475, 16
      %v2560 = vrot.slane %v2558, 5
      %v2561 = vor.u32 %v2557, %v2560
      %v2562 = vrot.slane %v2561, 4
      %v2564 = vshll.u32 %v2476, 16
      %v2566 = vrot.slane %v2564, 5
      %v2567 = vsel %vm250, %v2562, %v2566
      %v2568 = vshrl.u32 %v2476, 16
      %v2570 = vrot.slane %v2568, 4
      %v2571 = vor.u32 %v2570, %v2566
      %v2572 = vrot.slane %v2571, 4
      %v2574 = vshll.u32 %v2481, 16
      %v2576 = vrot.slane %v2574, 5
      %v2577 = vsel %vm250, %v2572, %v2576
      %s2578 = scalar_lea.vmem %s2, 4
      %v2579 = vld [vmem:[%s2578] sm:$0xf]
      %v2580 = vunpack.c.l.b16 %v2495
      %v2581 = vunpack.c.l.b16 %v2505
      %v2582 = vunpack.c.l.b16 %v2519
      %v2583 = vunpack.c.l.b16 %v2529
      %v2584 = vunpack.c.l.b16 %v2543
      %v2585 = vunpack.c.l.b16 %v2553
      %v2586 = vunpack.c.l.b16 %v2567
      %v2587 = vunpack.c.l.b16 %v2577
      %v2588 = vpack.c.b16 %v2581, %v2580
      %v2589 = vpack.c.b16 %v2583, %v2582
      %v2590 = vpack.c.b16 %v2585, %v2584
      %v2591 = vpack.c.b16 %v2587, %v2586
      %v2593 = vsel %vm415, %v2588, 0
      %v2596 = vsel %vm415, %v2589, 0
      %v2599 = vsel %vm415, %v2590, 0
      %v2602 = vsel %vm415, %v2591, 0
      %v2605 = vsel %vm434, %v2579, 0
      %2607 = vmatprep.subr.bf16.mxu0 0
      %2608 = vmatpush1.bf16.msra.mxu0 %v2605
      %2609 = vmatprep.subr.bf16.mxu0 0
      %2610 = vmatpush1.bf16.msra.mxu0 0
      %2611 = vmatprep.subr.bf16.mxu0 0
      %2612 = vmatpush1.bf16.msra.mxu0 0
      %2613 = vmatprep.subr.bf16.mxu0 0
      %2614 = vmatpush1.bf16.msra.mxu0 0
      %2615 = vmatprep.subr.bf16.mxu0 0
      %2616 = vmatpush1.bf16.msra.mxu0 0
      %2617 = vmatprep.subr.bf16.mxu0 0
      %2618 = vmatpush1.bf16.msra.mxu0 0
      %2619 = vmatprep.subr.bf16.mxu0 0
      %2620 = vmatpush1.bf16.msra.mxu0 0
      %2621 = vmatprep.subr.bf16.mxu0 0
      %2622 = vmatpush1.bf16.msra.mxu0 0
      %2623 = vmatprep.subr.bf16.mxu0 0
      %2624 = vmatpush1.bf16.msra.mxu0 0
      %2625 = vmatprep.subr.bf16.mxu0 0
      %2626 = vmatpush1.bf16.msra.mxu0 0
      %2627 = vmatprep.subr.bf16.mxu0 0
      %2628 = vmatpush1.bf16.msra.mxu0 0
      %2629 = vmatprep.subr.bf16.mxu0 0
      %2630 = vmatpush1.bf16.msra.mxu0 0
      %2631 = vmatprep.subr.bf16.mxu0 0
      %2632 = vmatpush1.bf16.msra.mxu0 0
      %2633 = vmatprep.subr.bf16.mxu0 0
      %2634 = vmatpush1.bf16.msra.mxu0 0
      %2635 = vmatprep.subr.bf16.mxu0 0
      %2636 = vmatpush1.bf16.msra.mxu0 0
      %2637 = vmatprep.subr.bf16.mxu0 0
      %2638 = vmatpush1.bf16.msra.mxu0 0
      %2639 = vmatprep.mubr.bf16.mxu0 0
      %2640 = vmatmul.mubr.bf16.gmra.mrb[0].mxu0 %v2593
      %v2641 = vpop.f32.mrb[0].mxu0
      %v2642 = vadd.f32 0.0, %v2641
      %v2643 = vpop.f32.mrb[0].mxu0
      %v2644 = vpop.f32.mrb[0].mxu0
      %v2645 = vadd.f32 0.0, %v2644
      %v2646 = vpop.f32.mrb[0].mxu0
      %2647 = vmatprep.mubr.bf16.mxu0 0
      %2648 = vmatmul.mubr.bf16.gmra.mrb[0].mxu0 %v2596
      %v2649 = vpop.f32.mrb[0].mxu0
      %v2650 = vadd.f32 0.0, %v2649
      %v2651 = vpop.f32.mrb[0].mxu0
      %v2652 = vpop.f32.mrb[0].mxu0
      %v2653 = vadd.f32 0.0, %v2652
      %v2654 = vpop.f32.mrb[0].mxu0
      %2655 = vmatprep.mubr.bf16.mxu0 0
      %2656 = vmatmul.mubr.bf16.gmra.mrb[0].mxu0 %v2599
      %v2657 = vpop.f32.mrb[0].mxu0
      %v2658 = vadd.f32 0.0, %v2657
      %v2659 = vpop.f32.mrb[0].mxu0
      %v2660 = vpop.f32.mrb[0].mxu0
      %v2661 = vadd.f32 0.0, %v2660
      %v2662 = vpop.f32.mrb[0].mxu0
      %2663 = vmatprep.mubr.bf16.mxu0 0
      %2664 = vmatmul.mubr.bf16.gmra.mrb[0].mxu0 %v2602
      %v2665 = vpop.f32.mrb[0].mxu0
      %v2666 = vadd.f32 0.0, %v2665
      %v2667 = vpop.f32.mrb[0].mxu0
      %v2668 = vpop.f32.mrb[0].mxu0
      %v2669 = vadd.f32 0.0, %v2668
      %v2670 = vpop.f32.mrb[0].mxu0
      %2671 = vdwg.mxu0
      %v2680 = vunpack.c.l.b16 %v2469
      %v2681 = vunpack.c.l.b16 %v2470
      %v2682 = vunpack.c.l.b16 %v2471
      %v2683 = vunpack.c.l.b16 %v2472
      %v2684 = vunpack.c.l.b16 %v2473
      %v2685 = vunpack.c.l.b16 %v2474
      %v2686 = vunpack.c.l.b16 %v2475
      %v2687 = vunpack.c.l.b16 %v2476
      %v2688 = vpack.c.b16 %v2681, %v2680
      %v2689 = vpack.c.b16 %v2683, %v2682
      %v2690 = vpack.c.b16 %v2685, %v2684
      %v2691 = vpack.c.b16 %v2687, %v2686
      %v2693 = vsel %vm415, %v2688, 0
      %v2696 = vsel %vm415, %v2689, 0
      %v2699 = vsel %vm415, %v2690, 0
      %v2702 = vsel %vm415, %v2691, 0
      %v2705 = vsel %vm434, %v2477, 0
      %2707 = vmatprep.subr.bf16.mxu0 0
      %2708 = vmatpush1.bf16.msra.mxu0 %v2705
      %2709 = vmatprep.subr.bf16.mxu0 0
      %2710 = vmatpush1.bf16.msra.mxu0 0
      %2711 = vmatprep.subr.bf16.mxu0 0
      %2712 = vmatpush1.bf16.msra.mxu0 0
      %2713 = vmatprep.subr.bf16.mxu0 0
      %2714 = vmatpush1.bf16.msra.mxu0 0
      %2715 = vmatprep.subr.bf16.mxu0 0
      %2716 = vmatpush1.bf16.msra.mxu0 0
      %2717 = vmatprep.subr.bf16.mxu0 0
      %2718 = vmatpush1.bf16.msra.mxu0 0
      %2719 = vmatprep.subr.bf16.mxu0 0
      %2720 = vmatpush1.bf16.msra.mxu0 0
      %2721 = vmatprep.subr.bf16.mxu0 0
      %2722 = vmatpush1.bf16.msra.mxu0 0
      %2723 = vmatprep.subr.bf16.mxu0 0
      %2724 = vmatpush1.bf16.msra.mxu0 0
      %2725 = vmatprep.subr.bf16.mxu0 0
      %2726 = vmatpush1.bf16.msra.mxu0 0
      %2727 = vmatprep.subr.bf16.mxu0 0
      %2728 = vmatpush1.bf16.msra.mxu0 0
      %2729 = vmatprep.subr.bf16.mxu0 0
      %2730 = vmatpush1.bf16.msra.mxu0 0
      %2731 = vmatprep.subr.bf16.mxu0 0
      %2732 = vmatpush1.bf16.msra.mxu0 0
      %2733 = vmatprep.subr.bf16.mxu0 0
      %2734 = vmatpush1.bf16.msra.mxu0 0
      %2735 = vmatprep.subr.bf16.mxu0 0
      %2736 = vmatpush1.bf16.msra.mxu0 0
      %2737 = vmatprep.subr.bf16.mxu0 0
      %2738 = vmatpush1.bf16.msra.mxu0 0
      %2739 = vmatprep.mubr.bf16.mxu0 0
      %2740 = vmatmul.mubr.bf16.gmra.mrb[0].mxu0 %v2693
      %v2741 = vpop.f32.mrb[0].mxu0
      %v2742 = vadd.f32 %v2642, %v2741
      %v2743 = vpop.f32.mrb[0].mxu0
      %v2744 = vpop.f32.mrb[0].mxu0
      %v2745 = vadd.f32 %v2645, %v2744
      %v2746 = vpop.f32.mrb[0].mxu0
      %2747 = vmatprep.mubr.bf16.mxu0 0
      %2748 = vmatmul.mubr.bf16.gmra.mrb[0].mxu0 %v2696
      %v2749 = vpop.f32.mrb[0].mxu0
      %v2750 = vadd.f32 %v2650, %v2749
      %v2751 = vpop.f32.mrb[0].mxu0
      %v2752 = vpop.f32.mrb[0].mxu0
      %v2753 = vadd.f32 %v2653, %v2752
      %v2754 = vpop.f32.mrb[0].mxu0
      %2755 = vmatprep.mubr.bf16.mxu0 0
      %2756 = vmatmul.mubr.bf16.gmra.mrb[0].mxu0 %v2699
      %v2757 = vpop.f32.mrb[0].mxu0
      %v2758 = vadd.f32 %v2658, %v2757
      %v2759 = vpop.f32.mrb[0].mxu0
      %v2760 = vpop.f32.mrb[0].mxu0
      %v2761 = vadd.f32 %v2661, %v2760
      %v2762 = vpop.f32.mrb[0].mxu0
      %2763 = vmatprep.mubr.bf16.mxu0 0
      %2764 = vmatmul.mubr.bf16.gmra.mrb[0].mxu0 %v2702
      %v2765 = vpop.f32.mrb[0].mxu0
      %v2766 = vadd.f32 %v2666, %v2765
      %v2767 = vpop.f32.mrb[0].mxu0
      %v2768 = vpop.f32.mrb[0].mxu0
      %v2769 = vadd.f32 %v2669, %v2768
      %v2770 = vpop.f32.mrb[0].mxu0
      %2771 = vdwg.mxu0
      %v2772 = vld [vmem:[#allocation2] sm:$0xe]
      %v2773 = vld [vmem:[#allocation2 + $0xc] sm:$0xe]
      %v2774 = vld [vmem:[#allocation2 + $0x18] sm:$0xe]
      %v2775 = vld [vmem:[#allocation2 + $0x24] sm:$0xe]
      %v2784 = vrot.slane %v2772, 5
      %v2785 = vrot.slane %v2784, 4
      %v2786 = vrot.slane %v2470, 5
      %v2787 = vsel %vm671, %v2785, %v2786
      %v2788 = vrot.slane %v2786, 4
      %v2789 = vrot.slane %v2478, 5
      %v2790 = vsel %vm671, %v2788, %v2789
      %v2791 = vrot.slane %v2773, 5
      %v2792 = vrot.slane %v2791, 4
      %v2793 = vrot.slane %v2472, 5
      %v2794 = vsel %vm671, %v2792, %v2793
      %v2795 = vrot.slane %v2793, 4
      %v2796 = vrot.slane %v2479, 5
      %v2797 = vsel %vm671, %v2795, %v2796
      %v2798 = vrot.slane %v2774, 5
      %v2799 = vrot.slane %v2798, 4
      %v2800 = vrot.slane %v2474, 5
      %v2801 = vsel %vm671, %v2799, %v2800
      %v2802 = vrot.slane %v2800, 4
      %v2803 = vrot.slane %v2480, 5
      %v2804 = vsel %vm671, %v2802, %v2803
      %v2805 = vrot.slane %v2775, 5
      %v2806 = vrot.slane %v2805, 4
      %v2807 = vrot.slane %v2476, 5
      %v2808 = vsel %vm671, %v2806, %v2807
      %v2809 = vrot.slane %v2807, 4
      %v2810 = vrot.slane %v2481, 5
      %v2811 = vsel %vm671, %v2809, %v2810
      %s2812 = scalar_lea.vmem %s2, 8
      %v2813 = vld [vmem:[%s2812] sm:$0xf]
      %v2814 = vunpack.c.l.b16 %v2787
      %v2815 = vunpack.c.l.b16 %v2790
      %v2816 = vunpack.c.l.b16 %v2794
      %v2817 = vunpack.c.l.b16 %v2797
      %v2818 = vunpack.c.l.b16 %v2801
      %v2819 = vunpack.c.l.b16 %v2804
      %v2820 = vunpack.c.l.b16 %v2808
      %v2821 = vunpack.c.l.b16 %v2811
      %v2822 = vpack.c.b16 %v2815, %v2814
      %v2823 = vpack.c.b16 %v2817, %v2816
      %v2824 = vpack.c.b16 %v2819, %v2818
      %v2825 = vpack.c.b16 %v2821, %v2820
      %v2827 = vsel %vm415, %v2822, 0
      %v2830 = vsel %vm415, %v2823, 0
      %v2833 = vsel %vm415, %v2824, 0
      %v2836 = vsel %vm415, %v2825, 0
      %v2839 = vsel %vm434, %v2813, 0
      %2841 = vmatprep.subr.bf16.mxu0 0
      %2842 = vmatpush1.bf16.msra.mxu0 %v2839
      %2843 = vmatprep.subr.bf16.mxu0 0
      %2844 = vmatpush1.bf16.msra.mxu0 0
      %2845 = vmatprep.subr.bf16.mxu0 0
      %2846 = vmatpush1.bf16.msra.mxu0 0
      %2847 = vmatprep.subr.bf16.mxu0 0
      %2848 = vmatpush1.bf16.msra.mxu0 0
      %2849 = vmatprep.subr.bf16.mxu0 0
      %2850 = vmatpush1.bf16.msra.mxu0 0
      %2851 = vmatprep.subr.bf16.mxu0 0
      %2852 = vmatpush1.bf16.msra.mxu0 0
      %2853 = vmatprep.subr.bf16.mxu0 0
      %2854 = vmatpush1.bf16.msra.mxu0 0
      %2855 = vmatprep.subr.bf16.mxu0 0
      %2856 = vmatpush1.bf16.msra.mxu0 0
      %2857 = vmatprep.subr.bf16.mxu0 0
      %2858 = vmatpush1.bf16.msra.mxu0 0
      %2859 = vmatprep.subr.bf16.mxu0 0
      %2860 = vmatpush1.bf16.msra.mxu0 0
      %2861 = vmatprep.subr.bf16.mxu0 0
      %2862 = vmatpush1.bf16.msra.mxu0 0
      %2863 = vmatprep.subr.bf16.mxu0 0
      %2864 = vmatpush1.bf16.msra.mxu0 0
      %2865 = vmatprep.subr.bf16.mxu0 0
      %2866 = vmatpush1.bf16.msra.mxu0 0
      %2867 = vmatprep.subr.bf16.mxu0 0
      %2868 = vmatpush1.bf16.msra.mxu0 0
      %2869 = vmatprep.subr.bf16.mxu0 0
      %2870 = vmatpush1.bf16.msra.mxu0 0
      %2871 = vmatprep.subr.bf16.mxu0 0
      %2872 = vmatpush1.bf16.msra.mxu0 0
      %2873 = vmatprep.mubr.bf16.mxu0 0
      %2874 = vmatmul.mubr.bf16.gmra.mrb[0].mxu0 %v2827
      %v2875 = vpop.f32.mrb[0].mxu0
      %v2876 = vadd.f32 0.0, %v2875
      %v2877 = vpop.f32.mrb[0].mxu0
      %v2878 = vpop.f32.mrb[0].mxu0
      %v2879 = vadd.f32 0.0, %v2878
      %v2880 = vpop.f32.mrb[0].mxu0
      %2881 = vmatprep.mubr.bf16.mxu0 0
      %2882 = vmatmul.mubr.bf16.gmra.mrb[0].mxu0 %v2830
      %v2883 = vpop.f32.mrb[0].mxu0
      %v2884 = vadd.f32 0.0, %v2883
      %v2885 = vpop.f32.mrb[0].mxu0
      %v2886 = vpop.f32.mrb[0].mxu0
      %v2887 = vadd.f32 0.0, %v2886
      %v2888 = vpop.f32.mrb[0].mxu0
      %2889 = vmatprep.mubr.bf16.mxu0 0
      %2890 = vmatmul.mubr.bf16.gmra.mrb[0].mxu0 %v2833
      %v2891 = vpop.f32.mrb[0].mxu0
      %v2892 = vadd.f32 0.0, %v2891
      %v2893 = vpop.f32.mrb[0].mxu0
      %v2894 = vpop.f32.mrb[0].mxu0
      %v2895 = vadd.f32 0.0, %v2894
      %v2896 = vpop.f32.mrb[0].mxu0
      %2897 = vmatprep.mubr.bf16.mxu0 0
      %2898 = vmatmul.mubr.bf16.gmra.mrb[0].mxu0 %v2836
      %v2899 = vpop.f32.mrb[0].mxu0
      %v2900 = vadd.f32 0.0, %v2899
      %v2901 = vpop.f32.mrb[0].mxu0
      %v2902 = vpop.f32.mrb[0].mxu0
      %v2903 = vadd.f32 0.0, %v2902
      %v2904 = vpop.f32.mrb[0].mxu0
      %2905 = vdwg.mxu0
      %v2906 = vadd.f32 %v2742, %v2876
      %v2907 = vadd.f32 %v2745, %v2879
      %v2908 = vadd.f32 %v2750, %v2884
      %v2909 = vadd.f32 %v2753, %v2887
      %v2910 = vadd.f32 %v2758, %v2892
      %v2911 = vadd.f32 %v2761, %v2895
      %v2912 = vadd.f32 %v2766, %v2900
      %v2913 = vadd.f32 %v2769, %v2903
      %s2914 = scalar_lea.vmem [#allocation2], 12
      %v2915 = vld [vmem:[%s2914] sm:$0xf]
      %v2916 = vld [vmem:[%s2914 + $0x4] sm:$0xf]
      %v2917 = vld [vmem:[%s2914 + $0xc] sm:$0xf]
      %v2918 = vld [vmem:[%s2914 + $0x10] sm:$0xf]
      %v2919 = vld [vmem:[%s2914 + $0x18] sm:$0xf]
      %v2920 = vld [vmem:[%s2914 + $0x1c] sm:$0xf]
      %v2921 = vld [vmem:[%s2914 + $0x24] sm:$0xf]
      %v2922 = vld [vmem:[%s2914 + $0x28] sm:$0xf]
      %s2923 = scalar_lea.vmem %s2, 12
      %v2924 = vld [vmem:[%s2923] sm:$0xf]
      %v2933 = vunpack.c.l.b16 %v2915
      %v2934 = vunpack.c.l.b16 %v2916
      %v2935 = vunpack.c.l.b16 %v2917
      %v2936 = vunpack.c.l.b16 %v2918
      %v2937 = vunpack.c.l.b16 %v2919
      %v2938 = vunpack.c.l.b16 %v2920
      %v2939 = vunpack.c.l.b16 %v2921
      %v2940 = vunpack.c.l.b16 %v2922
      %v2941 = vpack.c.b16 %v2934, %v2933
      %v2942 = vpack.c.b16 %v2936, %v2935
      %v2943 = vpack.c.b16 %v2938, %v2937
      %v2944 = vpack.c.b16 %v2940, %v2939
      %v2946 = vsel %vm415, %v2941, 0
      %v2949 = vsel %vm415, %v2942, 0
      %v2952 = vsel %vm415, %v2943, 0
      %v2955 = vsel %vm415, %v2944, 0
      %v2958 = vsel %vm434, %v2924, 0
      %2960 = vmatprep.subr.bf16.mxu0 0
      %2961 = vmatpush1.bf16.msra.mxu0 %v2958
      %2962 = vmatprep.subr.bf16.mxu0 0
      %2963 = vmatpush1.bf16.msra.mxu0 0
      %2964 = vmatprep.subr.bf16.mxu0 0
      %2965 = vmatpush1.bf16.msra.mxu0 0
      %2966 = vmatprep.subr.bf16.mxu0 0
      %2967 = vmatpush1.bf16.msra.mxu0 0
      %2968 = vmatprep.subr.bf16.mxu0 0
      %2969 = vmatpush1.bf16.msra.mxu0 0
      %2970 = vmatprep.subr.bf16.mxu0 0
      %2971 = vmatpush1.bf16.msra.mxu0 0
      %2972 = vmatprep.subr.bf16.mxu0 0
      %2973 = vmatpush1.bf16.msra.mxu0 0
      %2974 = vmatprep.subr.bf16.mxu0 0
      %2975 = vmatpush1.bf16.msra.mxu0 0
      %2976 = vmatprep.subr.bf16.mxu0 0
      %2977 = vmatpush1.bf16.msra.mxu0 0
      %2978 = vmatprep.subr.bf16.mxu0 0
      %2979 = vmatpush1.bf16.msra.mxu0 0
      %2980 = vmatprep.subr.bf16.mxu0 0
      %2981 = vmatpush1.bf16.msra.mxu0 0
      %2982 = vmatprep.subr.bf16.mxu0 0
      %2983 = vmatpush1.bf16.msra.mxu0 0
      %2984 = vmatprep.subr.bf16.mxu0 0
      %2985 = vmatpush1.bf16.msra.mxu0 0
      %2986 = vmatprep.subr.bf16.mxu0 0
      %2987 = vmatpush1.bf16.msra.mxu0 0
      %2988 = vmatprep.subr.bf16.mxu0 0
      %2989 = vmatpush1.bf16.msra.mxu0 0
      %2990 = vmatprep.subr.bf16.mxu0 0
      %2991 = vmatpush1.bf16.msra.mxu0 0
      %2992 = vmatprep.mubr.bf16.mxu0 0
      %2993 = vmatmul.mubr.bf16.gmra.mrb[0].mxu0 %v2946
      %v2994 = vpop.f32.mrb[0].mxu0
      %v2995 = vadd.f32 0.0, %v2994
      %v2996 = vpop.f32.mrb[0].mxu0
      %v2997 = vpop.f32.mrb[0].mxu0
      %v2998 = vadd.f32 0.0, %v2997
      %v2999 = vpop.f32.mrb[0].mxu0
      %3000 = vmatprep.mubr.bf16.mxu0 0
      %3001 = vmatmul.mubr.bf16.gmra.mrb[0].mxu0 %v2949
      %v3002 = vpop.f32.mrb[0].mxu0
      %v3003 = vadd.f32 0.0, %v3002
      %v3004 = vpop.f32.mrb[0].mxu0
      %v3005 = vpop.f32.mrb[0].mxu0
      %v3006 = vadd.f32 0.0, %v3005
      %v3007 = vpop.f32.mrb[0].mxu0
      %3008 = vmatprep.mubr.bf16.mxu0 0
      %3009 = vmatmul.mubr.bf16.gmra.mrb[0].mxu0 %v2952
      %v3010 = vpop.f32.mrb[0].mxu0
      %v3011 = vadd.f32 0.0, %v3010
      %v3012 = vpop.f32.mrb[0].mxu0
      %v3013 = vpop.f32.mrb[0].mxu0
      %v3014 = vadd.f32 0.0, %v3013
      %v3015 = vpop.f32.mrb[0].mxu0
      %3016 = vmatprep.mubr.bf16.mxu0 0
      %3017 = vmatmul.mubr.bf16.gmra.mrb[0].mxu0 %v2955
      %v3018 = vpop.f32.mrb[0].mxu0
      %v3019 = vadd.f32 0.0, %v3018
      %v3020 = vpop.f32.mrb[0].mxu0
      %v3021 = vpop.f32.mrb[0].mxu0
      %v3022 = vadd.f32 0.0, %v3021
      %v3023 = vpop.f32.mrb[0].mxu0
      %3024 = vdwg.mxu0
      %v3025 = vadd.f32 %v2906, %v2995
      %v3026 = vadd.f32 %v2907, %v2998
      %v3027 = vadd.f32 %v2908, %v3003
      %v3028 = vadd.f32 %v2909, %v3006
      %v3029 = vadd.f32 %v2910, %v3011
      %v3030 = vadd.f32 %v2911, %v3014
      %v3031 = vadd.f32 %v2912, %v3019
      %v3032 = vadd.f32 %v2913, %v3022
      %v3033 = vld [vmem:[%s2914] sm:$0xf]
      %v3034 = vld [vmem:[%s2914 + $0x4] sm:$0xf]
      %v3035 = vld [vmem:[%s2914 + $0x8] sm:$0x1]
      %v3036 = vld [vmem:[%s2914 + $0xc] sm:$0xf]
      %v3037 = vld [vmem:[%s2914 + $0x10] sm:$0xf]
      %v3038 = vld [vmem:[%s2914 + $0x14] sm:$0x1]
      %v3039 = vld [vmem:[%s2914 + $0x18] sm:$0xf]
      %v3040 = vld [vmem:[%s2914 + $0x1c] sm:$0xf]
      %v3041 = vld [vmem:[%s2914 + $0x20] sm:$0x1]
      %v3042 = vld [vmem:[%s2914 + $0x24] sm:$0xf]
      %v3043 = vld [vmem:[%s2914 + $0x28] sm:$0xf]
      %v3044 = vld [vmem:[%s2914 + $0x2c] sm:$0x1]
      %v3046 = vshrl.u32 %v3033, 16
      %v3048 = vrot.slane %v3046, 4
      %v3049 = vshll.u32 %v3033, 16
      %v3051 = vrot.slane %v3049, 5
      %v3052 = vor.u32 %v3048, %v3051
      %v3053 = vrot.slane %v3052, 4
      %v3055 = vshll.u32 %v3034, 16
      %v3057 = vrot.slane %v3055, 5
      %v3058 = vsel %vm250, %v3053, %v3057
      %v3059 = vshrl.u32 %v3034, 16
      %v3061 = vrot.slane %v3059, 4
      %v3062 = vor.u32 %v3061, %v3057
      %v3063 = vrot.slane %v3062, 4
      %v3065 = vshll.u32 %v3035, 16
      %v3067 = vrot.slane %v3065, 5
      %v3068 = vsel %vm250, %v3063, %v3067
      %v3070 = vshrl.u32 %v3036, 16
      %v3072 = vrot.slane %v3070, 4
      %v3073 = vshll.u32 %v3036, 16
      %v3075 = vrot.slane %v3073, 5
      %v3076 = vor.u32 %v3072, %v3075
      %v3077 = vrot.slane %v3076, 4
      %v3079 = vshll.u32 %v3037, 16
      %v3081 = vrot.slane %v3079, 5
      %v3082 = vsel %vm250, %v3077, %v3081
      %v3083 = vshrl.u32 %v3037, 16
      %v3085 = vrot.slane %v3083, 4
      %v3086 = vor.u32 %v3085, %v3081
      %v3087 = vrot.slane %v3086, 4
      %v3089 = vshll.u32 %v3038, 16
      %v3091 = vrot.slane %v3089, 5
      %v3092 = vsel %vm250, %v3087, %v3091
      %v3094 = vshrl.u32 %v3039, 16
      %v3096 = vrot.slane %v3094, 4
      %v3097 = vshll.u32 %v3039, 16
      %v3099 = vrot.slane %v3097, 5
      %v3100 = vor.u32 %v3096, %v3099
      %v3101 = vrot.slane %v3100, 4
      %v3103 = vshll.u32 %v3040, 16
      %v3105 = vrot.slane %v3103, 5
      %v3106 = vsel %vm250, %v3101, %v3105
      %v3107 = vshrl.u32 %v3040, 16
      %v3109 = vrot.slane %v3107, 4
      %v3110 = vor.u32 %v3109, %v3105
      %v3111 = vrot.slane %v3110, 4
      %v3113 = vshll.u32 %v3041, 16
      %v3115 = vrot.slane %v3113, 5
      %v3116 = vsel %vm250, %v3111, %v3115
      %v3118 = vshrl.u32 %v3042, 16
      %v3120 = vrot.slane %v3118, 4
      %v3121 = vshll.u32 %v3042, 16
      %v3123 = vrot.slane %v3121, 5
      %v3124 = vor.u32 %v3120, %v3123
      %v3125 = vrot.slane %v3124, 4
      %v3127 = vshll.u32 %v3043, 16
      %v3129 = vrot.slane %v3127, 5
      %v3130 = vsel %vm250, %v3125, %v3129
      %v3131 = vshrl.u32 %v3043, 16
      %v3133 = vrot.slane %v3131, 4
      %v3134 = vor.u32 %v3133, %v3129
      %v3135 = vrot.slane %v3134, 4
      %v3137 = vshll.u32 %v3044, 16
      %v3139 = vrot.slane %v3137, 5
      %v3140 = vsel %vm250, %v3135, %v3139
      %s3141 = scalar_lea.vmem %s2, 16
      %v3142 = vld [vmem:[%s3141] sm:$0xf]
      %v3143 = vunpack.c.l.b16 %v3058
      %v3144 = vunpack.c.l.b16 %v3068
      %v3145 = vunpack.c.l.b16 %v3082
      %v3146 = vunpack.c.l.b16 %v3092
      %v3147 = vunpack.c.l.b16 %v3106
      %v3148 = vunpack.c.l.b16 %v3116
      %v3149 = vunpack.c.l.b16 %v3130
      %v3150 = vunpack.c.l.b16 %v3140
      %v3151 = vpack.c.b16 %v3144, %v3143
      %v3152 = vpack.c.b16 %v3146, %v3145
      %v3153 = vpack.c.b16 %v3148, %v3147
      %v3154 = vpack.c.b16 %v3150, %v3149
      %v3156 = vsel %vm415, %v3151, 0
      %v3159 = vsel %vm415, %v3152, 0
      %v3162 = vsel %vm415, %v3153, 0
      %v3165 = vsel %vm415, %v3154, 0
      %v3168 = vsel %vm434, %v3142, 0
      %3170 = vmatprep.subr.bf16.mxu0 0
      %3171 = vmatpush1.bf16.msra.mxu0 %v3168
      %3172 = vmatprep.subr.bf16.mxu0 0
      %3173 = vmatpush1.bf16.msra.mxu0 0
      %3174 = vmatprep.subr.bf16.mxu0 0
      %3175 = vmatpush1.bf16.msra.mxu0 0
      %3176 = vmatprep.subr.bf16.mxu0 0
      %3177 = vmatpush1.bf16.msra.mxu0 0
      %3178 = vmatprep.subr.bf16.mxu0 0
      %3179 = vmatpush1.bf16.msra.mxu0 0
      %3180 = vmatprep.subr.bf16.mxu0 0
      %3181 = vmatpush1.bf16.msra.mxu0 0
      %3182 = vmatprep.subr.bf16.mxu0 0
      %3183 = vmatpush1.bf16.msra.mxu0 0
      %3184 = vmatprep.subr.bf16.mxu0 0
      %3185 = vmatpush1.bf16.msra.mxu0 0
      %3186 = vmatprep.subr.bf16.mxu0 0
      %3187 = vmatpush1.bf16.msra.mxu0 0
      %3188 = vmatprep.subr.bf16.mxu0 0
      %3189 = vmatpush1.bf16.msra.mxu0 0
      %3190 = vmatprep.subr.bf16.mxu0 0
      %3191 = vmatpush1.bf16.msra.mxu0 0
      %3192 = vmatprep.subr.bf16.mxu0 0
      %3193 = vmatpush1.bf16.msra.mxu0 0
      %3194 = vmatprep.subr.bf16.mxu0 0
      %3195 = vmatpush1.bf16.msra.mxu0 0
      %3196 = vmatprep.subr.bf16.mxu0 0
      %3197 = vmatpush1.bf16.msra.mxu0 0
      %3198 = vmatprep.subr.bf16.mxu0 0
      %3199 = vmatpush1.bf16.msra.mxu0 0
      %3200 = vmatprep.subr.bf16.mxu0 0
      %3201 = vmatpush1.bf16.msra.mxu0 0
      %3202 = vmatprep.mubr.bf16.mxu0 0
      %3203 = vmatmul.mubr.bf16.gmra.mrb[0].mxu0 %v3156
      %v3204 = vpop.f32.mrb[0].mxu0
      %v3205 = vadd.f32 0.0, %v3204
      %v3206 = vpop.f32.mrb[0].mxu0
      %v3207 = vpop.f32.mrb[0].mxu0
      %v3208 = vadd.f32 0.0, %v3207
      %v3209 = vpop.f32.mrb[0].mxu0
      %3210 = vmatprep.mubr.bf16.mxu0 0
      %3211 = vmatmul.mubr.bf16.gmra.mrb[0].mxu0 %v3159
      %v3212 = vpop.f32.mrb[0].mxu0
      %v3213 = vadd.f32 0.0, %v3212
      %v3214 = vpop.f32.mrb[0].mxu0
      %v3215 = vpop.f32.mrb[0].mxu0
      %v3216 = vadd.f32 0.0, %v3215
      %v3217 = vpop.f32.mrb[0].mxu0
      %3218 = vmatprep.mubr.bf16.mxu0 0
      %3219 = vmatmul.mubr.bf16.gmra.mrb[0].mxu0 %v3162
      %v3220 = vpop.f32.mrb[0].mxu0
      %v3221 = vadd.f32 0.0, %v3220
      %v3222 = vpop.f32.mrb[0].mxu0
      %v3223 = vpop.f32.mrb[0].mxu0
      %v3224 = vadd.f32 0.0, %v3223
      %v3225 = vpop.f32.mrb[0].mxu0
      %3226 = vmatprep.mubr.bf16.mxu0 0
      %3227 = vmatmul.mubr.bf16.gmra.mrb[0].mxu0 %v3165
      %v3228 = vpop.f32.mrb[0].mxu0
      %v3229 = vadd.f32 0.0, %v3228
      %v3230 = vpop.f32.mrb[0].mxu0
      %v3231 = vpop.f32.mrb[0].mxu0
      %v3232 = vadd.f32 0.0, %v3231
      %v3233 = vpop.f32.mrb[0].mxu0
      %3234 = vdwg.mxu0
      %v3235 = vadd.f32 %v3025, %v3205
      %v3236 = vadd.f32 %v3026, %v3208
      %v3237 = vadd.f32 %v3027, %v3213
      %v3238 = vadd.f32 %v3028, %v3216
      %v3239 = vadd.f32 %v3029, %v3221
      %v3240 = vadd.f32 %v3030, %v3224
      %v3241 = vadd.f32 %v3031, %v3229
      %v3242 = vadd.f32 %v3032, %v3232
      %v3243 = vld [vmem:[%s2914] sm:$0xe]
      %v3244 = vld [vmem:[%s2914 + $0xc] sm:$0xe]
      %v3245 = vld [vmem:[%s2914 + $0x18] sm:$0xe]
      %v3246 = vld [vmem:[%s2914 + $0x24] sm:$0xe]
      %v3259 = vrot.slane %v3243, 5
      %v3260 = vrot.slane %v3259, 4
      %v3261 = vrot.slane %v3034, 5
      %v3262 = vsel %vm671, %v3260, %v3261
      %v3263 = vrot.slane %v3261, 4
      %v3264 = vrot.slane %v3035, 5
      %v3265 = vsel %vm671, %v3263, %v3264
      %v3266 = vrot.slane %v3244, 5
      %v3267 = vrot.slane %v3266, 4
      %v3268 = vrot.slane %v3037, 5
      %v3269 = vsel %vm671, %v3267, %v3268
      %v3270 = vrot.slane %v3268, 4
      %v3271 = vrot.slane %v3038, 5
      %v3272 = vsel %vm671, %v3270, %v3271
      %v3273 = vrot.slane %v3245, 5
      %v3274 = vrot.slane %v3273, 4
      %v3275 = vrot.slane %v3040, 5
      %v3276 = vsel %vm671, %v3274, %v3275
      %v3277 = vrot.slane %v3275, 4
      %v3278 = vrot.slane %v3041, 5
      %v3279 = vsel %vm671, %v3277, %v3278
      %v3280 = vrot.slane %v3246, 5
      %v3281 = vrot.slane %v3280, 4
      %v3282 = vrot.slane %v3043, 5
      %v3283 = vsel %vm671, %v3281, %v3282
      %v3284 = vrot.slane %v3282, 4
      %v3285 = vrot.slane %v3044, 5
      %v3286 = vsel %vm671, %v3284, %v3285
      %s3287 = scalar_lea.vmem %s2, 20
      %v3288 = vld [vmem:[%s3287] sm:$0xf]
      %v3289 = vunpack.c.l.b16 %v3262
      %v3290 = vunpack.c.l.b16 %v3265
      %v3291 = vunpack.c.l.b16 %v3269
      %v3292 = vunpack.c.l.b16 %v3272
      %v3293 = vunpack.c.l.b16 %v3276
      %v3294 = vunpack.c.l.b16 %v3279
      %v3295 = vunpack.c.l.b16 %v3283
      %v3296 = vunpack.c.l.b16 %v3286
      %v3297 = vpack.c.b16 %v3290, %v3289
      %v3298 = vpack.c.b16 %v3292, %v3291
      %v3299 = vpack.c.b16 %v3294, %v3293
      %v3300 = vpack.c.b16 %v3296, %v3295
      %v3302 = vsel %vm415, %v3297, 0
      %v3305 = vsel %vm415, %v3298, 0
      %v3308 = vsel %vm415, %v3299, 0
      %v3311 = vsel %vm415, %v3300, 0
      %v3314 = vsel %vm434, %v3288, 0
      %3316 = vmatprep.subr.bf16.mxu0 0
      %3317 = vmatpush1.bf16.msra.mxu0 %v3314
      %3318 = vmatprep.subr.bf16.mxu0 0
      %3319 = vmatpush1.bf16.msra.mxu0 0
      %3320 = vmatprep.subr.bf16.mxu0 0
      %3321 = vmatpush1.bf16.msra.mxu0 0
      %3322 = vmatprep.subr.bf16.mxu0 0
      %3323 = vmatpush1.bf16.msra.mxu0 0
      %3324 = vmatprep.subr.bf16.mxu0 0
      %3325 = vmatpush1.bf16.msra.mxu0 0
      %3326 = vmatprep.subr.bf16.mxu0 0
      %3327 = vmatpush1.bf16.msra.mxu0 0
      %3328 = vmatprep.subr.bf16.mxu0 0
      %3329 = vmatpush1.bf16.msra.mxu0 0
      %3330 = vmatprep.subr.bf16.mxu0 0
      %3331 = vmatpush1.bf16.msra.mxu0 0
      %3332 = vmatprep.subr.bf16.mxu0 0
      %3333 = vmatpush1.bf16.msra.mxu0 0
      %3334 = vmatprep.subr.bf16.mxu0 0
      %3335 = vmatpush1.bf16.msra.mxu0 0
      %3336 = vmatprep.subr.bf16.mxu0 0
      %3337 = vmatpush1.bf16.msra.mxu0 0
      %3338 = vmatprep.subr.bf16.mxu0 0
      %3339 = vmatpush1.bf16.msra.mxu0 0
      %3340 = vmatprep.subr.bf16.mxu0 0
      %3341 = vmatpush1.bf16.msra.mxu0 0
      %3342 = vmatprep.subr.bf16.mxu0 0
      %3343 = vmatpush1.bf16.msra.mxu0 0
      %3344 = vmatprep.subr.bf16.mxu0 0
      %3345 = vmatpush1.bf16.msra.mxu0 0
      %3346 = vmatprep.subr.bf16.mxu0 0
      %3347 = vmatpush1.bf16.msra.mxu0 0
      %3348 = vmatprep.mubr.bf16.mxu0 0
      %3349 = vmatmul.mubr.bf16.gmra.mrb[0].mxu0 %v3302
      %v3350 = vpop.f32.mrb[0].mxu0
      %v3351 = vadd.f32 0.0, %v3350
      %v3352 = vpop.f32.mrb[0].mxu0
      %v3353 = vpop.f32.mrb[0].mxu0
      %v3354 = vadd.f32 0.0, %v3353
      %v3355 = vpop.f32.mrb[0].mxu0
      %3356 = vmatprep.mubr.bf16.mxu0 0
      %3357 = vmatmul.mubr.bf16.gmra.mrb[0].mxu0 %v3305
      %v3358 = vpop.f32.mrb[0].mxu0
      %v3359 = vadd.f32 0.0, %v3358
      %v3360 = vpop.f32.mrb[0].mxu0
      %v3361 = vpop.f32.mrb[0].mxu0
      %v3362 = vadd.f32 0.0, %v3361
      %v3363 = vpop.f32.mrb[0].mxu0
      %3364 = vmatprep.mubr.bf16.mxu0 0
      %3365 = vmatmul.mubr.bf16.gmra.mrb[0].mxu0 %v3308
      %v3366 = vpop.f32.mrb[0].mxu0
      %v3367 = vadd.f32 0.0, %v3366
      %v3368 = vpop.f32.mrb[0].mxu0
      %v3369 = vpop.f32.mrb[0].mxu0
      %v3370 = vadd.f32 0.0, %v3369
      %v3371 = vpop.f32.mrb[0].mxu0
      %3372 = vmatprep.mubr.bf16.mxu0 0
      %3373 = vmatmul.mubr.bf16.gmra.mrb[0].mxu0 %v3311
      %v3374 = vpop.f32.mrb[0].mxu0
      %v3375 = vadd.f32 0.0, %v3374
      %v3376 = vpop.f32.mrb[0].mxu0
      %v3377 = vpop.f32.mrb[0].mxu0
      %v3378 = vadd.f32 0.0, %v3377
      %v3379 = vpop.f32.mrb[0].mxu0
      %3380 = vdwg.mxu0
      %v3381 = vadd.f32 %v3235, %v3351
      %v3382 = vadd.f32 %v3236, %v3354
      %v3383 = vadd.f32 %v3237, %v3359
      %v3384 = vadd.f32 %v3238, %v3362
      %v3385 = vadd.f32 %v3239, %v3367
      %v3386 = vadd.f32 %v3240, %v3370
      %v3387 = vadd.f32 %v3241, %v3375
      %v3388 = vadd.f32 %v3242, %v3378
      %s3389 = scalar_lea.vmem [#allocation2], 24
      %v3390 = vld [vmem:[%s3389] sm:$0xf]
      %v3391 = vld [vmem:[%s3389 + $0x4] sm:$0xf]
      %v3392 = vld [vmem:[%s3389 + $0xc] sm:$0xf]
      %v3393 = vld [vmem:[%s3389 + $0x10] sm:$0xf]
      %v3394 = vld [vmem:[%s3389 + $0x18] sm:$0xf]
      %v3395 = vld [vmem:[%s3389 + $0x1c] sm:$0xf]
      %v3396 = vld [vmem:[%s3389 + $0x24] sm:$0xf]
      %v3397 = vld [vmem:[%s3389 + $0x28] sm:$0xf]
      %s3398 = scalar_lea.vmem %s2, 24
      %v3399 = vld [vmem:[%s3398] sm:$0xf]
      %v3408 = vunpack.c.l.b16 %v3390
      %v3409 = vunpack.c.l.b16 %v3391
      %v3410 = vunpack.c.l.b16 %v3392
      %v3411 = vunpack.c.l.b16 %v3393
      %v3412 = vunpack.c.l.b16 %v3394
      %v3413 = vunpack.c.l.b16 %v3395
      %v3414 = vunpack.c.l.b16 %v3396
      %v3415 = vunpack.c.l.b16 %v3397
      %v3416 = vpack.c.b16 %v3409, %v3408
      %v3417 = vpack.c.b16 %v3411, %v3410
      %v3418 = vpack.c.b16 %v3413, %v3412
      %v3419 = vpack.c.b16 %v3415, %v3414
      %v3421 = vsel %vm415, %v3416, 0
      %v3424 = vsel %vm415, %v3417, 0
      %v3427 = vsel %vm415, %v3418, 0
      %v3430 = vsel %vm415, %v3419, 0
      %v3433 = vsel %vm434, %v3399, 0
      %3435 = vmatprep.subr.bf16.mxu0 0
      %3436 = vmatpush1.bf16.msra.mxu0 %v3433
      %3437 = vmatprep.subr.bf16.mxu0 0
      %3438 = vmatpush1.bf16.msra.mxu0 0
      %3439 = vmatprep.subr.bf16.mxu0 0
      %3440 = vmatpush1.bf16.msra.mxu0 0
      %3441 = vmatprep.subr.bf16.mxu0 0
      %3442 = vmatpush1.bf16.msra.mxu0 0
      %3443 = vmatprep.subr.bf16.mxu0 0
      %3444 = vmatpush1.bf16.msra.mxu0 0
      %3445 = vmatprep.subr.bf16.mxu0 0
      %3446 = vmatpush1.bf16.msra.mxu0 0
      %3447 = vmatprep.subr.bf16.mxu0 0
      %3448 = vmatpush1.bf16.msra.mxu0 0
      %3449 = vmatprep.subr.bf16.mxu0 0
      %3450 = vmatpush1.bf16.msra.mxu0 0
      %3451 = vmatprep.subr.bf16.mxu0 0
      %3452 = vmatpush1.bf16.msra.mxu0 0
      %3453 = vmatprep.subr.bf16.mxu0 0
      %3454 = vmatpush1.bf16.msra.mxu0 0
      %3455 = vmatprep.subr.bf16.mxu0 0
      %3456 = vmatpush1.bf16.msra.mxu0 0
      %3457 = vmatprep.subr.bf16.mxu0 0
      %3458 = vmatpush1.bf16.msra.mxu0 0
      %3459 = vmatprep.subr.bf16.mxu0 0
      %3460 = vmatpush1.bf16.msra.mxu0 0
      %3461 = vmatprep.subr.bf16.mxu0 0
      %3462 = vmatpush1.bf16.msra.mxu0 0
      %3463 = vmatprep.subr.bf16.mxu0 0
      %3464 = vmatpush1.bf16.msra.mxu0 0
      %3465 = vmatprep.subr.bf16.mxu0 0
      %3466 = vmatpush1.bf16.msra.mxu0 0
      %3467 = vmatprep.mubr.bf16.mxu0 0
      %3468 = vmatmul.mubr.bf16.gmra.mrb[0].mxu0 %v3421
      %v3469 = vpop.f32.mrb[0].mxu0
      %v3470 = vadd.f32 0.0, %v3469
      %v3471 = vpop.f32.mrb[0].mxu0
      %v3472 = vpop.f32.mrb[0].mxu0
      %v3473 = vadd.f32 0.0, %v3472
      %v3474 = vpop.f32.mrb[0].mxu0
      %3475 = vmatprep.mubr.bf16.mxu0 0
      %3476 = vmatmul.mubr.bf16.gmra.mrb[0].mxu0 %v3424
      %v3477 = vpop.f32.mrb[0].mxu0
      %v3478 = vadd.f32 0.0, %v3477
      %v3479 = vpop.f32.mrb[0].mxu0
      %v3480 = vpop.f32.mrb[0].mxu0
      %v3481 = vadd.f32 0.0, %v3480
      %v3482 = vpop.f32.mrb[0].mxu0
      %3483 = vmatprep.mubr.bf16.mxu0 0
      %3484 = vmatmul.mubr.bf16.gmra.mrb[0].mxu0 %v3427
      %v3485 = vpop.f32.mrb[0].mxu0
      %v3486 = vadd.f32 0.0, %v3485
      %v3487 = vpop.f32.mrb[0].mxu0
      %v3488 = vpop.f32.mrb[0].mxu0
      %v3489 = vadd.f32 0.0, %v3488
      %v3490 = vpop.f32.mrb[0].mxu0
      %3491 = vmatprep.mubr.bf16.mxu0 0
      %3492 = vmatmul.mubr.bf16.gmra.mrb[0].mxu0 %v3430
      %v3493 = vpop.f32.mrb[0].mxu0
      %v3494 = vadd.f32 0.0, %v3493
      %v3495 = vpop.f32.mrb[0].mxu0
      %v3496 = vpop.f32.mrb[0].mxu0
      %v3497 = vadd.f32 0.0, %v3496
      %v3498 = vpop.f32.mrb[0].mxu0
      %3499 = vdwg.mxu0
      %v3500 = vadd.f32 %v3381, %v3470
      %v3501 = vadd.f32 %v3382, %v3473
      %v3502 = vadd.f32 %v3383, %v3478
      %v3503 = vadd.f32 %v3384, %v3481
      %v3504 = vadd.f32 %v3385, %v3486
      %v3505 = vadd.f32 %v3386, %v3489
      %v3506 = vadd.f32 %v3387, %v3494
      %v3507 = vadd.f32 %v3388, %v3497
      %v3508 = vld [vmem:[%s3389] sm:$0xf]
      %v3509 = vld [vmem:[%s3389 + $0x4] sm:$0xf]
      %v3510 = vld [vmem:[%s3389 + $0x8] sm:$0x1]
      %v3511 = vld [vmem:[%s3389 + $0xc] sm:$0xf]
      %v3512 = vld [vmem:[%s3389 + $0x10] sm:$0xf]
      %v3513 = vld [vmem:[%s3389 + $0x14] sm:$0x1]
      %v3514 = vld [vmem:[%s3389 + $0x18] sm:$0xf]
      %v3515 = vld [vmem:[%s3389 + $0x1c] sm:$0xf]
      %v3516 = vld [vmem:[%s3389 + $0x20] sm:$0x1]
      %v3517 = vld [vmem:[%s3389 + $0x24] sm:$0xf]
      %v3518 = vld [vmem:[%s3389 + $0x28] sm:$0xf]
      %v3519 = vld [vmem:[%s3389 + $0x2c] sm:$0x1]
      %v3521 = vshrl.u32 %v3508, 16
      %v3523 = vrot.slane %v3521, 4
      %v3524 = vshll.u32 %v3508, 16
      %v3526 = vrot.slane %v3524, 5
      %v3527 = vor.u32 %v3523, %v3526
      %v3528 = vrot.slane %v3527, 4
      %v3530 = vshll.u32 %v3509, 16
      %v3532 = vrot.slane %v3530, 5
      %v3533 = vsel %vm250, %v3528, %v3532
      %v3534 = vshrl.u32 %v3509, 16
      %v3536 = vrot.slane %v3534, 4
      %v3537 = vor.u32 %v3536, %v3532
      %v3538 = vrot.slane %v3537, 4
      %v3540 = vshll.u32 %v3510, 16
      %v3542 = vrot.slane %v3540, 5
      %v3543 = vsel %vm250, %v3538, %v3542
      %v3545 = vshrl.u32 %v3511, 16
      %v3547 = vrot.slane %v3545, 4
      %v3548 = vshll.u32 %v3511, 16
      %v3550 = vrot.slane %v3548, 5
      %v3551 = vor.u32 %v3547, %v3550
      %v3552 = vrot.slane %v3551, 4
      %v3554 = vshll.u32 %v3512, 16
      %v3556 = vrot.slane %v3554, 5
      %v3557 = vsel %vm250, %v3552, %v3556
      %v3558 = vshrl.u32 %v3512, 16
      %v3560 = vrot.slane %v3558, 4
      %v3561 = vor.u32 %v3560, %v3556
      %v3562 = vrot.slane %v3561, 4
      %v3564 = vshll.u32 %v3513, 16
      %v3566 = vrot.slane %v3564, 5
      %v3567 = vsel %vm250, %v3562, %v3566
      %v3569 = vshrl.u32 %v3514, 16
      %v3571 = vrot.slane %v3569, 4
      %v3572 = vshll.u32 %v3514, 16
      %v3574 = vrot.slane %v3572, 5
      %v3575 = vor.u32 %v3571, %v3574
      %v3576 = vrot.slane %v3575, 4
      %v3578 = vshll.u32 %v3515, 16
      %v3580 = vrot.slane %v3578, 5
      %v3581 = vsel %vm250, %v3576, %v3580
      %v3582 = vshrl.u32 %v3515, 16
      %v3584 = vrot.slane %v3582, 4
      %v3585 = vor.u32 %v3584, %v3580
      %v3586 = vrot.slane %v3585, 4
      %v3588 = vshll.u32 %v3516, 16
      %v3590 = vrot.slane %v3588, 5
      %v3591 = vsel %vm250, %v3586, %v3590
      %v3593 = vshrl.u32 %v3517, 16
      %v3595 = vrot.slane %v3593, 4
      %v3596 = vshll.u32 %v3517, 16
      %v3598 = vrot.slane %v3596, 5
      %v3599 = vor.u32 %v3595, %v3598
      %v3600 = vrot.slane %v3599, 4
      %v3602 = vshll.u32 %v3518, 16
      %v3604 = vrot.slane %v3602, 5
      %v3605 = vsel %vm250, %v3600, %v3604
      %v3606 = vshrl.u32 %v3518, 16
      %v3608 = vrot.slane %v3606, 4
      %v3609 = vor.u32 %v3608, %v3604
      %v3610 = vrot.slane %v3609, 4
      %v3612 = vshll.u32 %v3519, 16
      %v3614 = vrot.slane %v3612, 5
      %v3615 = vsel %vm250, %v3610, %v3614
      %s3616 = scalar_lea.vmem %s2, 28
      %v3617 = vld [vmem:[%s3616] sm:$0xf]
      %v3618 = vunpack.c.l.b16 %v3533
      %v3619 = vunpack.c.l.b16 %v3543
      %v3620 = vunpack.c.l.b16 %v3557
      %v3621 = vunpack.c.l.b16 %v3567
      %v3622 = vunpack.c.l.b16 %v3581
      %v3623 = vunpack.c.l.b16 %v3591
      %v3624 = vunpack.c.l.b16 %v3605
      %v3625 = vunpack.c.l.b16 %v3615
      %v3626 = vpack.c.b16 %v3619, %v3618
      %v3627 = vpack.c.b16 %v3621, %v3620
      %v3628 = vpack.c.b16 %v3623, %v3622
      %v3629 = vpack.c.b16 %v3625, %v3624
      %v3631 = vsel %vm415, %v3626, 0
      %v3634 = vsel %vm415, %v3627, 0
      %v3637 = vsel %vm415, %v3628, 0
      %v3640 = vsel %vm415, %v3629, 0
      %v3643 = vsel %vm434, %v3617, 0
      %3645 = vmatprep.subr.bf16.mxu0 0
      %3646 = vmatpush1.bf16.msra.mxu0 %v3643
      %3647 = vmatprep.subr.bf16.mxu0 0
      %3648 = vmatpush1.bf16.msra.mxu0 0
      %3649 = vmatprep.subr.bf16.mxu0 0
      %3650 = vmatpush1.bf16.msra.mxu0 0
      %3651 = vmatprep.subr.bf16.mxu0 0
      %3652 = vmatpush1.bf16.msra.mxu0 0
      %3653 = vmatprep.subr.bf16.mxu0 0
      %3654 = vmatpush1.bf16.msra.mxu0 0
      %3655 = vmatprep.subr.bf16.mxu0 0
      %3656 = vmatpush1.bf16.msra.mxu0 0
      %3657 = vmatprep.subr.bf16.mxu0 0
      %3658 = vmatpush1.bf16.msra.mxu0 0
      %3659 = vmatprep.subr.bf16.mxu0 0
      %3660 = vmatpush1.bf16.msra.mxu0 0
      %3661 = vmatprep.subr.bf16.mxu0 0
      %3662 = vmatpush1.bf16.msra.mxu0 0
      %3663 = vmatprep.subr.bf16.mxu0 0
      %3664 = vmatpush1.bf16.msra.mxu0 0
      %3665 = vmatprep.subr.bf16.mxu0 0
      %3666 = vmatpush1.bf16.msra.mxu0 0
      %3667 = vmatprep.subr.bf16.mxu0 0
      %3668 = vmatpush1.bf16.msra.mxu0 0
      %3669 = vmatprep.subr.bf16.mxu0 0
      %3670 = vmatpush1.bf16.msra.mxu0 0
      %3671 = vmatprep.subr.bf16.mxu0 0
      %3672 = vmatpush1.bf16.msra.mxu0 0
      %3673 = vmatprep.subr.bf16.mxu0 0
      %3674 = vmatpush1.bf16.msra.mxu0 0
      %3675 = vmatprep.subr.bf16.mxu0 0
      %3676 = vmatpush1.bf16.msra.mxu0 0
      %3677 = vmatprep.mubr.bf16.mxu0 0
      %3678 = vmatmul.mubr.bf16.gmra.mrb[0].mxu0 %v3631
      %v3679 = vpop.f32.mrb[0].mxu0
      %v3680 = vadd.f32 0.0, %v3679
      %v3681 = vpop.f32.mrb[0].mxu0
      %v3682 = vpop.f32.mrb[0].mxu0
      %v3683 = vadd.f32 0.0, %v3682
      %v3684 = vpop.f32.mrb[0].mxu0
      %3685 = vmatprep.mubr.bf16.mxu0 0
      %3686 = vmatmul.mubr.bf16.gmra.mrb[0].mxu0 %v3634
      %v3687 = vpop.f32.mrb[0].mxu0
      %v3688 = vadd.f32 0.0, %v3687
      %v3689 = vpop.f32.mrb[0].mxu0
      %v3690 = vpop.f32.mrb[0].mxu0
      %v3691 = vadd.f32 0.0, %v3690
      %v3692 = vpop.f32.mrb[0].mxu0
      %3693 = vmatprep.mubr.bf16.mxu0 0
      %3694 = vmatmul.mubr.bf16.gmra.mrb[0].mxu0 %v3637
      %v3695 = vpop.f32.mrb[0].mxu0
      %v3696 = vadd.f32 0.0, %v3695
      %v3697 = vpop.f32.mrb[0].mxu0
      %v3698 = vpop.f32.mrb[0].mxu0
      %v3699 = vadd.f32 0.0, %v3698
      %v3700 = vpop.f32.mrb[0].mxu0
      %3701 = vmatprep.mubr.bf16.mxu0 0
      %3702 = vmatmul.mubr.bf16.gmra.mrb[0].mxu0 %v3640
      %v3703 = vpop.f32.mrb[0].mxu0
      %v3704 = vadd.f32 0.0, %v3703
      %v3705 = vpop.f32.mrb[0].mxu0
      %v3706 = vpop.f32.mrb[0].mxu0
      %v3707 = vadd.f32 0.0, %v3706
      %v3708 = vpop.f32.mrb[0].mxu0
      %3709 = vdwg.mxu0
      %v3710 = vadd.f32 %v3500, %v3680
      %v3711 = vadd.f32 %v3501, %v3683
      %v3712 = vadd.f32 %v3502, %v3688
      %v3713 = vadd.f32 %v3503, %v3691
      %v3714 = vadd.f32 %v3504, %v3696
      %v3715 = vadd.f32 %v3505, %v3699
      %v3716 = vadd.f32 %v3506, %v3704
      %v3717 = vadd.f32 %v3507, %v3707
      %v3718 = vld [vmem:[%s3389] sm:$0xe]
      %v3719 = vld [vmem:[%s3389 + $0xc] sm:$0xe]
      %v3720 = vld [vmem:[%s3389 + $0x18] sm:$0xe]
      %v3721 = vld [vmem:[%s3389 + $0x24] sm:$0xe]
      %v3734 = vrot.slane %v3718, 5
      %v3735 = vrot.slane %v3734, 4
      %v3736 = vrot.slane %v3509, 5
      %v3737 = vsel %vm671, %v3735, %v3736
      %v3738 = vrot.slane %v3736, 4
      %v3739 = vrot.slane %v3510, 5
      %v3740 = vsel %vm671, %v3738, %v3739
      %v3741 = vrot.slane %v3719, 5
      %v3742 = vrot.slane %v3741, 4
      %v3743 = vrot.slane %v3512, 5
      %v3744 = vsel %vm671, %v3742, %v3743
      %v3745 = vrot.slane %v3743, 4
      %v3746 = vrot.slane %v3513, 5
      %v3747 = vsel %vm671, %v3745, %v3746
      %v3748 = vrot.slane %v3720, 5
      %v3749 = vrot.slane %v3748, 4
      %v3750 = vrot.slane %v3515, 5
      %v3751 = vsel %vm671, %v3749, %v3750
      %v3752 = vrot.slane %v3750, 4
      %v3753 = vrot.slane %v3516, 5
      %v3754 = vsel %vm671, %v3752, %v3753
      %v3755 = vrot.slane %v3721, 5
      %v3756 = vrot.slane %v3755, 4
      %v3757 = vrot.slane %v3518, 5
      %v3758 = vsel %vm671, %v3756, %v3757
      %v3759 = vrot.slane %v3757, 4
      %v3760 = vrot.slane %v3519, 5
      %v3761 = vsel %vm671, %v3759, %v3760
      %s3762 = scalar_lea.vmem %s2, 32
      %v3763 = vld [vmem:[%s3762] sm:$0xf]
      %v3764 = vunpack.c.l.b16 %v3737
      %v3765 = vunpack.c.l.b16 %v3740
      %v3766 = vunpack.c.l.b16 %v3744
      %v3767 = vunpack.c.l.b16 %v3747
      %v3768 = vunpack.c.l.b16 %v3751
      %v3769 = vunpack.c.l.b16 %v3754
      %v3770 = vunpack.c.l.b16 %v3758
      %v3771 = vunpack.c.l.b16 %v3761
      %v3772 = vpack.c.b16 %v3765, %v3764
      %v3773 = vpack.c.b16 %v3767, %v3766
      %v3774 = vpack.c.b16 %v3769, %v3768
      %v3775 = vpack.c.b16 %v3771, %v3770
      %v3777 = vsel %vm415, %v3772, 0
      %v3780 = vsel %vm415, %v3773, 0
      %v3783 = vsel %vm415, %v3774, 0
      %v3786 = vsel %vm415, %v3775, 0
      %v3789 = vsel %vm434, %v3763, 0
      %3791 = vmatprep.subr.bf16.mxu0 0
      %3792 = vmatpush1.bf16.msra.mxu0 %v3789
      %3793 = vmatprep.subr.bf16.mxu0 0
      %3794 = vmatpush1.bf16.msra.mxu0 0
      %3795 = vmatprep.subr.bf16.mxu0 0
      %3796 = vmatpush1.bf16.msra.mxu0 0
      %3797 = vmatprep.subr.bf16.mxu0 0
      %3798 = vmatpush1.bf16.msra.mxu0 0
      %3799 = vmatprep.subr.bf16.mxu0 0
      %3800 = vmatpush1.bf16.msra.mxu0 0
      %3801 = vmatprep.subr.bf16.mxu0 0
      %3802 = vmatpush1.bf16.msra.mxu0 0
      %3803 = vmatprep.subr.bf16.mxu0 0
      %3804 = vmatpush1.bf16.msra.mxu0 0
      %3805 = vmatprep.subr.bf16.mxu0 0
      %3806 = vmatpush1.bf16.msra.mxu0 0
      %3807 = vmatprep.subr.bf16.mxu0 0
      %3808 = vmatpush1.bf16.msra.mxu0 0
      %3809 = vmatprep.subr.bf16.mxu0 0
      %3810 = vmatpush1.bf16.msra.mxu0 0
      %3811 = vmatprep.subr.bf16.mxu0 0
      %3812 = vmatpush1.bf16.msra.mxu0 0
      %3813 = vmatprep.subr.bf16.mxu0 0
      %3814 = vmatpush1.bf16.msra.mxu0 0
      %3815 = vmatprep.subr.bf16.mxu0 0
      %3816 = vmatpush1.bf16.msra.mxu0 0
      %3817 = vmatprep.subr.bf16.mxu0 0
      %3818 = vmatpush1.bf16.msra.mxu0 0
      %3819 = vmatprep.subr.bf16.mxu0 0
      %3820 = vmatpush1.bf16.msra.mxu0 0
      %3821 = vmatprep.subr.bf16.mxu0 0
      %3822 = vmatpush1.bf16.msra.mxu0 0
      %3823 = vmatprep.mubr.bf16.mxu0 0
      %3824 = vmatmul.mubr.bf16.gmra.mrb[0].mxu0 %v3777
      %v3825 = vpop.f32.mrb[0].mxu0
      %v3826 = vadd.f32 0.0, %v3825
      %v3827 = vpop.f32.mrb[0].mxu0
      %v3828 = vpop.f32.mrb[0].mxu0
      %v3829 = vadd.f32 0.0, %v3828
      %v3830 = vpop.f32.mrb[0].mxu0
      %3831 = vmatprep.mubr.bf16.mxu0 0
      %3832 = vmatmul.mubr.bf16.gmra.mrb[0].mxu0 %v3780
      %v3833 = vpop.f32.mrb[0].mxu0
      %v3834 = vadd.f32 0.0, %v3833
      %v3835 = vpop.f32.mrb[0].mxu0
      %v3836 = vpop.f32.mrb[0].mxu0
      %v3837 = vadd.f32 0.0, %v3836
      %v3838 = vpop.f32.mrb[0].mxu0
      %3839 = vmatprep.mubr.bf16.mxu0 0
      %3840 = vmatmul.mubr.bf16.gmra.mrb[0].mxu0 %v3783
      %v3841 = vpop.f32.mrb[0].mxu0
      %v3842 = vadd.f32 0.0, %v3841
      %v3843 = vpop.f32.mrb[0].mxu0
      %v3844 = vpop.f32.mrb[0].mxu0
      %v3845 = vadd.f32 0.0, %v3844
      %v3846 = vpop.f32.mrb[0].mxu0
      %3847 = vmatprep.mubr.bf16.mxu0 0
      %3848 = vmatmul.mubr.bf16.gmra.mrb[0].mxu0 %v3786
      %v3849 = vpop.f32.mrb[0].mxu0
      %v3850 = vadd.f32 0.0, %v3849
      %v3851 = vpop.f32.mrb[0].mxu0
      %v3852 = vpop.f32.mrb[0].mxu0
      %v3853 = vadd.f32 0.0, %v3852
      %v3854 = vpop.f32.mrb[0].mxu0
      %3855 = vdwg.mxu0
      %v3856 = vadd.f32 %v3710, %v3826
      %v3857 = vadd.f32 %v3711, %v3829
      %v3858 = vadd.f32 %v3712, %v3834
      %v3859 = vadd.f32 %v3713, %v3837
      %v3860 = vadd.f32 %v3714, %v3842
      %v3861 = vadd.f32 %v3715, %v3845
      %v3862 = vadd.f32 %v3716, %v3850
      %v3863 = vadd.f32 %v3717, %v3853
      %v3864 = vlaneseq
      %v3865 = vshrl.u32 %v3864, 7
      %v3866 = vsub.s32 2, %v3865
      %v3867 = vrot.slane %v224, %v3866
      %v3868 = vmul.f32 %v3856, %v3867
      %v3869 = vmul.f32 %v3857, %v3867
      %v3870 = vmul.f32 %v3858, %v3867
      %v3871 = vmul.f32 %v3859, %v3867
      %v3872 = vmul.f32 %v3860, %v3867
      %v3873 = vmul.f32 %v3861, %v3867
      %v3874 = vmul.f32 %v3862, %v3867
      %v3875 = vmul.f32 %v3863, %v3867
      %v3876 = vlaneseq
      %v3877 = vshrl.u32 %v3876, 7
      %v3878 = vsub.s32 3, %v3877
      %v3879 = vrot.slane %v224, %v3878
      %v3880 = vadd.f32 %v3868, %v3879
      %v3881 = vadd.f32 %v3869, %v3879
      %v3882 = vadd.f32 %v3870, %v3879
      %v3883 = vadd.f32 %v3871, %v3879
      %v3884 = vadd.f32 %v3872, %v3879
      %v3885 = vadd.f32 %v3873, %v3879
      %v3886 = vadd.f32 %v3874, %v3879
      %v3887 = vadd.f32 %v3875, %v3879
      %v3888 = vld [vmem:[%s1509] sm:$0xf]
      %v3889 = vld [vmem:[%s1509 + $0x4] sm:$0xf]
      %v3890 = vld [vmem:[%s1509 + $0x8] sm:$0x1]
      %v3891 = vld [vmem:[%s1509 + $0xc] sm:$0xf]
      %v3892 = vld [vmem:[%s1509 + $0x10] sm:$0xf]
      %v3893 = vld [vmem:[%s1509 + $0x14] sm:$0x1]
      %v3894 = vld [vmem:[%s1509 + $0x18] sm:$0xf]
      %v3895 = vld [vmem:[%s1509 + $0x1c] sm:$0xf]
      %v3896 = vld [vmem:[%s1509 + $0x20] sm:$0x1]
      %v3897 = vld [vmem:[%s1509 + $0x24] sm:$0xf]
      %v3898 = vld [vmem:[%s1509 + $0x28] sm:$0xf]
      %v3899 = vld [vmem:[%s1509 + $0x2c] sm:$0x1]
      %v3901 = vshrl.u32 %v3888, 16
      %v3903 = vrot.slane %v3901, 4
      %v3904 = vshll.u32 %v3888, 16
      %v3906 = vrot.slane %v3904, 5
      %v3907 = vor.u32 %v3903, %v3906
      %v3908 = vrot.slane %v3907, 4
      %v3910 = vshll.u32 %v3889, 16
      %v3912 = vrot.slane %v3910, 5
      %v3913 = vsel %vm250, %v3908, %v3912
      %v3914 = vshrl.u32 %v3889, 16
      %v3916 = vrot.slane %v3914, 4
      %v3917 = vor.u32 %v3916, %v3912
      %v3918 = vrot.slane %v3917, 4
      %v3920 = vshll.u32 %v3890, 16
      %v3922 = vrot.slane %v3920, 5
      %v3923 = vsel %vm250, %v3918, %v3922
      %v3925 = vshrl.u32 %v3891, 16
      %v3927 = vrot.slane %v3925, 4
      %v3928 = vshll.u32 %v3891, 16
      %v3930 = vrot.slane %v3928, 5
      %v3931 = vor.u32 %v3927, %v3930
      %v3932 = vrot.slane %v3931, 4
      %v3934 = vshll.u32 %v3892, 16
      %v3936 = vrot.slane %v3934, 5
      %v3937 = vsel %vm250, %v3932, %v3936
      %v3938 = vshrl.u32 %v3892, 16
      %v3940 = vrot.slane %v3938, 4
      %v3941 = vor.u32 %v3940, %v3936
      %v3942 = vrot.slane %v3941, 4
      %v3944 = vshll.u32 %v3893, 16
      %v3946 = vrot.slane %v3944, 5
      %v3947 = vsel %vm250, %v3942, %v3946
      %v3949 = vshrl.u32 %v3894, 16
      %v3951 = vrot.slane %v3949, 4
      %v3952 = vshll.u32 %v3894, 16
      %v3954 = vrot.slane %v3952, 5
      %v3955 = vor.u32 %v3951, %v3954
      %v3956 = vrot.slane %v3955, 4
      %v3958 = vshll.u32 %v3895, 16
      %v3960 = vrot.slane %v3958, 5
      %v3961 = vsel %vm250, %v3956, %v3960
      %v3962 = vshrl.u32 %v3895, 16
      %v3964 = vrot.slane %v3962, 4
      %v3965 = vor.u32 %v3964, %v3960
      %v3966 = vrot.slane %v3965, 4
      %v3968 = vshll.u32 %v3896, 16
      %v3970 = vrot.slane %v3968, 5
      %v3971 = vsel %vm250, %v3966, %v3970
      %v3973 = vshrl.u32 %v3897, 16
      %v3975 = vrot.slane %v3973, 4
      %v3976 = vshll.u32 %v3897, 16
      %v3978 = vrot.slane %v3976, 5
      %v3979 = vor.u32 %v3975, %v3978
      %v3980 = vrot.slane %v3979, 4
      %v3982 = vshll.u32 %v3898, 16
      %v3984 = vrot.slane %v3982, 5
      %v3985 = vsel %vm250, %v3980, %v3984
      %v3986 = vshrl.u32 %v3898, 16
      %v3988 = vrot.slane %v3986, 4
      %v3989 = vor.u32 %v3988, %v3984
      %v3990 = vrot.slane %v3989, 4
      %v3992 = vshll.u32 %v3899, 16
      %v3994 = vrot.slane %v3992, 5
      %v3995 = vsel %vm250, %v3990, %v3994
      %v4004 = vunpack.c.l.bf16 %v3913
      %v4005 = vunpack.c.l.bf16 %v3923
      %v4006 = vunpack.c.l.bf16 %v3937
      %v4007 = vunpack.c.l.bf16 %v3947
      %v4008 = vunpack.c.l.bf16 %v3961
      %v4009 = vunpack.c.l.bf16 %v3971
      %v4010 = vunpack.c.l.bf16 %v3985
      %v4011 = vunpack.c.l.bf16 %v3995
      %v4012 = vadd.f32 %v3880, %v4004
      %v4013 = vadd.f32 %v3881, %v4005
      %v4014 = vadd.f32 %v3882, %v4006
      %v4015 = vadd.f32 %v3883, %v4007
      %v4016 = vadd.f32 %v3884, %v4008
      %v4017 = vadd.f32 %v3885, %v4009
      %v4018 = vadd.f32 %v3886, %v4010
      %v4019 = vadd.f32 %v3887, %v4011
      %v4020 = vmax.f32 %v4012, 0.0
      %v4021 = vmax.f32 %v4013, 0.0
      %v4022 = vmax.f32 %v4014, 0.0
      %v4023 = vmax.f32 %v4015, 0.0
      %v4024 = vmax.f32 %v4016, 0.0
      %v4025 = vmax.f32 %v4017, 0.0
      %v4026 = vmax.f32 %v4018, 0.0
      %v4027 = vmax.f32 %v4019, 0.0
      %v4028 = vpack.c.bf16 %v4021, %v4020
      %v4029 = vpack.c.bf16 %v4023, %v4022
      %v4030 = vpack.c.bf16 %v4025, %v4024
      %v4031 = vpack.c.bf16 %v4027, %v4026
      %v4036 = vunpack.c.l.b16 %v4028
      %v4037 = vunpack.c.h.b16 %v4028
      %v4038 = vunpack.c.l.b16 %v4029
      %v4039 = vunpack.c.h.b16 %v4029
      %v4040 = vunpack.c.l.b16 %v4030
      %v4041 = vunpack.c.h.b16 %v4030
      %v4042 = vunpack.c.l.b16 %v4031
      %v4043 = vunpack.c.h.b16 %v4031
      %v4044 = vpack.c.b16 %v4036, %v4036
      %v4045 = vpack.c.b16 %v4037, %v4037
      %v4046 = vpack.c.b16 %v4038, %v4038
      %v4047 = vpack.c.b16 %v4039, %v4039
      %v4048 = vpack.c.b16 %v4040, %v4040
      %v4049 = vpack.c.b16 %v4041, %v4041
      %v4050 = vpack.c.b16 %v4042, %v4042
      %v4051 = vpack.c.b16 %v4043, %v4043
      %4060 = vst.msk [vmem:[%s221] sm:$0xf] %vm2373, %v4044
      %4061 = vst.msk [vmem:[%s221 + $0x4] sm:$0xf] %vm2373, %v4045
      %4062 = vst.msk [vmem:[%s221 + $0x8] sm:$0xf] %vm2373, %v4046
      %4063 = vst.msk [vmem:[%s221 + $0xc] sm:$0xf] %vm2373, %v4047
      %4064 = vst.msk [vmem:[%s221 + $0x10] sm:$0xf] %vm2373, %v4048
      %4065 = vst.msk [vmem:[%s221 + $0x14] sm:$0xf] %vm2373, %v4049
      %4066 = vst.msk [vmem:[%s221 + $0x18] sm:$0xf] %vm2373, %v4050
      %4067 = vst.msk [vmem:[%s221 + $0x1c] sm:$0xf] %vm2373, %v4051
      %s4068 = smul.u32 4, %s20
      %p4069 = scmp.lt.s32.totalorder %s19, 1
      %s4070 = scalar_select %p4069, %s19, 1
      %p4071 = scmp.lt.s32.totalorder %s4068, 15
      %s4072 = scalar_select %p4071, %s4068, 15
      %s4073 = smul.addr %s4072, 2
      %s4074 = smul.addr %s4070, 32
      %s4075 = sadd.s32 %s4073, %s4074
      %s4076 = smul.addr %s4075, 4
      %s4077 = scalar_lea.vmem %s4, %s4076
      // Predicated region
      $region45: #{tpu_custom_call.1} parent=35 // pred_check
        %p4078 = pneg %p136
      $region46: #{tpu_custom_call.1} parent=35 // pred_check_branch
        %4080 = sbr.rel (%p4078) target = $region48
      $region47: #{tpu_custom_call.1} parent=35 // pred_region
        %s4081 = smul.u32 4, %s20
      $region48: #{tpu_custom_call.1} parent=35 // pred_fallthru
        _
    $region36: #{tpu_custom_call.1} parent=5 // pred_fallthru
      _
    %p4082 = scmp.le.s32.totalorder 2, %s10
    // Predicated region
    $region49: #{tpu_custom_call.1} parent=5 // pred_check
      %p4083 = pneg %p4082
    $region50: #{tpu_custom_call.1} parent=5 // pred_check_branch
      %4085 = sbr.rel (%p4083) target = $region52
    $region51: #{tpu_custom_call.1} parent=5 // pred_region
      %s4086 = ssub.s32 %s10, 2
      // Predicated region
      $region53: #{tpu_custom_call.1} parent=51 // pred_check
        %p4087 = pneg %p142
      $region54: #{tpu_custom_call.1} parent=51 // pred_check_branch
        %4089 = sbr.rel (%p4087) target = $region56
      $region55: #{tpu_custom_call.1} parent=51 // pred_region
        %s4090 = smul.u32 4, %s22
        %p4091 = scmp.lt.s32.totalorder %s21, 1
        %s4092 = scalar_select %p4091, %s21, 1
        %p4093 = scmp.lt.s32.totalorder %s4090, 15
        %s4094 = scalar_select %p4093, %s4090, 15
        %s4095 = smul.addr %s4094, 2
        %s4096 = smul.addr %s4092, 32
        %s4097 = sadd.s32 %s4095, %s4096
        %s4098 = smul.addr %s4097, 4
        %s4099 = scalar_lea.vmem %s4, %s4098
      $region56: #{tpu_custom_call.1} parent=51 // pred_fallthru
        _
    $region52: #{tpu_custom_call.1} parent=5 // pred_fallthru
      _
  $region6: #{tpu_custom_call.1} parent=0 // loop_footer
    %s14 = sadd.s32 1, %s10
  $region7: #{tpu_custom_call.1} parent=0 // loop_footer_branch
    %9 = sbr.rel target = $region3
  $region8: #{tpu_custom_call.1} parent=0 // loop_exit
    _

// kernel: tpu_custom_call.1
$region0: #{tpu_custom_call.1}
  #allocation0 [shape = 'u32[]', space=smem, size = 0x4, offset = 0x4, fixed_abs, tag = 'smem constant byte address 0x4 - core index']
  #allocation1 [shape = 'u32[144,128]{1,0:T(1,128)}', space=vmem, size = 0x12000, scoped, tag = 'internal scratch']
  #allocation2 [shape = 'bf16[6,18,8]{2,1,0:T(8,128)(2,1)}', space=vmem, size = 0x9000, scoped, tag = 'scratch operand']
  %s0 = inlined_call_operand.vmem [shape: bf16[2,20,18,8], index: 0, kind: input, shape index: {}]
  %s1 = inlined_call_operand.vmem [shape: bf16[9,8,8], index: 1, kind: input, shape index: {}]
  %s2 = inlined_call_operand.vmem [shape: bf16[9,8,8], index: 2, kind: input, shape index: {}]
  %s3 = inlined_call_operand.vmem [shape: f32[4,8], index: 3, kind: input, shape index: {}]
  %s4 = inlined_call_operand.vmem [shape: bf16[2,16,16,8], index: 4, kind: output, shape index: {}]
  %s5 = sld [smem:[#allocation0]]
  $region57: #{tpu_custom_call.1} parent=0
    _
  %s7 = ssub.s32 1, %s5
  %s8 = scalar_select 0, %s7, %s5
  loop: start=0, step=1, limit=10
  $region2: #{tpu_custom_call.1} parent=0 // loop_pre_header
    _
  $region3: #{tpu_custom_call.1} parent=0 // loop_header
    %s10 = sphi 0, %s14
    %p11 = scmp.ge.s32.totalorder %s10, 10
    %s17 = sphi 0, %s29
    %s18 = sphi 0, %s25
    %s19 = sphi 0, %s17
    %s20 = sphi 0, %s18
    %s21 = sphi 0, %s19
    %s22 = sphi 0, %s20
    %s32 = sphi 0, %s34
    %s35 = sphi 0, %s32
    %s36 = sphi 0, %s35
    %s52 = sphi 0, %s36
    %s56 = sphi 0, %s56
    %s58 = sphi 0, %s56
    %s59 = sphi 0, %s58
    %s73 = sphi 0, %s59
    %s77 = sphi 0, %s77
    %s79 = sphi 0, %s77
    %s80 = sphi 0, %s79
    %s94 = sphi 0, %s80
    %s98 = sphi 0, %s98
    %s100 = sphi 0, %s98
    %s101 = sphi 0, %s100
    %s115 = sphi 0, %s101
    %s123 = sphi 0, %s125
    %s126 = sphi 0, %s123
    %s127 = sphi 0, %s126
    %s143 = sphi 0, %s127
  $region4: #{tpu_custom_call.1} parent=0 // loop_header_branch
    %13 = sbr.rel (%p11) target = $region8
  $region5: #{tpu_custom_call.1} parent=0 // loop_body
    %s15 = ssub.s32 %s10, 1
    %s16 = ssub.s32 %s10, 2
    %s23 = sadd.s32 1, %s18
    %p24 = scmp.ge.s32.totalorder %s23, 4
    %s25 = scalar_select %p24, 0, %s23
    %s26 = sadd.s32 1, %s17
    %s27 = scalar_select %p24, %s26, %s17
    %p28 = scmp.ge.s32.totalorder %s27, 2
    %s29 = scalar_select %p28, 0, %s27
    %s30 = ssub.s32 %s17, %s29
    %p31 = scmp.eq.s32.totalorder %s30, 0
    %s33 = sadd.s32 %s32, 1
    %s34 = scalar_select %p31, %s32, %s33
    %p37 = pneg %p31
    %p38 = scmp.eq.s32.totalorder %s10, 7
    %p39 = por %p37, %p38
    %p40 = scmp.ne.s32.totalorder %s32, %s35
    %p41 = scmp.eq.s32.totalorder %s10, 0
    %p42 = por %p40, %p41
    %p43 = scmp.ne.s32.totalorder %s32, %s35
    %p44 = scmp.eq.s32.totalorder %s15, 7
    %p45 = por %p43, %p44
    %p46 = scmp.ne.s32.totalorder %s35, %s36
    %p47 = scmp.eq.s32.totalorder %s15, 0
    %p48 = por %p46, %p47
    %p49 = scmp.ne.s32.totalorder %s35, %s36
    %p50 = scmp.eq.s32.totalorder %s16, 7
    %p51 = por %p49, %p50
    %p53 = scmp.ne.s32.totalorder %s36, %s52
    %p54 = scmp.eq.s32.totalorder %s16, 0
    %p55 = por %p53, %p54
    %s57 = sadd.s32 %s56, 1
    %p60 = scmp.eq.s32.totalorder %s10, 7
    %p61 = scmp.ne.s32.totalorder %s56, %s58
    %p62 = scmp.eq.s32.totalorder %s10, 0
    %p63 = por %p61, %p62
    %p64 = scmp.ne.s32.totalorder %s56, %s58
    %p65 = scmp.eq.s32.totalorder %s15, 7
    %p66 = por %p64, %p65
    %p67 = scmp.ne.s32.totalorder %s58, %s59
    %p68 = scmp.eq.s32.totalorder %s15, 0
    %p69 = por %p67, %p68
    %p70 = scmp.ne.s32.totalorder %s58, %s59
    %p71 = scmp.eq.s32.totalorder %s16, 7
    %p72 = por %p70, %p71
    %p74 = scmp.ne.s32.totalorder %s59, %s73
    %p75 = scmp.eq.s32.totalorder %s16, 0
    %p76 = por %p74, %p75
    %s78 = sadd.s32 %s77, 1
    %p81 = scmp.eq.s32.totalorder %s10, 7
    %p82 = scmp.ne.s32.totalorder %s77, %s79
    %p83 = scmp.eq.s32.totalorder %s10, 0
    %p84 = por %p82, %p83
    %p85 = scmp.ne.s32.totalorder %s77, %s79
    %p86 = scmp.eq.s32.totalorder %s15, 7
    %p87 = por %p85, %p86
    %p88 = scmp.ne.s32.totalorder %s79, %s80
    %p89 = scmp.eq.s32.totalorder %s15, 0
    %p90 = por %p88, %p89
    %p91 = scmp.ne.s32.totalorder %s79, %s80
    %p92 = scmp.eq.s32.totalorder %s16, 7
    %p93 = por %p91, %p92
    %p95 = scmp.ne.s32.totalorder %s80, %s94
    %p96 = scmp.eq.s32.totalorder %s16, 0
    %p97 = por %p95, %p96
    %s99 = sadd.s32 %s98, 1
    %p102 = scmp.eq.s32.totalorder %s10, 7
    %p103 = scmp.ne.s32.totalorder %s98, %s100
    %p104 = scmp.eq.s32.totalorder %s10, 0
    %p105 = por %p103, %p104
    %p106 = scmp.ne.s32.totalorder %s98, %s100
    %p107 = scmp.eq.s32.totalorder %s15, 7
    %p108 = por %p106, %p107
    %p109 = scmp.ne.s32.totalorder %s100, %s101
    %p110 = scmp.eq.s32.totalorder %s15, 0
    %p111 = por %p109, %p110
    %p112 = scmp.ne.s32.totalorder %s100, %s101
    %p113 = scmp.eq.s32.totalorder %s16, 7
    %p114 = por %p112, %p113
    %p116 = scmp.ne.s32.totalorder %s101, %s115
    %p117 = scmp.eq.s32.totalorder %s16, 0
    %p118 = por %p116, %p117
    %s119 = ssub.s32 %s17, %s29
    %s120 = ssub.s32 %s18, %s25
    %s121 = sor.u32 %s119, %s120
    %p122 = scmp.eq.s32.totalorder %s121, 0
    %s124 = sadd.s32 %s123, 1
    %s125 = scalar_select %p122, %s123, %s124
    %p128 = pneg %p122
    %p129 = scmp.eq.s32.totalorder %s10, 7
    %p130 = por %p128, %p129
    %p131 = scmp.ne.s32.totalorder %s123, %s126
    %p132 = scmp.eq.s32.totalorder %s10, 0
    %p133 = por %p131, %p132
    %p134 = scmp.ne.s32.totalorder %s123, %s126
    %p135 = scmp.eq.s32.totalorder %s15, 7
    %p136 = por %p134, %p135
    %p137 = scmp.ne.s32.totalorder %s126, %s127
    %p138 = scmp.eq.s32.totalorder %s15, 0
    %p139 = por %p137, %p138
    %p140 = scmp.ne.s32.totalorder %s126, %s127
    %p141 = scmp.eq.s32.totalorder %s16, 7
    %p142 = por %p140, %p141
    %p144 = scmp.ne.s32.totalorder %s127, %s143
    %p145 = scmp.eq.s32.totalorder %s16, 0
    %p146 = por %p144, %p145
    %p147 = scmp.le.s32.totalorder 1, %s10
    %p148 = scmp.lt.s32.totalorder %s10, 9
    %p149 = pnand %p147, %p148
    %p150 = pneg %p149
    // Predicated region
    $region9: #{tpu_custom_call.1} parent=5 // pred_check
      _
    $region10: #{tpu_custom_call.1} parent=5 // pred_check_branch
      %152 = sbr.rel (%p149) target = $region12
    $region11: #{tpu_custom_call.1} parent=5 // pred_region
      %s153 = ssub.s32 %s10, 1
      // Predicated region
      $region13: #{tpu_custom_call.1} parent=11 // pred_check
        %p154 = pneg %p69
      $region14: #{tpu_custom_call.1} parent=11 // pred_check_branch
        %156 = sbr.rel (%p154) target = $region16
      $region15: #{tpu_custom_call.1} parent=11 // pred_region
        _
      $region16: #{tpu_custom_call.1} parent=11 // pred_fallthru
        _
      // Predicated region
      $region17: #{tpu_custom_call.1} parent=11 // pred_check
        %p157 = pneg %p90
      $region18: #{tpu_custom_call.1} parent=11 // pred_check_branch
        %159 = sbr.rel (%p157) target = $region20
      $region19: #{tpu_custom_call.1} parent=11 // pred_region
        _
      $region20: #{tpu_custom_call.1} parent=11 // pred_fallthru
        _
      // Predicated region
      $region21: #{tpu_custom_call.1} parent=11 // pred_check
        %p160 = pneg %p111
      $region22: #{tpu_custom_call.1} parent=11 // pred_check_branch
        %162 = sbr.rel (%p160) target = $region24
      $region23: #{tpu_custom_call.1} parent=11 // pred_region
        _
      $region24: #{tpu_custom_call.1} parent=11 // pred_fallthru
        _
    $region12: #{tpu_custom_call.1} parent=5 // pred_fallthru
      _
    %p163 = scmp.lt.s32.totalorder %s10, 8
    // Predicated region
    $region25: #{tpu_custom_call.1} parent=5 // pred_check
      %p164 = pneg %p163
    $region26: #{tpu_custom_call.1} parent=5 // pred_check_branch
      %166 = sbr.rel (%p164) target = $region28
    $region27: #{tpu_custom_call.1} parent=5 // pred_region
      // Predicated region
      $region29: #{tpu_custom_call.1} parent=27 // pred_check
        %p167 = pneg %p42
      $region30: #{tpu_custom_call.1} parent=27 // pred_check_branch
        %169 = sbr.rel (%p167) target = $region32
      $region31: #{tpu_custom_call.1} parent=27 // pred_region
        %p170 = scmp.lt.s32.totalorder %s17, 1
        %s171 = scalar_select %p170, %s17, 1
        %s172 = smul.addr %s171, 60
        %s173 = smul.addr %s172, 4
        %s174 = scalar_lea.vmem %s0, %s173
      $region32: #{tpu_custom_call.1} parent=27 // pred_fallthru
        _
    $region28: #{tpu_custom_call.1} parent=5 // pred_fallthru
      _
    %p175 = scmp.le.s32.totalorder 1, %s10
    %p176 = scmp.lt.s32.totalorder %s10, 9
    %p177 = pnand %p175, %p176
    %p178 = pneg %p177
    // Predicated region
    $region33: #{tpu_custom_call.1} parent=5 // pred_check
      _
    $region34: #{tpu_custom_call.1} parent=5 // pred_check_branch
      %180 = sbr.rel (%p177) target = $region36
    $region35: #{tpu_custom_call.1} parent=5 // pred_region
      %s181 = ssub.s32 %s10, 1
      %p182 = scmp.lt.s32.totalorder %s19, 1
      %s183 = scalar_select %p182, %s19, 1
      %s184 = smul.addr %s183, 60
      %s185 = smul.addr %s184, 4
      %s186 = scalar_lea.vmem %s0, %s185
      %p187 = pneg %p48
      %p188 = pneg %p45
      %p189 = pneg %p69
      %p190 = pneg %p66
      %p191 = pneg %p90
      %p192 = pneg %p87
      %p193 = pneg %p111
      %p194 = pneg %p108
      %p195 = pneg %p139
      %p196 = pneg %p136
      %s197 = smul.u32 4, %s20
      %p198 = scmp.lt.s32.totalorder %s19, 1
      %s199 = scalar_select %p198, %s19, 1
      %p200 = scmp.lt.s32.totalorder %s197, 15
      %s201 = scalar_select %p200, %s197, 15
      %s202 = smul.addr %s201, 2
      %s203 = smul.addr %s199, 32
      %s204 = sadd.s32 %s202, %s203
      %s205 = smul.addr %s204, 4
      %s206 = scalar_lea.vmem %s4, %s205
      %p207 = scmp.lt.s32.totalorder %s19, 1
      %s208 = scalar_select %p207, %s19, 1
      %s209 = smul.addr %s208, 60
      %s210 = smul.addr %s209, 4
      %s211 = scalar_lea.vmem %s0, %s210
      %s212 = smul.u32 4, %s20
      %p213 = scmp.lt.s32.totalorder %s19, 1
      %s214 = scalar_select %p213, %s19, 1
      %p215 = scmp.lt.s32.totalorder %s212, 15
      %s216 = scalar_select %p215, %s212, 15
      %s217 = smul.addr %s216, 2
      %s218 = smul.addr %s214, 32
      %s219 = sadd.s32 %s217, %s218
      %s220 = smul.addr %s219, 4
      %s221 = scalar_lea.vmem %s4, %s220
      %s222 = smul.u32 4, %s20
      %v224 = vld [vmem:[%s3] sm:$0xf]
      %s225 = smul.u32 %s20, 4
      %s226 = smul.u32 %s225, 3
      %s227 = smul.addr %s226, 4
      %s228 = scalar_lea.vmem %s211, %s227
      %v229 = vld [vmem:[%s228] sm:$0xf]
      %v230 = vld [vmem:[%s228 + $0x4] sm:$0xf]
      %v231 = vld [vmem:[%s228 + $0xc] sm:$0xf]
      %v232 = vld [vmem:[%s228 + $0x10] sm:$0xf]
      %v233 = vld [vmem:[%s228 + $0x18] sm:$0xf]
      %v234 = vld [vmem:[%s228 + $0x1c] sm:$0xf]
      %v235 = vld [vmem:[%s228 + $0x24] sm:$0xf]
      %v236 = vld [vmem:[%s228 + $0x28] sm:$0xf]
      %v237 = vld [vmem:[%s228 + $0x30] sm:$0xf]
      %v238 = vld [vmem:[%s228 + $0x34] sm:$0xf]
      %v239 = vld [vmem:[%s228 + $0x3c] sm:$0xf]
      %v240 = vld [vmem:[%s228 + $0x40] sm:$0xf]
      %v241 = vld [vmem:[%s1] sm:$0xf]
      %v242 = vld [vmem:[%s228 + $0x8] sm:$0x1]
      %v243 = vld [vmem:[%s228 + $0x14] sm:$0x1]
      %v244 = vld [vmem:[%s228 + $0x20] sm:$0x1]
      %v245 = vld [vmem:[%s228 + $0x2c] sm:$0x1]
      %v246 = vld [vmem:[%s228 + $0x38] sm:$0x1]
      %v247 = vld [vmem:[%s228 + $0x44] sm:$0x1]
      %vm248 = vsmask.f32 3328
      %vm249 = vsmask.f32 7440
      %vm250 = vmor %vm248, %vm249
      %v252 = vshrl.u32 %v229, 16
      %v254 = vrot.slane %v252, 4
      %v255 = vshll.u32 %v229, 16
      %v257 = vrot.slane %v255, 5
      %v258 = vor.u32 %v254, %v257
      %v259 = vrot.slane %v258, 4
      %v261 = vshll.u32 %v230, 16
      %v263 = vrot.slane %v261, 5
      %v264 = vsel %vm250, %v259, %v263
      %v265 = vshrl.u32 %v230, 16
      %v267 = vrot.slane %v265, 4
      %v268 = vor.u32 %v267, %v263
      %v269 = vrot.slane %v268, 4
      %v271 = vshll.u32 %v242, 16
      %v273 = vrot.slane %v271, 5
      %v274 = vsel %vm250, %v269, %v273
      %v276 = vshrl.u32 %v231, 16
      %v278 = vrot.slane %v276, 4
      %v279 = vshll.u32 %v231, 16
      %v281 = vrot.slane %v279, 5
      %v282 = vor.u32 %v278, %v281
      %v283 = vrot.slane %v282, 4
      %v285 = vshll.u32 %v232, 16
      %v287 = vrot.slane %v285, 5
      %v288 = vsel %vm250, %v283, %v287
      %v289 = vshrl.u32 %v232, 16
      %v291 = vrot.slane %v289, 4
      %v292 = vor.u32 %v291, %v287
      %v293 = vrot.slane %v292, 4
      %v295 = vshll.u32 %v243, 16
      %v297 = vrot.slane %v295, 5
      %v298 = vsel %vm250, %v293, %v297
      %v300 = vshrl.u32 %v233, 16
      %v302 = vrot.slane %v300, 4
      %v303 = vshll.u32 %v233, 16
      %v305 = vrot.slane %v303, 5
      %v306 = vor.u32 %v302, %v305
      %v307 = vrot.slane %v306, 4
      %v309 = vshll.u32 %v234, 16
      %v311 = vrot.slane %v309, 5
      %v312 = vsel %vm250, %v307, %v311
      %v313 = vshrl.u32 %v234, 16
      %v315 = vrot.slane %v313, 4
      %v316 = vor.u32 %v315, %v311
      %v317 = vrot.slane %v316, 4
      %v319 = vshll.u32 %v244, 16
      %v321 = vrot.slane %v319, 5
      %v322 = vsel %vm250, %v317, %v321
      %v324 = vshrl.u32 %v235, 16
      %v326 = vrot.slane %v324, 4
      %v327 = vshll.u32 %v235, 16
      %v329 = vrot.slane %v327, 5
      %v330 = vor.u32 %v326, %v329
      %v331 = vrot.slane %v330, 4
      %v333 = vshll.u32 %v236, 16
      %v335 = vrot.slane %v333, 5
      %v336 = vsel %vm250, %v331, %v335
      %v337 = vshrl.u32 %v236, 16
      %v339 = vrot.slane %v337, 4
      %v340 = vor.u32 %v339, %v335
      %v341 = vrot.slane %v340, 4
      %v343 = vshll.u32 %v245, 16
      %v345 = vrot.slane %v343, 5
      %v346 = vsel %vm250, %v341, %v345
      %v348 = vshrl.u32 %v237, 16
      %v350 = vrot.slane %v348, 4
      %v351 = vshll.u32 %v237, 16
      %v353 = vrot.slane %v351, 5
      %v354 = vor.u32 %v350, %v353
      %v355 = vrot.slane %v354, 4
      %v357 = vshll.u32 %v238, 16
      %v359 = vrot.slane %v357, 5
      %v360 = vsel %vm250, %v355, %v359
      %v361 = vshrl.u32 %v238, 16
      %v363 = vrot.slane %v361, 4
      %v364 = vor.u32 %v363, %v359
      %v365 = vrot.slane %v364, 4
      %v367 = vshll.u32 %v246, 16
      %v369 = vrot.slane %v367, 5
      %v370 = vsel %vm250, %v365, %v369
      %v372 = vshrl.u32 %v239, 16
      %v374 = vrot.slane %v372, 4
      %v375 = vshll.u32 %v239, 16
      %v377 = vrot.slane %v375, 5
      %v378 = vor.u32 %v374, %v377
      %v379 = vrot.slane %v378, 4
      %v381 = vshll.u32 %v240, 16
      %v383 = vrot.slane %v381, 5
      %v384 = vsel %vm250, %v379, %v383
      %v385 = vshrl.u32 %v240, 16
      %v387 = vrot.slane %v385, 4
      %v388 = vor.u32 %v387, %v383
      %v389 = vrot.slane %v388, 4
      %v391 = vshll.u32 %v247, 16
      %v393 = vrot.slane %v391, 5
      %v394 = vsel %vm250, %v389, %v393
      %s395 = scalar_lea.vmem %s1, 4
      %v396 = vld [vmem:[%s395] sm:$0xf]
      %v397 = vunpack.c.l.b16 %v264
      %v398 = vunpack.c.l.b16 %v274
      %v399 = vunpack.c.l.b16 %v288
      %v400 = vunpack.c.l.b16 %v298
      %v401 = vunpack.c.l.b16 %v312
      %v402 = vunpack.c.l.b16 %v322
      %v403 = vunpack.c.l.b16 %v336
      %v404 = vunpack.c.l.b16 %v346
      %v405 = vunpack.c.l.b16 %v360
      %v406 = vunpack.c.l.b16 %v370
      %v407 = vunpack.c.l.b16 %v384
      %v408 = vunpack.c.l.b16 %v394
      %v409 = vpack.c.b16 %v398, %v397
      %v410 = vpack.c.b16 %v400, %v399
      %v411 = vpack.c.b16 %v402, %v401
      %v412 = vpack.c.b16 %v404, %v403
      %v413 = vpack.c.b16 %v406, %v405
      %v414 = vpack.c.b16 %v408, %v407
      %vm415 = vcmask 64512
      %v417 = vsel %vm415, %v409, 0
      %v420 = vsel %vm415, %v410, 0
      %v423 = vsel %vm415, %v411, 0
      %v426 = vsel %vm415, %v412, 0
      %v429 = vsel %vm415, %v413, 0
      %v432 = vsel %vm415, %v414, 0
      %vm434 = vcmask 1043456
      %v436 = vsel %vm434, %v396, 0
      %438 = vmatprep.subr.bf16.mxu0 0
      %439 = vmatpush1.bf16.msra.mxu0 %v436
      %440 = vmatprep.subr.bf16.mxu0 0
      %441 = vmatpush1.bf16.msra.mxu0 0
      %442 = vmatprep.subr.bf16.mxu0 0
      %443 = vmatpush1.bf16.msra.mxu0 0
      %444 = vmatprep.subr.bf16.mxu0 0
      %445 = vmatpush1.bf16.msra.mxu0 0
      %446 = vmatprep.subr.bf16.mxu0 0
      %447 = vmatpush1.bf16.msra.mxu0 0
      %448 = vmatprep.subr.bf16.mxu0 0
      %449 = vmatpush1.bf16.msra.mxu0 0
      %450 = vmatprep.subr.bf16.mxu0 0
      %451 = vmatpush1.bf16.msra.mxu0 0
      %452 = vmatprep.subr.bf16.mxu0 0
      %453 = vmatpush1.bf16.msra.mxu0 0
      %454 = vmatprep.subr.bf16.mxu0 0
      %455 = vmatpush1.bf16.msra.mxu0 0
      %456 = vmatprep.subr.bf16.mxu0 0
      %457 = vmatpush1.bf16.msra.mxu0 0
      %458 = vmatprep.subr.bf16.mxu0 0
      %459 = vmatpush1.bf16.msra.mxu0 0
      %460 = vmatprep.subr.bf16.mxu0 0
      %461 = vmatpush1.bf16.msra.mxu0 0
      %462 = vmatprep.subr.bf16.mxu0 0
      %463 = vmatpush1.bf16.msra.mxu0 0
      %464 = vmatprep.subr.bf16.mxu0 0
      %465 = vmatpush1.bf16.msra.mxu0 0
      %466 = vmatprep.subr.bf16.mxu0 0
      %467 = vmatpush1.bf16.msra.mxu0 0
      %468 = vmatprep.subr.bf16.mxu0 0
      %469 = vmatpush1.bf16.msra.mxu0 0
      %470 = vmatprep.mubr.bf16.mxu0 0
      %471 = vmatmul.mubr.bf16.gmra.mrb[0].mxu0 %v417
      %v472 = vpop.f32.mrb[0].mxu0
      %v473 = vadd.f32 0.0, %v472
      %v474 = vpop.f32.mrb[0].mxu0
      %v475 = vpop.f32.mrb[0].mxu0
      %v476 = vadd.f32 0.0, %v475
      %v477 = vpop.f32.mrb[0].mxu0
      %478 = vmatprep.mubr.bf16.mxu0 0
      %479 = vmatmul.mubr.bf16.gmra.mrb[0].mxu0 %v420
      %v480 = vpop.f32.mrb[0].mxu0
      %v481 = vadd.f32 0.0, %v480
      %v482 = vpop.f32.mrb[0].mxu0
      %v483 = vpop.f32.mrb[0].mxu0
      %v484 = vadd.f32 0.0, %v483
      %v485 = vpop.f32.mrb[0].mxu0
      %486 = vmatprep.mubr.bf16.mxu0 0
      %487 = vmatmul.mubr.bf16.gmra.mrb[0].mxu0 %v423
      %v488 = vpop.f32.mrb[0].mxu0
      %v489 = vadd.f32 0.0, %v488
      %v490 = vpop.f32.mrb[0].mxu0
      %v491 = vpop.f32.mrb[0].mxu0
      %v492 = vadd.f32 0.0, %v491
      %v493 = vpop.f32.mrb[0].mxu0
      %494 = vmatprep.mubr.bf16.mxu0 0
      %495 = vmatmul.mubr.bf16.gmra.mrb[0].mxu0 %v426
      %v496 = vpop.f32.mrb[0].mxu0
      %v497 = vadd.f32 0.0, %v496
      %v498 = vpop.f32.mrb[0].mxu0
      %v499 = vpop.f32.mrb[0].mxu0
      %v500 = vadd.f32 0.0, %v499
      %v501 = vpop.f32.mrb[0].mxu0
      %502 = vmatprep.mubr.bf16.mxu0 0
      %503 = vmatmul.mubr.bf16.gmra.mrb[0].mxu0 %v429
      %v504 = vpop.f32.mrb[0].mxu0
      %v505 = vadd.f32 0.0, %v504
      %v506 = vpop.f32.mrb[0].mxu0
      %v507 = vpop.f32.mrb[0].mxu0
      %v508 = vadd.f32 0.0, %v507
      %v509 = vpop.f32.mrb[0].mxu0
      %510 = vmatprep.mubr.bf16.mxu0 0
      %511 = vmatmul.mubr.bf16.gmra.mrb[0].mxu0 %v432
      %v512 = vpop.f32.mrb[0].mxu0
      %v513 = vadd.f32 0.0, %v512
      %v514 = vpop.f32.mrb[0].mxu0
      %v515 = vpop.f32.mrb[0].mxu0
      %v516 = vadd.f32 0.0, %v515
      %v517 = vpop.f32.mrb[0].mxu0
      %518 = vdwg.mxu0
      %v531 = vunpack.c.l.b16 %v229
      %v532 = vunpack.c.l.b16 %v230
      %v533 = vunpack.c.l.b16 %v231
      %v534 = vunpack.c.l.b16 %v232
      %v535 = vunpack.c.l.b16 %v233
      %v536 = vunpack.c.l.b16 %v234
      %v537 = vunpack.c.l.b16 %v235
      %v538 = vunpack.c.l.b16 %v236
      %v539 = vunpack.c.l.b16 %v237
      %v540 = vunpack.c.l.b16 %v238
      %v541 = vunpack.c.l.b16 %v239
      %v542 = vunpack.c.l.b16 %v240
      %v543 = vpack.c.b16 %v532, %v531
      %v544 = vpack.c.b16 %v534, %v533
      %v545 = vpack.c.b16 %v536, %v535
      %v546 = vpack.c.b16 %v538, %v537
      %v547 = vpack.c.b16 %v540, %v539
      %v548 = vpack.c.b16 %v542, %v541
      %v550 = vsel %vm415, %v543, 0
      %v553 = vsel %vm415, %v544, 0
      %v556 = vsel %vm415, %v545, 0
      %v559 = vsel %vm415, %v546, 0
      %v562 = vsel %vm415, %v547, 0
      %v565 = vsel %vm415, %v548, 0
      %v568 = vsel %vm434, %v241, 0
      %570 = vmatprep.subr.bf16.mxu0 0
      %571 = vmatpush1.bf16.msra.mxu0 %v568
      %572 = vmatprep.subr.bf16.mxu0 0
      %573 = vmatpush1.bf16.msra.mxu0 0
      %574 = vmatprep.subr.bf16.mxu0 0
      %575 = vmatpush1.bf16.msra.mxu0 0
      %576 = vmatprep.subr.bf16.mxu0 0
      %577 = vmatpush1.bf16.msra.mxu0 0
      %578 = vmatprep.subr.bf16.mxu0 0
      %579 = vmatpush1.bf16.msra.mxu0 0
      %580 = vmatprep.subr.bf16.mxu0 0
      %581 = vmatpush1.bf16.msra.mxu0 0
      %582 = vmatprep.subr.bf16.mxu0 0
      %583 = vmatpush1.bf16.msra.mxu0 0
      %584 = vmatprep.subr.bf16.mxu0 0
      %585 = vmatpush1.bf16.msra.mxu0 0
      %586 = vmatprep.subr.bf16.mxu0 0
      %587 = vmatpush1.bf16.msra.mxu0 0
      %588 = vmatprep.subr.bf16.mxu0 0
      %589 = vmatpush1.bf16.msra.mxu0 0
      %590 = vmatprep.subr.bf16.mxu0 0
      %591 = vmatpush1.bf16.msra.mxu0 0
      %592 = vmatprep.subr.bf16.mxu0 0
      %593 = vmatpush1.bf16.msra.mxu0 0
      %594 = vmatprep.subr.bf16.mxu0 0
      %595 = vmatpush1.bf16.msra.mxu0 0
      %596 = vmatprep.subr.bf16.mxu0 0
      %597 = vmatpush1.bf16.msra.mxu0 0
      %598 = vmatprep.subr.bf16.mxu0 0
      %599 = vmatpush1.bf16.msra.mxu0 0
      %600 = vmatprep.subr.bf16.mxu0 0
      %601 = vmatpush1.bf16.msra.mxu0 0
      %602 = vmatprep.mubr.bf16.mxu0 0
      %603 = vmatmul.mubr.bf16.gmra.mrb[0].mxu0 %v550
      %v604 = vpop.f32.mrb[0].mxu0
      %v605 = vadd.f32 %v473, %v604
      %v606 = vpop.f32.mrb[0].mxu0
      %v607 = vpop.f32.mrb[0].mxu0
      %v608 = vadd.f32 %v476, %v607
      %v609 = vpop.f32.mrb[0].mxu0
      %610 = vmatprep.mubr.bf16.mxu0 0
      %611 = vmatmul.mubr.bf16.gmra.mrb[0].mxu0 %v553
      %v612 = vpop.f32.mrb[0].mxu0
      %v613 = vadd.f32 %v481, %v612
      %v614 = vpop.f32.mrb[0].mxu0
      %v615 = vpop.f32.mrb[0].mxu0
      %v616 = vadd.f32 %v484, %v615
      %v617 = vpop.f32.mrb[0].mxu0
      %618 = vmatprep.mubr.bf16.mxu0 0
      %619 = vmatmul.mubr.bf16.gmra.mrb[0].mxu0 %v556
      %v620 = vpop.f32.mrb[0].mxu0
      %v621 = vadd.f32 %v489, %v620
      %v622 = vpop.f32.mrb[0].mxu0
      %v623 = vpop.f32.mrb[0].mxu0
      %v624 = vadd.f32 %v492, %v623
      %v625 = vpop.f32.mrb[0].mxu0
      %626 = vmatprep.mubr.bf16.mxu0 0
      %627 = vmatmul.mubr.bf16.gmra.mrb[0].mxu0 %v559
      %v628 = vpop.f32.mrb[0].mxu0
      %v629 = vadd.f32 %v497, %v628
      %v630 = vpop.f32.mrb[0].mxu0
      %v631 = vpop.f32.mrb[0].mxu0
      %v632 = vadd.f32 %v500, %v631
      %v633 = vpop.f32.mrb[0].mxu0
      %634 = vmatprep.mubr.bf16.mxu0 0
      %635 = vmatmul.mubr.bf16.gmra.mrb[0].mxu0 %v562
      %v636 = vpop.f32.mrb[0].mxu0
      %v637 = vadd.f32 %v505, %v636
      %v638 = vpop.f32.mrb[0].mxu0
      %v639 = vpop.f32.mrb[0].mxu0
      %v640 = vadd.f32 %v508, %v639
      %v641 = vpop.f32.mrb[0].mxu0
      %642 = vmatprep.mubr.bf16.mxu0 0
      %643 = vmatmul.mubr.bf16.gmra.mrb[0].mxu0 %v565
      %v644 = vpop.f32.mrb[0].mxu0
      %v645 = vadd.f32 %v513, %v644
      %v646 = vpop.f32.mrb[0].mxu0
      %v647 = vpop.f32.mrb[0].mxu0
      %v648 = vadd.f32 %v516, %v647
      %v649 = vpop.f32.mrb[0].mxu0
      %650 = vdwg.mxu0
      %v651 = vld [vmem:[%s228] sm:$0xe]
      %v652 = vld [vmem:[%s228 + $0xc] sm:$0xe]
      %v653 = vld [vmem:[%s228 + $0x18] sm:$0xe]
      %v654 = vld [vmem:[%s228 + $0x24] sm:$0xe]
      %v655 = vld [vmem:[%s228 + $0x30] sm:$0xe]
      %v656 = vld [vmem:[%s228 + $0x3c] sm:$0xe]
      %vm669 = vcmask 1042432
      %vm670 = vcmask 1046532
      %vm671 = vmor %vm669, %vm670
      %v672 = vrot.slane %v651, 5
      %v673 = vrot.slane %v672, 4
      %v674 = vrot.slane %v230, 5
      %v675 = vsel %vm671, %v673, %v674
      %v676 = vrot.slane %v674, 4
      %v677 = vrot.slane %v242, 5
      %v678 = vsel %vm671, %v676, %v677
      %v679 = vrot.slane %v652, 5
      %v680 = vrot.slane %v679, 4
      %v681 = vrot.slane %v232, 5
      %v682 = vsel %vm671, %v680, %v681
      %v683 = vrot.slane %v681, 4
      %v684 = vrot.slane %v243, 5
      %v685 = vsel %vm671, %v683, %v684
      %v686 = vrot.slane %v653, 5
      %v687 = vrot.slane %v686, 4
      %v688 = vrot.slane %v234, 5
      %v689 = vsel %vm671, %v687, %v688
      %v690 = vrot.slane %v688, 4
      %v691 = vrot.slane %v244, 5
      %v692 = vsel %vm671, %v690, %v691
      %v693 = vrot.slane %v654, 5
      %v694 = vrot.slane %v693, 4
      %v695 = vrot.slane %v236, 5
      %v696 = vsel %vm671, %v694, %v695
      %v697 = vrot.slane %v695, 4
      %v698 = vrot.slane %v245, 5
      %v699 = vsel %vm671, %v697, %v698
      %v700 = vrot.slane %v655, 5
      %v701 = vrot.slane %v700, 4
      %v702 = vrot.slane %v238, 5
      %v703 = vsel %vm671, %v701, %v702
      %v704 = vrot.slane %v702, 4
      %v705 = vrot.slane %v246, 5
      %v706 = vsel %vm671, %v704, %v705
      %v707 = vrot.slane %v656, 5
      %v708 = vrot.slane %v707, 4
      %v709 = vrot.slane %v240, 5
      %v710 = vsel %vm671, %v708, %v709
      %v711 = vrot.slane %v709, 4
      %v712 = vrot.slane %v247, 5
      %v713 = vsel %vm671, %v711, %v712
      %s714 = scalar_lea.vmem %s1, 8
      %v715 = vld [vmem:[%s714] sm:$0xf]
      %v716 = vunpack.c.l.b16 %v675
      %v717 = vunpack.c.l.b16 %v678
      %v718 = vunpack.c.l.b16 %v682
      %v719 = vunpack.c.l.b16 %v685
      %v720 = vunpack.c.l.b16 %v689
      %v721 = vunpack.c.l.b16 %v692
      %v722 = vunpack.c.l.b16 %v696
      %v723 = vunpack.c.l.b16 %v699
      %v724 = vunpack.c.l.b16 %v703
      %v725 = vunpack.c.l.b16 %v706
      %v726 = vunpack.c.l.b16 %v710
      %v727 = vunpack.c.l.b16 %v713
      %v728 = vpack.c.b16 %v717, %v716
      %v729 = vpack.c.b16 %v719, %v718
      %v730 = vpack.c.b16 %v721, %v720
      %v731 = vpack.c.b16 %v723, %v722
      %v732 = vpack.c.b16 %v725, %v724
      %v733 = vpack.c.b16 %v727, %v726
      %v735 = vsel %vm415, %v728, 0
      %v738 = vsel %vm415, %v729, 0
      %v741 = vsel %vm415, %v730, 0
      %v744 = vsel %vm415, %v731, 0
      %v747 = vsel %vm415, %v732, 0
      %v750 = vsel %vm415, %v733, 0
      %v753 = vsel %vm434, %v715, 0
      %755 = vmatprep.subr.bf16.mxu0 0
      %756 = vmatpush1.bf16.msra.mxu0 %v753
      %757 = vmatprep.subr.bf16.mxu0 0
      %758 = vmatpush1.bf16.msra.mxu0 0
      %759 = vmatprep.subr.bf16.mxu0 0
      %760 = vmatpush1.bf16.msra.mxu0 0
      %761 = vmatprep.subr.bf16.mxu0 0
      %762 = vmatpush1.bf16.msra.mxu0 0
      %763 = vmatprep.subr.bf16.mxu0 0
      %764 = vmatpush1.bf16.msra.mxu0 0
      %765 = vmatprep.subr.bf16.mxu0 0
      %766 = vmatpush1.bf16.msra.mxu0 0
      %767 = vmatprep.subr.bf16.mxu0 0
      %768 = vmatpush1.bf16.msra.mxu0 0
      %769 = vmatprep.subr.bf16.mxu0 0
      %770 = vmatpush1.bf16.msra.mxu0 0
      %771 = vmatprep.subr.bf16.mxu0 0
      %772 = vmatpush1.bf16.msra.mxu0 0
      %773 = vmatprep.subr.bf16.mxu0 0
      %774 = vmatpush1.bf16.msra.mxu0 0
      %775 = vmatprep.subr.bf16.mxu0 0
      %776 = vmatpush1.bf16.msra.mxu0 0
      %777 = vmatprep.subr.bf16.mxu0 0
      %778 = vmatpush1.bf16.msra.mxu0 0
      %779 = vmatprep.subr.bf16.mxu0 0
      %780 = vmatpush1.bf16.msra.mxu0 0
      %781 = vmatprep.subr.bf16.mxu0 0
      %782 = vmatpush1.bf16.msra.mxu0 0
      %783 = vmatprep.subr.bf16.mxu0 0
      %784 = vmatpush1.bf16.msra.mxu0 0
      %785 = vmatprep.subr.bf16.mxu0 0
      %786 = vmatpush1.bf16.msra.mxu0 0
      %787 = vmatprep.mubr.bf16.mxu0 0
      %788 = vmatmul.mubr.bf16.gmra.mrb[0].mxu0 %v735
      %v789 = vpop.f32.mrb[0].mxu0
      %v790 = vadd.f32 0.0, %v789
      %v791 = vpop.f32.mrb[0].mxu0
      %v792 = vpop.f32.mrb[0].mxu0
      %v793 = vadd.f32 0.0, %v792
      %v794 = vpop.f32.mrb[0].mxu0
      %795 = vmatprep.mubr.bf16.mxu0 0
      %796 = vmatmul.mubr.bf16.gmra.mrb[0].mxu0 %v738
      %v797 = vpop.f32.mrb[0].mxu0
      %v798 = vadd.f32 0.0, %v797
      %v799 = vpop.f32.mrb[0].mxu0
      %v800 = vpop.f32.mrb[0].mxu0
      %v801 = vadd.f32 0.0, %v800
      %v802 = vpop.f32.mrb[0].mxu0
      %803 = vmatprep.mubr.bf16.mxu0 0
      %804 = vmatmul.mubr.bf16.gmra.mrb[0].mxu0 %v741
      %v805 = vpop.f32.mrb[0].mxu0
      %v806 = vadd.f32 0.0, %v805
      %v807 = vpop.f32.mrb[0].mxu0
      %v808 = vpop.f32.mrb[0].mxu0
      %v809 = vadd.f32 0.0, %v808
      %v810 = vpop.f32.mrb[0].mxu0
      %811 = vmatprep.mubr.bf16.mxu0 0
      %812 = vmatmul.mubr.bf16.gmra.mrb[0].mxu0 %v744
      %v813 = vpop.f32.mrb[0].mxu0
      %v814 = vadd.f32 0.0, %v813
      %v815 = vpop.f32.mrb[0].mxu0
      %v816 = vpop.f32.mrb[0].mxu0
      %v817 = vadd.f32 0.0, %v816
      %v818 = vpop.f32.mrb[0].mxu0
      %819 = vmatprep.mubr.bf16.mxu0 0
      %820 = vmatmul.mubr.bf16.gmra.mrb[0].mxu0 %v747
      %v821 = vpop.f32.mrb[0].mxu0
      %v822 = vadd.f32 0.0, %v821
      %v823 = vpop.f32.mrb[0].mxu0
      %v824 = vpop.f32.mrb[0].mxu0
      %v825 = vadd.f32 0.0, %v824
      %v826 = vpop.f32.mrb[0].mxu0
      %827 = vmatprep.mubr.bf16.mxu0 0
      %828 = vmatmul.mubr.bf16.gmra.mrb[0].mxu0 %v750
      %v829 = vpop.f32.mrb[0].mxu0
      %v830 = vadd.f32 0.0, %v829
      %v831 = vpop.f32.mrb[0].mxu0
      %v832 = vpop.f32.mrb[0].mxu0
      %v833 = vadd.f32 0.0, %v832
      %v834 = vpop.f32.mrb[0].mxu0
      %835 = vdwg.mxu0
      %v836 = vadd.f32 %v605, %v790
      %v837 = vadd.f32 %v608, %v793
      %v838 = vadd.f32 %v613, %v798
      %v839 = vadd.f32 %v616, %v801
      %v840 = vadd.f32 %v621, %v806
      %v841 = vadd.f32 %v624, %v809
      %v842 = vadd.f32 %v629, %v814
      %v843 = vadd.f32 %v632, %v817
      %v844 = vadd.f32 %v637, %v822
      %v845 = vadd.f32 %v640, %v825
      %v846 = vadd.f32 %v645, %v830
      %v847 = vadd.f32 %v648, %v833
      %s848 = sadd.s32 %s225, 1
      %s849 = smul.u32 %s848, 3
      %s850 = smul.addr %s849, 4
      %s851 = scalar_lea.vmem %s211, %s850
      %v852 = vld [vmem:[%s851] sm:$0xf]
      %v853 = vld [vmem:[%s851 + $0x4] sm:$0xf]
      %v854 = vld [vmem:[%s851 + $0xc] sm:$0xf]
      %v855 = vld [vmem:[%s851 + $0x10] sm:$0xf]
      %v856 = vld [vmem:[%s851 + $0x18] sm:$0xf]
      %v857 = vld [vmem:[%s851 + $0x1c] sm:$0xf]
      %v858 = vld [vmem:[%s851 + $0x24] sm:$0xf]
      %v859 = vld [vmem:[%s851 + $0x28] sm:$0xf]
      %v860 = vld [vmem:[%s851 + $0x30] sm:$0xf]
      %v861 = vld [vmem:[%s851 + $0x34] sm:$0xf]
      %v862 = vld [vmem:[%s851 + $0x3c] sm:$0xf]
      %v863 = vld [vmem:[%s851 + $0x40] sm:$0xf]
      %s864 = scalar_lea.vmem %s1, 12
      %v865 = vld [vmem:[%s864] sm:$0xf]
      %v878 = vunpack.c.l.b16 %v852
      %v879 = vunpack.c.l.b16 %v853
      %v880 = vunpack.c.l.b16 %v854
      %v881 = vunpack.c.l.b16 %v855
      %v882 = vunpack.c.l.b16 %v856
      %v883 = vunpack.c.l.b16 %v857
      %v884 = vunpack.c.l.b16 %v858
      %v885 = vunpack.c.l.b16 %v859
      %v886 = vunpack.c.l.b16 %v860
      %v887 = vunpack.c.l.b16 %v861
      %v888 = vunpack.c.l.b16 %v862
      %v889 = vunpack.c.l.b16 %v863
      %v890 = vpack.c.b16 %v879, %v878
      %v891 = vpack.c.b16 %v881, %v880
      %v892 = vpack.c.b16 %v883, %v882
      %v893 = vpack.c.b16 %v885, %v884
      %v894 = vpack.c.b16 %v887, %v886
      %v895 = vpack.c.b16 %v889, %v888
      %v897 = vsel %vm415, %v890, 0
      %v900 = vsel %vm415, %v891, 0
      %v903 = vsel %vm415, %v892, 0
      %v906 = vsel %vm415, %v893, 0
      %v909 = vsel %vm415, %v894, 0
      %v912 = vsel %vm415, %v895, 0
      %v915 = vsel %vm434, %v865, 0
      %917 = vmatprep.subr.bf16.mxu0 0
      %918 = vmatpush1.bf16.msra.mxu0 %v915
      %919 = vmatprep.subr.bf16.mxu0 0
      %920 = vmatpush1.bf16.msra.mxu0 0
      %921 = vmatprep.subr.bf16.mxu0 0
      %922 = vmatpush1.bf16.msra.mxu0 0
      %923 = vmatprep.subr.bf16.mxu0 0
      %924 = vmatpush1.bf16.msra.mxu0 0
      %925 = vmatprep.subr.bf16.mxu0 0
      %926 = vmatpush1.bf16.msra.mxu0 0
      %927 = vmatprep.subr.bf16.mxu0 0
      %928 = vmatpush1.bf16.msra.mxu0 0
      %929 = vmatprep.subr.bf16.mxu0 0
      %930 = vmatpush1.bf16.msra.mxu0 0
      %931 = vmatprep.subr.bf16.mxu0 0
      %932 = vmatpush1.bf16.msra.mxu0 0
      %933 = vmatprep.subr.bf16.mxu0 0
      %934 = vmatpush1.bf16.msra.mxu0 0
      %935 = vmatprep.subr.bf16.mxu0 0
      %936 = vmatpush1.bf16.msra.mxu0 0
      %937 = vmatprep.subr.bf16.mxu0 0
      %938 = vmatpush1.bf16.msra.mxu0 0
      %939 = vmatprep.subr.bf16.mxu0 0
      %940 = vmatpush1.bf16.msra.mxu0 0
      %941 = vmatprep.subr.bf16.mxu0 0
      %942 = vmatpush1.bf16.msra.mxu0 0
      %943 = vmatprep.subr.bf16.mxu0 0
      %944 = vmatpush1.bf16.msra.mxu0 0
      %945 = vmatprep.subr.bf16.mxu0 0
      %946 = vmatpush1.bf16.msra.mxu0 0
      %947 = vmatprep.subr.bf16.mxu0 0
      %948 = vmatpush1.bf16.msra.mxu0 0
      %949 = vmatprep.mubr.bf16.mxu0 0
      %950 = vmatmul.mubr.bf16.gmra.mrb[0].mxu0 %v897
      %v951 = vpop.f32.mrb[0].mxu0
      %v952 = vadd.f32 0.0, %v951
      %v953 = vpop.f32.mrb[0].mxu0
      %v954 = vpop.f32.mrb[0].mxu0
      %v955 = vadd.f32 0.0, %v954
      %v956 = vpop.f32.mrb[0].mxu0
      %957 = vmatprep.mubr.bf16.mxu0 0
      %958 = vmatmul.mubr.bf16.gmra.mrb[0].mxu0 %v900
      %v959 = vpop.f32.mrb[0].mxu0
      %v960 = vadd.f32 0.0, %v959
      %v961 = vpop.f32.mrb[0].mxu0
      %v962 = vpop.f32.mrb[0].mxu0
      %v963 = vadd.f32 0.0, %v962
      %v964 = vpop.f32.mrb[0].mxu0
      %965 = vmatprep.mubr.bf16.mxu0 0
      %966 = vmatmul.mubr.bf16.gmra.mrb[0].mxu0 %v903
      %v967 = vpop.f32.mrb[0].mxu0
      %v968 = vadd.f32 0.0, %v967
      %v969 = vpop.f32.mrb[0].mxu0
      %v970 = vpop.f32.mrb[0].mxu0
      %v971 = vadd.f32 0.0, %v970
      %v972 = vpop.f32.mrb[0].mxu0
      %973 = vmatprep.mubr.bf16.mxu0 0
      %974 = vmatmul.mubr.bf16.gmra.mrb[0].mxu0 %v906
      %v975 = vpop.f32.mrb[0].mxu0
      %v976 = vadd.f32 0.0, %v975
      %v977 = vpop.f32.mrb[0].mxu0
      %v978 = vpop.f32.mrb[0].mxu0
      %v979 = vadd.f32 0.0, %v978
      %v980 = vpop.f32.mrb[0].mxu0
      %981 = vmatprep.mubr.bf16.mxu0 0
      %982 = vmatmul.mubr.bf16.gmra.mrb[0].mxu0 %v909
      %v983 = vpop.f32.mrb[0].mxu0
      %v984 = vadd.f32 0.0, %v983
      %v985 = vpop.f32.mrb[0].mxu0
      %v986 = vpop.f32.mrb[0].mxu0
      %v987 = vadd.f32 0.0, %v986
      %v988 = vpop.f32.mrb[0].mxu0
      %989 = vmatprep.mubr.bf16.mxu0 0
      %990 = vmatmul.mubr.bf16.gmra.mrb[0].mxu0 %v912
      %v991 = vpop.f32.mrb[0].mxu0
      %v992 = vadd.f32 0.0, %v991
      %v993 = vpop.f32.mrb[0].mxu0
      %v994 = vpop.f32.mrb[0].mxu0
      %v995 = vadd.f32 0.0, %v994
      %v996 = vpop.f32.mrb[0].mxu0
      %997 = vdwg.mxu0
      %v998 = vadd.f32 %v836, %v952
      %v999 = vadd.f32 %v837, %v955
      %v1000 = vadd.f32 %v838, %v960
      %v1001 = vadd.f32 %v839, %v963
      %v1002 = vadd.f32 %v840, %v968
      %v1003 = vadd.f32 %v841, %v971
      %v1004 = vadd.f32 %v842, %v976
      %v1005 = vadd.f32 %v843, %v979
      %v1006 = vadd.f32 %v844, %v984
      %v1007 = vadd.f32 %v845, %v987
      %v1008 = vadd.f32 %v846, %v992
      %v1009 = vadd.f32 %v847, %v995
      %v1010 = vld [vmem:[%s851] sm:$0xf]
      %v1011 = vld [vmem:[%s851 + $0x4] sm:$0xf]
      %v1012 = vld [vmem:[%s851 + $0x8] sm:$0x1]
      %v1013 = vld [vmem:[%s851 + $0xc] sm:$0xf]
      %v1014 = vld [vmem:[%s851 + $0x10] sm:$0xf]
      %v1015 = vld [vmem:[%s851 + $0x14] sm:$0x1]
      %v1016 = vld [vmem:[%s851 + $0x18] sm:$0xf]
      %v1017 = vld [vmem:[%s851 + $0x1c] sm:$0xf]
      %v1018 = vld [vmem:[%s851 + $0x20] sm:$0x1]
      %v1019 = vld [vmem:[%s851 + $0x24] sm:$0xf]
      %v1020 = vld [vmem:[%s851 + $0x28] sm:$0xf]
      %v1021 = vld [vmem:[%s851 + $0x2c] sm:$0x1]
      %v1022 = vld [vmem:[%s851 + $0x30] sm:$0xf]
      %v1023 = vld [vmem:[%s851 + $0x34] sm:$0xf]
      %v1024 = vld [vmem:[%s851 + $0x38] sm:$0x1]
      %v1025 = vld [vmem:[%s851 + $0x3c] sm:$0xf]
      %v1026 = vld [vmem:[%s851 + $0x40] sm:$0xf]
      %v1027 = vld [vmem:[%s851 + $0x44] sm:$0x1]
      %v1029 = vshrl.u32 %v1010, 16
      %v1031 = vrot.slane %v1029, 4
      %v1032 = vshll.u32 %v1010, 16
      %v1034 = vrot.slane %v1032, 5
      %v1035 = vor.u32 %v1031, %v1034
      %v1036 = vrot.slane %v1035, 4
      %v1038 = vshll.u32 %v1011, 16
      %v1040 = vrot.slane %v1038, 5
      %v1041 = vsel %vm250, %v1036, %v1040
      %v1042 = vshrl.u32 %v1011, 16
      %v1044 = vrot.slane %v1042, 4
      %v1045 = vor.u32 %v1044, %v1040
      %v1046 = vrot.slane %v1045, 4
      %v1048 = vshll.u32 %v1012, 16
      %v1050 = vrot.slane %v1048, 5
      %v1051 = vsel %vm250, %v1046, %v1050
      %v1053 = vshrl.u32 %v1013, 16
      %v1055 = vrot.slane %v1053, 4
      %v1056 = vshll.u32 %v1013, 16
      %v1058 = vrot.slane %v1056, 5
      %v1059 = vor.u32 %v1055, %v1058
      %v1060 = vrot.slane %v1059, 4
      %v1062 = vshll.u32 %v1014, 16
      %v1064 = vrot.slane %v1062, 5
      %v1065 = vsel %vm250, %v1060, %v1064
      %v1066 = vshrl.u32 %v1014, 16
      %v1068 = vrot.slane %v1066, 4
      %v1069 = vor.u32 %v1068, %v1064
      %v1070 = vrot.slane %v1069, 4
      %v1072 = vshll.u32 %v1015, 16
      %v1074 = vrot.slane %v1072, 5
      %v1075 = vsel %vm250, %v1070, %v1074
      %v1077 = vshrl.u32 %v1016, 16
      %v1079 = vrot.slane %v1077, 4
      %v1080 = vshll.u32 %v1016, 16
      %v1082 = vrot.slane %v1080, 5
      %v1083 = vor.u32 %v1079, %v1082
      %v1084 = vrot.slane %v1083, 4
      %v1086 = vshll.u32 %v1017, 16
      %v1088 = vrot.slane %v1086, 5
      %v1089 = vsel %vm250, %v1084, %v1088
      %v1090 = vshrl.u32 %v1017, 16
      %v1092 = vrot.slane %v1090, 4
      %v1093 = vor.u32 %v1092, %v1088
      %v1094 = vrot.slane %v1093, 4
      %v1096 = vshll.u32 %v1018, 16
      %v1098 = vrot.slane %v1096, 5
      %v1099 = vsel %vm250, %v1094, %v1098
      %v1101 = vshrl.u32 %v1019, 16
      %v1103 = vrot.slane %v1101, 4
      %v1104 = vshll.u32 %v1019, 16
      %v1106 = vrot.slane %v1104, 5
      %v1107 = vor.u32 %v1103, %v1106
      %v1108 = vrot.slane %v1107, 4
      %v1110 = vshll.u32 %v1020, 16
      %v1112 = vrot.slane %v1110, 5
      %v1113 = vsel %vm250, %v1108, %v1112
      %v1114 = vshrl.u32 %v1020, 16
      %v1116 = vrot.slane %v1114, 4
      %v1117 = vor.u32 %v1116, %v1112
      %v1118 = vrot.slane %v1117, 4
      %v1120 = vshll.u32 %v1021, 16
      %v1122 = vrot.slane %v1120, 5
      %v1123 = vsel %vm250, %v1118, %v1122
      %v1125 = vshrl.u32 %v1022, 16
      %v1127 = vrot.slane %v1125, 4
      %v1128 = vshll.u32 %v1022, 16
      %v1130 = vrot.slane %v1128, 5
      %v1131 = vor.u32 %v1127, %v1130
      %v1132 = vrot.slane %v1131, 4
      %v1134 = vshll.u32 %v1023, 16
      %v1136 = vrot.slane %v1134, 5
      %v1137 = vsel %vm250, %v1132, %v1136
      %v1138 = vshrl.u32 %v1023, 16
      %v1140 = vrot.slane %v1138, 4
      %v1141 = vor.u32 %v1140, %v1136
      %v1142 = vrot.slane %v1141, 4
      %v1144 = vshll.u32 %v1024, 16
      %v1146 = vrot.slane %v1144, 5
      %v1147 = vsel %vm250, %v1142, %v1146
      %v1149 = vshrl.u32 %v1025, 16
      %v1151 = vrot.slane %v1149, 4
      %v1152 = vshll.u32 %v1025, 16
      %v1154 = vrot.slane %v1152, 5
      %v1155 = vor.u32 %v1151, %v1154
      %v1156 = vrot.slane %v1155, 4
      %v1158 = vshll.u32 %v1026, 16
      %v1160 = vrot.slane %v1158, 5
      %v1161 = vsel %vm250, %v1156, %v1160
      %v1162 = vshrl.u32 %v1026, 16
      %v1164 = vrot.slane %v1162, 4
      %v1165 = vor.u32 %v1164, %v1160
      %v1166 = vrot.slane %v1165, 4
      %v1168 = vshll.u32 %v1027, 16
      %v1170 = vrot.slane %v1168, 5
      %v1171 = vsel %vm250, %v1166, %v1170
      %s1172 = scalar_lea.vmem %s1, 16
      %v1173 = vld [vmem:[%s1172] sm:$0xf]
      %v1174 = vunpack.c.l.b16 %v1041
      %v1175 = vunpack.c.l.b16 %v1051
      %v1176 = vunpack.c.l.b16 %v1065
      %v1177 = vunpack.c.l.b16 %v1075
      %v1178 = vunpack.c.l.b16 %v1089
      %v1179 = vunpack.c.l.b16 %v1099
      %v1180 = vunpack.c.l.b16 %v1113
      %v1181 = vunpack.c.l.b16 %v1123
      %v1182 = vunpack.c.l.b16 %v1137
      %v1183 = vunpack.c.l.b16 %v1147
      %v1184 = vunpack.c.l.b16 %v1161
      %v1185 = vunpack.c.l.b16 %v1171
      %v1186 = vpack.c.b16 %v1175, %v1174
      %v1187 = vpack.c.b16 %v1177, %v1176
      %v1188 = vpack.c.b16 %v1179, %v1178
      %v1189 = vpack.c.b16 %v1181, %v1180
      %v1190 = vpack.c.b16 %v1183, %v1182
      %v1191 = vpack.c.b16 %v1185, %v1184
      %v1193 = vsel %vm415, %v1186, 0
      %v1196 = vsel %vm415, %v1187, 0
      %v1199 = vsel %vm415, %v1188, 0
      %v1202 = vsel %vm415, %v1189, 0
      %v1205 = vsel %vm415, %v1190, 0
      %v1208 = vsel %vm415, %v1191, 0
      %v1211 = vsel %vm434, %v1173, 0
      %1213 = vmatprep.subr.bf16.mxu0 0
      %1214 = vmatpush1.bf16.msra.mxu0 %v1211
      %1215 = vmatprep.subr.bf16.mxu0 0
      %1216 = vmatpush1.bf16.msra.mxu0 0
      %1217 = vmatprep.subr.bf16.mxu0 0
      %1218 = vmatpush1.bf16.msra.mxu0 0
      %1219 = vmatprep.subr.bf16.mxu0 0
      %1220 = vmatpush1.bf16.msra.mxu0 0
      %1221 = vmatprep.subr.bf16.mxu0 0
      %1222 = vmatpush1.bf16.msra.mxu0 0
      %1223 = vmatprep.subr.bf16.mxu0 0
      %1224 = vmatpush1.bf16.msra.mxu0 0
      %1225 = vmatprep.subr.bf16.mxu0 0
      %1226 = vmatpush1.bf16.msra.mxu0 0
      %1227 = vmatprep.subr.bf16.mxu0 0
      %1228 = vmatpush1.bf16.msra.mxu0 0
      %1229 = vmatprep.subr.bf16.mxu0 0
      %1230 = vmatpush1.bf16.msra.mxu0 0
      %1231 = vmatprep.subr.bf16.mxu0 0
      %1232 = vmatpush1.bf16.msra.mxu0 0
      %1233 = vmatprep.subr.bf16.mxu0 0
      %1234 = vmatpush1.bf16.msra.mxu0 0
      %1235 = vmatprep.subr.bf16.mxu0 0
      %1236 = vmatpush1.bf16.msra.mxu0 0
      %1237 = vmatprep.subr.bf16.mxu0 0
      %1238 = vmatpush1.bf16.msra.mxu0 0
      %1239 = vmatprep.subr.bf16.mxu0 0
      %1240 = vmatpush1.bf16.msra.mxu0 0
      %1241 = vmatprep.subr.bf16.mxu0 0
      %1242 = vmatpush1.bf16.msra.mxu0 0
      %1243 = vmatprep.subr.bf16.mxu0 0
      %1244 = vmatpush1.bf16.msra.mxu0 0
      %1245 = vmatprep.mubr.bf16.mxu0 0
      %1246 = vmatmul.mubr.bf16.gmra.mrb[0].mxu0 %v1193
      %v1247 = vpop.f32.mrb[0].mxu0
      %v1248 = vadd.f32 0.0, %v1247
      %v1249 = vpop.f32.mrb[0].mxu0
      %v1250 = vpop.f32.mrb[0].mxu0
      %v1251 = vadd.f32 0.0, %v1250
      %v1252 = vpop.f32.mrb[0].mxu0
      %1253 = vmatprep.mubr.bf16.mxu0 0
      %1254 = vmatmul.mubr.bf16.gmra.mrb[0].mxu0 %v1196
      %v1255 = vpop.f32.mrb[0].mxu0
      %v1256 = vadd.f32 0.0, %v1255
      %v1257 = vpop.f32.mrb[0].mxu0
      %v1258 = vpop.f32.mrb[0].mxu0
      %v1259 = vadd.f32 0.0, %v1258
      %v1260 = vpop.f32.mrb[0].mxu0
      %1261 = vmatprep.mubr.bf16.mxu0 0
      %1262 = vmatmul.mubr.bf16.gmra.mrb[0].mxu0 %v1199
      %v1263 = vpop.f32.mrb[0].mxu0
      %v1264 = vadd.f32 0.0, %v1263
      %v1265 = vpop.f32.mrb[0].mxu0
      %v1266 = vpop.f32.mrb[0].mxu0
      %v1267 = vadd.f32 0.0, %v1266
      %v1268 = vpop.f32.mrb[0].mxu0
      %1269 = vmatprep.mubr.bf16.mxu0 0
      %1270 = vmatmul.mubr.bf16.gmra.mrb[0].mxu0 %v1202
      %v1271 = vpop.f32.mrb[0].mxu0
      %v1272 = vadd.f32 0.0, %v1271
      %v1273 = vpop.f32.mrb[0].mxu0
      %v1274 = vpop.f32.mrb[0].mxu0
      %v1275 = vadd.f32 0.0, %v1274
      %v1276 = vpop.f32.mrb[0].mxu0
      %1277 = vmatprep.mubr.bf16.mxu0 0
      %1278 = vmatmul.mubr.bf16.gmra.mrb[0].mxu0 %v1205
      %v1279 = vpop.f32.mrb[0].mxu0
      %v1280 = vadd.f32 0.0, %v1279
      %v1281 = vpop.f32.mrb[0].mxu0
      %v1282 = vpop.f32.mrb[0].mxu0
      %v1283 = vadd.f32 0.0, %v1282
      %v1284 = vpop.f32.mrb[0].mxu0
      %1285 = vmatprep.mubr.bf16.mxu0 0
      %1286 = vmatmul.mubr.bf16.gmra.mrb[0].mxu0 %v1208
      %v1287 = vpop.f32.mrb[0].mxu0
      %v1288 = vadd.f32 0.0, %v1287
      %v1289 = vpop.f32.mrb[0].mxu0
      %v1290 = vpop.f32.mrb[0].mxu0
      %v1291 = vadd.f32 0.0, %v1290
      %v1292 = vpop.f32.mrb[0].mxu0
      %1293 = vdwg.mxu0
      %v1294 = vadd.f32 %v998, %v1248
      %v1295 = vadd.f32 %v999, %v1251
      %v1296 = vadd.f32 %v1000, %v1256
      %v1297 = vadd.f32 %v1001, %v1259
      %v1298 = vadd.f32 %v1002, %v1264
      %v1299 = vadd.f32 %v1003, %v1267
      %v1300 = vadd.f32 %v1004, %v1272
      %v1301 = vadd.f32 %v1005, %v1275
      %v1302 = vadd.f32 %v1006, %v1280
      %v1303 = vadd.f32 %v1007, %v1283
      %v1304 = vadd.f32 %v1008, %v1288
      %v1305 = vadd.f32 %v1009, %v1291
      %v1306 = vld [vmem:[%s851] sm:$0xe]
      %v1307 = vld [vmem:[%s851 + $0xc] sm:$0xe]
      %v1308 = vld [vmem:[%s851 + $0x18] sm:$0xe]
      %v1309 = vld [vmem:[%s851 + $0x24] sm:$0xe]
      %v1310 = vld [vmem:[%s851 + $0x30] sm:$0xe]
      %v1311 = vld [vmem:[%s851 + $0x3c] sm:$0xe]
      %v1330 = vrot.slane %v1306, 5
      %v1331 = vrot.slane %v1330, 4
      %v1332 = vrot.slane %v1011, 5
      %v1333 = vsel %vm671, %v1331, %v1332
      %v1334 = vrot.slane %v1332, 4
      %v1335 = vrot.slane %v1012, 5
      %v1336 = vsel %vm671, %v1334, %v1335
      %v1337 = vrot.slane %v1307, 5
      %v1338 = vrot.slane %v1337, 4
      %v1339 = vrot.slane %v1014, 5
      %v1340 = vsel %vm671, %v1338, %v1339
      %v1341 = vrot.slane %v1339, 4
      %v1342 = vrot.slane %v1015, 5
      %v1343 = vsel %vm671, %v1341, %v1342
      %v1344 = vrot.slane %v1308, 5
      %v1345 = vrot.slane %v1344, 4
      %v1346 = vrot.slane %v1017, 5
      %v1347 = vsel %vm671, %v1345, %v1346
      %v1348 = vrot.slane %v1346, 4
      %v1349 = vrot.slane %v1018, 5
      %v1350 = vsel %vm671, %v1348, %v1349
      %v1351 = vrot.slane %v1309, 5
      %v1352 = vrot.slane %v1351, 4
      %v1353 = vrot.slane %v1020, 5
      %v1354 = vsel %vm671, %v1352, %v1353
      %v1355 = vrot.slane %v1353, 4
      %v1356 = vrot.slane %v1021, 5
      %v1357 = vsel %vm671, %v1355, %v1356
      %v1358 = vrot.slane %v1310, 5
      %v1359 = vrot.slane %v1358, 4
      %v1360 = vrot.slane %v1023, 5
      %v1361 = vsel %vm671, %v1359, %v1360
      %v1362 = vrot.slane %v1360, 4
      %v1363 = vrot.slane %v1024, 5
      %v1364 = vsel %vm671, %v1362, %v1363
      %v1365 = vrot.slane %v1311, 5
      %v1366 = vrot.slane %v1365, 4
      %v1367 = vrot.slane %v1026, 5
      %v1368 = vsel %vm671, %v1366, %v1367
      %v1369 = vrot.slane %v1367, 4
      %v1370 = vrot.slane %v1027, 5
      %v1371 = vsel %vm671, %v1369, %v1370
      %s1372 = scalar_lea.vmem %s1, 20
      %v1373 = vld [vmem:[%s1372] sm:$0xf]
      %v1374 = vunpack.c.l.b16 %v1333
      %v1375 = vunpack.c.l.b16 %v1336
      %v1376 = vunpack.c.l.b16 %v1340
      %v1377 = vunpack.c.l.b16 %v1343
      %v1378 = vunpack.c.l.b16 %v1347
      %v1379 = vunpack.c.l.b16 %v1350
      %v1380 = vunpack.c.l.b16 %v1354
      %v1381 = vunpack.c.l.b16 %v1357
      %v1382 = vunpack.c.l.b16 %v1361
      %v1383 = vunpack.c.l.b16 %v1364
      %v1384 = vunpack.c.l.b16 %v1368
      %v1385 = vunpack.c.l.b16 %v1371
      %v1386 = vpack.c.b16 %v1375, %v1374
      %v1387 = vpack.c.b16 %v1377, %v1376
      %v1388 = vpack.c.b16 %v1379, %v1378
      %v1389 = vpack.c.b16 %v1381, %v1380
      %v1390 = vpack.c.b16 %v1383, %v1382
      %v1391 = vpack.c.b16 %v1385, %v1384
      %v1393 = vsel %vm415, %v1386, 0
      %v1396 = vsel %vm415, %v1387, 0
      %v1399 = vsel %vm415, %v1388, 0
      %v1402 = vsel %vm415, %v1389, 0
      %v1405 = vsel %vm415, %v1390, 0
      %v1408 = vsel %vm415, %v1391, 0
      %v1411 = vsel %vm434, %v1373, 0
      %1413 = vmatprep.subr.bf16.mxu0 0
      %1414 = vmatpush1.bf16.msra.mxu0 %v1411
      %1415 = vmatprep.subr.bf16.mxu0 0
      %1416 = vmatpush1.bf16.msra.mxu0 0
      %1417 = vmatprep.subr.bf16.mxu0 0
      %1418 = vmatpush1.bf16.msra.mxu0 0
      %1419 = vmatprep.subr.bf16.mxu0 0
      %1420 = vmatpush1.bf16.msra.mxu0 0
      %1421 = vmatprep.subr.bf16.mxu0 0
      %1422 = vmatpush1.bf16.msra.mxu0 0
      %1423 = vmatprep.subr.bf16.mxu0 0
      %1424 = vmatpush1.bf16.msra.mxu0 0
      %1425 = vmatprep.subr.bf16.mxu0 0
      %1426 = vmatpush1.bf16.msra.mxu0 0
      %1427 = vmatprep.subr.bf16.mxu0 0
      %1428 = vmatpush1.bf16.msra.mxu0 0
      %1429 = vmatprep.subr.bf16.mxu0 0
      %1430 = vmatpush1.bf16.msra.mxu0 0
      %1431 = vmatprep.subr.bf16.mxu0 0
      %1432 = vmatpush1.bf16.msra.mxu0 0
      %1433 = vmatprep.subr.bf16.mxu0 0
      %1434 = vmatpush1.bf16.msra.mxu0 0
      %1435 = vmatprep.subr.bf16.mxu0 0
      %1436 = vmatpush1.bf16.msra.mxu0 0
      %1437 = vmatprep.subr.bf16.mxu0 0
      %1438 = vmatpush1.bf16.msra.mxu0 0
      %1439 = vmatprep.subr.bf16.mxu0 0
      %1440 = vmatpush1.bf16.msra.mxu0 0
      %1441 = vmatprep.subr.bf16.mxu0 0
      %1442 = vmatpush1.bf16.msra.mxu0 0
      %1443 = vmatprep.subr.bf16.mxu0 0
      %1444 = vmatpush1.bf16.msra.mxu0 0
      %1445 = vmatprep.mubr.bf16.mxu0 0
      %1446 = vmatmul.mubr.bf16.gmra.mrb[0].mxu0 %v1393
      %v1447 = vpop.f32.mrb[0].mxu0
      %v1448 = vadd.f32 0.0, %v1447
      %v1449 = vpop.f32.mrb[0].mxu0
      %v1450 = vpop.f32.mrb[0].mxu0
      %v1451 = vadd.f32 0.0, %v1450
      %v1452 = vpop.f32.mrb[0].mxu0
      %1453 = vmatprep.mubr.bf16.mxu0 0
      %1454 = vmatmul.mubr.bf16.gmra.mrb[0].mxu0 %v1396
      %v1455 = vpop.f32.mrb[0].mxu0
      %v1456 = vadd.f32 0.0, %v1455
      %v1457 = vpop.f32.mrb[0].mxu0
      %v1458 = vpop.f32.mrb[0].mxu0
      %v1459 = vadd.f32 0.0, %v1458
      %v1460 = vpop.f32.mrb[0].mxu0
      %1461 = vmatprep.mubr.bf16.mxu0 0
      %1462 = vmatmul.mubr.bf16.gmra.mrb[0].mxu0 %v1399
      %v1463 = vpop.f32.mrb[0].mxu0
      %v1464 = vadd.f32 0.0, %v1463
      %v1465 = vpop.f32.mrb[0].mxu0
      %v1466 = vpop.f32.mrb[0].mxu0
      %v1467 = vadd.f32 0.0, %v1466
      %v1468 = vpop.f32.mrb[0].mxu0
      %1469 = vmatprep.mubr.bf16.mxu0 0
      %1470 = vmatmul.mubr.bf16.gmra.mrb[0].mxu0 %v1402
      %v1471 = vpop.f32.mrb[0].mxu0
      %v1472 = vadd.f32 0.0, %v1471
      %v1473 = vpop.f32.mrb[0].mxu0
      %v1474 = vpop.f32.mrb[0].mxu0
      %v1475 = vadd.f32 0.0, %v1474
      %v1476 = vpop.f32.mrb[0].mxu0
      %1477 = vmatprep.mubr.bf16.mxu0 0
      %1478 = vmatmul.mubr.bf16.gmra.mrb[0].mxu0 %v1405
      %v1479 = vpop.f32.mrb[0].mxu0
      %v1480 = vadd.f32 0.0, %v1479
      %v1481 = vpop.f32.mrb[0].mxu0
      %v1482 = vpop.f32.mrb[0].mxu0
      %v1483 = vadd.f32 0.0, %v1482
      %v1484 = vpop.f32.mrb[0].mxu0
      %1485 = vmatprep.mubr.bf16.mxu0 0
      %1486 = vmatmul.mubr.bf16.gmra.mrb[0].mxu0 %v1408
      %v1487 = vpop.f32.mrb[0].mxu0
      %v1488 = vadd.f32 0.0, %v1487
      %v1489 = vpop.f32.mrb[0].mxu0
      %v1490 = vpop.f32.mrb[0].mxu0
      %v1491 = vadd.f32 0.0, %v1490
      %v1492 = vpop.f32.mrb[0].mxu0
      %1493 = vdwg.mxu0
      %v1494 = vadd.f32 %v1294, %v1448
      %v1495 = vadd.f32 %v1295, %v1451
      %v1496 = vadd.f32 %v1296, %v1456
      %v1497 = vadd.f32 %v1297, %v1459
      %v1498 = vadd.f32 %v1298, %v1464
      %v1499 = vadd.f32 %v1299, %v1467
      %v1500 = vadd.f32 %v1300, %v1472
      %v1501 = vadd.f32 %v1301, %v1475
      %v1502 = vadd.f32 %v1302, %v1480
      %v1503 = vadd.f32 %v1303, %v1483
      %v1504 = vadd.f32 %v1304, %v1488
      %v1505 = vadd.f32 %v1305, %v1491
      %s1506 = sadd.s32 %s225, 2
      %s1507 = smul.u32 %s1506, 3
      %s1508 = smul.addr %s1507, 4
      %s1509 = scalar_lea.vmem %s211, %s1508
      %v1510 = vld [vmem:[%s1509] sm:$0xf]
      %v1511 = vld [vmem:[%s1509 + $0x4] sm:$0xf]
      %v1512 = vld [vmem:[%s1509 + $0xc] sm:$0xf]
      %v1513 = vld [vmem:[%s1509 + $0x10] sm:$0xf]
      %v1514 = vld [vmem:[%s1509 + $0x18] sm:$0xf]
      %v1515 = vld [vmem:[%s1509 + $0x1c] sm:$0xf]
      %v1516 = vld [vmem:[%s1509 + $0x24] sm:$0xf]
      %v1517 = vld [vmem:[%s1509 + $0x28] sm:$0xf]
      %v1518 = vld [vmem:[%s1509 + $0x30] sm:$0xf]
      %v1519 = vld [vmem:[%s1509 + $0x34] sm:$0xf]
      %v1520 = vld [vmem:[%s1509 + $0x3c] sm:$0xf]
      %v1521 = vld [vmem:[%s1509 + $0x40] sm:$0xf]
      %s1522 = scalar_lea.vmem %s1, 24
      %v1523 = vld [vmem:[%s1522] sm:$0xf]
      %v1536 = vunpack.c.l.b16 %v1510
      %v1537 = vunpack.c.l.b16 %v1511
      %v1538 = vunpack.c.l.b16 %v1512
      %v1539 = vunpack.c.l.b16 %v1513
      %v1540 = vunpack.c.l.b16 %v1514
      %v1541 = vunpack.c.l.b16 %v1515
      %v1542 = vunpack.c.l.b16 %v1516
      %v1543 = vunpack.c.l.b16 %v1517
      %v1544 = vunpack.c.l.b16 %v1518
      %v1545 = vunpack.c.l.b16 %v1519
      %v1546 = vunpack.c.l.b16 %v1520
      %v1547 = vunpack.c.l.b16 %v1521
      %v1548 = vpack.c.b16 %v1537, %v1536
      %v1549 = vpack.c.b16 %v1539, %v1538
      %v1550 = vpack.c.b16 %v1541, %v1540
      %v1551 = vpack.c.b16 %v1543, %v1542
      %v1552 = vpack.c.b16 %v1545, %v1544
      %v1553 = vpack.c.b16 %v1547, %v1546
      %v1555 = vsel %vm415, %v1548, 0
      %v1558 = vsel %vm415, %v1549, 0
      %v1561 = vsel %vm415, %v1550, 0
      %v1564 = vsel %vm415, %v1551, 0
      %v1567 = vsel %vm415, %v1552, 0
      %v1570 = vsel %vm415, %v1553, 0
      %v1573 = vsel %vm434, %v1523, 0
      %1575 = vmatprep.subr.bf16.mxu0 0
      %1576 = vmatpush1.bf16.msra.mxu0 %v1573
      %1577 = vmatprep.subr.bf16.mxu0 0
      %1578 = vmatpush1.bf16.msra.mxu0 0
      %1579 = vmatprep.subr.bf16.mxu0 0
      %1580 = vmatpush1.bf16.msra.mxu0 0
      %1581 = vmatprep.subr.bf16.mxu0 0
      %1582 = vmatpush1.bf16.msra.mxu0 0
      %1583 = vmatprep.subr.bf16.mxu0 0
      %1584 = vmatpush1.bf16.msra.mxu0 0
      %1585 = vmatprep.subr.bf16.mxu0 0
      %1586 = vmatpush1.bf16.msra.mxu0 0
      %1587 = vmatprep.subr.bf16.mxu0 0
      %1588 = vmatpush1.bf16.msra.mxu0 0
      %1589 = vmatprep.subr.bf16.mxu0 0
      %1590 = vmatpush1.bf16.msra.mxu0 0
      %1591 = vmatprep.subr.bf16.mxu0 0
      %1592 = vmatpush1.bf16.msra.mxu0 0
      %1593 = vmatprep.subr.bf16.mxu0 0
      %1594 = vmatpush1.bf16.msra.mxu0 0
      %1595 = vmatprep.subr.bf16.mxu0 0
      %1596 = vmatpush1.bf16.msra.mxu0 0
      %1597 = vmatprep.subr.bf16.mxu0 0
      %1598 = vmatpush1.bf16.msra.mxu0 0
      %1599 = vmatprep.subr.bf16.mxu0 0
      %1600 = vmatpush1.bf16.msra.mxu0 0
      %1601 = vmatprep.subr.bf16.mxu0 0
      %1602 = vmatpush1.bf16.msra.mxu0 0
      %1603 = vmatprep.subr.bf16.mxu0 0
      %1604 = vmatpush1.bf16.msra.mxu0 0
      %1605 = vmatprep.subr.bf16.mxu0 0
      %1606 = vmatpush1.bf16.msra.mxu0 0
      %1607 = vmatprep.mubr.bf16.mxu0 0
      %1608 = vmatmul.mubr.bf16.gmra.mrb[0].mxu0 %v1555
      %v1609 = vpop.f32.mrb[0].mxu0
      %v1610 = vadd.f32 0.0, %v1609
      %v1611 = vpop.f32.mrb[0].mxu0
      %v1612 = vpop.f32.mrb[0].mxu0
      %v1613 = vadd.f32 0.0, %v1612
      %v1614 = vpop.f32.mrb[0].mxu0
      %1615 = vmatprep.mubr.bf16.mxu0 0
      %1616 = vmatmul.mubr.bf16.gmra.mrb[0].mxu0 %v1558
      %v1617 = vpop.f32.mrb[0].mxu0
      %v1618 = vadd.f32 0.0, %v1617
      %v1619 = vpop.f32.mrb[0].mxu0
      %v1620 = vpop.f32.mrb[0].mxu0
      %v1621 = vadd.f32 0.0, %v1620
      %v1622 = vpop.f32.mrb[0].mxu0
      %1623 = vmatprep.mubr.bf16.mxu0 0
      %1624 = vmatmul.mubr.bf16.gmra.mrb[0].mxu0 %v1561
      %v1625 = vpop.f32.mrb[0].mxu0
      %v1626 = vadd.f32 0.0, %v1625
      %v1627 = vpop.f32.mrb[0].mxu0
      %v1628 = vpop.f32.mrb[0].mxu0
      %v1629 = vadd.f32 0.0, %v1628
      %v1630 = vpop.f32.mrb[0].mxu0
      %1631 = vmatprep.mubr.bf16.mxu0 0
      %1632 = vmatmul.mubr.bf16.gmra.mrb[0].mxu0 %v1564
      %v1633 = vpop.f32.mrb[0].mxu0
      %v1634 = vadd.f32 0.0, %v1633
      %v1635 = vpop.f32.mrb[0].mxu0
      %v1636 = vpop.f32.mrb[0].mxu0
      %v1637 = vadd.f32 0.0, %v1636
      %v1638 = vpop.f32.mrb[0].mxu0
      %1639 = vmatprep.mubr.bf16.mxu0 0
      %1640 = vmatmul.mubr.bf16.gmra.mrb[0].mxu0 %v1567
      %v1641 = vpop.f32.mrb[0].mxu0
      %v1642 = vadd.f32 0.0, %v1641
      %v1643 = vpop.f32.mrb[0].mxu0
      %v1644 = vpop.f32.mrb[0].mxu0
      %v1645 = vadd.f32 0.0, %v1644
      %v1646 = vpop.f32.mrb[0].mxu0
      %1647 = vmatprep.mubr.bf16.mxu0 0
      %1648 = vmatmul.mubr.bf16.gmra.mrb[0].mxu0 %v1570
      %v1649 = vpop.f32.mrb[0].mxu0
      %v1650 = vadd.f32 0.0, %v1649
      %v1651 = vpop.f32.mrb[0].mxu0
      %v1652 = vpop.f32.mrb[0].mxu0
      %v1653 = vadd.f32 0.0, %v1652
      %v1654 = vpop.f32.mrb[0].mxu0
      %1655 = vdwg.mxu0
      %v1656 = vadd.f32 %v1494, %v1610
      %v1657 = vadd.f32 %v1495, %v1613
      %v1658 = vadd.f32 %v1496, %v1618
      %v1659 = vadd.f32 %v1497, %v1621
      %v1660 = vadd.f32 %v1498, %v1626
      %v1661 = vadd.f32 %v1499, %v1629
      %v1662 = vadd.f32 %v1500, %v1634
      %v1663 = vadd.f32 %v1501, %v1637
      %v1664 = vadd.f32 %v1502, %v1642
      %v1665 = vadd.f32 %v1503, %v1645
      %v1666 = vadd.f32 %v1504, %v1650
      %v1667 = vadd.f32 %v1505, %v1653
      %v1668 = vld [vmem:[%s1509] sm:$0xf]
      %v1669 = vld [vmem:[%s1509 + $0x4] sm:$0xf]
      %v1670 = vld [vmem:[%s1509 + $0x8] sm:$0x1]
      %v1671 = vld [vmem:[%s1509 + $0xc] sm:$0xf]
      %v1672 = vld [vmem:[%s1509 + $0x10] sm:$0xf]
      %v1673 = vld [vmem:[%s1509 + $0x14] sm:$0x1]
      %v1674 = vld [vmem:[%s1509 + $0x18] sm:$0xf]
      %v1675 = vld [vmem:[%s1509 + $0x1c] sm:$0xf]
      %v1676 = vld [vmem:[%s1509 + $0x20] sm:$0x1]
      %v1677 = vld [vmem:[%s1509 + $0x24] sm:$0xf]
      %v1678 = vld [vmem:[%s1509 + $0x28] sm:$0xf]
      %v1679 = vld [vmem:[%s1509 + $0x2c] sm:$0x1]
      %v1680 = vld [vmem:[%s1509 + $0x30] sm:$0xf]
      %v1681 = vld [vmem:[%s1509 + $0x34] sm:$0xf]
      %v1682 = vld [vmem:[%s1509 + $0x38] sm:$0x1]
      %v1683 = vld [vmem:[%s1509 + $0x3c] sm:$0xf]
      %v1684 = vld [vmem:[%s1509 + $0x40] sm:$0xf]
      %v1685 = vld [vmem:[%s1509 + $0x44] sm:$0x1]
      %v1687 = vshrl.u32 %v1668, 16
      %v1689 = vrot.slane %v1687, 4
      %v1690 = vshll.u32 %v1668, 16
      %v1692 = vrot.slane %v1690, 5
      %v1693 = vor.u32 %v1689, %v1692
      %v1694 = vrot.slane %v1693, 4
      %v1696 = vshll.u32 %v1669, 16
      %v1698 = vrot.slane %v1696, 5
      %v1699 = vsel %vm250, %v1694, %v1698
      %v1700 = vshrl.u32 %v1669, 16
      %v1702 = vrot.slane %v1700, 4
      %v1703 = vor.u32 %v1702, %v1698
      %v1704 = vrot.slane %v1703, 4
      %v1706 = vshll.u32 %v1670, 16
      %v1708 = vrot.slane %v1706, 5
      %v1709 = vsel %vm250, %v1704, %v1708
      %v1711 = vshrl.u32 %v1671, 16
      %v1713 = vrot.slane %v1711, 4
      %v1714 = vshll.u32 %v1671, 16
      %v1716 = vrot.slane %v1714, 5
      %v1717 = vor.u32 %v1713, %v1716
      %v1718 = vrot.slane %v1717, 4
      %v1720 = vshll.u32 %v1672, 16
      %v1722 = vrot.slane %v1720, 5
      %v1723 = vsel %vm250, %v1718, %v1722
      %v1724 = vshrl.u32 %v1672, 16
      %v1726 = vrot.slane %v1724, 4
      %v1727 = vor.u32 %v1726, %v1722
      %v1728 = vrot.slane %v1727, 4
      %v1730 = vshll.u32 %v1673, 16
      %v1732 = vrot.slane %v1730, 5
      %v1733 = vsel %vm250, %v1728, %v1732
      %v1735 = vshrl.u32 %v1674, 16
      %v1737 = vrot.slane %v1735, 4
      %v1738 = vshll.u32 %v1674, 16
      %v1740 = vrot.slane %v1738, 5
      %v1741 = vor.u32 %v1737, %v1740
      %v1742 = vrot.slane %v1741, 4
      %v1744 = vshll.u32 %v1675, 16
      %v1746 = vrot.slane %v1744, 5
      %v1747 = vsel %vm250, %v1742, %v1746
      %v1748 = vshrl.u32 %v1675, 16
      %v1750 = vrot.slane %v1748, 4
      %v1751 = vor.u32 %v1750, %v1746
      %v1752 = vrot.slane %v1751, 4
      %v1754 = vshll.u32 %v1676, 16
      %v1756 = vrot.slane %v1754, 5
      %v1757 = vsel %vm250, %v1752, %v1756
      %v1759 = vshrl.u32 %v1677, 16
      %v1761 = vrot.slane %v1759, 4
      %v1762 = vshll.u32 %v1677, 16
      %v1764 = vrot.slane %v1762, 5
      %v1765 = vor.u32 %v1761, %v1764
      %v1766 = vrot.slane %v1765, 4
      %v1768 = vshll.u32 %v1678, 16
      %v1770 = vrot.slane %v1768, 5
      %v1771 = vsel %vm250, %v1766, %v1770
      %v1772 = vshrl.u32 %v1678, 16
      %v1774 = vrot.slane %v1772, 4
      %v1775 = vor.u32 %v1774, %v1770
      %v1776 = vrot.slane %v1775, 4
      %v1778 = vshll.u32 %v1679, 16
      %v1780 = vrot.slane %v1778, 5
      %v1781 = vsel %vm250, %v1776, %v1780
      %v1783 = vshrl.u32 %v1680, 16
      %v1785 = vrot.slane %v1783, 4
      %v1786 = vshll.u32 %v1680, 16
      %v1788 = vrot.slane %v1786, 5
      %v1789 = vor.u32 %v1785, %v1788
      %v1790 = vrot.slane %v1789, 4
      %v1792 = vshll.u32 %v1681, 16
      %v1794 = vrot.slane %v1792, 5
      %v1795 = vsel %vm250, %v1790, %v1794
      %v1796 = vshrl.u32 %v1681, 16
      %v1798 = vrot.slane %v1796, 4
      %v1799 = vor.u32 %v1798, %v1794
      %v1800 = vrot.slane %v1799, 4
      %v1802 = vshll.u32 %v1682, 16
      %v1804 = vrot.slane %v1802, 5
      %v1805 = vsel %vm250, %v1800, %v1804
      %v1807 = vshrl.u32 %v1683, 16
      %v1809 = vrot.slane %v1807, 4
      %v1810 = vshll.u32 %v1683, 16
      %v1812 = vrot.slane %v1810, 5
      %v1813 = vor.u32 %v1809, %v1812
      %v1814 = vrot.slane %v1813, 4
      %v1816 = vshll.u32 %v1684, 16
      %v1818 = vrot.slane %v1816, 5
      %v1819 = vsel %vm250, %v1814, %v1818
      %v1820 = vshrl.u32 %v1684, 16
      %v1822 = vrot.slane %v1820, 4
      %v1823 = vor.u32 %v1822, %v1818
      %v1824 = vrot.slane %v1823, 4
      %v1826 = vshll.u32 %v1685, 16
      %v1828 = vrot.slane %v1826, 5
      %v1829 = vsel %vm250, %v1824, %v1828
      %s1830 = scalar_lea.vmem %s1, 28
      %v1831 = vld [vmem:[%s1830] sm:$0xf]
      %v1832 = vunpack.c.l.b16 %v1699
      %v1833 = vunpack.c.l.b16 %v1709
      %v1834 = vunpack.c.l.b16 %v1723
      %v1835 = vunpack.c.l.b16 %v1733
      %v1836 = vunpack.c.l.b16 %v1747
      %v1837 = vunpack.c.l.b16 %v1757
      %v1838 = vunpack.c.l.b16 %v1771
      %v1839 = vunpack.c.l.b16 %v1781
      %v1840 = vunpack.c.l.b16 %v1795
      %v1841 = vunpack.c.l.b16 %v1805
      %v1842 = vunpack.c.l.b16 %v1819
      %v1843 = vunpack.c.l.b16 %v1829
      %v1844 = vpack.c.b16 %v1833, %v1832
      %v1845 = vpack.c.b16 %v1835, %v1834
      %v1846 = vpack.c.b16 %v1837, %v1836
      %v1847 = vpack.c.b16 %v1839, %v1838
      %v1848 = vpack.c.b16 %v1841, %v1840
      %v1849 = vpack.c.b16 %v1843, %v1842
      %v1851 = vsel %vm415, %v1844, 0
      %v1854 = vsel %vm415, %v1845, 0
      %v1857 = vsel %vm415, %v1846, 0
      %v1860 = vsel %vm415, %v1847, 0
      %v1863 = vsel %vm415, %v1848, 0
      %v1866 = vsel %vm415, %v1849, 0
      %v1869 = vsel %vm434, %v1831, 0
      %1871 = vmatprep.subr.bf16.mxu0 0
      %1872 = vmatpush1.bf16.msra.mxu0 %v1869
      %1873 = vmatprep.subr.bf16.mxu0 0
      %1874 = vmatpush1.bf16.msra.mxu0 0
      %1875 = vmatprep.subr.bf16.mxu0 0
      %1876 = vmatpush1.bf16.msra.mxu0 0
      %1877 = vmatprep.subr.bf16.mxu0 0
      %1878 = vmatpush1.bf16.msra.mxu0 0
      %1879 = vmatprep.subr.bf16.mxu0 0
      %1880 = vmatpush1.bf16.msra.mxu0 0
      %1881 = vmatprep.subr.bf16.mxu0 0
      %1882 = vmatpush1.bf16.msra.mxu0 0
      %1883 = vmatprep.subr.bf16.mxu0 0
      %1884 = vmatpush1.bf16.msra.mxu0 0
      %1885 = vmatprep.subr.bf16.mxu0 0
      %1886 = vmatpush1.bf16.msra.mxu0 0
      %1887 = vmatprep.subr.bf16.mxu0 0
      %1888 = vmatpush1.bf16.msra.mxu0 0
      %1889 = vmatprep.subr.bf16.mxu0 0
      %1890 = vmatpush1.bf16.msra.mxu0 0
      %1891 = vmatprep.subr.bf16.mxu0 0
      %1892 = vmatpush1.bf16.msra.mxu0 0
      %1893 = vmatprep.subr.bf16.mxu0 0
      %1894 = vmatpush1.bf16.msra.mxu0 0
      %1895 = vmatprep.subr.bf16.mxu0 0
      %1896 = vmatpush1.bf16.msra.mxu0 0
      %1897 = vmatprep.subr.bf16.mxu0 0
      %1898 = vmatpush1.bf16.msra.mxu0 0
      %1899 = vmatprep.subr.bf16.mxu0 0
      %1900 = vmatpush1.bf16.msra.mxu0 0
      %1901 = vmatprep.subr.bf16.mxu0 0
      %1902 = vmatpush1.bf16.msra.mxu0 0
      %1903 = vmatprep.mubr.bf16.mxu0 0
      %1904 = vmatmul.mubr.bf16.gmra.mrb[0].mxu0 %v1851
      %v1905 = vpop.f32.mrb[0].mxu0
      %v1906 = vadd.f32 0.0, %v1905
      %v1907 = vpop.f32.mrb[0].mxu0
      %v1908 = vpop.f32.mrb[0].mxu0
      %v1909 = vadd.f32 0.0, %v1908
      %v1910 = vpop.f32.mrb[0].mxu0
      %1911 = vmatprep.mubr.bf16.mxu0 0
      %1912 = vmatmul.mubr.bf16.gmra.mrb[0].mxu0 %v1854
      %v1913 = vpop.f32.mrb[0].mxu0
      %v1914 = vadd.f32 0.0, %v1913
      %v1915 = vpop.f32.mrb[0].mxu0
      %v1916 = vpop.f32.mrb[0].mxu0
      %v1917 = vadd.f32 0.0, %v1916
      %v1918 = vpop.f32.mrb[0].mxu0
      %1919 = vmatprep.mubr.bf16.mxu0 0
      %1920 = vmatmul.mubr.bf16.gmra.mrb[0].mxu0 %v1857
      %v1921 = vpop.f32.mrb[0].mxu0
      %v1922 = vadd.f32 0.0, %v1921
      %v1923 = vpop.f32.mrb[0].mxu0
      %v1924 = vpop.f32.mrb[0].mxu0
      %v1925 = vadd.f32 0.0, %v1924
      %v1926 = vpop.f32.mrb[0].mxu0
      %1927 = vmatprep.mubr.bf16.mxu0 0
      %1928 = vmatmul.mubr.bf16.gmra.mrb[0].mxu0 %v1860
      %v1929 = vpop.f32.mrb[0].mxu0
      %v1930 = vadd.f32 0.0, %v1929
      %v1931 = vpop.f32.mrb[0].mxu0
      %v1932 = vpop.f32.mrb[0].mxu0
      %v1933 = vadd.f32 0.0, %v1932
      %v1934 = vpop.f32.mrb[0].mxu0
      %1935 = vmatprep.mubr.bf16.mxu0 0
      %1936 = vmatmul.mubr.bf16.gmra.mrb[0].mxu0 %v1863
      %v1937 = vpop.f32.mrb[0].mxu0
      %v1938 = vadd.f32 0.0, %v1937
      %v1939 = vpop.f32.mrb[0].mxu0
      %v1940 = vpop.f32.mrb[0].mxu0
      %v1941 = vadd.f32 0.0, %v1940
      %v1942 = vpop.f32.mrb[0].mxu0
      %1943 = vmatprep.mubr.bf16.mxu0 0
      %1944 = vmatmul.mubr.bf16.gmra.mrb[0].mxu0 %v1866
      %v1945 = vpop.f32.mrb[0].mxu0
      %v1946 = vadd.f32 0.0, %v1945
      %v1947 = vpop.f32.mrb[0].mxu0
      %v1948 = vpop.f32.mrb[0].mxu0
      %v1949 = vadd.f32 0.0, %v1948
      %v1950 = vpop.f32.mrb[0].mxu0
      %1951 = vdwg.mxu0
      %v1952 = vadd.f32 %v1656, %v1906
      %v1953 = vadd.f32 %v1657, %v1909
      %v1954 = vadd.f32 %v1658, %v1914
      %v1955 = vadd.f32 %v1659, %v1917
      %v1956 = vadd.f32 %v1660, %v1922
      %v1957 = vadd.f32 %v1661, %v1925
      %v1958 = vadd.f32 %v1662, %v1930
      %v1959 = vadd.f32 %v1663, %v1933
      %v1960 = vadd.f32 %v1664, %v1938
      %v1961 = vadd.f32 %v1665, %v1941
      %v1962 = vadd.f32 %v1666, %v1946
      %v1963 = vadd.f32 %v1667, %v1949
      %v1964 = vld [vmem:[%s1509] sm:$0xe]
      %v1965 = vld [vmem:[%s1509 + $0xc] sm:$0xe]
      %v1966 = vld [vmem:[%s1509 + $0x18] sm:$0xe]
      %v1967 = vld [vmem:[%s1509 + $0x24] sm:$0xe]
      %v1968 = vld [vmem:[%s1509 + $0x30] sm:$0xe]
      %v1969 = vld [vmem:[%s1509 + $0x3c] sm:$0xe]
      %v1988 = vrot.slane %v1964, 5
      %v1989 = vrot.slane %v1988, 4
      %v1990 = vrot.slane %v1669, 5
      %v1991 = vsel %vm671, %v1989, %v1990
      %v1992 = vrot.slane %v1990, 4
      %v1993 = vrot.slane %v1670, 5
      %v1994 = vsel %vm671, %v1992, %v1993
      %v1995 = vrot.slane %v1965, 5
      %v1996 = vrot.slane %v1995, 4
      %v1997 = vrot.slane %v1672, 5
      %v1998 = vsel %vm671, %v1996, %v1997
      %v1999 = vrot.slane %v1997, 4
      %v2000 = vrot.slane %v1673, 5
      %v2001 = vsel %vm671, %v1999, %v2000
      %v2002 = vrot.slane %v1966, 5
      %v2003 = vrot.slane %v2002, 4
      %v2004 = vrot.slane %v1675, 5
      %v2005 = vsel %vm671, %v2003, %v2004
      %v2006 = vrot.slane %v2004, 4
      %v2007 = vrot.slane %v1676, 5
      %v2008 = vsel %vm671, %v2006, %v2007
      %v2009 = vrot.slane %v1967, 5
      %v2010 = vrot.slane %v2009, 4
      %v2011 = vrot.slane %v1678, 5
      %v2012 = vsel %vm671, %v2010, %v2011
      %v2013 = vrot.slane %v2011, 4
      %v2014 = vrot.slane %v1679, 5
      %v2015 = vsel %vm671, %v2013, %v2014
      %v2016 = vrot.slane %v1968, 5
      %v2017 = vrot.slane %v2016, 4
      %v2018 = vrot.slane %v1681, 5
      %v2019 = vsel %vm671, %v2017, %v2018
      %v2020 = vrot.slane %v2018, 4
      %v2021 = vrot.slane %v1682, 5
      %v2022 = vsel %vm671, %v2020, %v2021
      %v2023 = vrot.slane %v1969, 5
      %v2024 = vrot.slane %v2023, 4
      %v2025 = vrot.slane %v1684, 5
      %v2026 = vsel %vm671, %v2024, %v2025
      %v2027 = vrot.slane %v2025, 4
      %v2028 = vrot.slane %v1685, 5
      %v2029 = vsel %vm671, %v2027, %v2028
      %s2030 = scalar_lea.vmem %s1, 32
      %v2031 = vld [vmem:[%s2030] sm:$0xf]
      %v2032 = vunpack.c.l.b16 %v1991
      %v2033 = vunpack.c.l.b16 %v1994
      %v2034 = vunpack.c.l.b16 %v1998
      %v2035 = vunpack.c.l.b16 %v2001
      %v2036 = vunpack.c.l.b16 %v2005
      %v2037 = vunpack.c.l.b16 %v2008
      %v2038 = vunpack.c.l.b16 %v2012
      %v2039 = vunpack.c.l.b16 %v2015
      %v2040 = vunpack.c.l.b16 %v2019
      %v2041 = vunpack.c.l.b16 %v2022
      %v2042 = vunpack.c.l.b16 %v2026
      %v2043 = vunpack.c.l.b16 %v2029
      %v2044 = vpack.c.b16 %v2033, %v2032
      %v2045 = vpack.c.b16 %v2035, %v2034
      %v2046 = vpack.c.b16 %v2037, %v2036
      %v2047 = vpack.c.b16 %v2039, %v2038
      %v2048 = vpack.c.b16 %v2041, %v2040
      %v2049 = vpack.c.b16 %v2043, %v2042
      %v2051 = vsel %vm415, %v2044, 0
      %v2054 = vsel %vm415, %v2045, 0
      %v2057 = vsel %vm415, %v2046, 0
      %v2060 = vsel %vm415, %v2047, 0
      %v2063 = vsel %vm415, %v2048, 0
      %v2066 = vsel %vm415, %v2049, 0
      %v2069 = vsel %vm434, %v2031, 0
      %2071 = vmatprep.subr.bf16.mxu0 0
      %2072 = vmatpush1.bf16.msra.mxu0 %v2069
      %2073 = vmatprep.subr.bf16.mxu0 0
      %2074 = vmatpush1.bf16.msra.mxu0 0
      %2075 = vmatprep.subr.bf16.mxu0 0
      %2076 = vmatpush1.bf16.msra.mxu0 0
      %2077 = vmatprep.subr.bf16.mxu0 0
      %2078 = vmatpush1.bf16.msra.mxu0 0
      %2079 = vmatprep.subr.bf16.mxu0 0
      %2080 = vmatpush1.bf16.msra.mxu0 0
      %2081 = vmatprep.subr.bf16.mxu0 0
      %2082 = vmatpush1.bf16.msra.mxu0 0
      %2083 = vmatprep.subr.bf16.mxu0 0
      %2084 = vmatpush1.bf16.msra.mxu0 0
      %2085 = vmatprep.subr.bf16.mxu0 0
      %2086 = vmatpush1.bf16.msra.mxu0 0
      %2087 = vmatprep.subr.bf16.mxu0 0
      %2088 = vmatpush1.bf16.msra.mxu0 0
      %2089 = vmatprep.subr.bf16.mxu0 0
      %2090 = vmatpush1.bf16.msra.mxu0 0
      %2091 = vmatprep.subr.bf16.mxu0 0
      %2092 = vmatpush1.bf16.msra.mxu0 0
      %2093 = vmatprep.subr.bf16.mxu0 0
      %2094 = vmatpush1.bf16.msra.mxu0 0
      %2095 = vmatprep.subr.bf16.mxu0 0
      %2096 = vmatpush1.bf16.msra.mxu0 0
      %2097 = vmatprep.subr.bf16.mxu0 0
      %2098 = vmatpush1.bf16.msra.mxu0 0
      %2099 = vmatprep.subr.bf16.mxu0 0
      %2100 = vmatpush1.bf16.msra.mxu0 0
      %2101 = vmatprep.subr.bf16.mxu0 0
      %2102 = vmatpush1.bf16.msra.mxu0 0
      %2103 = vmatprep.mubr.bf16.mxu0 0
      %2104 = vmatmul.mubr.bf16.gmra.mrb[0].mxu0 %v2051
      %v2105 = vpop.f32.mrb[0].mxu0
      %v2106 = vadd.f32 0.0, %v2105
      %v2107 = vpop.f32.mrb[0].mxu0
      %v2108 = vpop.f32.mrb[0].mxu0
      %v2109 = vadd.f32 0.0, %v2108
      %v2110 = vpop.f32.mrb[0].mxu0
      %2111 = vmatprep.mubr.bf16.mxu0 0
      %2112 = vmatmul.mubr.bf16.gmra.mrb[0].mxu0 %v2054
      %v2113 = vpop.f32.mrb[0].mxu0
      %v2114 = vadd.f32 0.0, %v2113
      %v2115 = vpop.f32.mrb[0].mxu0
      %v2116 = vpop.f32.mrb[0].mxu0
      %v2117 = vadd.f32 0.0, %v2116
      %v2118 = vpop.f32.mrb[0].mxu0
      %2119 = vmatprep.mubr.bf16.mxu0 0
      %2120 = vmatmul.mubr.bf16.gmra.mrb[0].mxu0 %v2057
      %v2121 = vpop.f32.mrb[0].mxu0
      %v2122 = vadd.f32 0.0, %v2121
      %v2123 = vpop.f32.mrb[0].mxu0
      %v2124 = vpop.f32.mrb[0].mxu0
      %v2125 = vadd.f32 0.0, %v2124
      %v2126 = vpop.f32.mrb[0].mxu0
      %2127 = vmatprep.mubr.bf16.mxu0 0
      %2128 = vmatmul.mubr.bf16.gmra.mrb[0].mxu0 %v2060
      %v2129 = vpop.f32.mrb[0].mxu0
      %v2130 = vadd.f32 0.0, %v2129
      %v2131 = vpop.f32.mrb[0].mxu0
      %v2132 = vpop.f32.mrb[0].mxu0
      %v2133 = vadd.f32 0.0, %v2132
      %v2134 = vpop.f32.mrb[0].mxu0
      %2135 = vmatprep.mubr.bf16.mxu0 0
      %2136 = vmatmul.mubr.bf16.gmra.mrb[0].mxu0 %v2063
      %v2137 = vpop.f32.mrb[0].mxu0
      %v2138 = vadd.f32 0.0, %v2137
      %v2139 = vpop.f32.mrb[0].mxu0
      %v2140 = vpop.f32.mrb[0].mxu0
      %v2141 = vadd.f32 0.0, %v2140
      %v2142 = vpop.f32.mrb[0].mxu0
      %2143 = vmatprep.mubr.bf16.mxu0 0
      %2144 = vmatmul.mubr.bf16.gmra.mrb[0].mxu0 %v2066
      %v2145 = vpop.f32.mrb[0].mxu0
      %v2146 = vadd.f32 0.0, %v2145
      %v2147 = vpop.f32.mrb[0].mxu0
      %v2148 = vpop.f32.mrb[0].mxu0
      %v2149 = vadd.f32 0.0, %v2148
      %v2150 = vpop.f32.mrb[0].mxu0
      %2151 = vdwg.mxu0
      %v2152 = vadd.f32 %v1952, %v2106
      %v2153 = vadd.f32 %v1953, %v2109
      %v2154 = vadd.f32 %v1954, %v2114
      %v2155 = vadd.f32 %v1955, %v2117
      %v2156 = vadd.f32 %v1956, %v2122
      %v2157 = vadd.f32 %v1957, %v2125
      %v2158 = vadd.f32 %v1958, %v2130
      %v2159 = vadd.f32 %v1959, %v2133
      %v2160 = vadd.f32 %v1960, %v2138
      %v2161 = vadd.f32 %v1961, %v2141
      %v2162 = vadd.f32 %v1962, %v2146
      %v2163 = vadd.f32 %v1963, %v2149
      %v2164 = vlaneseq
      %v2165 = vshrl.u32 %v2164, 7
      %v2166 = vsub.s32 0, %v2165
      %v2167 = vrot.slane %v224, %v2166
      %v2168 = vmul.f32 %v2152, %v2167
      %v2169 = vmul.f32 %v2153, %v2167
      %v2170 = vmul.f32 %v2154, %v2167
      %v2171 = vmul.f32 %v2155, %v2167
      %v2172 = vmul.f32 %v2156, %v2167
      %v2173 = vmul.f32 %v2157, %v2167
      %v2174 = vmul.f32 %v2158, %v2167
      %v2175 = vmul.f32 %v2159, %v2167
      %v2176 = vmul.f32 %v2160, %v2167
      %v2177 = vmul.f32 %v2161, %v2167
      %v2178 = vmul.f32 %v2162, %v2167
      %v2179 = vmul.f32 %v2163, %v2167
      %v2180 = vlaneseq
      %v2181 = vshrl.u32 %v2180, 7
      %v2182 = vsub.s32 1, %v2181
      %v2183 = vrot.slane %v224, %v2182
      %v2184 = vadd.f32 %v2168, %v2183
      %v2185 = vadd.f32 %v2169, %v2183
      %v2186 = vadd.f32 %v2170, %v2183
      %v2187 = vadd.f32 %v2171, %v2183
      %v2188 = vadd.f32 %v2172, %v2183
      %v2189 = vadd.f32 %v2173, %v2183
      %v2190 = vadd.f32 %v2174, %v2183
      %v2191 = vadd.f32 %v2175, %v2183
      %v2192 = vadd.f32 %v2176, %v2183
      %v2193 = vadd.f32 %v2177, %v2183
      %v2194 = vadd.f32 %v2178, %v2183
      %v2195 = vadd.f32 %v2179, %v2183
      %v2196 = vmax.f32 %v2184, 0.0
      %v2197 = vmax.f32 %v2185, 0.0
      %v2198 = vmax.f32 %v2186, 0.0
      %v2199 = vmax.f32 %v2187, 0.0
      %v2200 = vmax.f32 %v2188, 0.0
      %v2201 = vmax.f32 %v2189, 0.0
      %v2202 = vmax.f32 %v2190, 0.0
      %v2203 = vmax.f32 %v2191, 0.0
      %v2204 = vmax.f32 %v2192, 0.0
      %v2205 = vmax.f32 %v2193, 0.0
      %v2206 = vmax.f32 %v2194, 0.0
      %v2207 = vmax.f32 %v2195, 0.0
      %v2208 = vpack.c.bf16 %v2197, %v2196
      %v2209 = vpack.c.bf16 %v2199, %v2198
      %v2210 = vpack.c.bf16 %v2201, %v2200
      %v2211 = vpack.c.bf16 %v2203, %v2202
      %v2212 = vpack.c.bf16 %v2205, %v2204
      %v2213 = vpack.c.bf16 %v2207, %v2206
      %v2220 = vunpack.c.l.b16 %v2208
      %v2221 = vunpack.c.h.b16 %v2208
      %v2222 = vunpack.c.l.b16 %v2209
      %v2223 = vunpack.c.h.b16 %v2209
      %v2224 = vunpack.c.l.b16 %v2210
      %v2225 = vunpack.c.h.b16 %v2210
      %v2226 = vunpack.c.l.b16 %v2211
      %v2227 = vunpack.c.h.b16 %v2211
      %v2228 = vunpack.c.l.b16 %v2212
      %v2229 = vunpack.c.h.b16 %v2212
      %v2230 = vunpack.c.l.b16 %v2213
      %v2231 = vunpack.c.h.b16 %v2213
      %v2232 = vpack.c.b16 %v2220, %v2220
      %v2233 = vpack.c.b16 %v2221, %v2221
      %v2234 = vpack.c.b16 %v2222, %v2222
      %v2235 = vpack.c.b16 %v2223, %v2223
      %v2236 = vpack.c.b16 %v2224, %v2224
      %v2237 = vpack.c.b16 %v2225, %v2225
      %v2238 = vpack.c.b16 %v2226, %v2226
      %v2239 = vpack.c.b16 %v2227, %v2227
      %v2240 = vpack.c.b16 %v2228, %v2228
      %v2241 = vpack.c.b16 %v2229, %v2229
      %v2242 = vpack.c.b16 %v2230, %v2230
      %v2243 = vpack.c.b16 %v2231, %v2231
      %vm2244 = vsmask.f32 256
      %vm2245 = vsmask.f32 4368
      %vm2246 = vmor %vm2244, %vm2245
      %v2248 = vshrl.u32 %v2232, 16
      %v2250 = vrot.slane %v2248, 7
      %v2251 = vshll.u32 %v2232, 16
      %v2253 = vor.u32 %v2250, %v2251
      %v2254 = vrot.slane %v2250, 4
      %v2256 = vshrl.u32 %v2233, 16
      %v2258 = vrot.slane %v2256, 7
      %v2259 = vshll.u32 %v2233, 16
      %v2261 = vor.u32 %v2258, %v2259
      %v2262 = vsel %vm2246, %v2254, %v2261
      %v2263 = vrot.slane %v2258, 4
      %v2265 = vshrl.u32 %v2234, 16
      %v2267 = vrot.slane %v2265, 7
      %v2268 = vshll.u32 %v2234, 16
      %v2270 = vor.u32 %v2267, %v2268
      %v2271 = vrot.slane %v2267, 4
      %v2273 = vshrl.u32 %v2235, 16
      %v2275 = vrot.slane %v2273, 7
      %v2276 = vshll.u32 %v2235, 16
      %v2278 = vor.u32 %v2275, %v2276
      %v2279 = vsel %vm2246, %v2271, %v2278
      %v2280 = vrot.slane %v2275, 4
      %v2282 = vshrl.u32 %v2236, 16
      %v2284 = vrot.slane %v2282, 7
      %v2285 = vshll.u32 %v2236, 16
      %v2287 = vor.u32 %v2284, %v2285
      %v2288 = vrot.slane %v2284, 4
      %v2290 = vshrl.u32 %v2237, 16
      %v2292 = vrot.slane %v2290, 7
      %v2293 = vshll.u32 %v2237, 16
      %v2295 = vor.u32 %v2292, %v2293
      %v2296 = vsel %vm2246, %v2288, %v2295
      %v2297 = vrot.slane %v2292, 4
      %v2299 = vshrl.u32 %v2238, 16
      %v2301 = vrot.slane %v2299, 7
      %v2302 = vshll.u32 %v2238, 16
      %v2304 = vor.u32 %v2301, %v2302
      %v2305 = vrot.slane %v2301, 4
      %v2307 = vshrl.u32 %v2239, 16
      %v2309 = vrot.slane %v2307, 7
      %v2310 = vshll.u32 %v2239, 16
      %v2312 = vor.u32 %v2309, %v2310
      %v2313 = vsel %vm2246, %v2305, %v2312
      %v2314 = vrot.slane %v2309, 4
      %v2316 = vshrl.u32 %v2240, 16
      %v2318 = vrot.slane %v2316, 7
      %v2319 = vshll.u32 %v2240, 16
      %v2321 = vor.u32 %v2318, %v2319
      %v2322 = vrot.slane %v2318, 4
      %v2324 = vshrl.u32 %v2241, 16
      %v2326 = vrot.slane %v2324, 7
      %v2327 = vshll.u32 %v2241, 16
      %v2329 = vor.u32 %v2326, %v2327
      %v2330 = vsel %vm2246, %v2322, %v2329
      %v2331 = vrot.slane %v2326, 4
      %v2333 = vshrl.u32 %v2242, 16
      %v2335 = vrot.slane %v2333, 7
      %v2336 = vshll.u32 %v2242, 16
      %v2338 = vor.u32 %v2335, %v2336
      %v2339 = vrot.slane %v2335, 4
      %v2341 = vshrl.u32 %v2243, 16
      %v2343 = vrot.slane %v2341, 7
      %v2344 = vshll.u32 %v2243, 16
      %v2346 = vor.u32 %v2343, %v2344
      %v2347 = vsel %vm2246, %v2339, %v2346
      %v2348 = vrot.slane %v2343, 4
      %vm2367 = vcmask 60416
      %vm2368 = vsmask.f32 7938
      %vm2369 = vmand %vm2367, %vm2368
      %v2370 = vld [vmem:[#allocation2] sm:$0xf]
      %v2371 = vsel %vm2369, %v2253, %v2370
      %2372 = vst [vmem:[#allocation2] sm:$0xf] %v2371
      %vm2373 = vcmask 60416
      %2374 = vst.msk [vmem:[#allocation2 + $0x4] sm:$0xf] %vm2373, %v2262
      %vm2375 = vcmask 57344
      %vm2376 = vmand %vm2375, %vm2244
      %v2377 = vld [vmem:[#allocation2 + $0x8] sm:$0x1]
      %v2378 = vsel %vm2376, %v2263, %v2377
      %2379 = vst [vmem:[#allocation2 + $0x8] sm:$0x1] %v2378
      %v2380 = vld [vmem:[#allocation2 + $0xc] sm:$0xf]
      %v2381 = vsel %vm2369, %v2270, %v2380
      %2382 = vst [vmem:[#allocation2 + $0xc] sm:$0xf] %v2381
      %2383 = vst.msk [vmem:[#allocation2 + $0x10] sm:$0xf] %vm2373, %v2279
      %v2384 = vld [vmem:[#allocation2 + $0x14] sm:$0x1]
      %v2385 = vsel %vm2376, %v2280, %v2384
      %2386 = vst [vmem:[#allocation2 + $0x14] sm:$0x1] %v2385
      %v2387 = vld [vmem:[#allocation2 + $0x18] sm:$0xf]
      %v2388 = vsel %vm2369, %v2287, %v2387
      %2389 = vst [vmem:[#allocation2 + $0x18] sm:$0xf] %v2388
      %2390 = vst.msk [vmem:[#allocation2 + $0x1c] sm:$0xf] %vm2373, %v2296
      %v2391 = vld [vmem:[#allocation2 + $0x20] sm:$0x1]
      %v2392 = vsel %vm2376, %v2297, %v2391
      %2393 = vst [vmem:[#allocation2 + $0x20] sm:$0x1] %v2392
      %v2394 = vld [vmem:[#allocation2 + $0x24] sm:$0xf]
      %v2395 = vsel %vm2369, %v2304, %v2394
      %2396 = vst [vmem:[#allocation2 + $0x24] sm:$0xf] %v2395
      %2397 = vst.msk [vmem:[#allocation2 + $0x28] sm:$0xf] %vm2373, %v2313
      %v2398 = vld [vmem:[#allocation2 + $0x2c] sm:$0x1]
      %v2399 = vsel %vm2376, %v2314, %v2398
      %2400 = vst [vmem:[#allocation2 + $0x2c] sm:$0x1] %v2399
      %v2401 = vld [vmem:[#allocation2 + $0x30] sm:$0xf]
      %v2402 = vsel %vm2369, %v2321, %v2401
      %2403 = vst [vmem:[#allocation2 + $0x30] sm:$0xf] %v2402
      %2404 = vst.msk [vmem:[#allocation2 + $0x34] sm:$0xf] %vm2373, %v2330
      %v2405 = vld [vmem:[#allocation2 + $0x38] sm:$0x1]
      %v2406 = vsel %vm2376, %v2331, %v2405
      %2407 = vst [vmem:[#allocation2 + $0x38] sm:$0x1] %v2406
      %v2408 = vld [vmem:[#allocation2 + $0x3c] sm:$0xf]
      %v2409 = vsel %vm2369, %v2338, %v2408
      %2410 = vst [vmem:[#allocation2 + $0x3c] sm:$0xf] %v2409
      %2411 = vst.msk [vmem:[#allocation2 + $0x40] sm:$0xf] %vm2373, %v2347
      %v2412 = vld [vmem:[#allocation2 + $0x44] sm:$0x1]
      %v2413 = vsel %vm2376, %v2348, %v2412
      %2414 = vst [vmem:[#allocation2 + $0x44] sm:$0x1] %v2413
      %v2415 = vld [vmem:[#allocation2] sm:$0x1]
      %v2416 = vsel %vm2376, 0, %v2415
      %2417 = vst [vmem:[#allocation2] sm:$0x1] %v2416
      %v2418 = vld [vmem:[#allocation2 + $0xc] sm:$0x1]
      %v2419 = vsel %vm2376, 0, %v2418
      %2420 = vst [vmem:[#allocation2 + $0xc] sm:$0x1] %v2419
      %v2421 = vld [vmem:[#allocation2 + $0x18] sm:$0x1]
      %v2422 = vsel %vm2376, 0, %v2421
      %2423 = vst [vmem:[#allocation2 + $0x18] sm:$0x1] %v2422
      %v2424 = vld [vmem:[#allocation2 + $0x24] sm:$0x1]
      %v2425 = vsel %vm2376, 0, %v2424
      %2426 = vst [vmem:[#allocation2 + $0x24] sm:$0x1] %v2425
      %v2427 = vld [vmem:[#allocation2 + $0x30] sm:$0x1]
      %v2428 = vsel %vm2376, 0, %v2427
      %2429 = vst [vmem:[#allocation2 + $0x30] sm:$0x1] %v2428
      %v2430 = vld [vmem:[#allocation2 + $0x3c] sm:$0x1]
      %v2431 = vsel %vm2376, 0, %v2430
      %2432 = vst [vmem:[#allocation2 + $0x3c] sm:$0x1] %v2431
      %vm2433 = vmand %vm2375, %vm2368
      %v2434 = vld [vmem:[#allocation2 + $0x8] sm:$0x1]
      %v2435 = vsel %vm2433, 0, %v2434
      %2436 = vst [vmem:[#allocation2 + $0x8] sm:$0x1] %v2435
      %v2437 = vld [vmem:[#allocation2 + $0x14] sm:$0x1]
      %v2438 = vsel %vm2433, 0, %v2437
      %2439 = vst [vmem:[#allocation2 + $0x14] sm:$0x1] %v2438
      %v2440 = vld [vmem:[#allocation2 + $0x20] sm:$0x1]
      %v2441 = vsel %vm2433, 0, %v2440
      %2442 = vst [vmem:[#allocation2 + $0x20] sm:$0x1] %v2441
      %v2443 = vld [vmem:[#allocation2 + $0x2c] sm:$0x1]
      %v2444 = vsel %vm2433, 0, %v2443
      %2445 = vst [vmem:[#allocation2 + $0x2c] sm:$0x1] %v2444
      %v2446 = vld [vmem:[#allocation2 + $0x38] sm:$0x1]
      %v2447 = vsel %vm2433, 0, %v2446
      %2448 = vst [vmem:[#allocation2 + $0x38] sm:$0x1] %v2447
      %v2449 = vld [vmem:[#allocation2 + $0x44] sm:$0x1]
      %v2450 = vsel %vm2433, 0, %v2449
      %2451 = vst [vmem:[#allocation2 + $0x44] sm:$0x1] %v2450
      %p2452 = scmp.eq.s32.totalorder %s20, 0
      // Predicated region
      $region37: #{tpu_custom_call.1} parent=35 // pred_check
        %p2453 = pneg %p2452
      $region38: #{tpu_custom_call.1} parent=35 // pred_check_branch
        %2455 = sbr.rel (%p2453) target = $region40
      $region39: #{tpu_custom_call.1} parent=35 // pred_region
        %2456 = vst.msk [vmem:[#allocation2] sm:$0xf] %vm2373, 0
        %2457 = vst.msk [vmem:[#allocation2 + $0x4] sm:$0xf] %vm2373, 0
        %vm2458 = vcmask 57344
        %2459 = vst.msk [vmem:[#allocation2 + $0x8] sm:$0x1] %vm2458, 0
      $region40: #{tpu_custom_call.1} parent=35 // pred_fallthru
        _
      %p2460 = scmp.eq.s32.totalorder %s20, 3
      // Predicated region
      $region41: #{tpu_custom_call.1} parent=35 // pred_check
        %p2461 = pneg %p2460
      $region42: #{tpu_custom_call.1} parent=35 // pred_check_branch
        %2463 = sbr.rel (%p2461) target = $region44
      $region43: #{tpu_custom_call.1} parent=35 // pred_region
        %s2464 = scalar_lea.vmem [#allocation2], 60
        %2465 = vst.msk [vmem:[%s2464] sm:$0xf] %vm2373, 0
        %2466 = vst.msk [vmem:[%s2464 + $0x4] sm:$0xf] %vm2373, 0
        %vm2467 = vcmask 57344
        %2468 = vst.msk [vmem:[%s2464 + $0x8] sm:$0x1] %vm2467, 0
      $region44: #{tpu_custom_call.1} parent=35 // pred_fallthru
        _
      %v2469 = vld [vmem:[#allocation2] sm:$0xf]
      %v2470 = vld [vmem:[#allocation2 + $0x4] sm:$0xf]
      %v2471 = vld [vmem:[#allocation2 + $0xc] sm:$0xf]
      %v2472 = vld [vmem:[#allocation2 + $0x10] sm:$0xf]
      %v2473 = vld [vmem:[#allocation2 + $0x18] sm:$0xf]
      %v2474 = vld [vmem:[#allocation2 + $0x1c] sm:$0xf]
      %v2475 = vld [vmem:[#allocation2 + $0x24] sm:$0xf]
      %v2476 = vld [vmem:[#allocation2 + $0x28] sm:$0xf]
      %v2477 = vld [vmem:[%s2] sm:$0xf]
      %v2478 = vld [vmem:[#allocation2 + $0x8] sm:$0x1]
      %v2479 = vld [vmem:[#allocation2 + $0x14] sm:$0x1]
      %v2480 = vld [vmem:[#allocation2 + $0x20] sm:$0x1]
      %v2481 = vld [vmem:[#allocation2 + $0x2c] sm:$0x1]
      %v2483 = vshrl.u32 %v2469, 16
      %v2485 = vrot.slane %v2483, 4
      %v2486 = vshll.u32 %v2469, 16
      %v2488 = vrot.slane %v2486, 5
      %v2489 = vor.u32 %v2485, %v2488
      %v2490 = vrot.slane %v2489, 4
      %v2492 = vshll.u32 %v2470, 16
      %v2494 = vrot.slane %v2492, 5
      %v2495 = vsel %vm250, %v2490, %v2494
      %v2496 = vshrl.u32 %v2470, 16
      %v2498 = vrot.slane %v2496, 4
      %v2499 = vor.u32 %v2498, %v2494
      %v2500 = vrot.slane %v2499, 4
      %v2502 = vshll.u32 %v2478, 16
      %v2504 = vrot.slane %v2502, 5
      %v2505 = vsel %vm250, %v2500, %v2504
      %v2507 = vshrl.u32 %v2471, 16
      %v2509 = vrot.slane %v2507, 4
      %v2510 = vshll.u32 %v2471, 16
      %v2512 = vrot.slane %v2510, 5
      %v2513 = vor.u32 %v2509, %v2512
      %v2514 = vrot.slane %v2513, 4
      %v2516 = vshll.u32 %v2472, 16
      %v2518 = vrot.slane %v2516, 5
      %v2519 = vsel %vm250, %v2514, %v2518
      %v2520 = vshrl.u32 %v2472, 16
      %v2522 = vrot.slane %v2520, 4
      %v2523 = vor.u32 %v2522, %v2518
      %v2524 = vrot.slane %v2523, 4
      %v2526 = vshll.u32 %v2479, 16
      %v2528 = vrot.slane %v2526, 5
      %v2529 = vsel %vm250, %v2524, %v2528
      %v2531 = vshrl.u32 %v2473, 16
      %v2533 = vrot.slane %v2531, 4
      %v2534 = vshll.u32 %v2473, 16
      %v2536 = vrot.slane %v2534, 5
      %v2537 = vor.u32 %v2533, %v2536
      %v2538 = vrot.slane %v2537, 4
      %v2540 = vshll.u32 %v2474, 16
      %v2542 = vrot.slane %v2540, 5
      %v2543 = vsel %vm250, %v2538, %v2542
      %v2544 = vshrl.u32 %v2474, 16
      %v2546 = vrot.slane %v2544, 4
      %v2547 = vor.u32 %v2546, %v2542
      %v2548 = vrot.slane %v2547, 4
      %v2550 = vshll.u32 %v2480, 16
      %v2552 = vrot.slane %v2550, 5
      %v2553 = vsel %vm250, %v2548, %v2552
      %v2555 = vshrl.u32 %v2475, 16
      %v2557 = vrot.slane %v2555, 4
      %v2558 = vshll.u32 %v2475, 16
      %v2560 = vrot.slane %v2558, 5
      %v2561 = vor.u32 %v2557, %v2560
      %v2562 = vrot.slane %v2561, 4
      %v2564 = vshll.u32 %v2476, 16
      %v2566 = vrot.slane %v2564, 5
      %v2567 = vsel %vm250, %v2562, %v2566
      %v2568 = vshrl.u32 %v2476, 16
      %v2570 = vrot.slane %v2568, 4
      %v2571 = vor.u32 %v2570, %v2566
      %v2572 = vrot.slane %v2571, 4
      %v2574 = vshll.u32 %v2481, 16
      %v2576 = vrot.slane %v2574, 5
      %v2577 = vsel %vm250, %v2572, %v2576
      %s2578 = scalar_lea.vmem %s2, 4
      %v2579 = vld [vmem:[%s2578] sm:$0xf]
      %v2580 = vunpack.c.l.b16 %v2495
      %v2581 = vunpack.c.l.b16 %v2505
      %v2582 = vunpack.c.l.b16 %v2519
      %v2583 = vunpack.c.l.b16 %v2529
      %v2584 = vunpack.c.l.b16 %v2543
      %v2585 = vunpack.c.l.b16 %v2553
      %v2586 = vunpack.c.l.b16 %v2567
      %v2587 = vunpack.c.l.b16 %v2577
      %v2588 = vpack.c.b16 %v2581, %v2580
      %v2589 = vpack.c.b16 %v2583, %v2582
      %v2590 = vpack.c.b16 %v2585, %v2584
      %v2591 = vpack.c.b16 %v2587, %v2586
      %v2593 = vsel %vm415, %v2588, 0
      %v2596 = vsel %vm415, %v2589, 0
      %v2599 = vsel %vm415, %v2590, 0
      %v2602 = vsel %vm415, %v2591, 0
      %v2605 = vsel %vm434, %v2579, 0
      %2607 = vmatprep.subr.bf16.mxu0 0
      %2608 = vmatpush1.bf16.msra.mxu0 %v2605
      %2609 = vmatprep.subr.bf16.mxu0 0
      %2610 = vmatpush1.bf16.msra.mxu0 0
      %2611 = vmatprep.subr.bf16.mxu0 0
      %2612 = vmatpush1.bf16.msra.mxu0 0
      %2613 = vmatprep.subr.bf16.mxu0 0
      %2614 = vmatpush1.bf16.msra.mxu0 0
      %2615 = vmatprep.subr.bf16.mxu0 0
      %2616 = vmatpush1.bf16.msra.mxu0 0
      %2617 = vmatprep.subr.bf16.mxu0 0
      %2618 = vmatpush1.bf16.msra.mxu0 0
      %2619 = vmatprep.subr.bf16.mxu0 0
      %2620 = vmatpush1.bf16.msra.mxu0 0
      %2621 = vmatprep.subr.bf16.mxu0 0
      %2622 = vmatpush1.bf16.msra.mxu0 0
      %2623 = vmatprep.subr.bf16.mxu0 0
      %2624 = vmatpush1.bf16.msra.mxu0 0
      %2625 = vmatprep.subr.bf16.mxu0 0
      %2626 = vmatpush1.bf16.msra.mxu0 0
      %2627 = vmatprep.subr.bf16.mxu0 0
      %2628 = vmatpush1.bf16.msra.mxu0 0
      %2629 = vmatprep.subr.bf16.mxu0 0
      %2630 = vmatpush1.bf16.msra.mxu0 0
      %2631 = vmatprep.subr.bf16.mxu0 0
      %2632 = vmatpush1.bf16.msra.mxu0 0
      %2633 = vmatprep.subr.bf16.mxu0 0
      %2634 = vmatpush1.bf16.msra.mxu0 0
      %2635 = vmatprep.subr.bf16.mxu0 0
      %2636 = vmatpush1.bf16.msra.mxu0 0
      %2637 = vmatprep.subr.bf16.mxu0 0
      %2638 = vmatpush1.bf16.msra.mxu0 0
      %2639 = vmatprep.mubr.bf16.mxu0 0
      %2640 = vmatmul.mubr.bf16.gmra.mrb[0].mxu0 %v2593
      %v2641 = vpop.f32.mrb[0].mxu0
      %v2642 = vadd.f32 0.0, %v2641
      %v2643 = vpop.f32.mrb[0].mxu0
      %v2644 = vpop.f32.mrb[0].mxu0
      %v2645 = vadd.f32 0.0, %v2644
      %v2646 = vpop.f32.mrb[0].mxu0
      %2647 = vmatprep.mubr.bf16.mxu0 0
      %2648 = vmatmul.mubr.bf16.gmra.mrb[0].mxu0 %v2596
      %v2649 = vpop.f32.mrb[0].mxu0
      %v2650 = vadd.f32 0.0, %v2649
      %v2651 = vpop.f32.mrb[0].mxu0
      %v2652 = vpop.f32.mrb[0].mxu0
      %v2653 = vadd.f32 0.0, %v2652
      %v2654 = vpop.f32.mrb[0].mxu0
      %2655 = vmatprep.mubr.bf16.mxu0 0
      %2656 = vmatmul.mubr.bf16.gmra.mrb[0].mxu0 %v2599
      %v2657 = vpop.f32.mrb[0].mxu0
      %v2658 = vadd.f32 0.0, %v2657
      %v2659 = vpop.f32.mrb[0].mxu0
      %v2660 = vpop.f32.mrb[0].mxu0
      %v2661 = vadd.f32 0.0, %v2660
      %v2662 = vpop.f32.mrb[0].mxu0
      %2663 = vmatprep.mubr.bf16.mxu0 0
      %2664 = vmatmul.mubr.bf16.gmra.mrb[0].mxu0 %v2602
      %v2665 = vpop.f32.mrb[0].mxu0
      %v2666 = vadd.f32 0.0, %v2665
      %v2667 = vpop.f32.mrb[0].mxu0
      %v2668 = vpop.f32.mrb[0].mxu0
      %v2669 = vadd.f32 0.0, %v2668
      %v2670 = vpop.f32.mrb[0].mxu0
      %2671 = vdwg.mxu0
      %v2680 = vunpack.c.l.b16 %v2469
      %v2681 = vunpack.c.l.b16 %v2470
      %v2682 = vunpack.c.l.b16 %v2471
      %v2683 = vunpack.c.l.b16 %v2472
      %v2684 = vunpack.c.l.b16 %v2473
      %v2685 = vunpack.c.l.b16 %v2474
      %v2686 = vunpack.c.l.b16 %v2475
      %v2687 = vunpack.c.l.b16 %v2476
      %v2688 = vpack.c.b16 %v2681, %v2680
      %v2689 = vpack.c.b16 %v2683, %v2682
      %v2690 = vpack.c.b16 %v2685, %v2684
      %v2691 = vpack.c.b16 %v2687, %v2686
      %v2693 = vsel %vm415, %v2688, 0
      %v2696 = vsel %vm415, %v2689, 0
      %v2699 = vsel %vm415, %v2690, 0
      %v2702 = vsel %vm415, %v2691, 0
      %v2705 = vsel %vm434, %v2477, 0
      %2707 = vmatprep.subr.bf16.mxu0 0
      %2708 = vmatpush1.bf16.msra.mxu0 %v2705
      %2709 = vmatprep.subr.bf16.mxu0 0
      %2710 = vmatpush1.bf16.msra.mxu0 0
      %2711 = vmatprep.subr.bf16.mxu0 0
      %2712 = vmatpush1.bf16.msra.mxu0 0
      %2713 = vmatprep.subr.bf16.mxu0 0
      %2714 = vmatpush1.bf16.msra.mxu0 0
      %2715 = vmatprep.subr.bf16.mxu0 0
      %2716 = vmatpush1.bf16.msra.mxu0 0
      %2717 = vmatprep.subr.bf16.mxu0 0
      %2718 = vmatpush1.bf16.msra.mxu0 0
      %2719 = vmatprep.subr.bf16.mxu0 0
      %2720 = vmatpush1.bf16.msra.mxu0 0
      %2721 = vmatprep.subr.bf16.mxu0 0
      %2722 = vmatpush1.bf16.msra.mxu0 0
      %2723 = vmatprep.subr.bf16.mxu0 0
      %2724 = vmatpush1.bf16.msra.mxu0 0
      %2725 = vmatprep.subr.bf16.mxu0 0
      %2726 = vmatpush1.bf16.msra.mxu0 0
      %2727 = vmatprep.subr.bf16.mxu0 0
      %2728 = vmatpush1.bf16.msra.mxu0 0
      %2729 = vmatprep.subr.bf16.mxu0 0
      %2730 = vmatpush1.bf16.msra.mxu0 0
      %2731 = vmatprep.subr.bf16.mxu0 0
      %2732 = vmatpush1.bf16.msra.mxu0 0
      %2733 = vmatprep.subr.bf16.mxu0 0
      %2734 = vmatpush1.bf16.msra.mxu0 0
      %2735 = vmatprep.subr.bf16.mxu0 0
      %2736 = vmatpush1.bf16.msra.mxu0 0
      %2737 = vmatprep.subr.bf16.mxu0 0
      %2738 = vmatpush1.bf16.msra.mxu0 0
      %2739 = vmatprep.mubr.bf16.mxu0 0
      %2740 = vmatmul.mubr.bf16.gmra.mrb[0].mxu0 %v2693
      %v2741 = vpop.f32.mrb[0].mxu0
      %v2742 = vadd.f32 %v2642, %v2741
      %v2743 = vpop.f32.mrb[0].mxu0
      %v2744 = vpop.f32.mrb[0].mxu0
      %v2745 = vadd.f32 %v2645, %v2744
      %v2746 = vpop.f32.mrb[0].mxu0
      %2747 = vmatprep.mubr.bf16.mxu0 0
      %2748 = vmatmul.mubr.bf16.gmra.mrb[0].mxu0 %v2696
      %v2749 = vpop.f32.mrb[0].mxu0
      %v2750 = vadd.f32 %v2650, %v2749
      %v2751 = vpop.f32.mrb[0].mxu0
      %v2752 = vpop.f32.mrb[0].mxu0
      %v2753 = vadd.f32 %v2653, %v2752
      %v2754 = vpop.f32.mrb[0].mxu0
      %2755 = vmatprep.mubr.bf16.mxu0 0
      %2756 = vmatmul.mubr.bf16.gmra.mrb[0].mxu0 %v2699
      %v2757 = vpop.f32.mrb[0].mxu0
      %v2758 = vadd.f32 %v2658, %v2757
      %v2759 = vpop.f32.mrb[0].mxu0
      %v2760 = vpop.f32.mrb[0].mxu0
      %v2761 = vadd.f32 %v2661, %v2760
      %v2762 = vpop.f32.mrb[0].mxu0
      %2763 = vmatprep.mubr.bf16.mxu0 0
      %2764 = vmatmul.mubr.bf16.gmra.mrb[0].mxu0 %v2702
      %v2765 = vpop.f32.mrb[0].mxu0
      %v2766 = vadd.f32 %v2666, %v2765
      %v2767 = vpop.f32.mrb[0].mxu0
      %v2768 = vpop.f32.mrb[0].mxu0
      %v2769 = vadd.f32 %v2669, %v2768
      %v2770 = vpop.f32.mrb[0].mxu0
      %2771 = vdwg.mxu0
      %v2772 = vld [vmem:[#allocation2] sm:$0xe]
      %v2773 = vld [vmem:[#allocation2 + $0xc] sm:$0xe]
      %v2774 = vld [vmem:[#allocation2 + $0x18] sm:$0xe]
      %v2775 = vld [vmem:[#allocation2 + $0x24] sm:$0xe]
      %v2784 = vrot.slane %v2772, 5
      %v2785 = vrot.slane %v2784, 4
      %v2786 = vrot.slane %v2470, 5
      %v2787 = vsel %vm671, %v2785, %v2786
      %v2788 = vrot.slane %v2786, 4
      %v2789 = vrot.slane %v2478, 5
      %v2790 = vsel %vm671, %v2788, %v2789
      %v2791 = vrot.slane %v2773, 5
      %v2792 = vrot.slane %v2791, 4
      %v2793 = vrot.slane %v2472, 5
      %v2794 = vsel %vm671, %v2792, %v2793
      %v2795 = vrot.slane %v2793, 4
      %v2796 = vrot.slane %v2479, 5
      %v2797 = vsel %vm671, %v2795, %v2796
      %v2798 = vrot.slane %v2774, 5
      %v2799 = vrot.slane %v2798, 4
      %v2800 = vrot.slane %v2474, 5
      %v2801 = vsel %vm671, %v2799, %v2800
      %v2802 = vrot.slane %v2800, 4
      %v2803 = vrot.slane %v2480, 5
      %v2804 = vsel %vm671, %v2802, %v2803
      %v2805 = vrot.slane %v2775, 5
      %v2806 = vrot.slane %v2805, 4
      %v2807 = vrot.slane %v2476, 5
      %v2808 = vsel %vm671, %v2806, %v2807
      %v2809 = vrot.slane %v2807, 4
      %v2810 = vrot.slane %v2481, 5
      %v2811 = vsel %vm671, %v2809, %v2810
      %s2812 = scalar_lea.vmem %s2, 8
      %v2813 = vld [vmem:[%s2812] sm:$0xf]
      %v2814 = vunpack.c.l.b16 %v2787
      %v2815 = vunpack.c.l.b16 %v2790
      %v2816 = vunpack.c.l.b16 %v2794
      %v2817 = vunpack.c.l.b16 %v2797
      %v2818 = vunpack.c.l.b16 %v2801
      %v2819 = vunpack.c.l.b16 %v2804
      %v2820 = vunpack.c.l.b16 %v2808
      %v2821 = vunpack.c.l.b16 %v2811
      %v2822 = vpack.c.b16 %v2815, %v2814
      %v2823 = vpack.c.b16 %v2817, %v2816
      %v2824 = vpack.c.b16 %v2819, %v2818
      %v2825 = vpack.c.b16 %v2821, %v2820
      %v2827 = vsel %vm415, %v2822, 0
      %v2830 = vsel %vm415, %v2823, 0
      %v2833 = vsel %vm415, %v2824, 0
      %v2836 = vsel %vm415, %v2825, 0
      %v2839 = vsel %vm434, %v2813, 0
      %2841 = vmatprep.subr.bf16.mxu0 0
      %2842 = vmatpush1.bf16.msra.mxu0 %v2839
      %2843 = vmatprep.subr.bf16.mxu0 0
      %2844 = vmatpush1.bf16.msra.mxu0 0
      %2845 = vmatprep.subr.bf16.mxu0 0
      %2846 = vmatpush1.bf16.msra.mxu0 0
      %2847 = vmatprep.subr.bf16.mxu0 0
      %2848 = vmatpush1.bf16.msra.mxu0 0
      %2849 = vmatprep.subr.bf16.mxu0 0
      %2850 = vmatpush1.bf16.msra.mxu0 0
      %2851 = vmatprep.subr.bf16.mxu0 0
      %2852 = vmatpush1.bf16.msra.mxu0 0
      %2853 = vmatprep.subr.bf16.mxu0 0
      %2854 = vmatpush1.bf16.msra.mxu0 0
      %2855 = vmatprep.subr.bf16.mxu0 0
      %2856 = vmatpush1.bf16.msra.mxu0 0
      %2857 = vmatprep.subr.bf16.mxu0 0
      %2858 = vmatpush1.bf16.msra.mxu0 0
      %2859 = vmatprep.subr.bf16.mxu0 0
      %2860 = vmatpush1.bf16.msra.mxu0 0
      %2861 = vmatprep.subr.bf16.mxu0 0
      %2862 = vmatpush1.bf16.msra.mxu0 0
      %2863 = vmatprep.subr.bf16.mxu0 0
      %2864 = vmatpush1.bf16.msra.mxu0 0
      %2865 = vmatprep.subr.bf16.mxu0 0
      %2866 = vmatpush1.bf16.msra.mxu0 0
      %2867 = vmatprep.subr.bf16.mxu0 0
      %2868 = vmatpush1.bf16.msra.mxu0 0
      %2869 = vmatprep.subr.bf16.mxu0 0
      %2870 = vmatpush1.bf16.msra.mxu0 0
      %2871 = vmatprep.subr.bf16.mxu0 0
      %2872 = vmatpush1.bf16.msra.mxu0 0
      %2873 = vmatprep.mubr.bf16.mxu0 0
      %2874 = vmatmul.mubr.bf16.gmra.mrb[0].mxu0 %v2827
      %v2875 = vpop.f32.mrb[0].mxu0
      %v2876 = vadd.f32 0.0, %v2875
      %v2877 = vpop.f32.mrb[0].mxu0
      %v2878 = vpop.f32.mrb[0].mxu0
      %v2879 = vadd.f32 0.0, %v2878
      %v2880 = vpop.f32.mrb[0].mxu0
      %2881 = vmatprep.mubr.bf16.mxu0 0
      %2882 = vmatmul.mubr.bf16.gmra.mrb[0].mxu0 %v2830
      %v2883 = vpop.f32.mrb[0].mxu0
      %v2884 = vadd.f32 0.0, %v2883
      %v2885 = vpop.f32.mrb[0].mxu0
      %v2886 = vpop.f32.mrb[0].mxu0
      %v2887 = vadd.f32 0.0, %v2886
      %v2888 = vpop.f32.mrb[0].mxu0
      %2889 = vmatprep.mubr.bf16.mxu0 0
      %2890 = vmatmul.mubr.bf16.gmra.mrb[0].mxu0 %v2833
      %v2891 = vpop.f32.mrb[0].mxu0
      %v2892 = vadd.f32 0.0, %v2891
      %v2893 = vpop.f32.mrb[0].mxu0
      %v2894 = vpop.f32.mrb[0].mxu0
      %v2895 = vadd.f32 0.0, %v2894
      %v2896 = vpop.f32.mrb[0].mxu0
      %2897 = vmatprep.mubr.bf16.mxu0 0
      %2898 = vmatmul.mubr.bf16.gmra.mrb[0].mxu0 %v2836
      %v2899 = vpop.f32.mrb[0].mxu0
      %v2900 = vadd.f32 0.0, %v2899
      %v2901 = vpop.f32.mrb[0].mxu0
      %v2902 = vpop.f32.mrb[0].mxu0
      %v2903 = vadd.f32 0.0, %v2902
      %v2904 = vpop.f32.mrb[0].mxu0
      %2905 = vdwg.mxu0
      %v2906 = vadd.f32 %v2742, %v2876
      %v2907 = vadd.f32 %v2745, %v2879
      %v2908 = vadd.f32 %v2750, %v2884
      %v2909 = vadd.f32 %v2753, %v2887
      %v2910 = vadd.f32 %v2758, %v2892
      %v2911 = vadd.f32 %v2761, %v2895
      %v2912 = vadd.f32 %v2766, %v2900
      %v2913 = vadd.f32 %v2769, %v2903
      %s2914 = scalar_lea.vmem [#allocation2], 12
      %v2915 = vld [vmem:[%s2914] sm:$0xf]
      %v2916 = vld [vmem:[%s2914 + $0x4] sm:$0xf]
      %v2917 = vld [vmem:[%s2914 + $0xc] sm:$0xf]
      %v2918 = vld [vmem:[%s2914 + $0x10] sm:$0xf]
      %v2919 = vld [vmem:[%s2914 + $0x18] sm:$0xf]
      %v2920 = vld [vmem:[%s2914 + $0x1c] sm:$0xf]
      %v2921 = vld [vmem:[%s2914 + $0x24] sm:$0xf]
      %v2922 = vld [vmem:[%s2914 + $0x28] sm:$0xf]
      %s2923 = scalar_lea.vmem %s2, 12
      %v2924 = vld [vmem:[%s2923] sm:$0xf]
      %v2933 = vunpack.c.l.b16 %v2915
      %v2934 = vunpack.c.l.b16 %v2916
      %v2935 = vunpack.c.l.b16 %v2917
      %v2936 = vunpack.c.l.b16 %v2918
      %v2937 = vunpack.c.l.b16 %v2919
      %v2938 = vunpack.c.l.b16 %v2920
      %v2939 = vunpack.c.l.b16 %v2921
      %v2940 = vunpack.c.l.b16 %v2922
      %v2941 = vpack.c.b16 %v2934, %v2933
      %v2942 = vpack.c.b16 %v2936, %v2935
      %v2943 = vpack.c.b16 %v2938, %v2937
      %v2944 = vpack.c.b16 %v2940, %v2939
      %v2946 = vsel %vm415, %v2941, 0
      %v2949 = vsel %vm415, %v2942, 0
      %v2952 = vsel %vm415, %v2943, 0
      %v2955 = vsel %vm415, %v2944, 0
      %v2958 = vsel %vm434, %v2924, 0
      %2960 = vmatprep.subr.bf16.mxu0 0
      %2961 = vmatpush1.bf16.msra.mxu0 %v2958
      %2962 = vmatprep.subr.bf16.mxu0 0
      %2963 = vmatpush1.bf16.msra.mxu0 0
      %2964 = vmatprep.subr.bf16.mxu0 0
      %2965 = vmatpush1.bf16.msra.mxu0 0
      %2966 = vmatprep.subr.bf16.mxu0 0
      %2967 = vmatpush1.bf16.msra.mxu0 0
      %2968 = vmatprep.subr.bf16.mxu0 0
      %2969 = vmatpush1.bf16.msra.mxu0 0
      %2970 = vmatprep.subr.bf16.mxu0 0
      %2971 = vmatpush1.bf16.msra.mxu0 0
      %2972 = vmatprep.subr.bf16.mxu0 0
      %2973 = vmatpush1.bf16.msra.mxu0 0
      %2974 = vmatprep.subr.bf16.mxu0 0
      %2975 = vmatpush1.bf16.msra.mxu0 0
      %2976 = vmatprep.subr.bf16.mxu0 0
      %2977 = vmatpush1.bf16.msra.mxu0 0
      %2978 = vmatprep.subr.bf16.mxu0 0
      %2979 = vmatpush1.bf16.msra.mxu0 0
      %2980 = vmatprep.subr.bf16.mxu0 0
      %2981 = vmatpush1.bf16.msra.mxu0 0
      %2982 = vmatprep.subr.bf16.mxu0 0
      %2983 = vmatpush1.bf16.msra.mxu0 0
      %2984 = vmatprep.subr.bf16.mxu0 0
      %2985 = vmatpush1.bf16.msra.mxu0 0
      %2986 = vmatprep.subr.bf16.mxu0 0
      %2987 = vmatpush1.bf16.msra.mxu0 0
      %2988 = vmatprep.subr.bf16.mxu0 0
      %2989 = vmatpush1.bf16.msra.mxu0 0
      %2990 = vmatprep.subr.bf16.mxu0 0
      %2991 = vmatpush1.bf16.msra.mxu0 0
      %2992 = vmatprep.mubr.bf16.mxu0 0
      %2993 = vmatmul.mubr.bf16.gmra.mrb[0].mxu0 %v2946
      %v2994 = vpop.f32.mrb[0].mxu0
      %v2995 = vadd.f32 0.0, %v2994
      %v2996 = vpop.f32.mrb[0].mxu0
      %v2997 = vpop.f32.mrb[0].mxu0
      %v2998 = vadd.f32 0.0, %v2997
      %v2999 = vpop.f32.mrb[0].mxu0
      %3000 = vmatprep.mubr.bf16.mxu0 0
      %3001 = vmatmul.mubr.bf16.gmra.mrb[0].mxu0 %v2949
      %v3002 = vpop.f32.mrb[0].mxu0
      %v3003 = vadd.f32 0.0, %v3002
      %v3004 = vpop.f32.mrb[0].mxu0
      %v3005 = vpop.f32.mrb[0].mxu0
      %v3006 = vadd.f32 0.0, %v3005
      %v3007 = vpop.f32.mrb[0].mxu0
      %3008 = vmatprep.mubr.bf16.mxu0 0
      %3009 = vmatmul.mubr.bf16.gmra.mrb[0].mxu0 %v2952
      %v3010 = vpop.f32.mrb[0].mxu0
      %v3011 = vadd.f32 0.0, %v3010
      %v3012 = vpop.f32.mrb[0].mxu0
      %v3013 = vpop.f32.mrb[0].mxu0
      %v3014 = vadd.f32 0.0, %v3013
      %v3015 = vpop.f32.mrb[0].mxu0
      %3016 = vmatprep.mubr.bf16.mxu0 0
      %3017 = vmatmul.mubr.bf16.gmra.mrb[0].mxu0 %v2955
      %v3018 = vpop.f32.mrb[0].mxu0
      %v3019 = vadd.f32 0.0, %v3018
      %v3020 = vpop.f32.mrb[0].mxu0
      %v3021 = vpop.f32.mrb[0].mxu0
      %v3022 = vadd.f32 0.0, %v3021
      %v3023 = vpop.f32.mrb[0].mxu0
      %3024 = vdwg.mxu0
      %v3025 = vadd.f32 %v2906, %v2995
      %v3026 = vadd.f32 %v2907, %v2998
      %v3027 = vadd.f32 %v2908, %v3003
      %v3028 = vadd.f32 %v2909, %v3006
      %v3029 = vadd.f32 %v2910, %v3011
      %v3030 = vadd.f32 %v2911, %v3014
      %v3031 = vadd.f32 %v2912, %v3019
      %v3032 = vadd.f32 %v2913, %v3022
      %v3033 = vld [vmem:[%s2914] sm:$0xf]
      %v3034 = vld [vmem:[%s2914 + $0x4] sm:$0xf]
      %v3035 = vld [vmem:[%s2914 + $0x8] sm:$0x1]
      %v3036 = vld [vmem:[%s2914 + $0xc] sm:$0xf]
      %v3037 = vld [vmem:[%s2914 + $0x10] sm:$0xf]
      %v3038 = vld [vmem:[%s2914 + $0x14] sm:$0x1]
      %v3039 = vld [vmem:[%s2914 + $0x18] sm:$0xf]
      %v3040 = vld [vmem:[%s2914 + $0x1c] sm:$0xf]
      %v3041 = vld [vmem:[%s2914 + $0x20] sm:$0x1]
      %v3042 = vld [vmem:[%s2914 + $0x24] sm:$0xf]
      %v3043 = vld [vmem:[%s2914 + $0x28] sm:$0xf]
      %v3044 = vld [vmem:[%s2914 + $0x2c] sm:$0x1]
      %v3046 = vshrl.u32 %v3033, 16
      %v3048 = vrot.slane %v3046, 4
      %v3049 = vshll.u32 %v3033, 16
      %v3051 = vrot.slane %v3049, 5
      %v3052 = vor.u32 %v3048, %v3051
      %v3053 = vrot.slane %v3052, 4
      %v3055 = vshll.u32 %v3034, 16
      %v3057 = vrot.slane %v3055, 5
      %v3058 = vsel %vm250, %v3053, %v3057
      %v3059 = vshrl.u32 %v3034, 16
      %v3061 = vrot.slane %v3059, 4
      %v3062 = vor.u32 %v3061, %v3057
      %v3063 = vrot.slane %v3062, 4
      %v3065 = vshll.u32 %v3035, 16
      %v3067 = vrot.slane %v3065, 5
      %v3068 = vsel %vm250, %v3063, %v3067
      %v3070 = vshrl.u32 %v3036, 16
      %v3072 = vrot.slane %v3070, 4
      %v3073 = vshll.u32 %v3036, 16
      %v3075 = vrot.slane %v3073, 5
      %v3076 = vor.u32 %v3072, %v3075
      %v3077 = vrot.slane %v3076, 4
      %v3079 = vshll.u32 %v3037, 16
      %v3081 = vrot.slane %v3079, 5
      %v3082 = vsel %vm250, %v3077, %v3081
      %v3083 = vshrl.u32 %v3037, 16
      %v3085 = vrot.slane %v3083, 4
      %v3086 = vor.u32 %v3085, %v3081
      %v3087 = vrot.slane %v3086, 4
      %v3089 = vshll.u32 %v3038, 16
      %v3091 = vrot.slane %v3089, 5
      %v3092 = vsel %vm250, %v3087, %v3091
      %v3094 = vshrl.u32 %v3039, 16
      %v3096 = vrot.slane %v3094, 4
      %v3097 = vshll.u32 %v3039, 16
      %v3099 = vrot.slane %v3097, 5
      %v3100 = vor.u32 %v3096, %v3099
      %v3101 = vrot.slane %v3100, 4
      %v3103 = vshll.u32 %v3040, 16
      %v3105 = vrot.slane %v3103, 5
      %v3106 = vsel %vm250, %v3101, %v3105
      %v3107 = vshrl.u32 %v3040, 16
      %v3109 = vrot.slane %v3107, 4
      %v3110 = vor.u32 %v3109, %v3105
      %v3111 = vrot.slane %v3110, 4
      %v3113 = vshll.u32 %v3041, 16
      %v3115 = vrot.slane %v3113, 5
      %v3116 = vsel %vm250, %v3111, %v3115
      %v3118 = vshrl.u32 %v3042, 16
      %v3120 = vrot.slane %v3118, 4
      %v3121 = vshll.u32 %v3042, 16
      %v3123 = vrot.slane %v3121, 5
      %v3124 = vor.u32 %v3120, %v3123
      %v3125 = vrot.slane %v3124, 4
      %v3127 = vshll.u32 %v3043, 16
      %v3129 = vrot.slane %v3127, 5
      %v3130 = vsel %vm250, %v3125, %v3129
      %v3131 = vshrl.u32 %v3043, 16
      %v3133 = vrot.slane %v3131, 4
      %v3134 = vor.u32 %v3133, %v3129
      %v3135 = vrot.slane %v3134, 4
      %v3137 = vshll.u32 %v3044, 16
      %v3139 = vrot.slane %v3137, 5
      %v3140 = vsel %vm250, %v3135, %v3139
      %s3141 = scalar_lea.vmem %s2, 16
      %v3142 = vld [vmem:[%s3141] sm:$0xf]
      %v3143 = vunpack.c.l.b16 %v3058
      %v3144 = vunpack.c.l.b16 %v3068
      %v3145 = vunpack.c.l.b16 %v3082
      %v3146 = vunpack.c.l.b16 %v3092
      %v3147 = vunpack.c.l.b16 %v3106
      %v3148 = vunpack.c.l.b16 %v3116
      %v3149 = vunpack.c.l.b16 %v3130
      %v3150 = vunpack.c.l.b16 %v3140
      %v3151 = vpack.c.b16 %v3144, %v3143
      %v3152 = vpack.c.b16 %v3146, %v3145
      %v3153 = vpack.c.b16 %v3148, %v3147
      %v3154 = vpack.c.b16 %v3150, %v3149
      %v3156 = vsel %vm415, %v3151, 0
      %v3159 = vsel %vm415, %v3152, 0
      %v3162 = vsel %vm415, %v3153, 0
      %v3165 = vsel %vm415, %v3154, 0
      %v3168 = vsel %vm434, %v3142, 0
      %3170 = vmatprep.subr.bf16.mxu0 0
      %3171 = vmatpush1.bf16.msra.mxu0 %v3168
      %3172 = vmatprep.subr.bf16.mxu0 0
      %3173 = vmatpush1.bf16.msra.mxu0 0
      %3174 = vmatprep.subr.bf16.mxu0 0
      %3175 = vmatpush1.bf16.msra.mxu0 0
      %3176 = vmatprep.subr.bf16.mxu0 0
      %3177 = vmatpush1.bf16.msra.mxu0 0
      %3178 = vmatprep.subr.bf16.mxu0 0
      %3179 = vmatpush1.bf16.msra.mxu0 0
      %3180 = vmatprep.subr.bf16.mxu0 0
      %3181 = vmatpush1.bf16.msra.mxu0 0
      %3182 = vmatprep.subr.bf16.mxu0 0
      %3183 = vmatpush1.bf16.msra.mxu0 0
      %3184 = vmatprep.subr.bf16.mxu0 0
      %3185 = vmatpush1.bf16.msra.mxu0 0
      %3186 = vmatprep.subr.bf16.mxu0 0
      %3187 = vmatpush1.bf16.msra.mxu0 0
      %3188 = vmatprep.subr.bf16.mxu0 0
      %3189 = vmatpush1.bf16.msra.mxu0 0
      %3190 = vmatprep.subr.bf16.mxu0 0
      %3191 = vmatpush1.bf16.msra.mxu0 0
      %3192 = vmatprep.subr.bf16.mxu0 0
      %3193 = vmatpush1.bf16.msra.mxu0 0
      %3194 = vmatprep.subr.bf16.mxu0 0
      %3195 = vmatpush1.bf16.msra.mxu0 0
      %3196 = vmatprep.subr.bf16.mxu0 0
      %3197 = vmatpush1.bf16.msra.mxu0 0
      %3198 = vmatprep.subr.bf16.mxu0 0
      %3199 = vmatpush1.bf16.msra.mxu0 0
      %3200 = vmatprep.subr.bf16.mxu0 0
      %3201 = vmatpush1.bf16.msra.mxu0 0
      %3202 = vmatprep.mubr.bf16.mxu0 0
      %3203 = vmatmul.mubr.bf16.gmra.mrb[0].mxu0 %v3156
      %v3204 = vpop.f32.mrb[0].mxu0
      %v3205 = vadd.f32 0.0, %v3204
      %v3206 = vpop.f32.mrb[0].mxu0
      %v3207 = vpop.f32.mrb[0].mxu0
      %v3208 = vadd.f32 0.0, %v3207
      %v3209 = vpop.f32.mrb[0].mxu0
      %3210 = vmatprep.mubr.bf16.mxu0 0
      %3211 = vmatmul.mubr.bf16.gmra.mrb[0].mxu0 %v3159
      %v3212 = vpop.f32.mrb[0].mxu0
      %v3213 = vadd.f32 0.0, %v3212
      %v3214 = vpop.f32.mrb[0].mxu0
      %v3215 = vpop.f32.mrb[0].mxu0
      %v3216 = vadd.f32 0.0, %v3215
      %v3217 = vpop.f32.mrb[0].mxu0
      %3218 = vmatprep.mubr.bf16.mxu0 0
      %3219 = vmatmul.mubr.bf16.gmra.mrb[0].mxu0 %v3162
      %v3220 = vpop.f32.mrb[0].mxu0
      %v3221 = vadd.f32 0.0, %v3220
      %v3222 = vpop.f32.mrb[0].mxu0
      %v3223 = vpop.f32.mrb[0].mxu0
      %v3224 = vadd.f32 0.0, %v3223
      %v3225 = vpop.f32.mrb[0].mxu0
      %3226 = vmatprep.mubr.bf16.mxu0 0
      %3227 = vmatmul.mubr.bf16.gmra.mrb[0].mxu0 %v3165
      %v3228 = vpop.f32.mrb[0].mxu0
      %v3229 = vadd.f32 0.0, %v3228
      %v3230 = vpop.f32.mrb[0].mxu0
      %v3231 = vpop.f32.mrb[0].mxu0
      %v3232 = vadd.f32 0.0, %v3231
      %v3233 = vpop.f32.mrb[0].mxu0
      %3234 = vdwg.mxu0
      %v3235 = vadd.f32 %v3025, %v3205
      %v3236 = vadd.f32 %v3026, %v3208
      %v3237 = vadd.f32 %v3027, %v3213
      %v3238 = vadd.f32 %v3028, %v3216
      %v3239 = vadd.f32 %v3029, %v3221
      %v3240 = vadd.f32 %v3030, %v3224
      %v3241 = vadd.f32 %v3031, %v3229
      %v3242 = vadd.f32 %v3032, %v3232
      %v3243 = vld [vmem:[%s2914] sm:$0xe]
      %v3244 = vld [vmem:[%s2914 + $0xc] sm:$0xe]
      %v3245 = vld [vmem:[%s2914 + $0x18] sm:$0xe]
      %v3246 = vld [vmem:[%s2914 + $0x24] sm:$0xe]
      %v3259 = vrot.slane %v3243, 5
      %v3260 = vrot.slane %v3259, 4
      %v3261 = vrot.slane %v3034, 5
      %v3262 = vsel %vm671, %v3260, %v3261
      %v3263 = vrot.slane %v3261, 4
      %v3264 = vrot.slane %v3035, 5
      %v3265 = vsel %vm671, %v3263, %v3264
      %v3266 = vrot.slane %v3244, 5
      %v3267 = vrot.slane %v3266, 4
      %v3268 = vrot.slane %v3037, 5
      %v3269 = vsel %vm671, %v3267, %v3268
      %v3270 = vrot.slane %v3268, 4
      %v3271 = vrot.slane %v3038, 5
      %v3272 = vsel %vm671, %v3270, %v3271
      %v3273 = vrot.slane %v3245, 5
      %v3274 = vrot.slane %v3273, 4
      %v3275 = vrot.slane %v3040, 5
      %v3276 = vsel %vm671, %v3274, %v3275
      %v3277 = vrot.slane %v3275, 4
      %v3278 = vrot.slane %v3041, 5
      %v3279 = vsel %vm671, %v3277, %v3278
      %v3280 = vrot.slane %v3246, 5
      %v3281 = vrot.slane %v3280, 4
      %v3282 = vrot.slane %v3043, 5
      %v3283 = vsel %vm671, %v3281, %v3282
      %v3284 = vrot.slane %v3282, 4
      %v3285 = vrot.slane %v3044, 5
      %v3286 = vsel %vm671, %v3284, %v3285
      %s3287 = scalar_lea.vmem %s2, 20
      %v3288 = vld [vmem:[%s3287] sm:$0xf]
      %v3289 = vunpack.c.l.b16 %v3262
      %v3290 = vunpack.c.l.b16 %v3265
      %v3291 = vunpack.c.l.b16 %v3269
      %v3292 = vunpack.c.l.b16 %v3272
      %v3293 = vunpack.c.l.b16 %v3276
      %v3294 = vunpack.c.l.b16 %v3279
      %v3295 = vunpack.c.l.b16 %v3283
      %v3296 = vunpack.c.l.b16 %v3286
      %v3297 = vpack.c.b16 %v3290, %v3289
      %v3298 = vpack.c.b16 %v3292, %v3291
      %v3299 = vpack.c.b16 %v3294, %v3293
      %v3300 = vpack.c.b16 %v3296, %v3295
      %v3302 = vsel %vm415, %v3297, 0
      %v3305 = vsel %vm415, %v3298, 0
      %v3308 = vsel %vm415, %v3299, 0
      %v3311 = vsel %vm415, %v3300, 0
      %v3314 = vsel %vm434, %v3288, 0
      %3316 = vmatprep.subr.bf16.mxu0 0
      %3317 = vmatpush1.bf16.msra.mxu0 %v3314
      %3318 = vmatprep.subr.bf16.mxu0 0
      %3319 = vmatpush1.bf16.msra.mxu0 0
      %3320 = vmatprep.subr.bf16.mxu0 0
      %3321 = vmatpush1.bf16.msra.mxu0 0
      %3322 = vmatprep.subr.bf16.mxu0 0
      %3323 = vmatpush1.bf16.msra.mxu0 0
      %3324 = vmatprep.subr.bf16.mxu0 0
      %3325 = vmatpush1.bf16.msra.mxu0 0
      %3326 = vmatprep.subr.bf16.mxu0 0
      %3327 = vmatpush1.bf16.msra.mxu0 0
      %3328 = vmatprep.subr.bf16.mxu0 0
      %3329 = vmatpush1.bf16.msra.mxu0 0
      %3330 = vmatprep.subr.bf16.mxu0 0
      %3331 = vmatpush1.bf16.msra.mxu0 0
      %3332 = vmatprep.subr.bf16.mxu0 0
      %3333 = vmatpush1.bf16.msra.mxu0 0
      %3334 = vmatprep.subr.bf16.mxu0 0
      %3335 = vmatpush1.bf16.msra.mxu0 0
      %3336 = vmatprep.subr.bf16.mxu0 0
      %3337 = vmatpush1.bf16.msra.mxu0 0
      %3338 = vmatprep.subr.bf16.mxu0 0
      %3339 = vmatpush1.bf16.msra.mxu0 0
      %3340 = vmatprep.subr.bf16.mxu0 0
      %3341 = vmatpush1.bf16.msra.mxu0 0
      %3342 = vmatprep.subr.bf16.mxu0 0
      %3343 = vmatpush1.bf16.msra.mxu0 0
      %3344 = vmatprep.subr.bf16.mxu0 0
      %3345 = vmatpush1.bf16.msra.mxu0 0
      %3346 = vmatprep.subr.bf16.mxu0 0
      %3347 = vmatpush1.bf16.msra.mxu0 0
      %3348 = vmatprep.mubr.bf16.mxu0 0
      %3349 = vmatmul.mubr.bf16.gmra.mrb[0].mxu0 %v3302
      %v3350 = vpop.f32.mrb[0].mxu0
      %v3351 = vadd.f32 0.0, %v3350
      %v3352 = vpop.f32.mrb[0].mxu0
      %v3353 = vpop.f32.mrb[0].mxu0
      %v3354 = vadd.f32 0.0, %v3353
      %v3355 = vpop.f32.mrb[0].mxu0
      %3356 = vmatprep.mubr.bf16.mxu0 0
      %3357 = vmatmul.mubr.bf16.gmra.mrb[0].mxu0 %v3305
      %v3358 = vpop.f32.mrb[0].mxu0
      %v3359 = vadd.f32 0.0, %v3358
      %v3360 = vpop.f32.mrb[0].mxu0
      %v3361 = vpop.f32.mrb[0].mxu0
      %v3362 = vadd.f32 0.0, %v3361
      %v3363 = vpop.f32.mrb[0].mxu0
      %3364 = vmatprep.mubr.bf16.mxu0 0
      %3365 = vmatmul.mubr.bf16.gmra.mrb[0].mxu0 %v3308
      %v3366 = vpop.f32.mrb[0].mxu0
      %v3367 = vadd.f32 0.0, %v3366
      %v3368 = vpop.f32.mrb[0].mxu0
      %v3369 = vpop.f32.mrb[0].mxu0
      %v3370 = vadd.f32 0.0, %v3369
      %v3371 = vpop.f32.mrb[0].mxu0
      %3372 = vmatprep.mubr.bf16.mxu0 0
      %3373 = vmatmul.mubr.bf16.gmra.mrb[0].mxu0 %v3311
      %v3374 = vpop.f32.mrb[0].mxu0
      %v3375 = vadd.f32 0.0, %v3374
      %v3376 = vpop.f32.mrb[0].mxu0
      %v3377 = vpop.f32.mrb[0].mxu0
      %v3378 = vadd.f32 0.0, %v3377
      %v3379 = vpop.f32.mrb[0].mxu0
      %3380 = vdwg.mxu0
      %v3381 = vadd.f32 %v3235, %v3351
      %v3382 = vadd.f32 %v3236, %v3354
      %v3383 = vadd.f32 %v3237, %v3359
      %v3384 = vadd.f32 %v3238, %v3362
      %v3385 = vadd.f32 %v3239, %v3367
      %v3386 = vadd.f32 %v3240, %v3370
      %v3387 = vadd.f32 %v3241, %v3375
      %v3388 = vadd.f32 %v3242, %v3378
      %s3389 = scalar_lea.vmem [#allocation2], 24
      %v3390 = vld [vmem:[%s3389] sm:$0xf]
      %v3391 = vld [vmem:[%s3389 + $0x4] sm:$0xf]
      %v3392 = vld [vmem:[%s3389 + $0xc] sm:$0xf]
      %v3393 = vld [vmem:[%s3389 + $0x10] sm:$0xf]
      %v3394 = vld [vmem:[%s3389 + $0x18] sm:$0xf]
      %v3395 = vld [vmem:[%s3389 + $0x1c] sm:$0xf]
      %v3396 = vld [vmem:[%s3389 + $0x24] sm:$0xf]
      %v3397 = vld [vmem:[%s3389 + $0x28] sm:$0xf]
      %s3398 = scalar_lea.vmem %s2, 24
      %v3399 = vld [vmem:[%s3398] sm:$0xf]
      %v3408 = vunpack.c.l.b16 %v3390
      %v3409 = vunpack.c.l.b16 %v3391
      %v3410 = vunpack.c.l.b16 %v3392
      %v3411 = vunpack.c.l.b16 %v3393
      %v3412 = vunpack.c.l.b16 %v3394
      %v3413 = vunpack.c.l.b16 %v3395
      %v3414 = vunpack.c.l.b16 %v3396
      %v3415 = vunpack.c.l.b16 %v3397
      %v3416 = vpack.c.b16 %v3409, %v3408
      %v3417 = vpack.c.b16 %v3411, %v3410
      %v3418 = vpack.c.b16 %v3413, %v3412
      %v3419 = vpack.c.b16 %v3415, %v3414
      %v3421 = vsel %vm415, %v3416, 0
      %v3424 = vsel %vm415, %v3417, 0
      %v3427 = vsel %vm415, %v3418, 0
      %v3430 = vsel %vm415, %v3419, 0
      %v3433 = vsel %vm434, %v3399, 0
      %3435 = vmatprep.subr.bf16.mxu0 0
      %3436 = vmatpush1.bf16.msra.mxu0 %v3433
      %3437 = vmatprep.subr.bf16.mxu0 0
      %3438 = vmatpush1.bf16.msra.mxu0 0
      %3439 = vmatprep.subr.bf16.mxu0 0
      %3440 = vmatpush1.bf16.msra.mxu0 0
      %3441 = vmatprep.subr.bf16.mxu0 0
      %3442 = vmatpush1.bf16.msra.mxu0 0
      %3443 = vmatprep.subr.bf16.mxu0 0
      %3444 = vmatpush1.bf16.msra.mxu0 0
      %3445 = vmatprep.subr.bf16.mxu0 0
      %3446 = vmatpush1.bf16.msra.mxu0 0
      %3447 = vmatprep.subr.bf16.mxu0 0
      %3448 = vmatpush1.bf16.msra.mxu0 0
      %3449 = vmatprep.subr.bf16.mxu0 0
      %3450 = vmatpush1.bf16.msra.mxu0 0
      %3451 = vmatprep.subr.bf16.mxu0 0
      %3452 = vmatpush1.bf16.msra.mxu0 0
      %3453 = vmatprep.subr.bf16.mxu0 0
      %3454 = vmatpush1.bf16.msra.mxu0 0
      %3455 = vmatprep.subr.bf16.mxu0 0
      %3456 = vmatpush1.bf16.msra.mxu0 0
      %3457 = vmatprep.subr.bf16.mxu0 0
      %3458 = vmatpush1.bf16.msra.mxu0 0
      %3459 = vmatprep.subr.bf16.mxu0 0
      %3460 = vmatpush1.bf16.msra.mxu0 0
      %3461 = vmatprep.subr.bf16.mxu0 0
      %3462 = vmatpush1.bf16.msra.mxu0 0
      %3463 = vmatprep.subr.bf16.mxu0 0
      %3464 = vmatpush1.bf16.msra.mxu0 0
      %3465 = vmatprep.subr.bf16.mxu0 0
      %3466 = vmatpush1.bf16.msra.mxu0 0
      %3467 = vmatprep.mubr.bf16.mxu0 0
      %3468 = vmatmul.mubr.bf16.gmra.mrb[0].mxu0 %v3421
      %v3469 = vpop.f32.mrb[0].mxu0
      %v3470 = vadd.f32 0.0, %v3469
      %v3471 = vpop.f32.mrb[0].mxu0
      %v3472 = vpop.f32.mrb[0].mxu0
      %v3473 = vadd.f32 0.0, %v3472
      %v3474 = vpop.f32.mrb[0].mxu0
      %3475 = vmatprep.mubr.bf16.mxu0 0
      %3476 = vmatmul.mubr.bf16.gmra.mrb[0].mxu0 %v3424
      %v3477 = vpop.f32.mrb[0].mxu0
      %v3478 = vadd.f32 0.0, %v3477
      %v3479 = vpop.f32.mrb[0].mxu0
      %v3480 = vpop.f32.mrb[0].mxu0
      %v3481 = vadd.f32 0.0, %v3480
      %v3482 = vpop.f32.mrb[0].mxu0
      %3483 = vmatprep.mubr.bf16.mxu0 0
      %3484 = vmatmul.mubr.bf16.gmra.mrb[0].mxu0 %v3427
      %v3485 = vpop.f32.mrb[0].mxu0
      %v3486 = vadd.f32 0.0, %v3485
      %v3487 = vpop.f32.mrb[0].mxu0
      %v3488 = vpop.f32.mrb[0].mxu0
      %v3489 = vadd.f32 0.0, %v3488
      %v3490 = vpop.f32.mrb[0].mxu0
      %3491 = vmatprep.mubr.bf16.mxu0 0
      %3492 = vmatmul.mubr.bf16.gmra.mrb[0].mxu0 %v3430
      %v3493 = vpop.f32.mrb[0].mxu0
      %v3494 = vadd.f32 0.0, %v3493
      %v3495 = vpop.f32.mrb[0].mxu0
      %v3496 = vpop.f32.mrb[0].mxu0
      %v3497 = vadd.f32 0.0, %v3496
      %v3498 = vpop.f32.mrb[0].mxu0
      %3499 = vdwg.mxu0
      %v3500 = vadd.f32 %v3381, %v3470
      %v3501 = vadd.f32 %v3382, %v3473
      %v3502 = vadd.f32 %v3383, %v3478
      %v3503 = vadd.f32 %v3384, %v3481
      %v3504 = vadd.f32 %v3385, %v3486
      %v3505 = vadd.f32 %v3386, %v3489
      %v3506 = vadd.f32 %v3387, %v3494
      %v3507 = vadd.f32 %v3388, %v3497
      %v3508 = vld [vmem:[%s3389] sm:$0xf]
      %v3509 = vld [vmem:[%s3389 + $0x4] sm:$0xf]
      %v3510 = vld [vmem:[%s3389 + $0x8] sm:$0x1]
      %v3511 = vld [vmem:[%s3389 + $0xc] sm:$0xf]
      %v3512 = vld [vmem:[%s3389 + $0x10] sm:$0xf]
      %v3513 = vld [vmem:[%s3389 + $0x14] sm:$0x1]
      %v3514 = vld [vmem:[%s3389 + $0x18] sm:$0xf]
      %v3515 = vld [vmem:[%s3389 + $0x1c] sm:$0xf]
      %v3516 = vld [vmem:[%s3389 + $0x20] sm:$0x1]
      %v3517 = vld [vmem:[%s3389 + $0x24] sm:$0xf]
      %v3518 = vld [vmem:[%s3389 + $0x28] sm:$0xf]
      %v3519 = vld [vmem:[%s3389 + $0x2c] sm:$0x1]
      %v3521 = vshrl.u32 %v3508, 16
      %v3523 = vrot.slane %v3521, 4
      %v3524 = vshll.u32 %v3508, 16
      %v3526 = vrot.slane %v3524, 5
      %v3527 = vor.u32 %v3523, %v3526
      %v3528 = vrot.slane %v3527, 4
      %v3530 = vshll.u32 %v3509, 16
      %v3532 = vrot.slane %v3530, 5
      %v3533 = vsel %vm250, %v3528, %v3532
      %v3534 = vshrl.u32 %v3509, 16
      %v3536 = vrot.slane %v3534, 4
      %v3537 = vor.u32 %v3536, %v3532
      %v3538 = vrot.slane %v3537, 4
      %v3540 = vshll.u32 %v3510, 16
      %v3542 = vrot.slane %v3540, 5
      %v3543 = vsel %vm250, %v3538, %v3542
      %v3545 = vshrl.u32 %v3511, 16
      %v3547 = vrot.slane %v3545, 4
      %v3548 = vshll.u32 %v3511, 16
      %v3550 = vrot.slane %v3548, 5
      %v3551 = vor.u32 %v3547, %v3550
      %v3552 = vrot.slane %v3551, 4
      %v3554 = vshll.u32 %v3512, 16
      %v3556 = vrot.slane %v3554, 5
      %v3557 = vsel %vm250, %v3552, %v3556
      %v3558 = vshrl.u32 %v3512, 16
      %v3560 = vrot.slane %v3558, 4
      %v3561 = vor.u32 %v3560, %v3556
      %v3562 = vrot.slane %v3561, 4
      %v3564 = vshll.u32 %v3513, 16
      %v3566 = vrot.slane %v3564, 5
      %v3567 = vsel %vm250, %v3562, %v3566
      %v3569 = vshrl.u32 %v3514, 16
      %v3571 = vrot.slane %v3569, 4
      %v3572 = vshll.u32 %v3514, 16
      %v3574 = vrot.slane %v3572, 5
      %v3575 = vor.u32 %v3571, %v3574
      %v3576 = vrot.slane %v3575, 4
      %v3578 = vshll.u32 %v3515, 16
      %v3580 = vrot.slane %v3578, 5
      %v3581 = vsel %vm250, %v3576, %v3580
      %v3582 = vshrl.u32 %v3515, 16
      %v3584 = vrot.slane %v3582, 4
      %v3585 = vor.u32 %v3584, %v3580
      %v3586 = vrot.slane %v3585, 4
      %v3588 = vshll.u32 %v3516, 16
      %v3590 = vrot.slane %v3588, 5
      %v3591 = vsel %vm250, %v3586, %v3590
      %v3593 = vshrl.u32 %v3517, 16
      %v3595 = vrot.slane %v3593, 4
      %v3596 = vshll.u32 %v3517, 16
      %v3598 = vrot.slane %v3596, 5
      %v3599 = vor.u32 %v3595, %v3598
      %v3600 = vrot.slane %v3599, 4
      %v3602 = vshll.u32 %v3518, 16
      %v3604 = vrot.slane %v3602, 5
      %v3605 = vsel %vm250, %v3600, %v3604
      %v3606 = vshrl.u32 %v3518, 16
      %v3608 = vrot.slane %v3606, 4
      %v3609 = vor.u32 %v3608, %v3604
      %v3610 = vrot.slane %v3609, 4
      %v3612 = vshll.u32 %v3519, 16
      %v3614 = vrot.slane %v3612, 5
      %v3615 = vsel %vm250, %v3610, %v3614
      %s3616 = scalar_lea.vmem %s2, 28
      %v3617 = vld [vmem:[%s3616] sm:$0xf]
      %v3618 = vunpack.c.l.b16 %v3533
      %v3619 = vunpack.c.l.b16 %v3543
      %v3620 = vunpack.c.l.b16 %v3557
      %v3621 = vunpack.c.l.b16 %v3567
      %v3622 = vunpack.c.l.b16 %v3581
      %v3623 = vunpack.c.l.b16 %v3591
      %v3624 = vunpack.c.l.b16 %v3605
      %v3625 = vunpack.c.l.b16 %v3615
      %v3626 = vpack.c.b16 %v3619, %v3618
      %v3627 = vpack.c.b16 %v3621, %v3620
      %v3628 = vpack.c.b16 %v3623, %v3622
      %v3629 = vpack.c.b16 %v3625, %v3624
      %v3631 = vsel %vm415, %v3626, 0
      %v3634 = vsel %vm415, %v3627, 0
      %v3637 = vsel %vm415, %v3628, 0
      %v3640 = vsel %vm415, %v3629, 0
      %v3643 = vsel %vm434, %v3617, 0
      %3645 = vmatprep.subr.bf16.mxu0 0
      %3646 = vmatpush1.bf16.msra.mxu0 %v3643
      %3647 = vmatprep.subr.bf16.mxu0 0
      %3648 = vmatpush1.bf16.msra.mxu0 0
      %3649 = vmatprep.subr.bf16.mxu0 0
      %3650 = vmatpush1.bf16.msra.mxu0 0
      %3651 = vmatprep.subr.bf16.mxu0 0
      %3652 = vmatpush1.bf16.msra.mxu0 0
      %3653 = vmatprep.subr.bf16.mxu0 0
      %3654 = vmatpush1.bf16.msra.mxu0 0
      %3655 = vmatprep.subr.bf16.mxu0 0
      %3656 = vmatpush1.bf16.msra.mxu0 0
      %3657 = vmatprep.subr.bf16.mxu0 0
      %3658 = vmatpush1.bf16.msra.mxu0 0
      %3659 = vmatprep.subr.bf16.mxu0 0
      %3660 = vmatpush1.bf16.msra.mxu0 0
      %3661 = vmatprep.subr.bf16.mxu0 0
      %3662 = vmatpush1.bf16.msra.mxu0 0
      %3663 = vmatprep.subr.bf16.mxu0 0
      %3664 = vmatpush1.bf16.msra.mxu0 0
      %3665 = vmatprep.subr.bf16.mxu0 0
      %3666 = vmatpush1.bf16.msra.mxu0 0
      %3667 = vmatprep.subr.bf16.mxu0 0
      %3668 = vmatpush1.bf16.msra.mxu0 0
      %3669 = vmatprep.subr.bf16.mxu0 0
      %3670 = vmatpush1.bf16.msra.mxu0 0
      %3671 = vmatprep.subr.bf16.mxu0 0
      %3672 = vmatpush1.bf16.msra.mxu0 0
      %3673 = vmatprep.subr.bf16.mxu0 0
      %3674 = vmatpush1.bf16.msra.mxu0 0
      %3675 = vmatprep.subr.bf16.mxu0 0
      %3676 = vmatpush1.bf16.msra.mxu0 0
      %3677 = vmatprep.mubr.bf16.mxu0 0
      %3678 = vmatmul.mubr.bf16.gmra.mrb[0].mxu0 %v3631
      %v3679 = vpop.f32.mrb[0].mxu0
      %v3680 = vadd.f32 0.0, %v3679
      %v3681 = vpop.f32.mrb[0].mxu0
      %v3682 = vpop.f32.mrb[0].mxu0
      %v3683 = vadd.f32 0.0, %v3682
      %v3684 = vpop.f32.mrb[0].mxu0
      %3685 = vmatprep.mubr.bf16.mxu0 0
      %3686 = vmatmul.mubr.bf16.gmra.mrb[0].mxu0 %v3634
      %v3687 = vpop.f32.mrb[0].mxu0
      %v3688 = vadd.f32 0.0, %v3687
      %v3689 = vpop.f32.mrb[0].mxu0
      %v3690 = vpop.f32.mrb[0].mxu0
      %v3691 = vadd.f32 0.0, %v3690
      %v3692 = vpop.f32.mrb[0].mxu0
      %3693 = vmatprep.mubr.bf16.mxu0 0
      %3694 = vmatmul.mubr.bf16.gmra.mrb[0].mxu0 %v3637
      %v3695 = vpop.f32.mrb[0].mxu0
      %v3696 = vadd.f32 0.0, %v3695
      %v3697 = vpop.f32.mrb[0].mxu0
      %v3698 = vpop.f32.mrb[0].mxu0
      %v3699 = vadd.f32 0.0, %v3698
      %v3700 = vpop.f32.mrb[0].mxu0
      %3701 = vmatprep.mubr.bf16.mxu0 0
      %3702 = vmatmul.mubr.bf16.gmra.mrb[0].mxu0 %v3640
      %v3703 = vpop.f32.mrb[0].mxu0
      %v3704 = vadd.f32 0.0, %v3703
      %v3705 = vpop.f32.mrb[0].mxu0
      %v3706 = vpop.f32.mrb[0].mxu0
      %v3707 = vadd.f32 0.0, %v3706
      %v3708 = vpop.f32.mrb[0].mxu0
      %3709 = vdwg.mxu0
      %v3710 = vadd.f32 %v3500, %v3680
      %v3711 = vadd.f32 %v3501, %v3683
      %v3712 = vadd.f32 %v3502, %v3688
      %v3713 = vadd.f32 %v3503, %v3691
      %v3714 = vadd.f32 %v3504, %v3696
      %v3715 = vadd.f32 %v3505, %v3699
      %v3716 = vadd.f32 %v3506, %v3704
      %v3717 = vadd.f32 %v3507, %v3707
      %v3718 = vld [vmem:[%s3389] sm:$0xe]
      %v3719 = vld [vmem:[%s3389 + $0xc] sm:$0xe]
      %v3720 = vld [vmem:[%s3389 + $0x18] sm:$0xe]
      %v3721 = vld [vmem:[%s3389 + $0x24] sm:$0xe]
      %v3734 = vrot.slane %v3718, 5
      %v3735 = vrot.slane %v3734, 4
      %v3736 = vrot.slane %v3509, 5
      %v3737 = vsel %vm671, %v3735, %v3736
      %v3738 = vrot.slane %v3736, 4
      %v3739 = vrot.slane %v3510, 5
      %v3740 = vsel %vm671, %v3738, %v3739
      %v3741 = vrot.slane %v3719, 5
      %v3742 = vrot.slane %v3741, 4
      %v3743 = vrot.slane %v3512, 5
      %v3744 = vsel %vm671, %v3742, %v3743
      %v3745 = vrot.slane %v3743, 4
      %v3746 = vrot.slane %v3513, 5
      %v3747 = vsel %vm671, %v3745, %v3746
      %v3748 = vrot.slane %v3720, 5
      %v3749 = vrot.slane %v3748, 4
      %v3750 = vrot.slane %v3515, 5
      %v3751 = vsel %vm671, %v3749, %v3750
      %v3752 = vrot.slane %v3750, 4
      %v3753 = vrot.slane %v3516, 5
      %v3754 = vsel %vm671, %v3752, %v3753
      %v3755 = vrot.slane %v3721, 5
      %v3756 = vrot.slane %v3755, 4
      %v3757 = vrot.slane %v3518, 5
      %v3758 = vsel %vm671, %v3756, %v3757
      %v3759 = vrot.slane %v3757, 4
      %v3760 = vrot.slane %v3519, 5
      %v3761 = vsel %vm671, %v3759, %v3760
      %s3762 = scalar_lea.vmem %s2, 32
      %v3763 = vld [vmem:[%s3762] sm:$0xf]
      %v3764 = vunpack.c.l.b16 %v3737
      %v3765 = vunpack.c.l.b16 %v3740
      %v3766 = vunpack.c.l.b16 %v3744
      %v3767 = vunpack.c.l.b16 %v3747
      %v3768 = vunpack.c.l.b16 %v3751
      %v3769 = vunpack.c.l.b16 %v3754
      %v3770 = vunpack.c.l.b16 %v3758
      %v3771 = vunpack.c.l.b16 %v3761
      %v3772 = vpack.c.b16 %v3765, %v3764
      %v3773 = vpack.c.b16 %v3767, %v3766
      %v3774 = vpack.c.b16 %v3769, %v3768
      %v3775 = vpack.c.b16 %v3771, %v3770
      %v3777 = vsel %vm415, %v3772, 0
      %v3780 = vsel %vm415, %v3773, 0
      %v3783 = vsel %vm415, %v3774, 0
      %v3786 = vsel %vm415, %v3775, 0
      %v3789 = vsel %vm434, %v3763, 0
      %3791 = vmatprep.subr.bf16.mxu0 0
      %3792 = vmatpush1.bf16.msra.mxu0 %v3789
      %3793 = vmatprep.subr.bf16.mxu0 0
      %3794 = vmatpush1.bf16.msra.mxu0 0
      %3795 = vmatprep.subr.bf16.mxu0 0
      %3796 = vmatpush1.bf16.msra.mxu0 0
      %3797 = vmatprep.subr.bf16.mxu0 0
      %3798 = vmatpush1.bf16.msra.mxu0 0
      %3799 = vmatprep.subr.bf16.mxu0 0
      %3800 = vmatpush1.bf16.msra.mxu0 0
      %3801 = vmatprep.subr.bf16.mxu0 0
      %3802 = vmatpush1.bf16.msra.mxu0 0
      %3803 = vmatprep.subr.bf16.mxu0 0
      %3804 = vmatpush1.bf16.msra.mxu0 0
      %3805 = vmatprep.subr.bf16.mxu0 0
      %3806 = vmatpush1.bf16.msra.mxu0 0
      %3807 = vmatprep.subr.bf16.mxu0 0
      %3808 = vmatpush1.bf16.msra.mxu0 0
      %3809 = vmatprep.subr.bf16.mxu0 0
      %3810 = vmatpush1.bf16.msra.mxu0 0
      %3811 = vmatprep.subr.bf16.mxu0 0
      %3812 = vmatpush1.bf16.msra.mxu0 0
      %3813 = vmatprep.subr.bf16.mxu0 0
      %3814 = vmatpush1.bf16.msra.mxu0 0
      %3815 = vmatprep.subr.bf16.mxu0 0
      %3816 = vmatpush1.bf16.msra.mxu0 0
      %3817 = vmatprep.subr.bf16.mxu0 0
      %3818 = vmatpush1.bf16.msra.mxu0 0
      %3819 = vmatprep.subr.bf16.mxu0 0
      %3820 = vmatpush1.bf16.msra.mxu0 0
      %3821 = vmatprep.subr.bf16.mxu0 0
      %3822 = vmatpush1.bf16.msra.mxu0 0
      %3823 = vmatprep.mubr.bf16.mxu0 0
      %3824 = vmatmul.mubr.bf16.gmra.mrb[0].mxu0 %v3777
      %v3825 = vpop.f32.mrb[0].mxu0
      %v3826 = vadd.f32 0.0, %v3825
      %v3827 = vpop.f32.mrb[0].mxu0
      %v3828 = vpop.f32.mrb[0].mxu0
      %v3829 = vadd.f32 0.0, %v3828
      %v3830 = vpop.f32.mrb[0].mxu0
      %3831 = vmatprep.mubr.bf16.mxu0 0
      %3832 = vmatmul.mubr.bf16.gmra.mrb[0].mxu0 %v3780
      %v3833 = vpop.f32.mrb[0].mxu0
      %v3834 = vadd.f32 0.0, %v3833
      %v3835 = vpop.f32.mrb[0].mxu0
      %v3836 = vpop.f32.mrb[0].mxu0
      %v3837 = vadd.f32 0.0, %v3836
      %v3838 = vpop.f32.mrb[0].mxu0
      %3839 = vmatprep.mubr.bf16.mxu0 0
      %3840 = vmatmul.mubr.bf16.gmra.mrb[0].mxu0 %v3783
      %v3841 = vpop.f32.mrb[0].mxu0
      %v3842 = vadd.f32 0.0, %v3841
      %v3843 = vpop.f32.mrb[0].mxu0
      %v3844 = vpop.f32.mrb[0].mxu0
      %v3845 = vadd.f32 0.0, %v3844
      %v3846 = vpop.f32.mrb[0].mxu0
      %3847 = vmatprep.mubr.bf16.mxu0 0
      %3848 = vmatmul.mubr.bf16.gmra.mrb[0].mxu0 %v3786
      %v3849 = vpop.f32.mrb[0].mxu0
      %v3850 = vadd.f32 0.0, %v3849
      %v3851 = vpop.f32.mrb[0].mxu0
      %v3852 = vpop.f32.mrb[0].mxu0
      %v3853 = vadd.f32 0.0, %v3852
      %v3854 = vpop.f32.mrb[0].mxu0
      %3855 = vdwg.mxu0
      %v3856 = vadd.f32 %v3710, %v3826
      %v3857 = vadd.f32 %v3711, %v3829
      %v3858 = vadd.f32 %v3712, %v3834
      %v3859 = vadd.f32 %v3713, %v3837
      %v3860 = vadd.f32 %v3714, %v3842
      %v3861 = vadd.f32 %v3715, %v3845
      %v3862 = vadd.f32 %v3716, %v3850
      %v3863 = vadd.f32 %v3717, %v3853
      %v3864 = vlaneseq
      %v3865 = vshrl.u32 %v3864, 7
      %v3866 = vsub.s32 2, %v3865
      %v3867 = vrot.slane %v224, %v3866
      %v3868 = vmul.f32 %v3856, %v3867
      %v3869 = vmul.f32 %v3857, %v3867
      %v3870 = vmul.f32 %v3858, %v3867
      %v3871 = vmul.f32 %v3859, %v3867
      %v3872 = vmul.f32 %v3860, %v3867
      %v3873 = vmul.f32 %v3861, %v3867
      %v3874 = vmul.f32 %v3862, %v3867
      %v3875 = vmul.f32 %v3863, %v3867
      %v3876 = vlaneseq
      %v3877 = vshrl.u32 %v3876, 7
      %v3878 = vsub.s32 3, %v3877
      %v3879 = vrot.slane %v224, %v3878
      %v3880 = vadd.f32 %v3868, %v3879
      %v3881 = vadd.f32 %v3869, %v3879
      %v3882 = vadd.f32 %v3870, %v3879
      %v3883 = vadd.f32 %v3871, %v3879
      %v3884 = vadd.f32 %v3872, %v3879
      %v3885 = vadd.f32 %v3873, %v3879
      %v3886 = vadd.f32 %v3874, %v3879
      %v3887 = vadd.f32 %v3875, %v3879
      %v3888 = vld [vmem:[%s1509] sm:$0xf]
      %v3889 = vld [vmem:[%s1509 + $0x4] sm:$0xf]
      %v3890 = vld [vmem:[%s1509 + $0x8] sm:$0x1]
      %v3891 = vld [vmem:[%s1509 + $0xc] sm:$0xf]
      %v3892 = vld [vmem:[%s1509 + $0x10] sm:$0xf]
      %v3893 = vld [vmem:[%s1509 + $0x14] sm:$0x1]
      %v3894 = vld [vmem:[%s1509 + $0x18] sm:$0xf]
      %v3895 = vld [vmem:[%s1509 + $0x1c] sm:$0xf]
      %v3896 = vld [vmem:[%s1509 + $0x20] sm:$0x1]
      %v3897 = vld [vmem:[%s1509 + $0x24] sm:$0xf]
      %v3898 = vld [vmem:[%s1509 + $0x28] sm:$0xf]
      %v3899 = vld [vmem:[%s1509 + $0x2c] sm:$0x1]
      %v3901 = vshrl.u32 %v3888, 16
      %v3903 = vrot.slane %v3901, 4
      %v3904 = vshll.u32 %v3888, 16
      %v3906 = vrot.slane %v3904, 5
      %v3907 = vor.u32 %v3903, %v3906
      %v3908 = vrot.slane %v3907, 4
      %v3910 = vshll.u32 %v3889, 16
      %v3912 = vrot.slane %v3910, 5
      %v3913 = vsel %vm250, %v3908, %v3912
      %v3914 = vshrl.u32 %v3889, 16
      %v3916 = vrot.slane %v3914, 4
      %v3917 = vor.u32 %v3916, %v3912
      %v3918 = vrot.slane %v3917, 4
      %v3920 = vshll.u32 %v3890, 16
      %v3922 = vrot.slane %v3920, 5
      %v3923 = vsel %vm250, %v3918, %v3922
      %v3925 = vshrl.u32 %v3891, 16
      %v3927 = vrot.slane %v3925, 4
      %v3928 = vshll.u32 %v3891, 16
      %v3930 = vrot.slane %v3928, 5
      %v3931 = vor.u32 %v3927, %v3930
      %v3932 = vrot.slane %v3931, 4
      %v3934 = vshll.u32 %v3892, 16
      %v3936 = vrot.slane %v3934, 5
      %v3937 = vsel %vm250, %v3932, %v3936
      %v3938 = vshrl.u32 %v3892, 16
      %v3940 = vrot.slane %v3938, 4
      %v3941 = vor.u32 %v3940, %v3936
      %v3942 = vrot.slane %v3941, 4
      %v3944 = vshll.u32 %v3893, 16
      %v3946 = vrot.slane %v3944, 5
      %v3947 = vsel %vm250, %v3942, %v3946
      %v3949 = vshrl.u32 %v3894, 16
      %v3951 = vrot.slane %v3949, 4
      %v3952 = vshll.u32 %v3894, 16
      %v3954 = vrot.slane %v3952, 5
      %v3955 = vor.u32 %v3951, %v3954
      %v3956 = vrot.slane %v3955, 4
      %v3958 = vshll.u32 %v3895, 16
      %v3960 = vrot.slane %v3958, 5
      %v3961 = vsel %vm250, %v3956, %v3960
      %v3962 = vshrl.u32 %v3895, 16
      %v3964 = vrot.slane %v3962, 4
      %v3965 = vor.u32 %v3964, %v3960
      %v3966 = vrot.slane %v3965, 4
      %v3968 = vshll.u32 %v3896, 16
      %v3970 = vrot.slane %v3968, 5
      %v3971 = vsel %vm250, %v3966, %v3970
      %v3973 = vshrl.u32 %v3897, 16
      %v3975 = vrot.slane %v3973, 4
      %v3976 = vshll.u32 %v3897, 16
      %v3978 = vrot.slane %v3976, 5
      %v3979 = vor.u32 %v3975, %v3978
      %v3980 = vrot.slane %v3979, 4
      %v3982 = vshll.u32 %v3898, 16
      %v3984 = vrot.slane %v3982, 5
      %v3985 = vsel %vm250, %v3980, %v3984
      %v3986 = vshrl.u32 %v3898, 16
      %v3988 = vrot.slane %v3986, 4
      %v3989 = vor.u32 %v3988, %v3984
      %v3990 = vrot.slane %v3989, 4
      %v3992 = vshll.u32 %v3899, 16
      %v3994 = vrot.slane %v3992, 5
      %v3995 = vsel %vm250, %v3990, %v3994
      %v4004 = vunpack.c.l.bf16 %v3913
      %v4005 = vunpack.c.l.bf16 %v3923
      %v4006 = vunpack.c.l.bf16 %v3937
      %v4007 = vunpack.c.l.bf16 %v3947
      %v4008 = vunpack.c.l.bf16 %v3961
      %v4009 = vunpack.c.l.bf16 %v3971
      %v4010 = vunpack.c.l.bf16 %v3985
      %v4011 = vunpack.c.l.bf16 %v3995
      %v4012 = vadd.f32 %v3880, %v4004
      %v4013 = vadd.f32 %v3881, %v4005
      %v4014 = vadd.f32 %v3882, %v4006
      %v4015 = vadd.f32 %v3883, %v4007
      %v4016 = vadd.f32 %v3884, %v4008
      %v4017 = vadd.f32 %v3885, %v4009
      %v4018 = vadd.f32 %v3886, %v4010
      %v4019 = vadd.f32 %v3887, %v4011
      %v4020 = vmax.f32 %v4012, 0.0
      %v4021 = vmax.f32 %v4013, 0.0
      %v4022 = vmax.f32 %v4014, 0.0
      %v4023 = vmax.f32 %v4015, 0.0
      %v4024 = vmax.f32 %v4016, 0.0
      %v4025 = vmax.f32 %v4017, 0.0
      %v4026 = vmax.f32 %v4018, 0.0
      %v4027 = vmax.f32 %v4019, 0.0
      %v4028 = vpack.c.bf16 %v4021, %v4020
      %v4029 = vpack.c.bf16 %v4023, %v4022
      %v4030 = vpack.c.bf16 %v4025, %v4024
      %v4031 = vpack.c.bf16 %v4027, %v4026
      %v4036 = vunpack.c.l.b16 %v4028
      %v4037 = vunpack.c.h.b16 %v4028
      %v4038 = vunpack.c.l.b16 %v4029
      %v4039 = vunpack.c.h.b16 %v4029
      %v4040 = vunpack.c.l.b16 %v4030
      %v4041 = vunpack.c.h.b16 %v4030
      %v4042 = vunpack.c.l.b16 %v4031
      %v4043 = vunpack.c.h.b16 %v4031
      %v4044 = vpack.c.b16 %v4036, %v4036
      %v4045 = vpack.c.b16 %v4037, %v4037
      %v4046 = vpack.c.b16 %v4038, %v4038
      %v4047 = vpack.c.b16 %v4039, %v4039
      %v4048 = vpack.c.b16 %v4040, %v4040
      %v4049 = vpack.c.b16 %v4041, %v4041
      %v4050 = vpack.c.b16 %v4042, %v4042
      %v4051 = vpack.c.b16 %v4043, %v4043
      %4060 = vst.msk [vmem:[%s221] sm:$0xf] %vm2373, %v4044
      %4061 = vst.msk [vmem:[%s221 + $0x4] sm:$0xf] %vm2373, %v4045
      %4062 = vst.msk [vmem:[%s221 + $0x8] sm:$0xf] %vm2373, %v4046
      %4063 = vst.msk [vmem:[%s221 + $0xc] sm:$0xf] %vm2373, %v4047
      %4064 = vst.msk [vmem:[%s221 + $0x10] sm:$0xf] %vm2373, %v4048
      %4065 = vst.msk [vmem:[%s221 + $0x14] sm:$0xf] %vm2373, %v4049
      %4066 = vst.msk [vmem:[%s221 + $0x18] sm:$0xf] %vm2373, %v4050
      %4067 = vst.msk [vmem:[%s221 + $0x1c] sm:$0xf] %vm2373, %v4051
      %s4068 = smul.u32 4, %s20
      %p4069 = scmp.lt.s32.totalorder %s19, 1
      %s4070 = scalar_select %p4069, %s19, 1
      %p4071 = scmp.lt.s32.totalorder %s4068, 15
      %s4072 = scalar_select %p4071, %s4068, 15
      %s4073 = smul.addr %s4072, 2
      %s4074 = smul.addr %s4070, 32
      %s4075 = sadd.s32 %s4073, %s4074
      %s4076 = smul.addr %s4075, 4
      %s4077 = scalar_lea.vmem %s4, %s4076
      // Predicated region
      $region45: #{tpu_custom_call.1} parent=35 // pred_check
        %p4078 = pneg %p136
      $region46: #{tpu_custom_call.1} parent=35 // pred_check_branch
        %4080 = sbr.rel (%p4078) target = $region48
      $region47: #{tpu_custom_call.1} parent=35 // pred_region
        %s4081 = smul.u32 4, %s20
      $region48: #{tpu_custom_call.1} parent=35 // pred_fallthru
        _
    $region36: #{tpu_custom_call.1} parent=5 // pred_fallthru
      _
    %p4082 = scmp.le.s32.totalorder 2, %s10
    // Predicated region
    $region49: #{tpu_custom_call.1} parent=5 // pred_check
      %p4083 = pneg %p4082
    $region50: #{tpu_custom_call.1} parent=5 // pred_check_branch
      %4085 = sbr.rel (%p4083) target = $region52
    $region51: #{tpu_custom_call.1} parent=5 // pred_region
      %s4086 = ssub.s32 %s10, 2
      // Predicated region
      $region53: #{tpu_custom_call.1} parent=51 // pred_check
        %p4087 = pneg %p142
      $region54: #{tpu_custom_call.1} parent=51 // pred_check_branch
        %4089 = sbr.rel (%p4087) target = $region56
      $region55: #{tpu_custom_call.1} parent=51 // pred_region
        %s4090 = smul.u32 4, %s22
        %p4091 = scmp.lt.s32.totalorder %s21, 1
        %s4092 = scalar_select %p4091, %s21, 1
        %p4093 = scmp.lt.s32.totalorder %s4090, 15
        %s4094 = scalar_select %p4093, %s4090, 15
        %s4095 = smul.addr %s4094, 2
        %s4096 = smul.addr %s4092, 32
        %s4097 = sadd.s32 %s4095, %s4096
        %s4098 = smul.addr %s4097, 4
        %s4099 = scalar_lea.vmem %s4, %s4098
      $region56: #{tpu_custom_call.1} parent=51 // pred_fallthru
        _
    $region52: #{tpu_custom_call.1} parent=5 // pred_fallthru
      _
  $region6: #{tpu_custom_call.1} parent=0 // loop_footer
    %s14 = sadd.s32 1, %s10
  $region7: #{tpu_custom_call.1} parent=0 // loop_footer_branch
    %9 = sbr.rel target = $region3
  $region8: #{tpu_custom_call.1} parent=0 // loop_exit
    _

</llo_original>
